<compile_context>
chip_gen: v6e
topology: v6e:2x2x1
jax: 0.10.0
libtpu: 0.0.40
codegen_flags: <defaults>
</compile_context>

<pallas_src>
import jax
import jax.numpy as jnp
from jax import lax
from jax.experimental import pallas as pl
from jax.experimental.pallas import tpu as pltpu

EPS = 1e-5                 # PyTorch LayerNorm default eps
S = 64                     # sequence length is hard-coded to 8*8 in the module
MXU_DTYPE = jnp.bfloat16   # matmul-operand dtype (f32 accumulation everywhere)


def _layernorm(x, gamma, beta):
    """LayerNorm over the last dim. Works for 2-D (in-kernel) and 3-D (reference)."""
    mu = jnp.mean(x, axis=-1, keepdims=True)
    xc = x - mu
    var = jnp.mean(xc * xc, axis=-1, keepdims=True)
    return xc * lax.rsqrt(var + EPS) * gamma + beta


def _gelu(x):
    return jax.nn.gelu(x, approximate=True)


# ---------------------------------------------------------------------------
# Pallas kernels
# ---------------------------------------------------------------------------
def _mixer_fused_kernel(x_ref, pw_ref, pb_ref,
                        g1_ref, b1_ref, wt1_ref, bt1_ref, wt2_ref, bt2_ref,
                        g2_ref, b2_ref, wc1_ref, bc1_ref, wc2_ref, bc2_ref,
                        lng_ref, lnb_ref, p1w_ref, p1b_ref,
                        xln_ref, pol_ref):
    """proj_in + all mixer blocks + final LN + policy head for ONE batch element."""
    num_blocks = wt1_ref.shape[0]
    mxu_dt = wt1_ref.dtype

    # proj_in: 1x1 conv with K=2 expanded as two broadcast FMAs (MXU would waste
    # 126/128 of its columns on K=2).
    xt = x_ref[0]                                                  # (S, 2) f32
    pw = pw_ref[...]                                               # (2, E) f32
    a = xt[:, 0:1] * pw[0:1, :] + xt[:, 1:2] * pw[1:2, :] + pb_ref[...]   # (S, E)

    for n in range(num_blocks):                                    # static unroll
        # --- LayerNorm 1 + token-mixing MLP in transposed form (no transposes):
        #   h   = W1 @ y        : (T, S) @ (S, E) -> (T, E)
        #   tok = W2 @ gelu(h)  : (S, T) @ (T, E) -> (S, E)
        y = _layernorm(a, g1_ref[n], b1_ref[n])
        h = jnp.dot(wt1_ref[n], y.astype(mxu_dt),
                    preferred_element_type=jnp.float32) + bt1_ref[n]
        h = _gelu(h)
        tok = jnp.dot(wt2_ref[n], h.astype(mxu_dt),
                      preferred_element_type=jnp.float32) + bt2_ref[n]
        u = a + tok                                                # first residual

        # --- LayerNorm 2 + channel MLP.
        z = _layernorm(u, g2_ref[n], b2_ref[n])
        c = jnp.dot(z.astype(mxu_dt), wc1_ref[n],
                    preferred_element_type=jnp.float32) + bc1_ref[n]
        c = _gelu(c)
        # NOTE: per the module, the channel-MLP residual uses the BLOCK INPUT a,
        # not u = a + tok.
        a = a + jnp.dot(c.astype(mxu_dt), wc2_ref[n],
                        preferred_element_type=jnp.float32) + bc2_ref[n]

    # Final LayerNorm (feeds both heads) + policy head (1x1 conv emb -> 1).
    xln = _layernorm(a, lng_ref[...], lnb_ref[...])                # (S, E) f32
    xln_ref[0] = xln
    # policy (1, S) = p1_w (1, E) @ xln^T  (contract E on both) -> lane-dense row.
    pol = lax.dot_general(p1w_ref[...], xln,
                          dimension_numbers=(((1,), (1,)), ((), ())),
                          preferred_element_type=jnp.float32) + p1b_ref[...]
    pol_ref[0] = pol


def _value_kernel(xf_ref, w1_ref, b1_ref, w2_ref, b2_ref, o_ref):
    # xf: (B, S*E) f32, w1: (S*E, Cm) bf16, w2: (Cm, 1) f32  ->  (B, 1)
    h = jnp.dot(xf_ref[...].astype(w1_ref.dtype), w1_ref[...],
                preferred_element_type=jnp.float32) + b1_ref[...]
    h = jnp.maximum(h, 0.0)
    o_ref[...] = jnp.dot(h, w2_ref[...],
                         preferred_element_type=jnp.float32) + b2_ref[...]


# ---------------------------------------------------------------------------
# Forward pass (Pallas)
# ---------------------------------------------------------------------------
def mlp_mixer_forward(x, params):
    # x: (B, 2, 8, 8) NCHW, as in PyTorch.
    B = x.shape[0]
    E = params["proj_w"].shape[1]
    N, T, _ = params["wt1"].shape
    Cm = params["wc1"].shape[2]

    # proj_in flatten(2).transpose(1,2) == per-token linear; feed tokens as (B, S, 2).
    x_tok = jnp.transpose(x.reshape(B, 2, S), (0, 2, 1))

    # Pre-broadcast token-MLP column biases to full lane-dense tiles (layout
    # plumbing in the wrapper; avoids per-vreg lane broadcasts in the kernel).
    bt1_full = jnp.broadcast_to(params["bt1"][:, :, None], (N, T, E)).astype(jnp.float32)
    bt2_full = jnp.broadcast_to(params["bt2"][:, :, None], (N, S, E)).astype(jnp.float32)

    const2 = lambda b: (0, 0)
    const3 = lambda b: (0, 0, 0)

    xln, pol = pl.pallas_call(
        _mixer_fused_kernel,
        out_shape=(jax.ShapeDtypeStruct((B, S, E), jnp.float32),   # final-LN activations
                   jax.ShapeDtypeStruct((B, 1, S), jnp.float32)),  # policy logits (row)
        grid=(B,),
        in_specs=[
            pl.BlockSpec((1, S, 2), lambda b: (b, 0, 0)),   # x tokens
            pl.BlockSpec((2, E), const2),                   # proj_in weight
            pl.BlockSpec((1, E), const2),                   # proj_in bias
            pl.BlockSpec((N, 1, E), const3),                # ln1 gamma (stacked)
            pl.BlockSpec((N, 1, E), const3),                # ln1 beta
            pl.BlockSpec((N, T, S), const3),                # token W1 (= torch weight)
            pl.BlockSpec((N, T, E), const3),                # token b1 (full tile)
            pl.BlockSpec((N, S, T), const3),                # token W2 (= torch weight)
            pl.BlockSpec((N, S, E), const3),                # token b2 (full tile)
            pl.BlockSpec((N, 1, E), const3),                # ln2 gamma
            pl.BlockSpec((N, 1, E), const3),                # ln2 beta
            pl.BlockSpec((N, E, Cm), const3),               # channel W1 (transposed)
            pl.BlockSpec((N, 1, Cm), const3),               # channel b1
            pl.BlockSpec((N, Cm, E), const3),               # channel W2 (transposed)
            pl.BlockSpec((N, 1, E), const3),                # channel b2
            pl.BlockSpec((1, E), const2),                   # final LN gamma
            pl.BlockSpec((1, E), const2),                   # final LN beta
            pl.BlockSpec((1, E), const2),                   # policy weight
            pl.BlockSpec((1, 1), const2),                   # policy bias
        ],
        out_specs=(pl.BlockSpec((1, S, E), lambda b: (b, 0, 0)),
                   pl.BlockSpec((1, 1, S), lambda b: (b, 0, 0))),
        compiler_params=pltpu.CompilerParams(
            dimension_semantics=("parallel",)),             # megacore over batch (v7x)
    )(x_tok, params["proj_w"], params["proj_b"],
      params["g1"], params["b1"], params["wt1"], bt1_full,
      params["wt2"], bt2_full, params["g2"], params["b2"],
      params["wc1"], params["bc1"], params["wc2"], params["bc2"],
      params["ln_g"], params["ln_b"], params["p1_w"], params["p1_b"])

    policy = pol.reshape(B, S)

    # Tiny value head: whole-array VMEM blocks, no grid needed.
    vspec = pl.BlockSpec(memory_space=pltpu.MemorySpace.VMEM)
    value = pl.pallas_call(
        _value_kernel,
        out_shape=jax.ShapeDtypeStruct((B, 1), jnp.float32),
        in_specs=[vspec] * 5,
        out_specs=vspec,
    )(xln.reshape(B, S * E), params["v1_w"], params["v1_b"],
      params["v2_w"], params["v2_b"])

    return policy, value


# ---------------------------------------------------------------------------
# Pure-JAX reference (same math, same parameter layout, same bf16 dot operands)
# ---------------------------------------------------------------------------
def mlp_mixer_reference(x, params):
    B = x.shape[0]
    N = params["wt1"].shape[0]
    mxu_dt = params["wt1"].dtype

    x_tok = jnp.transpose(x.reshape(B, 2, S), (0, 2, 1))           # (B, S, 2)
    pw = params["proj_w"]
    a = (x_tok[..., 0:1] * pw[0][None, None, :]
         + x_tok[..., 1:2] * pw[1][None, None, :] + params["proj_b"])

    for n in range(N):
        y = _layernorm(a, params["g1"][n], params["b1"][n])
        h = jnp.einsum("ts,bse->bte", params["wt1"][n], y.astype(mxu_dt),
                       preferred_element_type=jnp.float32) + params["bt1"][n][None, :, None]
        h = _gelu(h)
        tok = jnp.einsum("st,bte->bse", params["wt2"][n], h.astype(mxu_dt),
                         preferred_element_type=jnp.float32) + params["bt2"][n][None, :, None]
        u = a + tok
        z = _layernorm(u, params["g2"][n], params["b2"][n])
        c = jnp.einsum("bse,ec->bsc", z.astype(mxu_dt), params["wc1"][n],
                       preferred_element_type=jnp.float32) + params["bc1"][n]
        c = _gelu(c)
        a = a + jnp.einsum("bsc,ce->bse", c.astype(mxu_dt), params["wc2"][n],
                           preferred_element_type=jnp.float32) + params["bc2"][n]

    xln = _layernorm(a, params["ln_g"], params["ln_b"])
    policy = jnp.einsum("bse,e->bs", xln, params["p1_w"].reshape(-1)) + params["p1_b"].reshape(())

    xf = xln.reshape(B, S * params["proj_w"].shape[1])
    h = jnp.dot(xf.astype(params["v1_w"].dtype), params["v1_w"],
                preferred_element_type=jnp.float32) + params["v1_b"]
    h = jnp.maximum(h, 0.0)
    value = jnp.dot(h, params["v2_w"], preferred_element_type=jnp.float32) + params["v2_b"]
    return policy, value


# ---------------------------------------------------------------------------
# Deterministic parameter init (PyTorch-style uniform bounds), stacked per block
# ---------------------------------------------------------------------------
def make_params(key, emb_dim, tokens_mlp_dim, channels_mlp_dim, num_blocks):
    E, T, Cm, N = emb_dim, tokens_mlp_dim, channels_mlp_dim, num_blocks
    keys = iter(jax.random.split(key, 8 + 8 * N))

    def uni(shape, fan_in):
        bound = float(1.0 / (fan_in ** 0.5))
        return jax.random.uniform(next(keys), shape, jnp.float32, -bound, bound)

    proj_w, proj_b = uni((2, E), 2), uni((1, E), 2)

    wt1, bt1, wt2, bt2, wc1, bc1, wc2, bc2 = [], [], [], [], [], [], [], []
    for _ in range(N):
        wt1.append(uni((T, S), S));   bt1.append(uni((T,), S))      # Linear(64, T)
        wt2.append(uni((S, T), T));   bt2.append(uni((S,), T))      # Linear(T, 64)
        wc1.append(uni((E, Cm), E));  bc1.append(uni((1, Cm), E))   # Linear(E, Cm).T
        wc2.append(uni((Cm, E), Cm)); bc2.append(uni((1, E), Cm))   # Linear(Cm, E).T

    return {
        "proj_w": proj_w, "proj_b": proj_b,
        "g1": jnp.ones((N, 1, E), jnp.float32), "b1": jnp.zeros((N, 1, E), jnp.float32),
        "wt1": jnp.stack(wt1).astype(MXU_DTYPE), "bt1": jnp.stack(bt1),
        "wt2": jnp.stack(wt2).astype(MXU_DTYPE), "bt2": jnp.stack(bt2),
        "g2": jnp.ones((N, 1, E), jnp.float32), "b2": jnp.zeros((N, 1, E), jnp.float32),
        "wc1": jnp.stack(wc1).astype(MXU_DTYPE), "bc1": jnp.stack(bc1),
        "wc2": jnp.stack(wc2).astype(MXU_DTYPE), "bc2": jnp.stack(bc2),
        "ln_g": jnp.ones((1, E), jnp.float32), "ln_b": jnp.zeros((1, E), jnp.float32),
        "p1_w": uni((1, E), E), "p1_b": uni((1, 1), E),
        "v1_w": uni((S * E, Cm), S * E).astype(MXU_DTYPE), "v1_b": uni((1, Cm), S * E),
        "v2_w": uni((Cm, 1), Cm), "v2_b": uni((1, 1), Cm),
    }


if __name__ == "__main__":
    B, EMB, T_MLP, C_MLP, N_BLOCKS = 2, 64, 128, 128, 2

    key = jax.random.PRNGKey(0)
    k_x, k_p = jax.random.split(key)
    x = jax.random.normal(k_x, (B, 2, 8, 8), dtype=jnp.float32)   # PyTorch NCHW input
    params = make_params(k_p, EMB, T_MLP, C_MLP, N_BLOCKS)

    policy, value = jax.block_until_ready(jax.jit(mlp_mixer_forward)(x, params))
    ref_policy, ref_value = jax.block_until_ready(jax.jit(mlp_mixer_reference)(x, params))

    assert policy.shape == (B, 64) and value.shape == (B, 1)
    pol_err = float(jnp.max(jnp.abs(policy - ref_policy)))
    val_err = float(jnp.max(jnp.abs(value - ref_value)))
    if not (jnp.allclose(policy, ref_policy, atol=2e-3, rtol=2e-3)
            and jnp.allclose(value, ref_value, atol=2e-3, rtol=2e-3)):
        raise AssertionError(f"Pallas mismatch: policy err={pol_err}, value err={val_err}")

    print("KERNEL_OK")
</pallas_src>

<mosaic_0001>
module attributes {stable_mosaic.version = 11 : i64} {
  func.func @_mixer_fused_kernel(%arg0: i32, %arg1: memref<1x64x2xf32, #tpu.memory_space<vmem>>, %arg2: memref<2x64xf32, #tpu.memory_space<vmem>>, %arg3: memref<1x64xf32, #tpu.memory_space<vmem>>, %arg4: memref<2x1x64xf32, #tpu.memory_space<vmem>>, %arg5: memref<2x1x64xf32, #tpu.memory_space<vmem>>, %arg6: memref<2x128x64xbf16, #tpu.memory_space<vmem>>, %arg7: memref<2x128x64xf32, #tpu.memory_space<vmem>>, %arg8: memref<2x64x128xbf16, #tpu.memory_space<vmem>>, %arg9: memref<2x64x64xf32, #tpu.memory_space<vmem>>, %arg10: memref<2x1x64xf32, #tpu.memory_space<vmem>>, %arg11: memref<2x1x64xf32, #tpu.memory_space<vmem>>, %arg12: memref<2x64x128xbf16, #tpu.memory_space<vmem>>, %arg13: memref<2x1x128xf32, #tpu.memory_space<vmem>>, %arg14: memref<2x128x64xbf16, #tpu.memory_space<vmem>>, %arg15: memref<2x1x64xf32, #tpu.memory_space<vmem>>, %arg16: memref<1x64xf32, #tpu.memory_space<vmem>>, %arg17: memref<1x64xf32, #tpu.memory_space<vmem>>, %arg18: memref<1x64xf32, #tpu.memory_space<vmem>>, %arg19: memref<1x1xf32, #tpu.memory_space<vmem>>, %arg20: memref<1x64x64xf32, #tpu.memory_space<vmem>>, %arg21: memref<1x1x64xf32, #tpu.memory_space<vmem>>) attributes {dimension_semantics = [#tpu.dimension_semantics<parallel>], iteration_bounds = array<i64: 2>, scalar_prefetch = 0 : i64, scratch_operands = 0 : i64, tpu.core_type = #tpu.core_type<tc>, window_params = [{transform_indices = @transform_0, window_bounds = array<i64: 1, 64, 2>}, {pipeline_mode = #tpu.pipeline_mode<synchronous>, transform_indices = @transform_1, window_bounds = array<i64: 2, 64>}, {pipeline_mode = #tpu.pipeline_mode<synchronous>, transform_indices = @transform_2, window_bounds = array<i64: 1, 64>}, {pipeline_mode = #tpu.pipeline_mode<synchronous>, transform_indices = @transform_3, window_bounds = array<i64: 2, 1, 64>}, {pipeline_mode = #tpu.pipeline_mode<synchronous>, transform_indices = @transform_4, window_bounds = array<i64: 2, 1, 64>}, {pipeline_mode = #tpu.pipeline_mode<synchronous>, transform_indices = @transform_5, window_bounds = array<i64: 2, 128, 64>}, {pipeline_mode = #tpu.pipeline_mode<synchronous>, transform_indices = @transform_6, window_bounds = array<i64: 2, 128, 64>}, {pipeline_mode = #tpu.pipeline_mode<synchronous>, transform_indices = @transform_7, window_bounds = array<i64: 2, 64, 128>}, {pipeline_mode = #tpu.pipeline_mode<synchronous>, transform_indices = @transform_8, window_bounds = array<i64: 2, 64, 64>}, {pipeline_mode = #tpu.pipeline_mode<synchronous>, transform_indices = @transform_9, window_bounds = array<i64: 2, 1, 64>}, {pipeline_mode = #tpu.pipeline_mode<synchronous>, transform_indices = @transform_10, window_bounds = array<i64: 2, 1, 64>}, {pipeline_mode = #tpu.pipeline_mode<synchronous>, transform_indices = @transform_11, window_bounds = array<i64: 2, 64, 128>}, {pipeline_mode = #tpu.pipeline_mode<synchronous>, transform_indices = @transform_12, window_bounds = array<i64: 2, 1, 128>}, {pipeline_mode = #tpu.pipeline_mode<synchronous>, transform_indices = @transform_13, window_bounds = array<i64: 2, 128, 64>}, {pipeline_mode = #tpu.pipeline_mode<synchronous>, transform_indices = @transform_14, window_bounds = array<i64: 2, 1, 64>}, {pipeline_mode = #tpu.pipeline_mode<synchronous>, transform_indices = @transform_15, window_bounds = array<i64: 1, 64>}, {pipeline_mode = #tpu.pipeline_mode<synchronous>, transform_indices = @transform_16, window_bounds = array<i64: 1, 64>}, {pipeline_mode = #tpu.pipeline_mode<synchronous>, transform_indices = @transform_17, window_bounds = array<i64: 1, 64>}, {pipeline_mode = #tpu.pipeline_mode<synchronous>, transform_indices = @transform_18, window_bounds = array<i64: 1, 1>}, {transform_indices = @transform_19, window_bounds = array<i64: 1, 64, 64>}, {transform_indices = @transform_20, window_bounds = array<i64: 1, 1, 64>}]} {
    %c0 = arith.constant 0 : index
    %c0_0 = arith.constant 0 : index
    %c0_1 = arith.constant 0 : index
    %0 = vector.load %arg1[%c0, %c0_0, %c0_1] : memref<1x64x2xf32, #tpu.memory_space<vmem>>, vector<1x64x2xf32>
    %1 = vector.shape_cast %0 : vector<1x64x2xf32> to vector<64x2xf32>
    %c0_2 = arith.constant 0 : index
    %c0_3 = arith.constant 0 : index
    %2 = vector.load %arg2[%c0_2, %c0_3] : memref<2x64xf32, #tpu.memory_space<vmem>>, vector<2x64xf32>
    %3 = vector.extract_strided_slice %1 {offsets = [0, 0], sizes = [64, 1], strides = [1, 1]} : vector<64x2xf32> to vector<64x1xf32>
    %4 = vector.extract_strided_slice %2 {offsets = [0, 0], sizes = [1, 64], strides = [1, 1]} : vector<2x64xf32> to vector<1x64xf32>
    %5 = vector.broadcast %3 : vector<64x1xf32> to vector<64x64xf32>
    %6 = vector.broadcast %4 : vector<1x64xf32> to vector<64x64xf32>
    %7 = arith.mulf %5, %6 : vector<64x64xf32>
    %8 = vector.extract_strided_slice %1 {offsets = [0, 1], sizes = [64, 1], strides = [1, 1]} : vector<64x2xf32> to vector<64x1xf32>
    %9 = vector.extract_strided_slice %2 {offsets = [1, 0], sizes = [1, 64], strides = [1, 1]} : vector<2x64xf32> to vector<1x64xf32>
    %10 = vector.broadcast %8 : vector<64x1xf32> to vector<64x64xf32>
    %11 = vector.broadcast %9 : vector<1x64xf32> to vector<64x64xf32>
    %12 = arith.mulf %10, %11 : vector<64x64xf32>
    %13 = arith.addf %7, %12 : vector<64x64xf32>
    %c0_4 = arith.constant 0 : index
    %c0_5 = arith.constant 0 : index
    %14 = vector.load %arg3[%c0_4, %c0_5] : memref<1x64xf32, #tpu.memory_space<vmem>>, vector<1x64xf32>
    %15 = vector.broadcast %14 : vector<1x64xf32> to vector<64x64xf32>
    %16 = arith.addf %13, %15 : vector<64x64xf32>
    %c0_6 = arith.constant 0 : index
    %c0_7 = arith.constant 0 : index
    %c0_8 = arith.constant 0 : index
    %17 = vector.load %arg4[%c0_6, %c0_7, %c0_8] : memref<2x1x64xf32, #tpu.memory_space<vmem>>, vector<1x1x64xf32>
    %18 = vector.shape_cast %17 : vector<1x1x64xf32> to vector<1x64xf32>
    %c0_9 = arith.constant 0 : index
    %c0_10 = arith.constant 0 : index
    %c0_11 = arith.constant 0 : index
    %19 = vector.load %arg5[%c0_9, %c0_10, %c0_11] : memref<2x1x64xf32, #tpu.memory_space<vmem>>, vector<1x1x64xf32>
    %20 = vector.shape_cast %19 : vector<1x1x64xf32> to vector<1x64xf32>
    %cst = arith.constant dense<0.000000e+00> : vector<64xf32>
    %21 = vector.multi_reduction <add>, %16, %cst [1] : vector<64x64xf32> to vector<64xf32>
    %22 = vector.shape_cast %21 : vector<64xf32> to vector<64x1xf32>
    %cst_12 = arith.constant 6.400000e+01 : f32
    %23 = vector.broadcast %cst_12 : f32 to vector<64x1xf32>
    %24 = arith.divf %22, %23 : vector<64x1xf32>
    %25 = vector.broadcast %24 : vector<64x1xf32> to vector<64x64xf32>
    %26 = arith.subf %16, %25 : vector<64x64xf32>
    %27 = arith.mulf %26, %26 : vector<64x64xf32>
    %cst_13 = arith.constant dense<0.000000e+00> : vector<64xf32>
    %28 = vector.multi_reduction <add>, %27, %cst_13 [1] : vector<64x64xf32> to vector<64xf32>
    %29 = vector.shape_cast %28 : vector<64xf32> to vector<64x1xf32>
    %cst_14 = arith.constant 6.400000e+01 : f32
    %30 = vector.broadcast %cst_14 : f32 to vector<64x1xf32>
    %31 = arith.divf %29, %30 : vector<64x1xf32>
    %cst_15 = arith.constant 9.99999974E-6 : f32
    %32 = vector.broadcast %cst_15 : f32 to vector<64x1xf32>
    %33 = arith.addf %31, %32 : vector<64x1xf32>
    %34 = math.rsqrt %33 : vector<64x1xf32>
    %35 = vector.broadcast %34 : vector<64x1xf32> to vector<64x64xf32>
    %36 = arith.mulf %26, %35 : vector<64x64xf32>
    %37 = vector.broadcast %18 : vector<1x64xf32> to vector<64x64xf32>
    %38 = arith.mulf %36, %37 : vector<64x64xf32>
    %39 = vector.broadcast %20 : vector<1x64xf32> to vector<64x64xf32>
    %40 = arith.addf %38, %39 : vector<64x64xf32>
    %c0_16 = arith.constant 0 : index
    %c0_17 = arith.constant 0 : index
    %c0_18 = arith.constant 0 : index
    %41 = vector.load %arg6[%c0_16, %c0_17, %c0_18] : memref<2x128x64xbf16, #tpu.memory_space<vmem>>, vector<1x128x64xbf16>
    %42 = vector.shape_cast %41 : vector<1x128x64xbf16> to vector<128x64xbf16>
    %43 = arith.truncf %40 : vector<64x64xf32> to vector<64x64xbf16>
    %cst_19 = arith.constant dense<0.000000e+00> : vector<128x64xf32>
    %44 = tpu.matmul %42, %43, %cst_19 {dimension_numbers = #tpu.dot_dimension_numbers<[1], [0], [0], [1], [0, 0, 1, 1], [], []>} : vector<128x64xbf16>, vector<64x64xbf16>, vector<128x64xf32> -> vector<128x64xf32>
    %c0_20 = arith.constant 0 : index
    %c0_21 = arith.constant 0 : index
    %c0_22 = arith.constant 0 : index
    %45 = vector.load %arg7[%c0_20, %c0_21, %c0_22] : memref<2x128x64xf32, #tpu.memory_space<vmem>>, vector<1x128x64xf32>
    %46 = vector.shape_cast %45 : vector<1x128x64xf32> to vector<128x64xf32>
    %47 = arith.addf %44, %46 : vector<128x64xf32>
    %48 = arith.mulf %47, %47 : vector<128x64xf32>
    %49 = arith.mulf %47, %48 : vector<128x64xf32>
    %cst_23 = arith.constant 4.471500e-02 : f32
    %50 = vector.broadcast %cst_23 : f32 to vector<128x64xf32>
    %51 = arith.mulf %50, %49 : vector<128x64xf32>
    %52 = arith.addf %47, %51 : vector<128x64xf32>
    %cst_24 = arith.constant 0.797884583 : f32
    %53 = vector.broadcast %cst_24 : f32 to vector<128x64xf32>
    %54 = arith.mulf %53, %52 : vector<128x64xf32>
    %55 = math.tanh %54 : vector<128x64xf32>
    %cst_25 = arith.constant 1.000000e+00 : f32
    %56 = vector.broadcast %cst_25 : f32 to vector<128x64xf32>
    %57 = arith.addf %56, %55 : vector<128x64xf32>
    %cst_26 = arith.constant 5.000000e-01 : f32
    %58 = vector.broadcast %cst_26 : f32 to vector<128x64xf32>
    %59 = arith.mulf %58, %57 : vector<128x64xf32>
    %60 = arith.mulf %47, %59 : vector<128x64xf32>
    %c0_27 = arith.constant 0 : index
    %c0_28 = arith.constant 0 : index
    %c0_29 = arith.constant 0 : index
    %61 = vector.load %arg8[%c0_27, %c0_28, %c0_29] : memref<2x64x128xbf16, #tpu.memory_space<vmem>>, vector<1x64x128xbf16>
    %62 = vector.shape_cast %61 : vector<1x64x128xbf16> to vector<64x128xbf16>
    %63 = arith.truncf %60 : vector<128x64xf32> to vector<128x64xbf16>
    %cst_30 = arith.constant dense<0.000000e+00> : vector<64x64xf32>
    %64 = tpu.matmul %62, %63, %cst_30 {dimension_numbers = #tpu.dot_dimension_numbers<[1], [0], [0], [1], [0, 0, 1, 1], [], []>} : vector<64x128xbf16>, vector<128x64xbf16>, vector<64x64xf32> -> vector<64x64xf32>
    %c0_31 = arith.constant 0 : index
    %c0_32 = arith.constant 0 : index
    %c0_33 = arith.constant 0 : index
    %65 = vector.load %arg9[%c0_31, %c0_32, %c0_33] : memref<2x64x64xf32, #tpu.memory_space<vmem>>, vector<1x64x64xf32>
    %66 = vector.shape_cast %65 : vector<1x64x64xf32> to vector<64x64xf32>
    %67 = arith.addf %64, %66 : vector<64x64xf32>
    %68 = arith.addf %16, %67 : vector<64x64xf32>
    %c0_34 = arith.constant 0 : index
    %c0_35 = arith.constant 0 : index
    %c0_36 = arith.constant 0 : index
    %69 = vector.load %arg10[%c0_34, %c0_35, %c0_36] : memref<2x1x64xf32, #tpu.memory_space<vmem>>, vector<1x1x64xf32>
    %70 = vector.shape_cast %69 : vector<1x1x64xf32> to vector<1x64xf32>
    %c0_37 = arith.constant 0 : index
    %c0_38 = arith.constant 0 : index
    %c0_39 = arith.constant 0 : index
    %71 = vector.load %arg11[%c0_37, %c0_38, %c0_39] : memref<2x1x64xf32, #tpu.memory_space<vmem>>, vector<1x1x64xf32>
    %72 = vector.shape_cast %71 : vector<1x1x64xf32> to vector<1x64xf32>
    %cst_40 = arith.constant dense<0.000000e+00> : vector<64xf32>
    %73 = vector.multi_reduction <add>, %68, %cst_40 [1] : vector<64x64xf32> to vector<64xf32>
    %74 = vector.shape_cast %73 : vector<64xf32> to vector<64x1xf32>
    %cst_41 = arith.constant 6.400000e+01 : f32
    %75 = vector.broadcast %cst_41 : f32 to vector<64x1xf32>
    %76 = arith.divf %74, %75 : vector<64x1xf32>
    %77 = vector.broadcast %76 : vector<64x1xf32> to vector<64x64xf32>
    %78 = arith.subf %68, %77 : vector<64x64xf32>
    %79 = arith.mulf %78, %78 : vector<64x64xf32>
    %cst_42 = arith.constant dense<0.000000e+00> : vector<64xf32>
    %80 = vector.multi_reduction <add>, %79, %cst_42 [1] : vector<64x64xf32> to vector<64xf32>
    %81 = vector.shape_cast %80 : vector<64xf32> to vector<64x1xf32>
    %cst_43 = arith.constant 6.400000e+01 : f32
    %82 = vector.broadcast %cst_43 : f32 to vector<64x1xf32>
    %83 = arith.divf %81, %82 : vector<64x1xf32>
    %cst_44 = arith.constant 9.99999974E-6 : f32
    %84 = vector.broadcast %cst_44 : f32 to vector<64x1xf32>
    %85 = arith.addf %83, %84 : vector<64x1xf32>
    %86 = math.rsqrt %85 : vector<64x1xf32>
    %87 = vector.broadcast %86 : vector<64x1xf32> to vector<64x64xf32>
    %88 = arith.mulf %78, %87 : vector<64x64xf32>
    %89 = vector.broadcast %70 : vector<1x64xf32> to vector<64x64xf32>
    %90 = arith.mulf %88, %89 : vector<64x64xf32>
    %91 = vector.broadcast %72 : vector<1x64xf32> to vector<64x64xf32>
    %92 = arith.addf %90, %91 : vector<64x64xf32>
    %93 = arith.truncf %92 : vector<64x64xf32> to vector<64x64xbf16>
    %c0_45 = arith.constant 0 : index
    %c0_46 = arith.constant 0 : index
    %c0_47 = arith.constant 0 : index
    %94 = vector.load %arg12[%c0_45, %c0_46, %c0_47] : memref<2x64x128xbf16, #tpu.memory_space<vmem>>, vector<1x64x128xbf16>
    %95 = vector.shape_cast %94 : vector<1x64x128xbf16> to vector<64x128xbf16>
    %cst_48 = arith.constant dense<0.000000e+00> : vector<64x128xf32>
    %96 = tpu.matmul %93, %95, %cst_48 {dimension_numbers = #tpu.dot_dimension_numbers<[1], [0], [0], [1], [0, 0, 1, 1], [], []>} : vector<64x64xbf16>, vector<64x128xbf16>, vector<64x128xf32> -> vector<64x128xf32>
    %c0_49 = arith.constant 0 : index
    %c0_50 = arith.constant 0 : index
    %c0_51 = arith.constant 0 : index
    %97 = vector.load %arg13[%c0_49, %c0_50, %c0_51] : memref<2x1x128xf32, #tpu.memory_space<vmem>>, vector<1x1x128xf32>
    %98 = vector.shape_cast %97 : vector<1x1x128xf32> to vector<1x128xf32>
    %99 = vector.broadcast %98 : vector<1x128xf32> to vector<64x128xf32>
    %100 = arith.addf %96, %99 : vector<64x128xf32>
    %101 = arith.mulf %100, %100 : vector<64x128xf32>
    %102 = arith.mulf %100, %101 : vector<64x128xf32>
    %cst_52 = arith.constant 4.471500e-02 : f32
    %103 = vector.broadcast %cst_52 : f32 to vector<64x128xf32>
    %104 = arith.mulf %103, %102 : vector<64x128xf32>
    %105 = arith.addf %100, %104 : vector<64x128xf32>
    %cst_53 = arith.constant 0.797884583 : f32
    %106 = vector.broadcast %cst_53 : f32 to vector<64x128xf32>
    %107 = arith.mulf %106, %105 : vector<64x128xf32>
    %108 = math.tanh %107 : vector<64x128xf32>
    %cst_54 = arith.constant 1.000000e+00 : f32
    %109 = vector.broadcast %cst_54 : f32 to vector<64x128xf32>
    %110 = arith.addf %109, %108 : vector<64x128xf32>
    %cst_55 = arith.constant 5.000000e-01 : f32
    %111 = vector.broadcast %cst_55 : f32 to vector<64x128xf32>
    %112 = arith.mulf %111, %110 : vector<64x128xf32>
    %113 = arith.mulf %100, %112 : vector<64x128xf32>
    %114 = arith.truncf %113 : vector<64x128xf32> to vector<64x128xbf16>
    %c0_56 = arith.constant 0 : index
    %c0_57 = arith.constant 0 : index
    %c0_58 = arith.constant 0 : index
    %115 = vector.load %arg14[%c0_56, %c0_57, %c0_58] : memref<2x128x64xbf16, #tpu.memory_space<vmem>>, vector<1x128x64xbf16>
    %116 = vector.shape_cast %115 : vector<1x128x64xbf16> to vector<128x64xbf16>
    %cst_59 = arith.constant dense<0.000000e+00> : vector<64x64xf32>
    %117 = tpu.matmul %114, %116, %cst_59 {dimension_numbers = #tpu.dot_dimension_numbers<[1], [0], [0], [1], [0, 0, 1, 1], [], []>} : vector<64x128xbf16>, vector<128x64xbf16>, vector<64x64xf32> -> vector<64x64xf32>
    %118 = arith.addf %16, %117 : vector<64x64xf32>
    %c0_60 = arith.constant 0 : index
    %c0_61 = arith.constant 0 : index
    %c0_62 = arith.constant 0 : index
    %119 = vector.load %arg15[%c0_60, %c0_61, %c0_62] : memref<2x1x64xf32, #tpu.memory_space<vmem>>, vector<1x1x64xf32>
    %120 = vector.shape_cast %119 : vector<1x1x64xf32> to vector<1x64xf32>
    %121 = vector.broadcast %120 : vector<1x64xf32> to vector<64x64xf32>
    %122 = arith.addf %118, %121 : vector<64x64xf32>
    %c1 = arith.constant 1 : index
    %c0_63 = arith.constant 0 : index
    %c0_64 = arith.constant 0 : index
    %123 = vector.load %arg4[%c1, %c0_63, %c0_64] : memref<2x1x64xf32, #tpu.memory_space<vmem>>, vector<1x1x64xf32>
    %124 = vector.shape_cast %123 : vector<1x1x64xf32> to vector<1x64xf32>
    %c1_65 = arith.constant 1 : index
    %c0_66 = arith.constant 0 : index
    %c0_67 = arith.constant 0 : index
    %125 = vector.load %arg5[%c1_65, %c0_66, %c0_67] : memref<2x1x64xf32, #tpu.memory_space<vmem>>, vector<1x1x64xf32>
    %126 = vector.shape_cast %125 : vector<1x1x64xf32> to vector<1x64xf32>
    %cst_68 = arith.constant dense<0.000000e+00> : vector<64xf32>
    %127 = vector.multi_reduction <add>, %122, %cst_68 [1] : vector<64x64xf32> to vector<64xf32>
    %128 = vector.shape_cast %127 : vector<64xf32> to vector<64x1xf32>
    %cst_69 = arith.constant 6.400000e+01 : f32
    %129 = vector.broadcast %cst_69 : f32 to vector<64x1xf32>
    %130 = arith.divf %128, %129 : vector<64x1xf32>
    %131 = vector.broadcast %130 : vector<64x1xf32> to vector<64x64xf32>
    %132 = arith.subf %122, %131 : vector<64x64xf32>
    %133 = arith.mulf %132, %132 : vector<64x64xf32>
    %cst_70 = arith.constant dense<0.000000e+00> : vector<64xf32>
    %134 = vector.multi_reduction <add>, %133, %cst_70 [1] : vector<64x64xf32> to vector<64xf32>
    %135 = vector.shape_cast %134 : vector<64xf32> to vector<64x1xf32>
    %cst_71 = arith.constant 6.400000e+01 : f32
    %136 = vector.broadcast %cst_71 : f32 to vector<64x1xf32>
    %137 = arith.divf %135, %136 : vector<64x1xf32>
    %cst_72 = arith.constant 9.99999974E-6 : f32
    %138 = vector.broadcast %cst_72 : f32 to vector<64x1xf32>
    %139 = arith.addf %137, %138 : vector<64x1xf32>
    %140 = math.rsqrt %139 : vector<64x1xf32>
    %141 = vector.broadcast %140 : vector<64x1xf32> to vector<64x64xf32>
    %142 = arith.mulf %132, %141 : vector<64x64xf32>
    %143 = vector.broadcast %124 : vector<1x64xf32> to vector<64x64xf32>
    %144 = arith.mulf %142, %143 : vector<64x64xf32>
    %145 = vector.broadcast %126 : vector<1x64xf32> to vector<64x64xf32>
    %146 = arith.addf %144, %145 : vector<64x64xf32>
    %c1_73 = arith.constant 1 : index
    %c0_74 = arith.constant 0 : index
    %c0_75 = arith.constant 0 : index
    %147 = vector.load %arg6[%c1_73, %c0_74, %c0_75] : memref<2x128x64xbf16, #tpu.memory_space<vmem>>, vector<1x128x64xbf16>
    %148 = vector.shape_cast %147 : vector<1x128x64xbf16> to vector<128x64xbf16>
    %149 = arith.truncf %146 : vector<64x64xf32> to vector<64x64xbf16>
    %cst_76 = arith.constant dense<0.000000e+00> : vector<128x64xf32>
    %150 = tpu.matmul %148, %149, %cst_76 {dimension_numbers = #tpu.dot_dimension_numbers<[1], [0], [0], [1], [0, 0, 1, 1], [], []>} : vector<128x64xbf16>, vector<64x64xbf16>, vector<128x64xf32> -> vector<128x64xf32>
    %c1_77 = arith.constant 1 : index
    %c0_78 = arith.constant 0 : index
    %c0_79 = arith.constant 0 : index
    %151 = vector.load %arg7[%c1_77, %c0_78, %c0_79] : memref<2x128x64xf32, #tpu.memory_space<vmem>>, vector<1x128x64xf32>
    %152 = vector.shape_cast %151 : vector<1x128x64xf32> to vector<128x64xf32>
    %153 = arith.addf %150, %152 : vector<128x64xf32>
    %154 = arith.mulf %153, %153 : vector<128x64xf32>
    %155 = arith.mulf %153, %154 : vector<128x64xf32>
    %cst_80 = arith.constant 4.471500e-02 : f32
    %156 = vector.broadcast %cst_80 : f32 to vector<128x64xf32>
    %157 = arith.mulf %156, %155 : vector<128x64xf32>
    %158 = arith.addf %153, %157 : vector<128x64xf32>
    %cst_81 = arith.constant 0.797884583 : f32
    %159 = vector.broadcast %cst_81 : f32 to vector<128x64xf32>
    %160 = arith.mulf %159, %158 : vector<128x64xf32>
    %161 = math.tanh %160 : vector<128x64xf32>
    %cst_82 = arith.constant 1.000000e+00 : f32
    %162 = vector.broadcast %cst_82 : f32 to vector<128x64xf32>
    %163 = arith.addf %162, %161 : vector<128x64xf32>
    %cst_83 = arith.constant 5.000000e-01 : f32
    %164 = vector.broadcast %cst_83 : f32 to vector<128x64xf32>
    %165 = arith.mulf %164, %163 : vector<128x64xf32>
    %166 = arith.mulf %153, %165 : vector<128x64xf32>
    %c1_84 = arith.constant 1 : index
    %c0_85 = arith.constant 0 : index
    %c0_86 = arith.constant 0 : index
    %167 = vector.load %arg8[%c1_84, %c0_85, %c0_86] : memref<2x64x128xbf16, #tpu.memory_space<vmem>>, vector<1x64x128xbf16>
    %168 = vector.shape_cast %167 : vector<1x64x128xbf16> to vector<64x128xbf16>
    %169 = arith.truncf %166 : vector<128x64xf32> to vector<128x64xbf16>
    %cst_87 = arith.constant dense<0.000000e+00> : vector<64x64xf32>
    %170 = tpu.matmul %168, %169, %cst_87 {dimension_numbers = #tpu.dot_dimension_numbers<[1], [0], [0], [1], [0, 0, 1, 1], [], []>} : vector<64x128xbf16>, vector<128x64xbf16>, vector<64x64xf32> -> vector<64x64xf32>
    %c1_88 = arith.constant 1 : index
    %c0_89 = arith.constant 0 : index
    %c0_90 = arith.constant 0 : index
    %171 = vector.load %arg9[%c1_88, %c0_89, %c0_90] : memref<2x64x64xf32, #tpu.memory_space<vmem>>, vector<1x64x64xf32>
    %172 = vector.shape_cast %171 : vector<1x64x64xf32> to vector<64x64xf32>
    %173 = arith.addf %170, %172 : vector<64x64xf32>
    %174 = arith.addf %122, %173 : vector<64x64xf32>
    %c1_91 = arith.constant 1 : index
    %c0_92 = arith.constant 0 : index
    %c0_93 = arith.constant 0 : index
    %175 = vector.load %arg10[%c1_91, %c0_92, %c0_93] : memref<2x1x64xf32, #tpu.memory_space<vmem>>, vector<1x1x64xf32>
    %176 = vector.shape_cast %175 : vector<1x1x64xf32> to vector<1x64xf32>
    %c1_94 = arith.constant 1 : index
    %c0_95 = arith.constant 0 : index
    %c0_96 = arith.constant 0 : index
    %177 = vector.load %arg11[%c1_94, %c0_95, %c0_96] : memref<2x1x64xf32, #tpu.memory_space<vmem>>, vector<1x1x64xf32>
    %178 = vector.shape_cast %177 : vector<1x1x64xf32> to vector<1x64xf32>
    %cst_97 = arith.constant dense<0.000000e+00> : vector<64xf32>
    %179 = vector.multi_reduction <add>, %174, %cst_97 [1] : vector<64x64xf32> to vector<64xf32>
    %180 = vector.shape_cast %179 : vector<64xf32> to vector<64x1xf32>
    %cst_98 = arith.constant 6.400000e+01 : f32
    %181 = vector.broadcast %cst_98 : f32 to vector<64x1xf32>
    %182 = arith.divf %180, %181 : vector<64x1xf32>
    %183 = vector.broadcast %182 : vector<64x1xf32> to vector<64x64xf32>
    %184 = arith.subf %174, %183 : vector<64x64xf32>
    %185 = arith.mulf %184, %184 : vector<64x64xf32>
    %cst_99 = arith.constant dense<0.000000e+00> : vector<64xf32>
    %186 = vector.multi_reduction <add>, %185, %cst_99 [1] : vector<64x64xf32> to vector<64xf32>
    %187 = vector.shape_cast %186 : vector<64xf32> to vector<64x1xf32>
    %cst_100 = arith.constant 6.400000e+01 : f32
    %188 = vector.broadcast %cst_100 : f32 to vector<64x1xf32>
    %189 = arith.divf %187, %188 : vector<64x1xf32>
    %cst_101 = arith.constant 9.99999974E-6 : f32
    %190 = vector.broadcast %cst_101 : f32 to vector<64x1xf32>
    %191 = arith.addf %189, %190 : vector<64x1xf32>
    %192 = math.rsqrt %191 : vector<64x1xf32>
    %193 = vector.broadcast %192 : vector<64x1xf32> to vector<64x64xf32>
    %194 = arith.mulf %184, %193 : vector<64x64xf32>
    %195 = vector.broadcast %176 : vector<1x64xf32> to vector<64x64xf32>
    %196 = arith.mulf %194, %195 : vector<64x64xf32>
    %197 = vector.broadcast %178 : vector<1x64xf32> to vector<64x64xf32>
    %198 = arith.addf %196, %197 : vector<64x64xf32>
    %199 = arith.truncf %198 : vector<64x64xf32> to vector<64x64xbf16>
    %c1_102 = arith.constant 1 : index
    %c0_103 = arith.constant 0 : index
    %c0_104 = arith.constant 0 : index
    %200 = vector.load %arg12[%c1_102, %c0_103, %c0_104] : memref<2x64x128xbf16, #tpu.memory_space<vmem>>, vector<1x64x128xbf16>
    %201 = vector.shape_cast %200 : vector<1x64x128xbf16> to vector<64x128xbf16>
    %cst_105 = arith.constant dense<0.000000e+00> : vector<64x128xf32>
    %202 = tpu.matmul %199, %201, %cst_105 {dimension_numbers = #tpu.dot_dimension_numbers<[1], [0], [0], [1], [0, 0, 1, 1], [], []>} : vector<64x64xbf16>, vector<64x128xbf16>, vector<64x128xf32> -> vector<64x128xf32>
    %c1_106 = arith.constant 1 : index
    %c0_107 = arith.constant 0 : index
    %c0_108 = arith.constant 0 : index
    %203 = vector.load %arg13[%c1_106, %c0_107, %c0_108] : memref<2x1x128xf32, #tpu.memory_space<vmem>>, vector<1x1x128xf32>
    %204 = vector.shape_cast %203 : vector<1x1x128xf32> to vector<1x128xf32>
    %205 = vector.broadcast %204 : vector<1x128xf32> to vector<64x128xf32>
    %206 = arith.addf %202, %205 : vector<64x128xf32>
    %207 = arith.mulf %206, %206 : vector<64x128xf32>
    %208 = arith.mulf %206, %207 : vector<64x128xf32>
    %cst_109 = arith.constant 4.471500e-02 : f32
    %209 = vector.broadcast %cst_109 : f32 to vector<64x128xf32>
    %210 = arith.mulf %209, %208 : vector<64x128xf32>
    %211 = arith.addf %206, %210 : vector<64x128xf32>
    %cst_110 = arith.constant 0.797884583 : f32
    %212 = vector.broadcast %cst_110 : f32 to vector<64x128xf32>
    %213 = arith.mulf %212, %211 : vector<64x128xf32>
    %214 = math.tanh %213 : vector<64x128xf32>
    %cst_111 = arith.constant 1.000000e+00 : f32
    %215 = vector.broadcast %cst_111 : f32 to vector<64x128xf32>
    %216 = arith.addf %215, %214 : vector<64x128xf32>
    %cst_112 = arith.constant 5.000000e-01 : f32
    %217 = vector.broadcast %cst_112 : f32 to vector<64x128xf32>
    %218 = arith.mulf %217, %216 : vector<64x128xf32>
    %219 = arith.mulf %206, %218 : vector<64x128xf32>
    %220 = arith.truncf %219 : vector<64x128xf32> to vector<64x128xbf16>
    %c1_113 = arith.constant 1 : index
    %c0_114 = arith.constant 0 : index
    %c0_115 = arith.constant 0 : index
    %221 = vector.load %arg14[%c1_113, %c0_114, %c0_115] : memref<2x128x64xbf16, #tpu.memory_space<vmem>>, vector<1x128x64xbf16>
    %222 = vector.shape_cast %221 : vector<1x128x64xbf16> to vector<128x64xbf16>
    %cst_116 = arith.constant dense<0.000000e+00> : vector<64x64xf32>
    %223 = tpu.matmul %220, %222, %cst_116 {dimension_numbers = #tpu.dot_dimension_numbers<[1], [0], [0], [1], [0, 0, 1, 1], [], []>} : vector<64x128xbf16>, vector<128x64xbf16>, vector<64x64xf32> -> vector<64x64xf32>
    %224 = arith.addf %122, %223 : vector<64x64xf32>
    %c1_117 = arith.constant 1 : index
    %c0_118 = arith.constant 0 : index
    %c0_119 = arith.constant 0 : index
    %225 = vector.load %arg15[%c1_117, %c0_118, %c0_119] : memref<2x1x64xf32, #tpu.memory_space<vmem>>, vector<1x1x64xf32>
    %226 = vector.shape_cast %225 : vector<1x1x64xf32> to vector<1x64xf32>
    %227 = vector.broadcast %226 : vector<1x64xf32> to vector<64x64xf32>
    %228 = arith.addf %224, %227 : vector<64x64xf32>
    %c0_120 = arith.constant 0 : index
    %c0_121 = arith.constant 0 : index
    %229 = vector.load %arg16[%c0_120, %c0_121] : memref<1x64xf32, #tpu.memory_space<vmem>>, vector<1x64xf32>
    %c0_122 = arith.constant 0 : index
    %c0_123 = arith.constant 0 : index
    %230 = vector.load %arg17[%c0_122, %c0_123] : memref<1x64xf32, #tpu.memory_space<vmem>>, vector<1x64xf32>
    %cst_124 = arith.constant dense<0.000000e+00> : vector<64xf32>
    %231 = vector.multi_reduction <add>, %228, %cst_124 [1] : vector<64x64xf32> to vector<64xf32>
    %232 = vector.shape_cast %231 : vector<64xf32> to vector<64x1xf32>
    %cst_125 = arith.constant 6.400000e+01 : f32
    %233 = vector.broadcast %cst_125 : f32 to vector<64x1xf32>
    %234 = arith.divf %232, %233 : vector<64x1xf32>
    %235 = vector.broadcast %234 : vector<64x1xf32> to vector<64x64xf32>
    %236 = arith.subf %228, %235 : vector<64x64xf32>
    %237 = arith.mulf %236, %236 : vector<64x64xf32>
    %cst_126 = arith.constant dense<0.000000e+00> : vector<64xf32>
    %238 = vector.multi_reduction <add>, %237, %cst_126 [1] : vector<64x64xf32> to vector<64xf32>
    %239 = vector.shape_cast %238 : vector<64xf32> to vector<64x1xf32>
    %cst_127 = arith.constant 6.400000e+01 : f32
    %240 = vector.broadcast %cst_127 : f32 to vector<64x1xf32>
    %241 = arith.divf %239, %240 : vector<64x1xf32>
    %cst_128 = arith.constant 9.99999974E-6 : f32
    %242 = vector.broadcast %cst_128 : f32 to vector<64x1xf32>
    %243 = arith.addf %241, %242 : vector<64x1xf32>
    %244 = math.rsqrt %243 : vector<64x1xf32>
    %245 = vector.broadcast %244 : vector<64x1xf32> to vector<64x64xf32>
    %246 = arith.mulf %236, %245 : vector<64x64xf32>
    %247 = vector.broadcast %229 : vector<1x64xf32> to vector<64x64xf32>
    %248 = arith.mulf %246, %247 : vector<64x64xf32>
    %249 = vector.broadcast %230 : vector<1x64xf32> to vector<64x64xf32>
    %250 = arith.addf %248, %249 : vector<64x64xf32>
    %c0_129 = arith.constant 0 : index
    %c0_130 = arith.constant 0 : index
    %c0_131 = arith.constant 0 : index
    %251 = vector.load %arg20[%c0_129, %c0_130, %c0_131] : memref<1x64x64xf32, #tpu.memory_space<vmem>>, vector<1x64x64xf32>
    %252 = vector.shape_cast %251 : vector<1x64x64xf32> to vector<64x64xf32>
    %253 = vector.shape_cast %250 : vector<64x64xf32> to vector<1x64x64xf32>
    tpu.vector_store %arg20[%c0_129, %c0_130, %c0_131], %253 {strides = array<i32>} : memref<1x64x64xf32, #tpu.memory_space<vmem>>, vector<1x64x64xf32>,
    %c0_132 = arith.constant 0 : index
    %c0_133 = arith.constant 0 : index
    %254 = vector.load %arg18[%c0_132, %c0_133] : memref<1x64xf32, #tpu.memory_space<vmem>>, vector<1x64xf32>
    %cst_134 = arith.constant dense<0.000000e+00> : vector<1x64xf32>
    %255 = tpu.matmul %254, %250, %cst_134 {dimension_numbers = #tpu.dot_dimension_numbers<[1], [1], [0], [0], [0, 0, 1, 0], [], []>} : vector<1x64xf32>, vector<64x64xf32>, vector<1x64xf32> -> vector<1x64xf32>
    %c0_135 = arith.constant 0 : index
    %c0_136 = arith.constant 0 : index
    %256 = vector.load %arg19[%c0_135, %c0_136] : memref<1x1xf32, #tpu.memory_space<vmem>>, vector<1x1xf32>
    %257 = vector.broadcast %256 : vector<1x1xf32> to vector<1x64xf32>
    %258 = arith.addf %255, %257 : vector<1x64xf32>
    %c0_137 = arith.constant 0 : index
    %c0_138 = arith.constant 0 : index
    %c0_139 = arith.constant 0 : index
    %259 = vector.load %arg21[%c0_137, %c0_138, %c0_139] : memref<1x1x64xf32, #tpu.memory_space<vmem>>, vector<1x1x64xf32>
    %260 = vector.shape_cast %259 : vector<1x1x64xf32> to vector<1x64xf32>
    %261 = vector.shape_cast %258 : vector<1x64xf32> to vector<1x1x64xf32>
    tpu.vector_store %arg21[%c0_137, %c0_138, %c0_139], %261 {strides = array<i32>} : memref<1x1x64xf32, #tpu.memory_space<vmem>>, vector<1x1x64xf32>,
    return
  }
  func.func @transform_0(%arg0: i32) -> (i32, i32, i32) {
    %c0_i32 = arith.constant 0 : i32
    %c0_i32_0 = arith.constant 0 : i32
    %c0_i32_1 = arith.constant 0 : i32
    return %arg0, %c0_i32, %c0_i32_0 : i32, i32, i32
  }
  func.func @transform_1(%arg0: i32) -> (i32, i32) {
    %c0_i32 = arith.constant 0 : i32
    %c0_i32_0 = arith.constant 0 : i32
    %c0_i32_1 = arith.constant 0 : i32
    return %c0_i32, %c0_i32_0 : i32, i32
  }
  func.func @transform_2(%arg0: i32) -> (i32, i32) {
    %c0_i32 = arith.constant 0 : i32
    %c0_i32_0 = arith.constant 0 : i32
    %c0_i32_1 = arith.constant 0 : i32
    return %c0_i32, %c0_i32_0 : i32, i32
  }
  func.func @transform_3(%arg0: i32) -> (i32, i32, i32) {
    %c0_i32 = arith.constant 0 : i32
    %c0_i32_0 = arith.constant 0 : i32
    %c0_i32_1 = arith.constant 0 : i32
    %c0_i32_2 = arith.constant 0 : i32
    return %c0_i32, %c0_i32_0, %c0_i32_1 : i32, i32, i32
  }
  func.func @transform_4(%arg0: i32) -> (i32, i32, i32) {
    %c0_i32 = arith.constant 0 : i32
    %c0_i32_0 = arith.constant 0 : i32
    %c0_i32_1 = arith.constant 0 : i32
    %c0_i32_2 = arith.constant 0 : i32
    return %c0_i32, %c0_i32_0, %c0_i32_1 : i32, i32, i32
  }
  func.func @transform_5(%arg0: i32) -> (i32, i32, i32) {
    %c0_i32 = arith.constant 0 : i32
    %c0_i32_0 = arith.constant 0 : i32
    %c0_i32_1 = arith.constant 0 : i32
    %c0_i32_2 = arith.constant 0 : i32
    return %c0_i32, %c0_i32_0, %c0_i32_1 : i32, i32, i32
  }
  func.func @transform_6(%arg0: i32) -> (i32, i32, i32) {
    %c0_i32 = arith.constant 0 : i32
    %c0_i32_0 = arith.constant 0 : i32
    %c0_i32_1 = arith.constant 0 : i32
    %c0_i32_2 = arith.constant 0 : i32
    return %c0_i32, %c0_i32_0, %c0_i32_1 : i32, i32, i32
  }
  func.func @transform_7(%arg0: i32) -> (i32, i32, i32) {
    %c0_i32 = arith.constant 0 : i32
    %c0_i32_0 = arith.constant 0 : i32
    %c0_i32_1 = arith.constant 0 : i32
    %c0_i32_2 = arith.constant 0 : i32
    return %c0_i32, %c0_i32_0, %c0_i32_1 : i32, i32, i32
  }
  func.func @transform_8(%arg0: i32) -> (i32, i32, i32) {
    %c0_i32 = arith.constant 0 : i32
    %c0_i32_0 = arith.constant 0 : i32
    %c0_i32_1 = arith.constant 0 : i32
    %c0_i32_2 = arith.constant 0 : i32
    return %c0_i32, %c0_i32_0, %c0_i32_1 : i32, i32, i32
  }
  func.func @transform_9(%arg0: i32) -> (i32, i32, i32) {
    %c0_i32 = arith.constant 0 : i32
    %c0_i32_0 = arith.constant 0 : i32
    %c0_i32_1 = arith.constant 0 : i32
    %c0_i32_2 = arith.constant 0 : i32
    return %c0_i32, %c0_i32_0, %c0_i32_1 : i32, i32, i32
  }
  func.func @transform_10(%arg0: i32) -> (i32, i32, i32) {
    %c0_i32 = arith.constant 0 : i32
    %c0_i32_0 = arith.constant 0 : i32
    %c0_i32_1 = arith.constant 0 : i32
    %c0_i32_2 = arith.constant 0 : i32
    return %c0_i32, %c0_i32_0, %c0_i32_1 : i32, i32, i32
  }
  func.func @transform_11(%arg0: i32) -> (i32, i32, i32) {
    %c0_i32 = arith.constant 0 : i32
    %c0_i32_0 = arith.constant 0 : i32
    %c0_i32_1 = arith.constant 0 : i32
    %c0_i32_2 = arith.constant 0 : i32
    return %c0_i32, %c0_i32_0, %c0_i32_1 : i32, i32, i32
  }
  func.func @transform_12(%arg0: i32) -> (i32, i32, i32) {
    %c0_i32 = arith.constant 0 : i32
    %c0_i32_0 = arith.constant 0 : i32
    %c0_i32_1 = arith.constant 0 : i32
    %c0_i32_2 = arith.constant 0 : i32
    return %c0_i32, %c0_i32_0, %c0_i32_1 : i32, i32, i32
  }
  func.func @transform_13(%arg0: i32) -> (i32, i32, i32) {
    %c0_i32 = arith.constant 0 : i32
    %c0_i32_0 = arith.constant 0 : i32
    %c0_i32_1 = arith.constant 0 : i32
    %c0_i32_2 = arith.constant 0 : i32
    return %c0_i32, %c0_i32_0, %c0_i32_1 : i32, i32, i32
  }
  func.func @transform_14(%arg0: i32) -> (i32, i32, i32) {
    %c0_i32 = arith.constant 0 : i32
    %c0_i32_0 = arith.constant 0 : i32
    %c0_i32_1 = arith.constant 0 : i32
    %c0_i32_2 = arith.constant 0 : i32
    return %c0_i32, %c0_i32_0, %c0_i32_1 : i32, i32, i32
  }
  func.func @transform_15(%arg0: i32) -> (i32, i32) {
    %c0_i32 = arith.constant 0 : i32
    %c0_i32_0 = arith.constant 0 : i32
    %c0_i32_1 = arith.constant 0 : i32
    return %c0_i32, %c0_i32_0 : i32, i32
  }
  func.func @transform_16(%arg0: i32) -> (i32, i32) {
    %c0_i32 = arith.constant 0 : i32
    %c0_i32_0 = arith.constant 0 : i32
    %c0_i32_1 = arith.constant 0 : i32
    return %c0_i32, %c0_i32_0 : i32, i32
  }
  func.func @transform_17(%arg0: i32) -> (i32, i32) {
    %c0_i32 = arith.constant 0 : i32
    %c0_i32_0 = arith.constant 0 : i32
    %c0_i32_1 = arith.constant 0 : i32
    return %c0_i32, %c0_i32_0 : i32, i32
  }
  func.func @transform_18(%arg0: i32) -> (i32, i32) {
    %c0_i32 = arith.constant 0 : i32
    %c0_i32_0 = arith.constant 0 : i32
    %c0_i32_1 = arith.constant 0 : i32
    return %c0_i32, %c0_i32_0 : i32, i32
  }
  func.func @transform_19(%arg0: i32) -> (i32, i32, i32) {
    %c0_i32 = arith.constant 0 : i32
    %c0_i32_0 = arith.constant 0 : i32
    %c0_i32_1 = arith.constant 0 : i32
    return %arg0, %c0_i32, %c0_i32_0 : i32, i32, i32
  }
  func.func @transform_20(%arg0: i32) -> (i32, i32, i32) {
    %c0_i32 = arith.constant 0 : i32
    %c0_i32_0 = arith.constant 0 : i32
    %c0_i32_1 = arith.constant 0 : i32
    return %arg0, %c0_i32, %c0_i32_0 : i32, i32, i32
  }
}

module attributes {stable_mosaic.version = 11 : i64} {
  func.func @_value_kernel(%arg0: memref<2x4096xf32, #tpu.memory_space<vmem>>, %arg1: memref<4096x128xbf16, #tpu.memory_space<vmem>>, %arg2: memref<1x128xf32, #tpu.memory_space<vmem>>, %arg3: memref<128x1xf32, #tpu.memory_space<vmem>>, %arg4: memref<1x1xf32, #tpu.memory_space<vmem>>, %arg5: memref<2x1xf32, #tpu.memory_space<vmem>>) attributes {dimension_semantics = [], scalar_prefetch = 0 : i64, scratch_operands = 0 : i64, tpu.core_type = #tpu.core_type<tc>} {
    %c0 = arith.constant 0 : index
    %c0_0 = arith.constant 0 : index
    %0 = vector.load %arg0[%c0, %c0_0] : memref<2x4096xf32, #tpu.memory_space<vmem>>, vector<2x4096xf32>
    %1 = arith.truncf %0 : vector<2x4096xf32> to vector<2x4096xbf16>
    %c0_1 = arith.constant 0 : index
    %c0_2 = arith.constant 0 : index
    %2 = vector.load %arg1[%c0_1, %c0_2] : memref<4096x128xbf16, #tpu.memory_space<vmem>>, vector<4096x128xbf16>
    %cst = arith.constant dense<0.000000e+00> : vector<2x128xf32>
    %3 = tpu.matmul %1, %2, %cst {dimension_numbers = #tpu.dot_dimension_numbers<[1], [0], [0], [1], [0, 0, 1, 1], [], []>} : vector<2x4096xbf16>, vector<4096x128xbf16>, vector<2x128xf32> -> vector<2x128xf32>
    %c0_3 = arith.constant 0 : index
    %c0_4 = arith.constant 0 : index
    %4 = vector.load %arg2[%c0_3, %c0_4] : memref<1x128xf32, #tpu.memory_space<vmem>>, vector<1x128xf32>
    %5 = vector.broadcast %4 : vector<1x128xf32> to vector<2x128xf32>
    %6 = arith.addf %3, %5 : vector<2x128xf32>
    %cst_5 = arith.constant 0.000000e+00 : f32
    %7 = vector.broadcast %cst_5 : f32 to vector<2x128xf32>
    %8 = arith.maximumf %6, %7 : vector<2x128xf32>
    %c0_6 = arith.constant 0 : index
    %c0_7 = arith.constant 0 : index
    %9 = vector.load %arg3[%c0_6, %c0_7] : memref<128x1xf32, #tpu.memory_space<vmem>>, vector<128x1xf32>
    %cst_8 = arith.constant dense<0.000000e+00> : vector<2x1xf32>
    %10 = tpu.matmul %8, %9, %cst_8 {dimension_numbers = #tpu.dot_dimension_numbers<[1], [0], [0], [1], [0, 0, 1, 1], [], []>} : vector<2x128xf32>, vector<128x1xf32>, vector<2x1xf32> -> vector<2x1xf32>
    %c0_9 = arith.constant 0 : index
    %c0_10 = arith.constant 0 : index
    %11 = vector.load %arg4[%c0_9, %c0_10] : memref<1x1xf32, #tpu.memory_space<vmem>>, vector<1x1xf32>
    %12 = vector.broadcast %11 : vector<1x1xf32> to vector<2x1xf32>
    %13 = arith.addf %10, %12 : vector<2x1xf32>
    %c0_11 = arith.constant 0 : index
    %c0_12 = arith.constant 0 : index
    %14 = vector.load %arg5[%c0_11, %c0_12] : memref<2x1xf32, #tpu.memory_space<vmem>>, vector<2x1xf32>
    tpu.vector_store %arg5[%c0_11, %c0_12], %13 {strides = array<i32>} : memref<2x1xf32, #tpu.memory_space<vmem>>, vector<2x1xf32>,
    return
  }
}

</mosaic_0001>

<llo_original>
// kernel: mlp_mixer_forward.2
$region0: #{mlp_mixer_forward.2}
  #allocation0 [shape = 'u32[]', space=smem, size = 0x4, offset = 0x4, fixed_abs, tag = 'smem constant byte address 0x4 - core index']
  #allocation1 [shape = 'u32[144,128]{1,0:T(1,128)}', space=vmem, size = 0x12000, scoped, tag = 'internal scratch']
  #allocation2 [shape = 'f32[1,1]{1,0:T(1,128)S(1)}', space=vmem, size = 0x200, scoped, tag = 'scoped memory for mlp_mixer_forward.2']
  %s0 = inlined_call_operand.vmem [shape: f32[2,64,2], index: 0, kind: input, shape index: {}]
  %s1 = inlined_call_operand.hbm [shape: f32[2,64], index: 1, kind: input, shape index: {}]
  %s2 = inlined_call_operand.hbm [shape: f32[1,64], index: 2, kind: input, shape index: {}]
  %s3 = inlined_call_operand.hbm [shape: f32[2,1,64], index: 3, kind: input, shape index: {}]
  %s4 = inlined_call_operand.hbm [shape: f32[2,1,64], index: 4, kind: input, shape index: {}]
  %s5 = inlined_call_operand.vmem [shape: bf16[2,128,64], index: 5, kind: input, shape index: {}]
  %s6 = inlined_call_operand.vmem [shape: f32[2,128,64], index: 6, kind: input, shape index: {}]
  %s7 = inlined_call_operand.hbm [shape: bf16[2,64,128], index: 7, kind: input, shape index: {}]
  %s8 = inlined_call_operand.vmem [shape: f32[2,64,64], index: 8, kind: input, shape index: {}]
  %s9 = inlined_call_operand.hbm [shape: f32[2,1,64], index: 9, kind: input, shape index: {}]
  %s10 = inlined_call_operand.hbm [shape: f32[2,1,64], index: 10, kind: input, shape index: {}]
  %s11 = inlined_call_operand.hbm [shape: bf16[2,64,128], index: 11, kind: input, shape index: {}]
  %s12 = inlined_call_operand.hbm [shape: f32[2,1,128], index: 12, kind: input, shape index: {}]
  %s13 = inlined_call_operand.vmem [shape: bf16[2,128,64], index: 13, kind: input, shape index: {}]
  %s14 = inlined_call_operand.hbm [shape: f32[2,1,64], index: 14, kind: input, shape index: {}]
  %s15 = inlined_call_operand.hbm [shape: f32[1,64], index: 15, kind: input, shape index: {}]
  %s16 = inlined_call_operand.hbm [shape: f32[1,64], index: 16, kind: input, shape index: {}]
  %s17 = inlined_call_operand.hbm [shape: f32[1,64], index: 17, kind: input, shape index: {}]
  %s18 = inlined_call_operand.<no memory space> [shape: f32[1,1], index: 18, kind: input, shape index: {}]
  %s19 = inlined_call_operand.vmem [shape: f32[2,64,64], index: 19, kind: output, shape index: {0}]
  %s20 = inlined_call_operand.hbm [shape: f32[2,1,64], index: 20, kind: output, shape index: {1}]
  %21 = xla_tuple %s19, %s20
  %s22 = sld [smem:[#allocation0]]
  $region169: #{mlp_mixer_forward.2} parent=0
    _
  %s24 = ssub.s32 1, %s22
  %s25 = scalar_select 0, %s24, %s22
  %v26 = vstv %s18
  %27 = vst [vmem:[#allocation2] sm:$0x1] %v26
  $region1: #{mlp_mixer_forward.2} parent=0
    #allocation3 [shape = 'u8[1024]{0}', space=vmem, size = 0x400, scoped, tag = 'input window, operand 1, single buffered']
    #allocation4 [shape = 's32[2]{0}', space=sflag, size = 0x8, scoped, tag = 'scoped memory for mlp_mixer_forward.2']
    #allocation5 [shape = 's32[2]{0}', space=sflag, size = 0x8, scoped, tag = 'scoped memory for mlp_mixer_forward.2']
    #allocation6 [shape = 'u8[512]{0}', space=vmem, size = 0x400, scoped, tag = 'input window, operand 2, single buffered']
    #allocation7 [shape = 's32[1]{0}', space=sflag, size = 0x4, scoped, tag = 'scoped memory for mlp_mixer_forward.2']
    #allocation8 [shape = 'u8[1024]{0}', space=vmem, size = 0x400, scoped, tag = 'input window, operand 3, single buffered']
    #allocation9 [shape = 'u8[1024]{0}', space=vmem, size = 0x400, scoped, tag = 'input window, operand 4, single buffered']
    #allocation10 [shape = 's32[1]{0}', space=sflag, size = 0x4, scoped, tag = 'scoped memory for mlp_mixer_forward.2']
    #allocation11 [shape = 'u8[32768]{0}', space=vmem, size = 0x8000, scoped, tag = 'input window, operand 7, single buffered']
    #allocation12 [shape = 'u8[1024]{0}', space=vmem, size = 0x400, scoped, tag = 'input window, operand 9, single buffered']
    #allocation13 [shape = 's32[1]{0}', space=sflag, size = 0x4, scoped, tag = 'scoped memory for mlp_mixer_forward.2']
    #allocation14 [shape = 'u8[1024]{0}', space=vmem, size = 0x400, scoped, tag = 'input window, operand 10, single buffered']
    #allocation15 [shape = 'u8[32768]{0}', space=vmem, size = 0x8000, scoped, tag = 'input window, operand 11, single buffered']
    #allocation16 [shape = 's32[1]{0}', space=sflag, size = 0x4, scoped, tag = 'scoped memory for mlp_mixer_forward.2']
    #allocation17 [shape = 'u8[1024]{0}', space=vmem, size = 0x400, scoped, tag = 'input window, operand 12, single buffered']
    #allocation18 [shape = 'u8[1024]{0}', space=vmem, size = 0x400, scoped, tag = 'input window, operand 14, single buffered']
    #allocation19 [shape = 's32[1]{0}', space=sflag, size = 0x4, scoped, tag = 'scoped memory for mlp_mixer_forward.2']
    #allocation20 [shape = 'u8[512]{0}', space=vmem, size = 0x400, scoped, tag = 'input window, operand 15, single buffered']
    #allocation21 [shape = 'u8[512]{0}', space=vmem, size = 0x400, scoped, tag = 'input window, operand 16, single buffered']
    #allocation22 [shape = 's32[1]{0}', space=sflag, size = 0x4, scoped, tag = 'scoped memory for mlp_mixer_forward.2']
    #allocation23 [shape = 'u8[512]{0}', space=vmem, size = 0x400, scoped, tag = 'input window, operand 17, single buffered']
    #allocation24 [shape = 'u8[1024]{0}', space=vmem, size = 0x400, scoped, tag = 'output window, operand 1']
    %28 = vsyncpa [#allocation4], 0
    %29 = vsyncpa [#allocation7], 0
    %30 = vsyncpa [#allocation10], 0
    %31 = vsyncpa [#allocation13], 0
    %32 = vsyncpa [#allocation16], 0
    %33 = vsyncpa [#allocation19], 0
    %34 = vsyncpa [#allocation22], 0
    %35 = vsyncpa [#allocation5], 0
    %s36 = scalar_lea.sflag [#allocation5], 1
    %37 = vsyncpa %s36, 0
    loop: start=0, step=1, limit=4
    $region2: #{mlp_mixer_forward.2} parent=1 // loop_pre_header
      _
    $region3: #{mlp_mixer_forward.2} parent=1 // loop_header
      %s39 = sphi 0, %s43
      %p40 = scmp.ge.s32.totalorder %s39, 4
      %s49 = sphi 0, %s51
      %s52 = sphi 0, %s49
      %s53 = sphi 0, %s52
      %s69 = sphi 0, %s53
      %s73 = sphi 0, %s73
      %s75 = sphi 0, %s73
      %s76 = sphi 0, %s75
      %s90 = sphi 0, %s76
      %s94 = sphi 0, %s94
      %s96 = sphi 0, %s94
      %s97 = sphi 0, %s96
      %s111 = sphi 0, %s97
      %s115 = sphi 0, %s115
      %s117 = sphi 0, %s115
      %s118 = sphi 0, %s117
      %s132 = sphi 0, %s118
      %s136 = sphi 0, %s136
      %s138 = sphi 0, %s136
      %s139 = sphi 0, %s138
      %s153 = sphi 0, %s139
      %s157 = sphi 0, %s157
      %s159 = sphi 0, %s157
      %s160 = sphi 0, %s159
      %s174 = sphi 0, %s160
      %s178 = sphi 0, %s178
      %s180 = sphi 0, %s178
      %s181 = sphi 0, %s180
      %s195 = sphi 0, %s181
      %s199 = sphi 0, %s199
      %s201 = sphi 0, %s199
      %s202 = sphi 0, %s201
      %s216 = sphi 0, %s202
      %s220 = sphi 0, %s220
      %s222 = sphi 0, %s220
      %s223 = sphi 0, %s222
      %s237 = sphi 0, %s223
      %s241 = sphi 0, %s241
      %s243 = sphi 0, %s241
      %s244 = sphi 0, %s243
      %s258 = sphi 0, %s244
      %s262 = sphi 0, %s262
      %s264 = sphi 0, %s262
      %s265 = sphi 0, %s264
      %s279 = sphi 0, %s265
      %s283 = sphi 0, %s283
      %s285 = sphi 0, %s283
      %s286 = sphi 0, %s285
      %s300 = sphi 0, %s286
      %s304 = sphi 0, %s304
      %s306 = sphi 0, %s304
      %s307 = sphi 0, %s306
      %s321 = sphi 0, %s307
      %s325 = sphi 0, %s325
      %s327 = sphi 0, %s325
      %s328 = sphi 0, %s327
      %s342 = sphi 0, %s328
      %s346 = sphi 0, %s346
      %s348 = sphi 0, %s346
      %s349 = sphi 0, %s348
      %s363 = sphi 0, %s349
      %s367 = sphi 0, %s367
      %s369 = sphi 0, %s367
      %s370 = sphi 0, %s369
      %s384 = sphi 0, %s370
      %s388 = sphi 0, %s388
      %s390 = sphi 0, %s388
      %s391 = sphi 0, %s390
      %s405 = sphi 0, %s391
      %s409 = sphi 0, %s409
      %s411 = sphi 0, %s409
      %s412 = sphi 0, %s411
      %s426 = sphi 0, %s412
      %s430 = sphi 0, %s430
      %s432 = sphi 0, %s430
      %s433 = sphi 0, %s432
      %s447 = sphi 0, %s433
      %s453 = sphi 0, %s455
      %s456 = sphi 0, %s453
      %s457 = sphi 0, %s456
      %s473 = sphi 0, %s457
      %s479 = sphi 0, %s481
      %s482 = sphi 0, %s479
      %s483 = sphi 0, %s482
      %s499 = sphi 0, %s483
    $region4: #{mlp_mixer_forward.2} parent=1 // loop_header_branch
      %42 = sbr.rel (%p40) target = $region8
    $region5: #{mlp_mixer_forward.2} parent=1 // loop_body
      %s44 = ssub.s32 %s39, 1
      %s45 = ssub.s32 %s39, 2
      %s46 = sadd.s32 %s39, 1
      %s47 = ssub.s32 %s39, %s46
      %p48 = scmp.eq.s32.totalorder %s47, 0
      %s50 = sadd.s32 %s49, 1
      %s51 = scalar_select %p48, %s49, %s50
      %p54 = pneg %p48
      %p55 = scmp.eq.s32.totalorder %s39, 1
      %p56 = por %p54, %p55
      %p57 = scmp.ne.s32.totalorder %s49, %s52
      %p58 = scmp.eq.s32.totalorder %s39, 0
      %p59 = por %p57, %p58
      %p60 = scmp.ne.s32.totalorder %s49, %s52
      %p61 = scmp.eq.s32.totalorder %s44, 1
      %p62 = por %p60, %p61
      %p63 = scmp.ne.s32.totalorder %s52, %s53
      %p64 = scmp.eq.s32.totalorder %s44, 0
      %p65 = por %p63, %p64
      %p66 = scmp.ne.s32.totalorder %s52, %s53
      %p67 = scmp.eq.s32.totalorder %s45, 1
      %p68 = por %p66, %p67
      %p70 = scmp.ne.s32.totalorder %s53, %s69
      %p71 = scmp.eq.s32.totalorder %s45, 0
      %p72 = por %p70, %p71
      %s74 = sadd.s32 %s73, 1
      %p77 = scmp.eq.s32.totalorder %s39, 1
      %p78 = scmp.ne.s32.totalorder %s73, %s75
      %p79 = scmp.eq.s32.totalorder %s39, 0
      %p80 = por %p78, %p79
      %p81 = scmp.ne.s32.totalorder %s73, %s75
      %p82 = scmp.eq.s32.totalorder %s44, 1
      %p83 = por %p81, %p82
      %p84 = scmp.ne.s32.totalorder %s75, %s76
      %p85 = scmp.eq.s32.totalorder %s44, 0
      %p86 = por %p84, %p85
      %p87 = scmp.ne.s32.totalorder %s75, %s76
      %p88 = scmp.eq.s32.totalorder %s45, 1
      %p89 = por %p87, %p88
      %p91 = scmp.ne.s32.totalorder %s76, %s90
      %p92 = scmp.eq.s32.totalorder %s45, 0
      %p93 = por %p91, %p92
      %s95 = sadd.s32 %s94, 1
      %p98 = scmp.eq.s32.totalorder %s39, 1
      %p99 = scmp.ne.s32.totalorder %s94, %s96
      %p100 = scmp.eq.s32.totalorder %s39, 0
      %p101 = por %p99, %p100
      %p102 = scmp.ne.s32.totalorder %s94, %s96
      %p103 = scmp.eq.s32.totalorder %s44, 1
      %p104 = por %p102, %p103
      %p105 = scmp.ne.s32.totalorder %s96, %s97
      %p106 = scmp.eq.s32.totalorder %s44, 0
      %p107 = por %p105, %p106
      %p108 = scmp.ne.s32.totalorder %s96, %s97
      %p109 = scmp.eq.s32.totalorder %s45, 1
      %p110 = por %p108, %p109
      %p112 = scmp.ne.s32.totalorder %s97, %s111
      %p113 = scmp.eq.s32.totalorder %s45, 0
      %p114 = por %p112, %p113
      %s116 = sadd.s32 %s115, 1
      %p119 = scmp.eq.s32.totalorder %s39, 1
      %p120 = scmp.ne.s32.totalorder %s115, %s117
      %p121 = scmp.eq.s32.totalorder %s39, 0
      %p122 = por %p120, %p121
      %p123 = scmp.ne.s32.totalorder %s115, %s117
      %p124 = scmp.eq.s32.totalorder %s44, 1
      %p125 = por %p123, %p124
      %p126 = scmp.ne.s32.totalorder %s117, %s118
      %p127 = scmp.eq.s32.totalorder %s44, 0
      %p128 = por %p126, %p127
      %p129 = scmp.ne.s32.totalorder %s117, %s118
      %p130 = scmp.eq.s32.totalorder %s45, 1
      %p131 = por %p129, %p130
      %p133 = scmp.ne.s32.totalorder %s118, %s132
      %p134 = scmp.eq.s32.totalorder %s45, 0
      %p135 = por %p133, %p134
      %s137 = sadd.s32 %s136, 1
      %p140 = scmp.eq.s32.totalorder %s39, 1
      %p141 = scmp.ne.s32.totalorder %s136, %s138
      %p142 = scmp.eq.s32.totalorder %s39, 0
      %p143 = por %p141, %p142
      %p144 = scmp.ne.s32.totalorder %s136, %s138
      %p145 = scmp.eq.s32.totalorder %s44, 1
      %p146 = por %p144, %p145
      %p147 = scmp.ne.s32.totalorder %s138, %s139
      %p148 = scmp.eq.s32.totalorder %s44, 0
      %p149 = por %p147, %p148
      %p150 = scmp.ne.s32.totalorder %s138, %s139
      %p151 = scmp.eq.s32.totalorder %s45, 1
      %p152 = por %p150, %p151
      %p154 = scmp.ne.s32.totalorder %s139, %s153
      %p155 = scmp.eq.s32.totalorder %s45, 0
      %p156 = por %p154, %p155
      %s158 = sadd.s32 %s157, 1
      %p161 = scmp.eq.s32.totalorder %s39, 1
      %p162 = scmp.ne.s32.totalorder %s157, %s159
      %p163 = scmp.eq.s32.totalorder %s39, 0
      %p164 = por %p162, %p163
      %p165 = scmp.ne.s32.totalorder %s157, %s159
      %p166 = scmp.eq.s32.totalorder %s44, 1
      %p167 = por %p165, %p166
      %p168 = scmp.ne.s32.totalorder %s159, %s160
      %p169 = scmp.eq.s32.totalorder %s44, 0
      %p170 = por %p168, %p169
      %p171 = scmp.ne.s32.totalorder %s159, %s160
      %p172 = scmp.eq.s32.totalorder %s45, 1
      %p173 = por %p171, %p172
      %p175 = scmp.ne.s32.totalorder %s160, %s174
      %p176 = scmp.eq.s32.totalorder %s45, 0
      %p177 = por %p175, %p176
      %s179 = sadd.s32 %s178, 1
      %p182 = scmp.eq.s32.totalorder %s39, 1
      %p183 = scmp.ne.s32.totalorder %s178, %s180
      %p184 = scmp.eq.s32.totalorder %s39, 0
      %p185 = por %p183, %p184
      %p186 = scmp.ne.s32.totalorder %s178, %s180
      %p187 = scmp.eq.s32.totalorder %s44, 1
      %p188 = por %p186, %p187
      %p189 = scmp.ne.s32.totalorder %s180, %s181
      %p190 = scmp.eq.s32.totalorder %s44, 0
      %p191 = por %p189, %p190
      %p192 = scmp.ne.s32.totalorder %s180, %s181
      %p193 = scmp.eq.s32.totalorder %s45, 1
      %p194 = por %p192, %p193
      %p196 = scmp.ne.s32.totalorder %s181, %s195
      %p197 = scmp.eq.s32.totalorder %s45, 0
      %p198 = por %p196, %p197
      %s200 = sadd.s32 %s199, 1
      %p203 = scmp.eq.s32.totalorder %s39, 1
      %p204 = scmp.ne.s32.totalorder %s199, %s201
      %p205 = scmp.eq.s32.totalorder %s39, 0
      %p206 = por %p204, %p205
      %p207 = scmp.ne.s32.totalorder %s199, %s201
      %p208 = scmp.eq.s32.totalorder %s44, 1
      %p209 = por %p207, %p208
      %p210 = scmp.ne.s32.totalorder %s201, %s202
      %p211 = scmp.eq.s32.totalorder %s44, 0
      %p212 = por %p210, %p211
      %p213 = scmp.ne.s32.totalorder %s201, %s202
      %p214 = scmp.eq.s32.totalorder %s45, 1
      %p215 = por %p213, %p214
      %p217 = scmp.ne.s32.totalorder %s202, %s216
      %p218 = scmp.eq.s32.totalorder %s45, 0
      %p219 = por %p217, %p218
      %s221 = sadd.s32 %s220, 1
      %p224 = scmp.eq.s32.totalorder %s39, 1
      %p225 = scmp.ne.s32.totalorder %s220, %s222
      %p226 = scmp.eq.s32.totalorder %s39, 0
      %p227 = por %p225, %p226
      %p228 = scmp.ne.s32.totalorder %s220, %s222
      %p229 = scmp.eq.s32.totalorder %s44, 1
      %p230 = por %p228, %p229
      %p231 = scmp.ne.s32.totalorder %s222, %s223
      %p232 = scmp.eq.s32.totalorder %s44, 0
      %p233 = por %p231, %p232
      %p234 = scmp.ne.s32.totalorder %s222, %s223
      %p235 = scmp.eq.s32.totalorder %s45, 1
      %p236 = por %p234, %p235
      %p238 = scmp.ne.s32.totalorder %s223, %s237
      %p239 = scmp.eq.s32.totalorder %s45, 0
      %p240 = por %p238, %p239
      %s242 = sadd.s32 %s241, 1
      %p245 = scmp.eq.s32.totalorder %s39, 1
      %p246 = scmp.ne.s32.totalorder %s241, %s243
      %p247 = scmp.eq.s32.totalorder %s39, 0
      %p248 = por %p246, %p247
      %p249 = scmp.ne.s32.totalorder %s241, %s243
      %p250 = scmp.eq.s32.totalorder %s44, 1
      %p251 = por %p249, %p250
      %p252 = scmp.ne.s32.totalorder %s243, %s244
      %p253 = scmp.eq.s32.totalorder %s44, 0
      %p254 = por %p252, %p253
      %p255 = scmp.ne.s32.totalorder %s243, %s244
      %p256 = scmp.eq.s32.totalorder %s45, 1
      %p257 = por %p255, %p256
      %p259 = scmp.ne.s32.totalorder %s244, %s258
      %p260 = scmp.eq.s32.totalorder %s45, 0
      %p261 = por %p259, %p260
      %s263 = sadd.s32 %s262, 1
      %p266 = scmp.eq.s32.totalorder %s39, 1
      %p267 = scmp.ne.s32.totalorder %s262, %s264
      %p268 = scmp.eq.s32.totalorder %s39, 0
      %p269 = por %p267, %p268
      %p270 = scmp.ne.s32.totalorder %s262, %s264
      %p271 = scmp.eq.s32.totalorder %s44, 1
      %p272 = por %p270, %p271
      %p273 = scmp.ne.s32.totalorder %s264, %s265
      %p274 = scmp.eq.s32.totalorder %s44, 0
      %p275 = por %p273, %p274
      %p276 = scmp.ne.s32.totalorder %s264, %s265
      %p277 = scmp.eq.s32.totalorder %s45, 1
      %p278 = por %p276, %p277
      %p280 = scmp.ne.s32.totalorder %s265, %s279
      %p281 = scmp.eq.s32.totalorder %s45, 0
      %p282 = por %p280, %p281
      %s284 = sadd.s32 %s283, 1
      %p287 = scmp.eq.s32.totalorder %s39, 1
      %p288 = scmp.ne.s32.totalorder %s283, %s285
      %p289 = scmp.eq.s32.totalorder %s39, 0
      %p290 = por %p288, %p289
      %p291 = scmp.ne.s32.totalorder %s283, %s285
      %p292 = scmp.eq.s32.totalorder %s44, 1
      %p293 = por %p291, %p292
      %p294 = scmp.ne.s32.totalorder %s285, %s286
      %p295 = scmp.eq.s32.totalorder %s44, 0
      %p296 = por %p294, %p295
      %p297 = scmp.ne.s32.totalorder %s285, %s286
      %p298 = scmp.eq.s32.totalorder %s45, 1
      %p299 = por %p297, %p298
      %p301 = scmp.ne.s32.totalorder %s286, %s300
      %p302 = scmp.eq.s32.totalorder %s45, 0
      %p303 = por %p301, %p302
      %s305 = sadd.s32 %s304, 1
      %p308 = scmp.eq.s32.totalorder %s39, 1
      %p309 = scmp.ne.s32.totalorder %s304, %s306
      %p310 = scmp.eq.s32.totalorder %s39, 0
      %p311 = por %p309, %p310
      %p312 = scmp.ne.s32.totalorder %s304, %s306
      %p313 = scmp.eq.s32.totalorder %s44, 1
      %p314 = por %p312, %p313
      %p315 = scmp.ne.s32.totalorder %s306, %s307
      %p316 = scmp.eq.s32.totalorder %s44, 0
      %p317 = por %p315, %p316
      %p318 = scmp.ne.s32.totalorder %s306, %s307
      %p319 = scmp.eq.s32.totalorder %s45, 1
      %p320 = por %p318, %p319
      %p322 = scmp.ne.s32.totalorder %s307, %s321
      %p323 = scmp.eq.s32.totalorder %s45, 0
      %p324 = por %p322, %p323
      %s326 = sadd.s32 %s325, 1
      %p329 = scmp.eq.s32.totalorder %s39, 1
      %p330 = scmp.ne.s32.totalorder %s325, %s327
      %p331 = scmp.eq.s32.totalorder %s39, 0
      %p332 = por %p330, %p331
      %p333 = scmp.ne.s32.totalorder %s325, %s327
      %p334 = scmp.eq.s32.totalorder %s44, 1
      %p335 = por %p333, %p334
      %p336 = scmp.ne.s32.totalorder %s327, %s328
      %p337 = scmp.eq.s32.totalorder %s44, 0
      %p338 = por %p336, %p337
      %p339 = scmp.ne.s32.totalorder %s327, %s328
      %p340 = scmp.eq.s32.totalorder %s45, 1
      %p341 = por %p339, %p340
      %p343 = scmp.ne.s32.totalorder %s328, %s342
      %p344 = scmp.eq.s32.totalorder %s45, 0
      %p345 = por %p343, %p344
      %s347 = sadd.s32 %s346, 1
      %p350 = scmp.eq.s32.totalorder %s39, 1
      %p351 = scmp.ne.s32.totalorder %s346, %s348
      %p352 = scmp.eq.s32.totalorder %s39, 0
      %p353 = por %p351, %p352
      %p354 = scmp.ne.s32.totalorder %s346, %s348
      %p355 = scmp.eq.s32.totalorder %s44, 1
      %p356 = por %p354, %p355
      %p357 = scmp.ne.s32.totalorder %s348, %s349
      %p358 = scmp.eq.s32.totalorder %s44, 0
      %p359 = por %p357, %p358
      %p360 = scmp.ne.s32.totalorder %s348, %s349
      %p361 = scmp.eq.s32.totalorder %s45, 1
      %p362 = por %p360, %p361
      %p364 = scmp.ne.s32.totalorder %s349, %s363
      %p365 = scmp.eq.s32.totalorder %s45, 0
      %p366 = por %p364, %p365
      %s368 = sadd.s32 %s367, 1
      %p371 = scmp.eq.s32.totalorder %s39, 1
      %p372 = scmp.ne.s32.totalorder %s367, %s369
      %p373 = scmp.eq.s32.totalorder %s39, 0
      %p374 = por %p372, %p373
      %p375 = scmp.ne.s32.totalorder %s367, %s369
      %p376 = scmp.eq.s32.totalorder %s44, 1
      %p377 = por %p375, %p376
      %p378 = scmp.ne.s32.totalorder %s369, %s370
      %p379 = scmp.eq.s32.totalorder %s44, 0
      %p380 = por %p378, %p379
      %p381 = scmp.ne.s32.totalorder %s369, %s370
      %p382 = scmp.eq.s32.totalorder %s45, 1
      %p383 = por %p381, %p382
      %p385 = scmp.ne.s32.totalorder %s370, %s384
      %p386 = scmp.eq.s32.totalorder %s45, 0
      %p387 = por %p385, %p386
      %s389 = sadd.s32 %s388, 1
      %p392 = scmp.eq.s32.totalorder %s39, 1
      %p393 = scmp.ne.s32.totalorder %s388, %s390
      %p394 = scmp.eq.s32.totalorder %s39, 0
      %p395 = por %p393, %p394
      %p396 = scmp.ne.s32.totalorder %s388, %s390
      %p397 = scmp.eq.s32.totalorder %s44, 1
      %p398 = por %p396, %p397
      %p399 = scmp.ne.s32.totalorder %s390, %s391
      %p400 = scmp.eq.s32.totalorder %s44, 0
      %p401 = por %p399, %p400
      %p402 = scmp.ne.s32.totalorder %s390, %s391
      %p403 = scmp.eq.s32.totalorder %s45, 1
      %p404 = por %p402, %p403
      %p406 = scmp.ne.s32.totalorder %s391, %s405
      %p407 = scmp.eq.s32.totalorder %s45, 0
      %p408 = por %p406, %p407
      %s410 = sadd.s32 %s409, 1
      %p413 = scmp.eq.s32.totalorder %s39, 1
      %p414 = scmp.ne.s32.totalorder %s409, %s411
      %p415 = scmp.eq.s32.totalorder %s39, 0
      %p416 = por %p414, %p415
      %p417 = scmp.ne.s32.totalorder %s409, %s411
      %p418 = scmp.eq.s32.totalorder %s44, 1
      %p419 = por %p417, %p418
      %p420 = scmp.ne.s32.totalorder %s411, %s412
      %p421 = scmp.eq.s32.totalorder %s44, 0
      %p422 = por %p420, %p421
      %p423 = scmp.ne.s32.totalorder %s411, %s412
      %p424 = scmp.eq.s32.totalorder %s45, 1
      %p425 = por %p423, %p424
      %p427 = scmp.ne.s32.totalorder %s412, %s426
      %p428 = scmp.eq.s32.totalorder %s45, 0
      %p429 = por %p427, %p428
      %s431 = sadd.s32 %s430, 1
      %p434 = scmp.eq.s32.totalorder %s39, 1
      %p435 = scmp.ne.s32.totalorder %s430, %s432
      %p436 = scmp.eq.s32.totalorder %s39, 0
      %p437 = por %p435, %p436
      %p438 = scmp.ne.s32.totalorder %s430, %s432
      %p439 = scmp.eq.s32.totalorder %s44, 1
      %p440 = por %p438, %p439
      %p441 = scmp.ne.s32.totalorder %s432, %s433
      %p442 = scmp.eq.s32.totalorder %s44, 0
      %p443 = por %p441, %p442
      %p444 = scmp.ne.s32.totalorder %s432, %s433
      %p445 = scmp.eq.s32.totalorder %s45, 1
      %p446 = por %p444, %p445
      %p448 = scmp.ne.s32.totalorder %s433, %s447
      %p449 = scmp.eq.s32.totalorder %s45, 0
      %p450 = por %p448, %p449
      %s451 = ssub.s32 %s39, %s46
      %p452 = scmp.eq.s32.totalorder %s451, 0
      %s454 = sadd.s32 %s453, 1
      %s455 = scalar_select %p452, %s453, %s454
      %p458 = pneg %p452
      %p459 = scmp.eq.s32.totalorder %s39, 1
      %p460 = por %p458, %p459
      %p461 = scmp.ne.s32.totalorder %s453, %s456
      %p462 = scmp.eq.s32.totalorder %s39, 0
      %p463 = por %p461, %p462
      %p464 = scmp.ne.s32.totalorder %s453, %s456
      %p465 = scmp.eq.s32.totalorder %s44, 1
      %p466 = por %p464, %p465
      %p467 = scmp.ne.s32.totalorder %s456, %s457
      %p468 = scmp.eq.s32.totalorder %s44, 0
      %p469 = por %p467, %p468
      %p470 = scmp.ne.s32.totalorder %s456, %s457
      %p471 = scmp.eq.s32.totalorder %s45, 1
      %p472 = por %p470, %p471
      %p474 = scmp.ne.s32.totalorder %s457, %s473
      %p475 = scmp.eq.s32.totalorder %s45, 0
      %p476 = por %p474, %p475
      %s477 = ssub.s32 %s39, %s46
      %p478 = scmp.eq.s32.totalorder %s477, 0
      %s480 = sadd.s32 %s479, 1
      %s481 = scalar_select %p478, %s479, %s480
      %p484 = pneg %p478
      %p485 = scmp.eq.s32.totalorder %s39, 1
      %p486 = por %p484, %p485
      %p487 = scmp.ne.s32.totalorder %s479, %s482
      %p488 = scmp.eq.s32.totalorder %s39, 0
      %p489 = por %p487, %p488
      %p490 = scmp.ne.s32.totalorder %s479, %s482
      %p491 = scmp.eq.s32.totalorder %s44, 1
      %p492 = por %p490, %p491
      %p493 = scmp.ne.s32.totalorder %s482, %s483
      %p494 = scmp.eq.s32.totalorder %s44, 0
      %p495 = por %p493, %p494
      %p496 = scmp.ne.s32.totalorder %s482, %s483
      %p497 = scmp.eq.s32.totalorder %s45, 1
      %p498 = por %p496, %p497
      %p500 = scmp.ne.s32.totalorder %s483, %s499
      %p501 = scmp.eq.s32.totalorder %s45, 0
      %p502 = por %p500, %p501
      %p503 = scmp.le.s32.totalorder 1, %s39
      %p504 = scmp.lt.s32.totalorder %s39, 3
      %p505 = pnand %p503, %p504
      %p506 = pneg %p505
      // Predicated region
      $region9: #{mlp_mixer_forward.2} parent=5 // pred_check
        _
      $region10: #{mlp_mixer_forward.2} parent=5 // pred_check_branch
        %508 = sbr.rel (%p505) target = $region12
      $region11: #{mlp_mixer_forward.2} parent=5 // pred_region
        %s509 = ssub.s32 %s39, 1
        // Predicated region
        $region13: #{mlp_mixer_forward.2} parent=11 // pred_check
          %p510 = pneg %p86
        $region14: #{mlp_mixer_forward.2} parent=11 // pred_check_branch
          %512 = sbr.rel (%p510) target = $region16
        $region15: #{mlp_mixer_forward.2} parent=11 // pred_region
          %s514 = ssub.s32 32, 32
          %515 = vsyncadd [#allocation4], %s514
          %s517 = sshll.u32 [#allocation3], 4
          %s518 = int_to_ptr.vmem [resolvable:$true] %s517
          %520 = dma.hbm_to_vmem [thread:$0]  %s1, 32, %s518, [#allocation4]
        $region16: #{mlp_mixer_forward.2} parent=11 // pred_fallthru
          _
        // Predicated region
        $region17: #{mlp_mixer_forward.2} parent=11 // pred_check
          %p521 = pneg %p107
        $region18: #{mlp_mixer_forward.2} parent=11 // pred_check_branch
          %523 = sbr.rel (%p521) target = $region20
        $region19: #{mlp_mixer_forward.2} parent=11 // pred_region
          %s525 = ssub.s32 16, 16
          %526 = vsyncadd [#allocation7], %s525
          %s528 = sshll.u32 [#allocation6], 4
          %s529 = int_to_ptr.vmem [resolvable:$true] %s528
          %531 = dma.hbm_to_vmem [thread:$0]  %s2, 16, %s529, [#allocation7]
        $region20: #{mlp_mixer_forward.2} parent=11 // pred_fallthru
          _
        // Predicated region
        $region21: #{mlp_mixer_forward.2} parent=11 // pred_check
          %p532 = pneg %p128
        $region22: #{mlp_mixer_forward.2} parent=11 // pred_check_branch
          %534 = sbr.rel (%p532) target = $region24
        $region23: #{mlp_mixer_forward.2} parent=11 // pred_region
          %s536 = ssub.s32 32, 32
          %537 = vsyncadd [#allocation7], %s536
          %s538 = sshll.u32 [#allocation8], 4
          %s539 = int_to_ptr.vmem [resolvable:$true] %s538
          %544 = dma.hbm_to_vmem [thread:$0]  %s3, 32, %s539, [#allocation7], 16, 16, 1
        $region24: #{mlp_mixer_forward.2} parent=11 // pred_fallthru
          _
        // Predicated region
        $region25: #{mlp_mixer_forward.2} parent=11 // pred_check
          %p545 = pneg %p149
        $region26: #{mlp_mixer_forward.2} parent=11 // pred_check_branch
          %547 = sbr.rel (%p545) target = $region28
        $region27: #{mlp_mixer_forward.2} parent=11 // pred_region
          %s549 = ssub.s32 32, 32
          %550 = vsyncadd [#allocation10], %s549
          %s551 = sshll.u32 [#allocation9], 4
          %s552 = int_to_ptr.vmem [resolvable:$true] %s551
          %557 = dma.hbm_to_vmem [thread:$0]  %s4, 32, %s552, [#allocation10], 16, 16, 1
        $region28: #{mlp_mixer_forward.2} parent=11 // pred_fallthru
          _
        // Predicated region
        $region29: #{mlp_mixer_forward.2} parent=11 // pred_check
          %p558 = pneg %p170
        $region30: #{mlp_mixer_forward.2} parent=11 // pred_check_branch
          %560 = sbr.rel (%p558) target = $region32
        $region31: #{mlp_mixer_forward.2} parent=11 // pred_region
          _
        $region32: #{mlp_mixer_forward.2} parent=11 // pred_fallthru
          _
        // Predicated region
        $region33: #{mlp_mixer_forward.2} parent=11 // pred_check
          %p561 = pneg %p191
        $region34: #{mlp_mixer_forward.2} parent=11 // pred_check_branch
          %563 = sbr.rel (%p561) target = $region36
        $region35: #{mlp_mixer_forward.2} parent=11 // pred_region
          _
        $region36: #{mlp_mixer_forward.2} parent=11 // pred_fallthru
          _
        // Predicated region
        $region37: #{mlp_mixer_forward.2} parent=11 // pred_check
          %p564 = pneg %p212
        $region38: #{mlp_mixer_forward.2} parent=11 // pred_check_branch
          %566 = sbr.rel (%p564) target = $region40
        $region39: #{mlp_mixer_forward.2} parent=11 // pred_region
          %s568 = ssub.s32 1024, 1024
          %569 = vsyncadd [#allocation10], %s568
          %s570 = sshll.u32 [#allocation11], 4
          %s571 = int_to_ptr.vmem [resolvable:$true] %s570
          %576 = dma.hbm_to_vmem [thread:$0]  %s7, 1024, %s571, [#allocation10], 64, 64, 4
        $region40: #{mlp_mixer_forward.2} parent=11 // pred_fallthru
          _
        // Predicated region
        $region41: #{mlp_mixer_forward.2} parent=11 // pred_check
          %p577 = pneg %p233
        $region42: #{mlp_mixer_forward.2} parent=11 // pred_check_branch
          %579 = sbr.rel (%p577) target = $region44
        $region43: #{mlp_mixer_forward.2} parent=11 // pred_region
          _
        $region44: #{mlp_mixer_forward.2} parent=11 // pred_fallthru
          _
        // Predicated region
        $region45: #{mlp_mixer_forward.2} parent=11 // pred_check
          %p580 = pneg %p254
        $region46: #{mlp_mixer_forward.2} parent=11 // pred_check_branch
          %582 = sbr.rel (%p580) target = $region48
        $region47: #{mlp_mixer_forward.2} parent=11 // pred_region
          %s584 = ssub.s32 32, 32
          %585 = vsyncadd [#allocation13], %s584
          %s586 = sshll.u32 [#allocation12], 4
          %s587 = int_to_ptr.vmem [resolvable:$true] %s586
          %592 = dma.hbm_to_vmem [thread:$0]  %s9, 32, %s587, [#allocation13], 16, 16, 1
        $region48: #{mlp_mixer_forward.2} parent=11 // pred_fallthru
          _
        // Predicated region
        $region49: #{mlp_mixer_forward.2} parent=11 // pred_check
          %p593 = pneg %p275
        $region50: #{mlp_mixer_forward.2} parent=11 // pred_check_branch
          %595 = sbr.rel (%p593) target = $region52
        $region51: #{mlp_mixer_forward.2} parent=11 // pred_region
          %s597 = ssub.s32 32, 32
          %598 = vsyncadd [#allocation13], %s597
          %s599 = sshll.u32 [#allocation14], 4
          %s600 = int_to_ptr.vmem [resolvable:$true] %s599
          %605 = dma.hbm_to_vmem [thread:$0]  %s10, 32, %s600, [#allocation13], 16, 16, 1
        $region52: #{mlp_mixer_forward.2} parent=11 // pred_fallthru
          _
        // Predicated region
        $region53: #{mlp_mixer_forward.2} parent=11 // pred_check
          %p606 = pneg %p296
        $region54: #{mlp_mixer_forward.2} parent=11 // pred_check_branch
          %608 = sbr.rel (%p606) target = $region56
        $region55: #{mlp_mixer_forward.2} parent=11 // pred_region
          %s610 = ssub.s32 1024, 1024
          %611 = vsyncadd [#allocation16], %s610
          %s612 = sshll.u32 [#allocation15], 4
          %s613 = int_to_ptr.vmem [resolvable:$true] %s612
          %618 = dma.hbm_to_vmem [thread:$0]  %s11, 1024, %s613, [#allocation16], 64, 64, 4
        $region56: #{mlp_mixer_forward.2} parent=11 // pred_fallthru
          _
        // Predicated region
        $region57: #{mlp_mixer_forward.2} parent=11 // pred_check
          %p619 = pneg %p317
        $region58: #{mlp_mixer_forward.2} parent=11 // pred_check_branch
          %621 = sbr.rel (%p619) target = $region60
        $region59: #{mlp_mixer_forward.2} parent=11 // pred_region
          %s623 = ssub.s32 32, 32
          %624 = vsyncadd [#allocation16], %s623
          %s625 = sshll.u32 [#allocation17], 4
          %s626 = int_to_ptr.vmem [resolvable:$true] %s625
          %631 = dma.hbm_to_vmem [thread:$0]  %s12, 32, %s626, [#allocation16], 16, 16, 1
        $region60: #{mlp_mixer_forward.2} parent=11 // pred_fallthru
          _
        // Predicated region
        $region61: #{mlp_mixer_forward.2} parent=11 // pred_check
          %p632 = pneg %p338
        $region62: #{mlp_mixer_forward.2} parent=11 // pred_check_branch
          %634 = sbr.rel (%p632) target = $region64
        $region63: #{mlp_mixer_forward.2} parent=11 // pred_region
          _
        $region64: #{mlp_mixer_forward.2} parent=11 // pred_fallthru
          _
        // Predicated region
        $region65: #{mlp_mixer_forward.2} parent=11 // pred_check
          %p635 = pneg %p359
        $region66: #{mlp_mixer_forward.2} parent=11 // pred_check_branch
          %637 = sbr.rel (%p635) target = $region68
        $region67: #{mlp_mixer_forward.2} parent=11 // pred_region
          %s639 = ssub.s32 32, 32
          %640 = vsyncadd [#allocation19], %s639
          %s641 = sshll.u32 [#allocation18], 4
          %s642 = int_to_ptr.vmem [resolvable:$true] %s641
          %647 = dma.hbm_to_vmem [thread:$0]  %s14, 32, %s642, [#allocation19], 16, 16, 1
        $region68: #{mlp_mixer_forward.2} parent=11 // pred_fallthru
          _
        // Predicated region
        $region69: #{mlp_mixer_forward.2} parent=11 // pred_check
          %p648 = pneg %p380
        $region70: #{mlp_mixer_forward.2} parent=11 // pred_check_branch
          %650 = sbr.rel (%p648) target = $region72
        $region71: #{mlp_mixer_forward.2} parent=11 // pred_region
          %s652 = ssub.s32 16, 16
          %653 = vsyncadd [#allocation19], %s652
          %s655 = sshll.u32 [#allocation20], 4
          %s656 = int_to_ptr.vmem [resolvable:$true] %s655
          %658 = dma.hbm_to_vmem [thread:$0]  %s15, 16, %s656, [#allocation19]
        $region72: #{mlp_mixer_forward.2} parent=11 // pred_fallthru
          _
        // Predicated region
        $region73: #{mlp_mixer_forward.2} parent=11 // pred_check
          %p659 = pneg %p401
        $region74: #{mlp_mixer_forward.2} parent=11 // pred_check_branch
          %661 = sbr.rel (%p659) target = $region76
        $region75: #{mlp_mixer_forward.2} parent=11 // pred_region
          %s663 = ssub.s32 16, 16
          %664 = vsyncadd [#allocation22], %s663
          %s666 = sshll.u32 [#allocation21], 4
          %s667 = int_to_ptr.vmem [resolvable:$true] %s666
          %669 = dma.hbm_to_vmem [thread:$0]  %s16, 16, %s667, [#allocation22]
        $region76: #{mlp_mixer_forward.2} parent=11 // pred_fallthru
          _
        // Predicated region
        $region77: #{mlp_mixer_forward.2} parent=11 // pred_check
          %p670 = pneg %p422
        $region78: #{mlp_mixer_forward.2} parent=11 // pred_check_branch
          %672 = sbr.rel (%p670) target = $region80
        $region79: #{mlp_mixer_forward.2} parent=11 // pred_region
          %s674 = ssub.s32 16, 16
          %675 = vsyncadd [#allocation22], %s674
          %s677 = sshll.u32 [#allocation23], 4
          %s678 = int_to_ptr.vmem [resolvable:$true] %s677
          %680 = dma.hbm_to_vmem [thread:$0]  %s17, 16, %s678, [#allocation22]
        $region80: #{mlp_mixer_forward.2} parent=11 // pred_fallthru
          _
        // Predicated region
        $region81: #{mlp_mixer_forward.2} parent=11 // pred_check
          %p681 = pneg %p443
        $region82: #{mlp_mixer_forward.2} parent=11 // pred_check_branch
          %683 = sbr.rel (%p681) target = $region84
        $region83: #{mlp_mixer_forward.2} parent=11 // pred_region
          _
        $region84: #{mlp_mixer_forward.2} parent=11 // pred_fallthru
          _
      $region12: #{mlp_mixer_forward.2} parent=5 // pred_fallthru
        _
      %p684 = scmp.lt.s32.totalorder %s39, 2
      // Predicated region
      $region85: #{mlp_mixer_forward.2} parent=5 // pred_check
        %p685 = pneg %p684
      $region86: #{mlp_mixer_forward.2} parent=5 // pred_check_branch
        %687 = sbr.rel (%p685) target = $region88
      $region87: #{mlp_mixer_forward.2} parent=5 // pred_region
        // Predicated region
        $region89: #{mlp_mixer_forward.2} parent=87 // pred_check
          %p688 = pneg %p59
        $region90: #{mlp_mixer_forward.2} parent=87 // pred_check_branch
          %690 = sbr.rel (%p688) target = $region92
        $region91: #{mlp_mixer_forward.2} parent=87 // pred_region
          %p691 = scmp.lt.s32.totalorder %s39, 1
          %s692 = scalar_select %p691, %s39, 1
          %s693 = smul.addr %s692, 8
          %s694 = smul.addr %s693, 8
          %s695 = scalar_lea.vmem %s0, %s694
        $region92: #{mlp_mixer_forward.2} parent=87 // pred_fallthru
          _
      $region88: #{mlp_mixer_forward.2} parent=5 // pred_fallthru
        _
      %p696 = scmp.le.s32.totalorder 1, %s39
      %p697 = scmp.lt.s32.totalorder %s39, 3
      %p698 = pnand %p696, %p697
      %p699 = pneg %p698
      // Predicated region
      $region93: #{mlp_mixer_forward.2} parent=5 // pred_check
        _
      $region94: #{mlp_mixer_forward.2} parent=5 // pred_check_branch
        %701 = sbr.rel (%p698) target = $region96
      $region95: #{mlp_mixer_forward.2} parent=5 // pred_region
        %s702 = ssub.s32 %s39, 1
        // Predicated region
        $region97: #{mlp_mixer_forward.2} parent=95 // pred_check
          %p703 = pneg %p86
        $region98: #{mlp_mixer_forward.2} parent=95 // pred_check_branch
          %705 = sbr.rel (%p703) target = $region100
        $region99: #{mlp_mixer_forward.2} parent=95 // pred_region
          %706 = dma.done [#allocation4], 32
        $region100: #{mlp_mixer_forward.2} parent=95 // pred_fallthru
          _
        // Predicated region
        $region101: #{mlp_mixer_forward.2} parent=95 // pred_check
          %p707 = pneg %p107
        $region102: #{mlp_mixer_forward.2} parent=95 // pred_check_branch
          %709 = sbr.rel (%p707) target = $region104
        $region103: #{mlp_mixer_forward.2} parent=95 // pred_region
          %710 = dma.done [#allocation7], 16
        $region104: #{mlp_mixer_forward.2} parent=95 // pred_fallthru
          _
        // Predicated region
        $region105: #{mlp_mixer_forward.2} parent=95 // pred_check
          %p711 = pneg %p128
        $region106: #{mlp_mixer_forward.2} parent=95 // pred_check_branch
          %713 = sbr.rel (%p711) target = $region108
        $region107: #{mlp_mixer_forward.2} parent=95 // pred_region
          %714 = dma.done [#allocation7], 32
        $region108: #{mlp_mixer_forward.2} parent=95 // pred_fallthru
          _
        // Predicated region
        $region109: #{mlp_mixer_forward.2} parent=95 // pred_check
          %p715 = pneg %p149
        $region110: #{mlp_mixer_forward.2} parent=95 // pred_check_branch
          %717 = sbr.rel (%p715) target = $region112
        $region111: #{mlp_mixer_forward.2} parent=95 // pred_region
          %718 = dma.done [#allocation10], 32
        $region112: #{mlp_mixer_forward.2} parent=95 // pred_fallthru
          _
        // Predicated region
        $region113: #{mlp_mixer_forward.2} parent=95 // pred_check
          %p719 = pneg %p212
        $region114: #{mlp_mixer_forward.2} parent=95 // pred_check_branch
          %721 = sbr.rel (%p719) target = $region116
        $region115: #{mlp_mixer_forward.2} parent=95 // pred_region
          %722 = dma.done [#allocation10], 1024
        $region116: #{mlp_mixer_forward.2} parent=95 // pred_fallthru
          _
        // Predicated region
        $region117: #{mlp_mixer_forward.2} parent=95 // pred_check
          %p723 = pneg %p254
        $region118: #{mlp_mixer_forward.2} parent=95 // pred_check_branch
          %725 = sbr.rel (%p723) target = $region120
        $region119: #{mlp_mixer_forward.2} parent=95 // pred_region
          %726 = dma.done [#allocation13], 32
        $region120: #{mlp_mixer_forward.2} parent=95 // pred_fallthru
          _
        // Predicated region
        $region121: #{mlp_mixer_forward.2} parent=95 // pred_check
          %p727 = pneg %p275
        $region122: #{mlp_mixer_forward.2} parent=95 // pred_check_branch
          %729 = sbr.rel (%p727) target = $region124
        $region123: #{mlp_mixer_forward.2} parent=95 // pred_region
          %730 = dma.done [#allocation13], 32
        $region124: #{mlp_mixer_forward.2} parent=95 // pred_fallthru
          _
        // Predicated region
        $region125: #{mlp_mixer_forward.2} parent=95 // pred_check
          %p731 = pneg %p296
        $region126: #{mlp_mixer_forward.2} parent=95 // pred_check_branch
          %733 = sbr.rel (%p731) target = $region128
        $region127: #{mlp_mixer_forward.2} parent=95 // pred_region
          %734 = dma.done [#allocation16], 1024
        $region128: #{mlp_mixer_forward.2} parent=95 // pred_fallthru
          _
        // Predicated region
        $region129: #{mlp_mixer_forward.2} parent=95 // pred_check
          %p735 = pneg %p317
        $region130: #{mlp_mixer_forward.2} parent=95 // pred_check_branch
          %737 = sbr.rel (%p735) target = $region132
        $region131: #{mlp_mixer_forward.2} parent=95 // pred_region
          %738 = dma.done [#allocation16], 32
        $region132: #{mlp_mixer_forward.2} parent=95 // pred_fallthru
          _
        // Predicated region
        $region133: #{mlp_mixer_forward.2} parent=95 // pred_check
          %p739 = pneg %p359
        $region134: #{mlp_mixer_forward.2} parent=95 // pred_check_branch
          %741 = sbr.rel (%p739) target = $region136
        $region135: #{mlp_mixer_forward.2} parent=95 // pred_region
          %742 = dma.done [#allocation19], 32
        $region136: #{mlp_mixer_forward.2} parent=95 // pred_fallthru
          _
        // Predicated region
        $region137: #{mlp_mixer_forward.2} parent=95 // pred_check
          %p743 = pneg %p380
        $region138: #{mlp_mixer_forward.2} parent=95 // pred_check_branch
          %745 = sbr.rel (%p743) target = $region140
        $region139: #{mlp_mixer_forward.2} parent=95 // pred_region
          %746 = dma.done [#allocation19], 16
        $region140: #{mlp_mixer_forward.2} parent=95 // pred_fallthru
          _
        // Predicated region
        $region141: #{mlp_mixer_forward.2} parent=95 // pred_check
          %p747 = pneg %p401
        $region142: #{mlp_mixer_forward.2} parent=95 // pred_check_branch
          %749 = sbr.rel (%p747) target = $region144
        $region143: #{mlp_mixer_forward.2} parent=95 // pred_region
          %750 = dma.done [#allocation22], 16
        $region144: #{mlp_mixer_forward.2} parent=95 // pred_fallthru
          _
        // Predicated region
        $region145: #{mlp_mixer_forward.2} parent=95 // pred_check
          %p751 = pneg %p422
        $region146: #{mlp_mixer_forward.2} parent=95 // pred_check_branch
          %753 = sbr.rel (%p751) target = $region148
        $region147: #{mlp_mixer_forward.2} parent=95 // pred_region
          %754 = dma.done [#allocation22], 16
        $region148: #{mlp_mixer_forward.2} parent=95 // pred_fallthru
          _
        %p755 = scmp.lt.s32.totalorder %s44, 1
        %s756 = scalar_select %p755, %s44, 1
        %s757 = smul.addr %s756, 8
        %s758 = smul.addr %s757, 8
        %s759 = scalar_lea.vmem %s0, %s758
        %p760 = pneg %p65
        %p761 = pneg %p62
        %p762 = pneg %p86
        %p763 = pneg %p83
        %p764 = pneg %p107
        %p765 = pneg %p104
        %p766 = pneg %p128
        %p767 = pneg %p125
        %p768 = pneg %p149
        %p769 = pneg %p146
        %p770 = pneg %p170
        %p771 = pneg %p167
        %p772 = pneg %p191
        %p773 = pneg %p188
        %p774 = pneg %p212
        %p775 = pneg %p209
        %p776 = pneg %p233
        %p777 = pneg %p230
        %p778 = pneg %p254
        %p779 = pneg %p251
        %p780 = pneg %p275
        %p781 = pneg %p272
        %p782 = pneg %p296
        %p783 = pneg %p293
        %p784 = pneg %p317
        %p785 = pneg %p314
        %p786 = pneg %p338
        %p787 = pneg %p335
        %p788 = pneg %p359
        %p789 = pneg %p356
        %p790 = pneg %p380
        %p791 = pneg %p377
        %p792 = pneg %p401
        %p793 = pneg %p398
        %p794 = pneg %p422
        %p795 = pneg %p419
        %p796 = pneg %p443
        %p797 = pneg %p440
        %p798 = pneg %p469
        %p799 = pneg %p466
        %p800 = scmp.lt.s32.totalorder %s44, 1
        %s801 = scalar_select %p800, %s44, 1
        %s802 = smul.addr %s801, 8
        %s803 = smul.addr %s802, 8
        %s804 = scalar_lea.vmem %s19, %s803
        %p805 = pneg %p495
        %p806 = pneg %p492
        %s807 = sand.u32 %s482, 1
        %s808 = scalar_lea.sflag [#allocation5], %s807
        %s809 = sand.u32 %s482, 1
        %s810 = scalar_lea.vmem [#allocation24], %s809
        %p811 = scmp.lt.s32.totalorder %s44, 1
        %s812 = scalar_select %p811, %s44, 1
        %s813 = smul.addr %s812, 8
        %s814 = smul.addr %s813, 8
        %s815 = scalar_lea.vmem %s0, %s814
        %p816 = scmp.lt.s32.totalorder %s44, 1
        %s817 = scalar_select %p816, %s44, 1
        %s818 = smul.addr %s817, 8
        %s819 = smul.addr %s818, 8
        %s820 = scalar_lea.vmem %s19, %s819
        %v822 = vld [vmem:[%s815] sm:$0xff]
        %v823 = vld [vmem:[%s815 + $0x8] sm:$0xff]
        %v824 = vld [vmem:[%s815 + $0x10] sm:$0xff]
        %v825 = vld [vmem:[%s815 + $0x18] sm:$0xff]
        %v826 = vld [vmem:[%s815 + $0x20] sm:$0xff]
        %v827 = vld [vmem:[%s815 + $0x28] sm:$0xff]
        %v828 = vld [vmem:[%s815 + $0x30] sm:$0xff]
        %v829 = vld [vmem:[%s815 + $0x38] sm:$0xff]
        %v830 = vld [vmem:[#allocation3] sm:$0x3]
        %832 = vset.pattern.permute.xlu0 0
        %833 = vperm.xlu0 %832, %v822
        %v834 = vpop.permute.xlu0 %833
        %837 = vset.pattern.permute.xlu0 0
        %838 = vperm.xlu0 %837, %v823
        %v839 = vpop.permute.xlu0 %838
        %842 = vset.pattern.permute.xlu0 0
        %843 = vperm.xlu0 %842, %v824
        %v844 = vpop.permute.xlu0 %843
        %847 = vset.pattern.permute.xlu0 0
        %848 = vperm.xlu0 %847, %v825
        %v849 = vpop.permute.xlu0 %848
        %852 = vset.pattern.permute.xlu0 0
        %853 = vperm.xlu0 %852, %v826
        %v854 = vpop.permute.xlu0 %853
        %857 = vset.pattern.permute.xlu0 0
        %858 = vperm.xlu0 %857, %v827
        %v859 = vpop.permute.xlu0 %858
        %862 = vset.pattern.permute.xlu0 0
        %863 = vperm.xlu0 %862, %v828
        %v864 = vpop.permute.xlu0 %863
        %867 = vset.pattern.permute.xlu0 0
        %868 = vperm.xlu0 %867, %v829
        %v869 = vpop.permute.xlu0 %868
        %v871 = vlaneseq
        %v872 = vshrl.u32 %v871, 7
        %v873 = vsub.s32 0, %v872
        %v874 = vrot.slane %v830, %v873
        %v875 = vmul.f32 %v834, %v874
        %v876 = vmul.f32 %v839, %v874
        %v877 = vmul.f32 %v844, %v874
        %v878 = vmul.f32 %v849, %v874
        %v879 = vmul.f32 %v854, %v874
        %v880 = vmul.f32 %v859, %v874
        %v881 = vmul.f32 %v864, %v874
        %v882 = vmul.f32 %v869, %v874
        %883 = vset.pattern.permute.xlu0 1
        %884 = vperm.xlu0 %883, %v822
        %v885 = vpop.permute.xlu0 %884
        %887 = vset.pattern.permute.xlu0 1
        %888 = vperm.xlu0 %887, %v823
        %v889 = vpop.permute.xlu0 %888
        %891 = vset.pattern.permute.xlu0 1
        %892 = vperm.xlu0 %891, %v824
        %v893 = vpop.permute.xlu0 %892
        %895 = vset.pattern.permute.xlu0 1
        %896 = vperm.xlu0 %895, %v825
        %v897 = vpop.permute.xlu0 %896
        %899 = vset.pattern.permute.xlu0 1
        %900 = vperm.xlu0 %899, %v826
        %v901 = vpop.permute.xlu0 %900
        %903 = vset.pattern.permute.xlu0 1
        %904 = vperm.xlu0 %903, %v827
        %v905 = vpop.permute.xlu0 %904
        %907 = vset.pattern.permute.xlu0 1
        %908 = vperm.xlu0 %907, %v828
        %v909 = vpop.permute.xlu0 %908
        %911 = vset.pattern.permute.xlu0 1
        %912 = vperm.xlu0 %911, %v829
        %v913 = vpop.permute.xlu0 %912
        %v915 = vlaneseq
        %v916 = vshrl.u32 %v915, 7
        %v917 = vsub.s32 1, %v916
        %v918 = vrot.slane %v830, %v917
        %v919 = vmul.f32 %v885, %v918
        %v920 = vmul.f32 %v889, %v918
        %v921 = vmul.f32 %v893, %v918
        %v922 = vmul.f32 %v897, %v918
        %v923 = vmul.f32 %v901, %v918
        %v924 = vmul.f32 %v905, %v918
        %v925 = vmul.f32 %v909, %v918
        %v926 = vmul.f32 %v913, %v918
        %v927 = vadd.f32 %v875, %v919
        %v928 = vadd.f32 %v876, %v920
        %v929 = vadd.f32 %v877, %v921
        %v930 = vadd.f32 %v878, %v922
        %v931 = vadd.f32 %v879, %v923
        %v932 = vadd.f32 %v880, %v924
        %v933 = vadd.f32 %v881, %v925
        %v934 = vadd.f32 %v882, %v926
        %v935 = vld [vmem:[#allocation6] sm:$0x1]
        %v937 = vlaneseq
        %v938 = vshrl.u32 %v937, 7
        %v939 = vsub.s32 0, %v938
        %v940 = vrot.slane %v935, %v939
        %v942 = vadd.f32 %v927, %v940
        %v943 = vadd.f32 %v928, %v940
        %v944 = vadd.f32 %v929, %v940
        %v945 = vadd.f32 %v930, %v940
        %v946 = vadd.f32 %v931, %v940
        %v947 = vadd.f32 %v932, %v940
        %v948 = vadd.f32 %v933, %v940
        %v949 = vadd.f32 %v934, %v940
        %v950 = vld [vmem:[#allocation8] sm:$0x1]
        %v951 = vld [vmem:[#allocation9] sm:$0x1]
        %vm952 = vcmask 523264
        %v953 = vsel %vm952, %v942, 0.0
        %954 = vadd.xlane.f32.xlu0 %v953
        %v955 = vpop.xlane.xlu0 %954
        %v956 = vsel %vm952, %v943, 0.0
        %957 = vadd.xlane.f32.xlu0 %v956
        %v958 = vpop.xlane.xlu0 %957
        %v959 = vsel %vm952, %v944, 0.0
        %960 = vadd.xlane.f32.xlu0 %v959
        %v961 = vpop.xlane.xlu0 %960
        %v962 = vsel %vm952, %v945, 0.0
        %963 = vadd.xlane.f32.xlu0 %v962
        %v964 = vpop.xlane.xlu0 %963
        %v965 = vsel %vm952, %v946, 0.0
        %966 = vadd.xlane.f32.xlu0 %v965
        %v967 = vpop.xlane.xlu0 %966
        %v968 = vsel %vm952, %v947, 0.0
        %969 = vadd.xlane.f32.xlu0 %v968
        %v970 = vpop.xlane.xlu0 %969
        %v971 = vsel %vm952, %v948, 0.0
        %972 = vadd.xlane.f32.xlu0 %v971
        %v973 = vpop.xlane.xlu0 %972
        %v974 = vsel %vm952, %v949, 0.0
        %975 = vadd.xlane.f32.xlu0 %v974
        %v976 = vpop.xlane.xlu0 %975
        %v977 = vrcp.pop 64.0
        %v978 = vmul.f32 %v955, %v977
        %v979 = vmul.f32 %v958, %v977
        %v980 = vmul.f32 %v961, %v977
        %v981 = vmul.f32 %v964, %v977
        %v982 = vmul.f32 %v967, %v977
        %v983 = vmul.f32 %v970, %v977
        %v984 = vmul.f32 %v973, %v977
        %v985 = vmul.f32 %v976, %v977
        %v986 = vsub.f32 %v942, %v978
        %v987 = vsub.f32 %v943, %v979
        %v988 = vsub.f32 %v944, %v980
        %v989 = vsub.f32 %v945, %v981
        %v990 = vsub.f32 %v946, %v982
        %v991 = vsub.f32 %v947, %v983
        %v992 = vsub.f32 %v948, %v984
        %v993 = vsub.f32 %v949, %v985
        %v994 = vmul.f32 %v986, %v986
        %v995 = vmul.f32 %v987, %v987
        %v996 = vmul.f32 %v988, %v988
        %v997 = vmul.f32 %v989, %v989
        %v998 = vmul.f32 %v990, %v990
        %v999 = vmul.f32 %v991, %v991
        %v1000 = vmul.f32 %v992, %v992
        %v1001 = vmul.f32 %v993, %v993
        %v1002 = vsel %vm952, %v994, 0.0
        %1003 = vadd.xlane.f32.xlu0 %v1002
        %v1004 = vpop.xlane.xlu0 %1003
        %v1005 = vsel %vm952, %v995, 0.0
        %1006 = vadd.xlane.f32.xlu0 %v1005
        %v1007 = vpop.xlane.xlu0 %1006
        %v1008 = vsel %vm952, %v996, 0.0
        %1009 = vadd.xlane.f32.xlu0 %v1008
        %v1010 = vpop.xlane.xlu0 %1009
        %v1011 = vsel %vm952, %v997, 0.0
        %1012 = vadd.xlane.f32.xlu0 %v1011
        %v1013 = vpop.xlane.xlu0 %1012
        %v1014 = vsel %vm952, %v998, 0.0
        %1015 = vadd.xlane.f32.xlu0 %v1014
        %v1016 = vpop.xlane.xlu0 %1015
        %v1017 = vsel %vm952, %v999, 0.0
        %1018 = vadd.xlane.f32.xlu0 %v1017
        %v1019 = vpop.xlane.xlu0 %1018
        %v1020 = vsel %vm952, %v1000, 0.0
        %1021 = vadd.xlane.f32.xlu0 %v1020
        %v1022 = vpop.xlane.xlu0 %1021
        %v1023 = vsel %vm952, %v1001, 0.0
        %1024 = vadd.xlane.f32.xlu0 %v1023
        %v1025 = vpop.xlane.xlu0 %1024
        %v1026 = vmul.f32 %v1004, %v977
        %v1027 = vmul.f32 %v1007, %v977
        %v1028 = vmul.f32 %v1010, %v977
        %v1029 = vmul.f32 %v1013, %v977
        %v1030 = vmul.f32 %v1016, %v977
        %v1031 = vmul.f32 %v1019, %v977
        %v1032 = vmul.f32 %v1022, %v977
        %v1033 = vmul.f32 %v1025, %v977
        %v1034 = vadd.f32 %v1026, 1e-05
        %v1035 = vadd.f32 %v1027, 1e-05
        %v1036 = vadd.f32 %v1028, 1e-05
        %v1037 = vadd.f32 %v1029, 1e-05
        %v1038 = vadd.f32 %v1030, 1e-05
        %v1039 = vadd.f32 %v1031, 1e-05
        %v1040 = vadd.f32 %v1032, 1e-05
        %v1041 = vadd.f32 %v1033, 1e-05
        %v1042 = vrsqrt.pop %v1034
        %v1043 = vrsqrt.pop %v1035
        %v1044 = vrsqrt.pop %v1036
        %v1045 = vrsqrt.pop %v1037
        %v1046 = vrsqrt.pop %v1038
        %v1047 = vrsqrt.pop %v1039
        %v1048 = vrsqrt.pop %v1040
        %v1049 = vrsqrt.pop %v1041
        %v1050 = vmul.f32 %v986, %v1042
        %v1051 = vmul.f32 %v987, %v1043
        %v1052 = vmul.f32 %v988, %v1044
        %v1053 = vmul.f32 %v989, %v1045
        %v1054 = vmul.f32 %v990, %v1046
        %v1055 = vmul.f32 %v991, %v1047
        %v1056 = vmul.f32 %v992, %v1048
        %v1057 = vmul.f32 %v993, %v1049
        %v1059 = vlaneseq
        %v1060 = vshrl.u32 %v1059, 7
        %v1061 = vsub.s32 0, %v1060
        %v1062 = vrot.slane %v950, %v1061
        %v1064 = vmul.f32 %v1050, %v1062
        %v1065 = vmul.f32 %v1051, %v1062
        %v1066 = vmul.f32 %v1052, %v1062
        %v1067 = vmul.f32 %v1053, %v1062
        %v1068 = vmul.f32 %v1054, %v1062
        %v1069 = vmul.f32 %v1055, %v1062
        %v1070 = vmul.f32 %v1056, %v1062
        %v1071 = vmul.f32 %v1057, %v1062
        %v1073 = vlaneseq
        %v1074 = vshrl.u32 %v1073, 7
        %v1075 = vsub.s32 0, %v1074
        %v1076 = vrot.slane %v951, %v1075
        %v1078 = vadd.f32 %v1064, %v1076
        %v1079 = vadd.f32 %v1065, %v1076
        %v1080 = vadd.f32 %v1066, %v1076
        %v1081 = vadd.f32 %v1067, %v1076
        %v1082 = vadd.f32 %v1068, %v1076
        %v1083 = vadd.f32 %v1069, %v1076
        %v1084 = vadd.f32 %v1070, %v1076
        %v1085 = vadd.f32 %v1071, %v1076
        %v1086 = vld [vmem:[%s5] sm:$0xf]
        %v1087 = vld [vmem:[%s5 + $0x4] sm:$0xf]
        %v1088 = vld [vmem:[%s5 + $0x8] sm:$0xf]
        %v1089 = vld [vmem:[%s5 + $0xc] sm:$0xf]
        %v1090 = vld [vmem:[%s5 + $0x10] sm:$0xf]
        %v1091 = vld [vmem:[%s5 + $0x14] sm:$0xf]
        %v1092 = vld [vmem:[%s5 + $0x18] sm:$0xf]
        %v1093 = vld [vmem:[%s5 + $0x1c] sm:$0xf]
        %v1094 = vld [vmem:[%s5 + $0x20] sm:$0xf]
        %v1095 = vld [vmem:[%s5 + $0x24] sm:$0xf]
        %v1096 = vld [vmem:[%s5 + $0x28] sm:$0xf]
        %v1097 = vld [vmem:[%s5 + $0x2c] sm:$0xf]
        %v1098 = vld [vmem:[%s5 + $0x30] sm:$0xf]
        %v1099 = vld [vmem:[%s5 + $0x34] sm:$0xf]
        %v1100 = vld [vmem:[%s5 + $0x38] sm:$0xf]
        %v1101 = vld [vmem:[%s5 + $0x3c] sm:$0xf]
        %v1102 = vpack.c.bf16 %v1079, %v1078
        %v1103 = vpack.c.bf16 %v1081, %v1080
        %v1104 = vpack.c.bf16 %v1083, %v1082
        %v1105 = vpack.c.bf16 %v1085, %v1084
        %v1106 = vld [vmem:[%s6] sm:$0xff]
        %v1107 = vld [vmem:[%s6 + $0x8] sm:$0xff]
        %v1108 = vld [vmem:[%s6 + $0x10] sm:$0xff]
        %v1109 = vld [vmem:[%s6 + $0x18] sm:$0xff]
        %v1110 = vld [vmem:[%s6 + $0x20] sm:$0xff]
        %v1111 = vld [vmem:[%s6 + $0x28] sm:$0xff]
        %v1112 = vld [vmem:[%s6 + $0x30] sm:$0xff]
        %v1113 = vld [vmem:[%s6 + $0x38] sm:$0xff]
        %v1114 = vld [vmem:[%s6 + $0x40] sm:$0xff]
        %v1115 = vld [vmem:[%s6 + $0x48] sm:$0xff]
        %v1116 = vld [vmem:[%s6 + $0x50] sm:$0xff]
        %v1117 = vld [vmem:[%s6 + $0x58] sm:$0xff]
        %v1118 = vld [vmem:[%s6 + $0x60] sm:$0xff]
        %v1119 = vld [vmem:[%s6 + $0x68] sm:$0xff]
        %v1120 = vld [vmem:[%s6 + $0x70] sm:$0xff]
        %v1121 = vld [vmem:[%s6 + $0x78] sm:$0xff]
        %v1138 = vunpack.c.l.b16 %v1086
        %v1139 = vunpack.c.l.b16 %v1087
        %v1140 = vunpack.c.l.b16 %v1088
        %v1141 = vunpack.c.l.b16 %v1089
        %v1142 = vunpack.c.l.b16 %v1090
        %v1143 = vunpack.c.l.b16 %v1091
        %v1144 = vunpack.c.l.b16 %v1092
        %v1145 = vunpack.c.l.b16 %v1093
        %v1146 = vunpack.c.l.b16 %v1094
        %v1147 = vunpack.c.l.b16 %v1095
        %v1148 = vunpack.c.l.b16 %v1096
        %v1149 = vunpack.c.l.b16 %v1097
        %v1150 = vunpack.c.l.b16 %v1098
        %v1151 = vunpack.c.l.b16 %v1099
        %v1152 = vunpack.c.l.b16 %v1100
        %v1153 = vunpack.c.l.b16 %v1101
        %v1154 = vpack.c.b16 %v1139, %v1138
        %v1155 = vpack.c.b16 %v1141, %v1140
        %v1156 = vpack.c.b16 %v1143, %v1142
        %v1157 = vpack.c.b16 %v1145, %v1144
        %v1158 = vpack.c.b16 %v1147, %v1146
        %v1159 = vpack.c.b16 %v1149, %v1148
        %v1160 = vpack.c.b16 %v1151, %v1150
        %v1161 = vpack.c.b16 %v1153, %v1152
        %v1163 = vsel %vm952, %v1154, 0
        %v1166 = vsel %vm952, %v1155, 0
        %v1169 = vsel %vm952, %v1156, 0
        %v1172 = vsel %vm952, %v1157, 0
        %v1175 = vsel %vm952, %v1158, 0
        %v1178 = vsel %vm952, %v1159, 0
        %v1181 = vsel %vm952, %v1160, 0
        %v1184 = vsel %vm952, %v1161, 0
        %1186 = vmatprep.subr.bf16.mxu0 0
        %1187 = vmatpush1.bf16.msra.mxu0 0
        %1188 = vmatprep.subr.bf16.mxu0 0
        %1189 = vmatpush1.bf16.msra.mxu0 0
        %1190 = vmatprep.subr.bf16.mxu0 0
        %1191 = vmatpush1.bf16.msra.mxu0 0
        %1192 = vmatprep.subr.bf16.mxu0 0
        %1193 = vmatpush1.bf16.msra.mxu0 0
        %1194 = vmatprep.subr.bf16.mxu0 0
        %1195 = vmatpush1.bf16.msra.mxu0 %v1105
        %1196 = vmatprep.subr.bf16.mxu0 0
        %1197 = vmatpush1.bf16.msra.mxu0 %v1104
        %1198 = vmatprep.subr.bf16.mxu0 0
        %1199 = vmatpush1.bf16.msra.mxu0 %v1103
        %1200 = vmatprep.subr.bf16.mxu0 0
        %1201 = vmatpush1.bf16.msra.mxu0 %v1102
        %1202 = vmatprep.subr.bf16.mxu0 0
        %1203 = vmatpush2.bf16.msra.mxu0 0
        %1204 = vmatprep.subr.bf16.mxu0 0
        %1205 = vmatpush2.bf16.msra.mxu0 0
        %1206 = vmatprep.subr.bf16.mxu0 0
        %1207 = vmatpush2.bf16.msra.mxu0 0
        %1208 = vmatprep.subr.bf16.mxu0 0
        %1209 = vmatpush2.bf16.msra.mxu0 0
        %1210 = vmatprep.subr.bf16.mxu0 0
        %1211 = vmatpush2.bf16.msra.mxu0 0
        %1212 = vmatprep.subr.bf16.mxu0 0
        %1213 = vmatpush2.bf16.msra.mxu0 0
        %1214 = vmatprep.subr.bf16.mxu0 0
        %1215 = vmatpush2.bf16.msra.mxu0 0
        %1216 = vmatprep.subr.bf16.mxu0 0
        %1217 = vmatpush2.bf16.msra.mxu0 0
        %1218 = vmatprep.mubr.bf16.mxu0 0
        %1219 = vmatmul.mubr.bf16.gmra.mxu0 %v1163
        %v1220 = vpop.f32.mrf.mxu0
        %v1221 = vadd.f32 %v1106, %v1220
        %v1222 = vpop.f32.mrf.mxu0
        %v1223 = vpop.f32.mrf.mxu0
        %v1224 = vadd.f32 %v1107, %v1223
        %v1225 = vpop.f32.mrf.mxu0
        %1226 = vmatprep.mubr.bf16.mxu0 0
        %1227 = vmatmul.mubr.bf16.gmra.mxu0 %v1166
        %v1228 = vpop.f32.mrf.mxu0
        %v1229 = vadd.f32 %v1108, %v1228
        %v1230 = vpop.f32.mrf.mxu0
        %v1231 = vpop.f32.mrf.mxu0
        %v1232 = vadd.f32 %v1109, %v1231
        %v1233 = vpop.f32.mrf.mxu0
        %1234 = vmatprep.mubr.bf16.mxu0 0
        %1235 = vmatmul.mubr.bf16.gmra.mxu0 %v1169
        %v1236 = vpop.f32.mrf.mxu0
        %v1237 = vadd.f32 %v1110, %v1236
        %v1238 = vpop.f32.mrf.mxu0
        %v1239 = vpop.f32.mrf.mxu0
        %v1240 = vadd.f32 %v1111, %v1239
        %v1241 = vpop.f32.mrf.mxu0
        %1242 = vmatprep.mubr.bf16.mxu0 0
        %1243 = vmatmul.mubr.bf16.gmra.mxu0 %v1172
        %v1244 = vpop.f32.mrf.mxu0
        %v1245 = vadd.f32 %v1112, %v1244
        %v1246 = vpop.f32.mrf.mxu0
        %v1247 = vpop.f32.mrf.mxu0
        %v1248 = vadd.f32 %v1113, %v1247
        %v1249 = vpop.f32.mrf.mxu0
        %1250 = vmatprep.mubr.bf16.mxu0 0
        %1251 = vmatmul.mubr.bf16.gmra.mxu0 %v1175
        %v1252 = vpop.f32.mrf.mxu0
        %v1253 = vadd.f32 %v1114, %v1252
        %v1254 = vpop.f32.mrf.mxu0
        %v1255 = vpop.f32.mrf.mxu0
        %v1256 = vadd.f32 %v1115, %v1255
        %v1257 = vpop.f32.mrf.mxu0
        %1258 = vmatprep.mubr.bf16.mxu0 0
        %1259 = vmatmul.mubr.bf16.gmra.mxu0 %v1178
        %v1260 = vpop.f32.mrf.mxu0
        %v1261 = vadd.f32 %v1116, %v1260
        %v1262 = vpop.f32.mrf.mxu0
        %v1263 = vpop.f32.mrf.mxu0
        %v1264 = vadd.f32 %v1117, %v1263
        %v1265 = vpop.f32.mrf.mxu0
        %1266 = vmatprep.mubr.bf16.mxu0 0
        %1267 = vmatmul.mubr.bf16.gmra.mxu0 %v1181
        %v1268 = vpop.f32.mrf.mxu0
        %v1269 = vadd.f32 %v1118, %v1268
        %v1270 = vpop.f32.mrf.mxu0
        %v1271 = vpop.f32.mrf.mxu0
        %v1272 = vadd.f32 %v1119, %v1271
        %v1273 = vpop.f32.mrf.mxu0
        %1274 = vmatprep.mubr.bf16.mxu0 0
        %1275 = vmatmul.mubr.bf16.gmra.mxu0 %v1184
        %v1276 = vpop.f32.mrf.mxu0
        %v1277 = vadd.f32 %v1120, %v1276
        %v1278 = vpop.f32.mrf.mxu0
        %v1279 = vpop.f32.mrf.mxu0
        %v1280 = vadd.f32 %v1121, %v1279
        %v1281 = vpop.f32.mrf.mxu0
        %1282 = vdwg.mxu0
        %v1283 = vmul.f32 %v1221, %v1221
        %v1284 = vmul.f32 %v1224, %v1224
        %v1285 = vmul.f32 %v1229, %v1229
        %v1286 = vmul.f32 %v1232, %v1232
        %v1287 = vmul.f32 %v1237, %v1237
        %v1288 = vmul.f32 %v1240, %v1240
        %v1289 = vmul.f32 %v1245, %v1245
        %v1290 = vmul.f32 %v1248, %v1248
        %v1291 = vmul.f32 %v1253, %v1253
        %v1292 = vmul.f32 %v1256, %v1256
        %v1293 = vmul.f32 %v1261, %v1261
        %v1294 = vmul.f32 %v1264, %v1264
        %v1295 = vmul.f32 %v1269, %v1269
        %v1296 = vmul.f32 %v1272, %v1272
        %v1297 = vmul.f32 %v1277, %v1277
        %v1298 = vmul.f32 %v1280, %v1280
        %v1299 = vmul.f32 %v1221, %v1283
        %v1300 = vmul.f32 %v1224, %v1284
        %v1301 = vmul.f32 %v1229, %v1285
        %v1302 = vmul.f32 %v1232, %v1286
        %v1303 = vmul.f32 %v1237, %v1287
        %v1304 = vmul.f32 %v1240, %v1288
        %v1305 = vmul.f32 %v1245, %v1289
        %v1306 = vmul.f32 %v1248, %v1290
        %v1307 = vmul.f32 %v1253, %v1291
        %v1308 = vmul.f32 %v1256, %v1292
        %v1309 = vmul.f32 %v1261, %v1293
        %v1310 = vmul.f32 %v1264, %v1294
        %v1311 = vmul.f32 %v1269, %v1295
        %v1312 = vmul.f32 %v1272, %v1296
        %v1313 = vmul.f32 %v1277, %v1297
        %v1314 = vmul.f32 %v1280, %v1298
        %v1315 = vmul.f32 %v1299, 0.044715
        %v1316 = vmul.f32 %v1300, 0.044715
        %v1317 = vmul.f32 %v1301, 0.044715
        %v1318 = vmul.f32 %v1302, 0.044715
        %v1319 = vmul.f32 %v1303, 0.044715
        %v1320 = vmul.f32 %v1304, 0.044715
        %v1321 = vmul.f32 %v1305, 0.044715
        %v1322 = vmul.f32 %v1306, 0.044715
        %v1323 = vmul.f32 %v1307, 0.044715
        %v1324 = vmul.f32 %v1308, 0.044715
        %v1325 = vmul.f32 %v1309, 0.044715
        %v1326 = vmul.f32 %v1310, 0.044715
        %v1327 = vmul.f32 %v1311, 0.044715
        %v1328 = vmul.f32 %v1312, 0.044715
        %v1329 = vmul.f32 %v1313, 0.044715
        %v1330 = vmul.f32 %v1314, 0.044715
        %v1331 = vadd.f32 %v1221, %v1315
        %v1332 = vadd.f32 %v1224, %v1316
        %v1333 = vadd.f32 %v1229, %v1317
        %v1334 = vadd.f32 %v1232, %v1318
        %v1335 = vadd.f32 %v1237, %v1319
        %v1336 = vadd.f32 %v1240, %v1320
        %v1337 = vadd.f32 %v1245, %v1321
        %v1338 = vadd.f32 %v1248, %v1322
        %v1339 = vadd.f32 %v1253, %v1323
        %v1340 = vadd.f32 %v1256, %v1324
        %v1341 = vadd.f32 %v1261, %v1325
        %v1342 = vadd.f32 %v1264, %v1326
        %v1343 = vadd.f32 %v1269, %v1327
        %v1344 = vadd.f32 %v1272, %v1328
        %v1345 = vadd.f32 %v1277, %v1329
        %v1346 = vadd.f32 %v1280, %v1330
        %v1347 = vmul.f32 %v1331, 0.7978846
        %v1348 = vmul.f32 %v1332, 0.7978846
        %v1349 = vmul.f32 %v1333, 0.7978846
        %v1350 = vmul.f32 %v1334, 0.7978846
        %v1351 = vmul.f32 %v1335, 0.7978846
        %v1352 = vmul.f32 %v1336, 0.7978846
        %v1353 = vmul.f32 %v1337, 0.7978846
        %v1354 = vmul.f32 %v1338, 0.7978846
        %v1355 = vmul.f32 %v1339, 0.7978846
        %v1356 = vmul.f32 %v1340, 0.7978846
        %v1357 = vmul.f32 %v1341, 0.7978846
        %v1358 = vmul.f32 %v1342, 0.7978846
        %v1359 = vmul.f32 %v1343, 0.7978846
        %v1360 = vmul.f32 %v1344, 0.7978846
        %v1361 = vmul.f32 %v1345, 0.7978846
        %v1362 = vmul.f32 %v1346, 0.7978846
        %v1363 = vtanh.pop %v1347
        %v1364 = vtanh.pop %v1348
        %v1365 = vtanh.pop %v1349
        %v1366 = vtanh.pop %v1350
        %v1367 = vtanh.pop %v1351
        %v1368 = vtanh.pop %v1352
        %v1369 = vtanh.pop %v1353
        %v1370 = vtanh.pop %v1354
        %v1371 = vtanh.pop %v1355
        %v1372 = vtanh.pop %v1356
        %v1373 = vtanh.pop %v1357
        %v1374 = vtanh.pop %v1358
        %v1375 = vtanh.pop %v1359
        %v1376 = vtanh.pop %v1360
        %v1377 = vtanh.pop %v1361
        %v1378 = vtanh.pop %v1362
        %v1379 = vadd.f32 %v1363, 1.0
        %v1380 = vadd.f32 %v1364, 1.0
        %v1381 = vadd.f32 %v1365, 1.0
        %v1382 = vadd.f32 %v1366, 1.0
        %v1383 = vadd.f32 %v1367, 1.0
        %v1384 = vadd.f32 %v1368, 1.0
        %v1385 = vadd.f32 %v1369, 1.0
        %v1386 = vadd.f32 %v1370, 1.0
        %v1387 = vadd.f32 %v1371, 1.0
        %v1388 = vadd.f32 %v1372, 1.0
        %v1389 = vadd.f32 %v1373, 1.0
        %v1390 = vadd.f32 %v1374, 1.0
        %v1391 = vadd.f32 %v1375, 1.0
        %v1392 = vadd.f32 %v1376, 1.0
        %v1393 = vadd.f32 %v1377, 1.0
        %v1394 = vadd.f32 %v1378, 1.0
        %v1395 = vmul.f32 %v1379, 0.5
        %v1396 = vmul.f32 %v1380, 0.5
        %v1397 = vmul.f32 %v1381, 0.5
        %v1398 = vmul.f32 %v1382, 0.5
        %v1399 = vmul.f32 %v1383, 0.5
        %v1400 = vmul.f32 %v1384, 0.5
        %v1401 = vmul.f32 %v1385, 0.5
        %v1402 = vmul.f32 %v1386, 0.5
        %v1403 = vmul.f32 %v1387, 0.5
        %v1404 = vmul.f32 %v1388, 0.5
        %v1405 = vmul.f32 %v1389, 0.5
        %v1406 = vmul.f32 %v1390, 0.5
        %v1407 = vmul.f32 %v1391, 0.5
        %v1408 = vmul.f32 %v1392, 0.5
        %v1409 = vmul.f32 %v1393, 0.5
        %v1410 = vmul.f32 %v1394, 0.5
        %v1411 = vmul.f32 %v1221, %v1395
        %v1412 = vmul.f32 %v1224, %v1396
        %v1413 = vmul.f32 %v1229, %v1397
        %v1414 = vmul.f32 %v1232, %v1398
        %v1415 = vmul.f32 %v1237, %v1399
        %v1416 = vmul.f32 %v1240, %v1400
        %v1417 = vmul.f32 %v1245, %v1401
        %v1418 = vmul.f32 %v1248, %v1402
        %v1419 = vmul.f32 %v1253, %v1403
        %v1420 = vmul.f32 %v1256, %v1404
        %v1421 = vmul.f32 %v1261, %v1405
        %v1422 = vmul.f32 %v1264, %v1406
        %v1423 = vmul.f32 %v1269, %v1407
        %v1424 = vmul.f32 %v1272, %v1408
        %v1425 = vmul.f32 %v1277, %v1409
        %v1426 = vmul.f32 %v1280, %v1410
        %v1427 = vld [vmem:[#allocation11] sm:$0xf]
        %v1428 = vld [vmem:[#allocation11 + $0x4] sm:$0xf]
        %v1429 = vld [vmem:[#allocation11 + $0x8] sm:$0xf]
        %v1430 = vld [vmem:[#allocation11 + $0xc] sm:$0xf]
        %v1431 = vld [vmem:[#allocation11 + $0x10] sm:$0xf]
        %v1432 = vld [vmem:[#allocation11 + $0x14] sm:$0xf]
        %v1433 = vld [vmem:[#allocation11 + $0x18] sm:$0xf]
        %v1434 = vld [vmem:[#allocation11 + $0x1c] sm:$0xf]
        %v1435 = vpack.c.bf16 %v1412, %v1411
        %v1436 = vpack.c.bf16 %v1414, %v1413
        %v1437 = vpack.c.bf16 %v1416, %v1415
        %v1438 = vpack.c.bf16 %v1418, %v1417
        %v1439 = vpack.c.bf16 %v1420, %v1419
        %v1440 = vpack.c.bf16 %v1422, %v1421
        %v1441 = vpack.c.bf16 %v1424, %v1423
        %v1442 = vpack.c.bf16 %v1426, %v1425
        %v1443 = vld [vmem:[%s8] sm:$0xff]
        %v1444 = vld [vmem:[%s8 + $0x8] sm:$0xff]
        %v1445 = vld [vmem:[%s8 + $0x10] sm:$0xff]
        %v1446 = vld [vmem:[%s8 + $0x18] sm:$0xff]
        %v1447 = vld [vmem:[%s8 + $0x20] sm:$0xff]
        %v1448 = vld [vmem:[%s8 + $0x28] sm:$0xff]
        %v1449 = vld [vmem:[%s8 + $0x30] sm:$0xff]
        %v1450 = vld [vmem:[%s8 + $0x38] sm:$0xff]
        %v1459 = vunpack.c.l.b16 %v1427
        %v1460 = vunpack.c.l.b16 %v1428
        %v1461 = vunpack.c.l.b16 %v1429
        %v1462 = vunpack.c.l.b16 %v1430
        %v1463 = vunpack.c.l.b16 %v1431
        %v1464 = vunpack.c.l.b16 %v1432
        %v1465 = vunpack.c.l.b16 %v1433
        %v1466 = vunpack.c.l.b16 %v1434
        %v1467 = vpack.c.b16 %v1460, %v1459
        %v1468 = vpack.c.b16 %v1462, %v1461
        %v1469 = vpack.c.b16 %v1464, %v1463
        %v1470 = vpack.c.b16 %v1466, %v1465
        %1475 = vmatprep.subr.bf16.mxu0 0
        %1476 = vmatpush1.bf16.msra.mxu0 %v1442
        %1477 = vmatprep.subr.bf16.mxu0 0
        %1478 = vmatpush1.bf16.msra.mxu0 %v1441
        %1479 = vmatprep.subr.bf16.mxu0 0
        %1480 = vmatpush1.bf16.msra.mxu0 %v1440
        %1481 = vmatprep.subr.bf16.mxu0 0
        %1482 = vmatpush1.bf16.msra.mxu0 %v1439
        %1483 = vmatprep.subr.bf16.mxu0 0
        %1484 = vmatpush1.bf16.msra.mxu0 %v1438
        %1485 = vmatprep.subr.bf16.mxu0 0
        %1486 = vmatpush1.bf16.msra.mxu0 %v1437
        %1487 = vmatprep.subr.bf16.mxu0 0
        %1488 = vmatpush1.bf16.msra.mxu0 %v1436
        %1489 = vmatprep.subr.bf16.mxu0 0
        %1490 = vmatpush1.bf16.msra.mxu0 %v1435
        %1491 = vmatprep.subr.bf16.mxu0 0
        %1492 = vmatpush2.bf16.msra.mxu0 0
        %1493 = vmatprep.subr.bf16.mxu0 0
        %1494 = vmatpush2.bf16.msra.mxu0 0
        %1495 = vmatprep.subr.bf16.mxu0 0
        %1496 = vmatpush2.bf16.msra.mxu0 0
        %1497 = vmatprep.subr.bf16.mxu0 0
        %1498 = vmatpush2.bf16.msra.mxu0 0
        %1499 = vmatprep.subr.bf16.mxu0 0
        %1500 = vmatpush2.bf16.msra.mxu0 0
        %1501 = vmatprep.subr.bf16.mxu0 0
        %1502 = vmatpush2.bf16.msra.mxu0 0
        %1503 = vmatprep.subr.bf16.mxu0 0
        %1504 = vmatpush2.bf16.msra.mxu0 0
        %1505 = vmatprep.subr.bf16.mxu0 0
        %1506 = vmatpush2.bf16.msra.mxu0 0
        %1507 = vmatprep.mubr.bf16.mxu0 0
        %1508 = vmatmul.mubr.bf16.gmra.mxu0 %v1467
        %v1509 = vpop.f32.mrf.mxu0
        %v1510 = vadd.f32 %v1443, %v1509
        %v1511 = vpop.f32.mrf.mxu0
        %v1512 = vpop.f32.mrf.mxu0
        %v1513 = vadd.f32 %v1444, %v1512
        %v1514 = vpop.f32.mrf.mxu0
        %1515 = vmatprep.mubr.bf16.mxu0 0
        %1516 = vmatmul.mubr.bf16.gmra.mxu0 %v1468
        %v1517 = vpop.f32.mrf.mxu0
        %v1518 = vadd.f32 %v1445, %v1517
        %v1519 = vpop.f32.mrf.mxu0
        %v1520 = vpop.f32.mrf.mxu0
        %v1521 = vadd.f32 %v1446, %v1520
        %v1522 = vpop.f32.mrf.mxu0
        %1523 = vmatprep.mubr.bf16.mxu0 0
        %1524 = vmatmul.mubr.bf16.gmra.mxu0 %v1469
        %v1525 = vpop.f32.mrf.mxu0
        %v1526 = vadd.f32 %v1447, %v1525
        %v1527 = vpop.f32.mrf.mxu0
        %v1528 = vpop.f32.mrf.mxu0
        %v1529 = vadd.f32 %v1448, %v1528
        %v1530 = vpop.f32.mrf.mxu0
        %1531 = vmatprep.mubr.bf16.mxu0 0
        %1532 = vmatmul.mubr.bf16.gmra.mxu0 %v1470
        %v1533 = vpop.f32.mrf.mxu0
        %v1534 = vadd.f32 %v1449, %v1533
        %v1535 = vpop.f32.mrf.mxu0
        %v1536 = vpop.f32.mrf.mxu0
        %v1537 = vadd.f32 %v1450, %v1536
        %v1538 = vpop.f32.mrf.mxu0
        %1539 = vdwg.mxu0
        %v1540 = vadd.f32 %v942, %v1510
        %v1541 = vadd.f32 %v943, %v1513
        %v1542 = vadd.f32 %v944, %v1518
        %v1543 = vadd.f32 %v945, %v1521
        %v1544 = vadd.f32 %v946, %v1526
        %v1545 = vadd.f32 %v947, %v1529
        %v1546 = vadd.f32 %v948, %v1534
        %v1547 = vadd.f32 %v949, %v1537
        %v1548 = vld [vmem:[#allocation12] sm:$0x1]
        %v1549 = vld [vmem:[#allocation14] sm:$0x1]
        %v1550 = vsel %vm952, %v1540, 0.0
        %1551 = vadd.xlane.f32.xlu0 %v1550
        %v1552 = vpop.xlane.xlu0 %1551
        %v1553 = vsel %vm952, %v1541, 0.0
        %1554 = vadd.xlane.f32.xlu0 %v1553
        %v1555 = vpop.xlane.xlu0 %1554
        %v1556 = vsel %vm952, %v1542, 0.0
        %1557 = vadd.xlane.f32.xlu0 %v1556
        %v1558 = vpop.xlane.xlu0 %1557
        %v1559 = vsel %vm952, %v1543, 0.0
        %1560 = vadd.xlane.f32.xlu0 %v1559
        %v1561 = vpop.xlane.xlu0 %1560
        %v1562 = vsel %vm952, %v1544, 0.0
        %1563 = vadd.xlane.f32.xlu0 %v1562
        %v1564 = vpop.xlane.xlu0 %1563
        %v1565 = vsel %vm952, %v1545, 0.0
        %1566 = vadd.xlane.f32.xlu0 %v1565
        %v1567 = vpop.xlane.xlu0 %1566
        %v1568 = vsel %vm952, %v1546, 0.0
        %1569 = vadd.xlane.f32.xlu0 %v1568
        %v1570 = vpop.xlane.xlu0 %1569
        %v1571 = vsel %vm952, %v1547, 0.0
        %1572 = vadd.xlane.f32.xlu0 %v1571
        %v1573 = vpop.xlane.xlu0 %1572
        %v1574 = vmul.f32 %v1552, %v977
        %v1575 = vmul.f32 %v1555, %v977
        %v1576 = vmul.f32 %v1558, %v977
        %v1577 = vmul.f32 %v1561, %v977
        %v1578 = vmul.f32 %v1564, %v977
        %v1579 = vmul.f32 %v1567, %v977
        %v1580 = vmul.f32 %v1570, %v977
        %v1581 = vmul.f32 %v1573, %v977
        %v1582 = vsub.f32 %v1540, %v1574
        %v1583 = vsub.f32 %v1541, %v1575
        %v1584 = vsub.f32 %v1542, %v1576
        %v1585 = vsub.f32 %v1543, %v1577
        %v1586 = vsub.f32 %v1544, %v1578
        %v1587 = vsub.f32 %v1545, %v1579
        %v1588 = vsub.f32 %v1546, %v1580
        %v1589 = vsub.f32 %v1547, %v1581
        %v1590 = vmul.f32 %v1582, %v1582
        %v1591 = vmul.f32 %v1583, %v1583
        %v1592 = vmul.f32 %v1584, %v1584
        %v1593 = vmul.f32 %v1585, %v1585
        %v1594 = vmul.f32 %v1586, %v1586
        %v1595 = vmul.f32 %v1587, %v1587
        %v1596 = vmul.f32 %v1588, %v1588
        %v1597 = vmul.f32 %v1589, %v1589
        %v1598 = vsel %vm952, %v1590, 0.0
        %1599 = vadd.xlane.f32.xlu0 %v1598
        %v1600 = vpop.xlane.xlu0 %1599
        %v1601 = vsel %vm952, %v1591, 0.0
        %1602 = vadd.xlane.f32.xlu0 %v1601
        %v1603 = vpop.xlane.xlu0 %1602
        %v1604 = vsel %vm952, %v1592, 0.0
        %1605 = vadd.xlane.f32.xlu0 %v1604
        %v1606 = vpop.xlane.xlu0 %1605
        %v1607 = vsel %vm952, %v1593, 0.0
        %1608 = vadd.xlane.f32.xlu0 %v1607
        %v1609 = vpop.xlane.xlu0 %1608
        %v1610 = vsel %vm952, %v1594, 0.0
        %1611 = vadd.xlane.f32.xlu0 %v1610
        %v1612 = vpop.xlane.xlu0 %1611
        %v1613 = vsel %vm952, %v1595, 0.0
        %1614 = vadd.xlane.f32.xlu0 %v1613
        %v1615 = vpop.xlane.xlu0 %1614
        %v1616 = vsel %vm952, %v1596, 0.0
        %1617 = vadd.xlane.f32.xlu0 %v1616
        %v1618 = vpop.xlane.xlu0 %1617
        %v1619 = vsel %vm952, %v1597, 0.0
        %1620 = vadd.xlane.f32.xlu0 %v1619
        %v1621 = vpop.xlane.xlu0 %1620
        %v1622 = vmul.f32 %v1600, %v977
        %v1623 = vmul.f32 %v1603, %v977
        %v1624 = vmul.f32 %v1606, %v977
        %v1625 = vmul.f32 %v1609, %v977
        %v1626 = vmul.f32 %v1612, %v977
        %v1627 = vmul.f32 %v1615, %v977
        %v1628 = vmul.f32 %v1618, %v977
        %v1629 = vmul.f32 %v1621, %v977
        %v1630 = vadd.f32 %v1622, 1e-05
        %v1631 = vadd.f32 %v1623, 1e-05
        %v1632 = vadd.f32 %v1624, 1e-05
        %v1633 = vadd.f32 %v1625, 1e-05
        %v1634 = vadd.f32 %v1626, 1e-05
        %v1635 = vadd.f32 %v1627, 1e-05
        %v1636 = vadd.f32 %v1628, 1e-05
        %v1637 = vadd.f32 %v1629, 1e-05
        %v1638 = vrsqrt.pop %v1630
        %v1639 = vrsqrt.pop %v1631
        %v1640 = vrsqrt.pop %v1632
        %v1641 = vrsqrt.pop %v1633
        %v1642 = vrsqrt.pop %v1634
        %v1643 = vrsqrt.pop %v1635
        %v1644 = vrsqrt.pop %v1636
        %v1645 = vrsqrt.pop %v1637
        %v1646 = vmul.f32 %v1582, %v1638
        %v1647 = vmul.f32 %v1583, %v1639
        %v1648 = vmul.f32 %v1584, %v1640
        %v1649 = vmul.f32 %v1585, %v1641
        %v1650 = vmul.f32 %v1586, %v1642
        %v1651 = vmul.f32 %v1587, %v1643
        %v1652 = vmul.f32 %v1588, %v1644
        %v1653 = vmul.f32 %v1589, %v1645
        %v1655 = vlaneseq
        %v1656 = vshrl.u32 %v1655, 7
        %v1657 = vsub.s32 0, %v1656
        %v1658 = vrot.slane %v1548, %v1657
        %v1660 = vmul.f32 %v1646, %v1658
        %v1661 = vmul.f32 %v1647, %v1658
        %v1662 = vmul.f32 %v1648, %v1658
        %v1663 = vmul.f32 %v1649, %v1658
        %v1664 = vmul.f32 %v1650, %v1658
        %v1665 = vmul.f32 %v1651, %v1658
        %v1666 = vmul.f32 %v1652, %v1658
        %v1667 = vmul.f32 %v1653, %v1658
        %v1669 = vlaneseq
        %v1670 = vshrl.u32 %v1669, 7
        %v1671 = vsub.s32 0, %v1670
        %v1672 = vrot.slane %v1549, %v1671
        %v1674 = vadd.f32 %v1660, %v1672
        %v1675 = vadd.f32 %v1661, %v1672
        %v1676 = vadd.f32 %v1662, %v1672
        %v1677 = vadd.f32 %v1663, %v1672
        %v1678 = vadd.f32 %v1664, %v1672
        %v1679 = vadd.f32 %v1665, %v1672
        %v1680 = vadd.f32 %v1666, %v1672
        %v1681 = vadd.f32 %v1667, %v1672
        %v1682 = vpack.c.bf16 %v1675, %v1674
        %v1683 = vpack.c.bf16 %v1677, %v1676
        %v1684 = vpack.c.bf16 %v1679, %v1678
        %v1685 = vpack.c.bf16 %v1681, %v1680
        %v1686 = vld [vmem:[#allocation15] sm:$0xf]
        %v1687 = vld [vmem:[#allocation15 + $0x4] sm:$0xf]
        %v1688 = vld [vmem:[#allocation15 + $0x8] sm:$0xf]
        %v1689 = vld [vmem:[#allocation15 + $0xc] sm:$0xf]
        %v1690 = vld [vmem:[#allocation15 + $0x10] sm:$0xf]
        %v1691 = vld [vmem:[#allocation15 + $0x14] sm:$0xf]
        %v1692 = vld [vmem:[#allocation15 + $0x18] sm:$0xf]
        %v1693 = vld [vmem:[#allocation15 + $0x1c] sm:$0xf]
        %v1694 = vld [vmem:[#allocation17] sm:$0x1]
        %v1696 = vlaneseq
        %v1697 = vshrl.u32 %v1696, 7
        %v1698 = vsub.s32 0, %v1697
        %v1699 = vrot.slane %v1694, %v1698
        %v1709 = vunpack.c.l.b16 %v1686
        %v1710 = vunpack.c.l.b16 %v1687
        %v1711 = vunpack.c.l.b16 %v1688
        %v1712 = vunpack.c.l.b16 %v1689
        %v1713 = vunpack.c.l.b16 %v1690
        %v1714 = vunpack.c.l.b16 %v1691
        %v1715 = vunpack.c.l.b16 %v1692
        %v1716 = vunpack.c.l.b16 %v1693
        %v1717 = vpack.c.b16 %v1710, %v1709
        %v1718 = vpack.c.b16 %v1712, %v1711
        %v1719 = vpack.c.b16 %v1714, %v1713
        %v1720 = vpack.c.b16 %v1716, %v1715
        %v1726 = vsel %vm952, %v1682, 0
        %v1729 = vsel %vm952, %v1683, 0
        %v1732 = vsel %vm952, %v1684, 0
        %v1735 = vsel %vm952, %v1685, 0
        %1737 = vmatprep.subr.bf16.mxu0 0
        %1738 = vmatpush1.bf16.msra.mxu0 0
        %1739 = vmatprep.subr.bf16.mxu0 0
        %1740 = vmatpush1.bf16.msra.mxu0 0
        %1741 = vmatprep.subr.bf16.mxu0 0
        %1742 = vmatpush1.bf16.msra.mxu0 0
        %1743 = vmatprep.subr.bf16.mxu0 0
        %1744 = vmatpush1.bf16.msra.mxu0 0
        %1745 = vmatprep.subr.bf16.mxu0 0
        %1746 = vmatpush1.bf16.msra.mxu0 %v1720
        %1747 = vmatprep.subr.bf16.mxu0 0
        %1748 = vmatpush1.bf16.msra.mxu0 %v1719
        %1749 = vmatprep.subr.bf16.mxu0 0
        %1750 = vmatpush1.bf16.msra.mxu0 %v1718
        %1751 = vmatprep.subr.bf16.mxu0 0
        %1752 = vmatpush1.bf16.msra.mxu0 %v1717
        %1753 = vmatprep.subr.bf16.mxu0 0
        %1754 = vmatpush2.bf16.msra.mxu0 0
        %1755 = vmatprep.subr.bf16.mxu0 0
        %1756 = vmatpush2.bf16.msra.mxu0 0
        %1757 = vmatprep.subr.bf16.mxu0 0
        %1758 = vmatpush2.bf16.msra.mxu0 0
        %1759 = vmatprep.subr.bf16.mxu0 0
        %1760 = vmatpush2.bf16.msra.mxu0 0
        %1761 = vmatprep.subr.bf16.mxu0 0
        %1762 = vmatpush2.bf16.msra.mxu0 0
        %1763 = vmatprep.subr.bf16.mxu0 0
        %1764 = vmatpush2.bf16.msra.mxu0 0
        %1765 = vmatprep.subr.bf16.mxu0 0
        %1766 = vmatpush2.bf16.msra.mxu0 0
        %1767 = vmatprep.subr.bf16.mxu0 0
        %1768 = vmatpush2.bf16.msra.mxu0 0
        %1769 = vmatprep.mubr.bf16.mxu0 0
        %1770 = vmatmul.mubr.bf16.gmra.mxu0 %v1726
        %v1771 = vpop.f32.mrf.mxu0
        %v1772 = vadd.f32 %v1699, %v1771
        %v1773 = vpop.f32.mrf.mxu0
        %v1774 = vpop.f32.mrf.mxu0
        %v1775 = vadd.f32 %v1699, %v1774
        %v1776 = vpop.f32.mrf.mxu0
        %1777 = vmatprep.mubr.bf16.mxu0 0
        %1778 = vmatmul.mubr.bf16.gmra.mxu0 %v1729
        %v1779 = vpop.f32.mrf.mxu0
        %v1780 = vadd.f32 %v1699, %v1779
        %v1781 = vpop.f32.mrf.mxu0
        %v1782 = vpop.f32.mrf.mxu0
        %v1783 = vadd.f32 %v1699, %v1782
        %v1784 = vpop.f32.mrf.mxu0
        %1785 = vmatprep.mubr.bf16.mxu0 0
        %1786 = vmatmul.mubr.bf16.gmra.mxu0 %v1732
        %v1787 = vpop.f32.mrf.mxu0
        %v1788 = vadd.f32 %v1699, %v1787
        %v1789 = vpop.f32.mrf.mxu0
        %v1790 = vpop.f32.mrf.mxu0
        %v1791 = vadd.f32 %v1699, %v1790
        %v1792 = vpop.f32.mrf.mxu0
        %1793 = vmatprep.mubr.bf16.mxu0 0
        %1794 = vmatmul.mubr.bf16.gmra.mxu0 %v1735
        %v1795 = vpop.f32.mrf.mxu0
        %v1796 = vadd.f32 %v1699, %v1795
        %v1797 = vpop.f32.mrf.mxu0
        %v1798 = vpop.f32.mrf.mxu0
        %v1799 = vadd.f32 %v1699, %v1798
        %v1800 = vpop.f32.mrf.mxu0
        %1801 = vdwg.mxu0
        %v1802 = vmul.f32 %v1772, %v1772
        %v1803 = vmul.f32 %v1775, %v1775
        %v1804 = vmul.f32 %v1780, %v1780
        %v1805 = vmul.f32 %v1783, %v1783
        %v1806 = vmul.f32 %v1788, %v1788
        %v1807 = vmul.f32 %v1791, %v1791
        %v1808 = vmul.f32 %v1796, %v1796
        %v1809 = vmul.f32 %v1799, %v1799
        %v1810 = vmul.f32 %v1772, %v1802
        %v1811 = vmul.f32 %v1775, %v1803
        %v1812 = vmul.f32 %v1780, %v1804
        %v1813 = vmul.f32 %v1783, %v1805
        %v1814 = vmul.f32 %v1788, %v1806
        %v1815 = vmul.f32 %v1791, %v1807
        %v1816 = vmul.f32 %v1796, %v1808
        %v1817 = vmul.f32 %v1799, %v1809
        %v1818 = vmul.f32 %v1810, 0.044715
        %v1819 = vmul.f32 %v1811, 0.044715
        %v1820 = vmul.f32 %v1812, 0.044715
        %v1821 = vmul.f32 %v1813, 0.044715
        %v1822 = vmul.f32 %v1814, 0.044715
        %v1823 = vmul.f32 %v1815, 0.044715
        %v1824 = vmul.f32 %v1816, 0.044715
        %v1825 = vmul.f32 %v1817, 0.044715
        %v1826 = vadd.f32 %v1772, %v1818
        %v1827 = vadd.f32 %v1775, %v1819
        %v1828 = vadd.f32 %v1780, %v1820
        %v1829 = vadd.f32 %v1783, %v1821
        %v1830 = vadd.f32 %v1788, %v1822
        %v1831 = vadd.f32 %v1791, %v1823
        %v1832 = vadd.f32 %v1796, %v1824
        %v1833 = vadd.f32 %v1799, %v1825
        %v1834 = vmul.f32 %v1826, 0.7978846
        %v1835 = vmul.f32 %v1827, 0.7978846
        %v1836 = vmul.f32 %v1828, 0.7978846
        %v1837 = vmul.f32 %v1829, 0.7978846
        %v1838 = vmul.f32 %v1830, 0.7978846
        %v1839 = vmul.f32 %v1831, 0.7978846
        %v1840 = vmul.f32 %v1832, 0.7978846
        %v1841 = vmul.f32 %v1833, 0.7978846
        %v1842 = vtanh.pop %v1834
        %v1843 = vtanh.pop %v1835
        %v1844 = vtanh.pop %v1836
        %v1845 = vtanh.pop %v1837
        %v1846 = vtanh.pop %v1838
        %v1847 = vtanh.pop %v1839
        %v1848 = vtanh.pop %v1840
        %v1849 = vtanh.pop %v1841
        %v1850 = vadd.f32 %v1842, 1.0
        %v1851 = vadd.f32 %v1843, 1.0
        %v1852 = vadd.f32 %v1844, 1.0
        %v1853 = vadd.f32 %v1845, 1.0
        %v1854 = vadd.f32 %v1846, 1.0
        %v1855 = vadd.f32 %v1847, 1.0
        %v1856 = vadd.f32 %v1848, 1.0
        %v1857 = vadd.f32 %v1849, 1.0
        %v1858 = vmul.f32 %v1850, 0.5
        %v1859 = vmul.f32 %v1851, 0.5
        %v1860 = vmul.f32 %v1852, 0.5
        %v1861 = vmul.f32 %v1853, 0.5
        %v1862 = vmul.f32 %v1854, 0.5
        %v1863 = vmul.f32 %v1855, 0.5
        %v1864 = vmul.f32 %v1856, 0.5
        %v1865 = vmul.f32 %v1857, 0.5
        %v1866 = vmul.f32 %v1772, %v1858
        %v1867 = vmul.f32 %v1775, %v1859
        %v1868 = vmul.f32 %v1780, %v1860
        %v1869 = vmul.f32 %v1783, %v1861
        %v1870 = vmul.f32 %v1788, %v1862
        %v1871 = vmul.f32 %v1791, %v1863
        %v1872 = vmul.f32 %v1796, %v1864
        %v1873 = vmul.f32 %v1799, %v1865
        %v1874 = vpack.c.bf16 %v1867, %v1866
        %v1875 = vpack.c.bf16 %v1869, %v1868
        %v1876 = vpack.c.bf16 %v1871, %v1870
        %v1877 = vpack.c.bf16 %v1873, %v1872
        %v1878 = vld [vmem:[%s13] sm:$0xf]
        %v1879 = vld [vmem:[%s13 + $0x4] sm:$0xf]
        %v1880 = vld [vmem:[%s13 + $0x8] sm:$0xf]
        %v1881 = vld [vmem:[%s13 + $0xc] sm:$0xf]
        %v1882 = vld [vmem:[%s13 + $0x10] sm:$0xf]
        %v1883 = vld [vmem:[%s13 + $0x14] sm:$0xf]
        %v1884 = vld [vmem:[%s13 + $0x18] sm:$0xf]
        %v1885 = vld [vmem:[%s13 + $0x1c] sm:$0xf]
        %v1886 = vld [vmem:[%s13 + $0x20] sm:$0xf]
        %v1887 = vld [vmem:[%s13 + $0x24] sm:$0xf]
        %v1888 = vld [vmem:[%s13 + $0x28] sm:$0xf]
        %v1889 = vld [vmem:[%s13 + $0x2c] sm:$0xf]
        %v1890 = vld [vmem:[%s13 + $0x30] sm:$0xf]
        %v1891 = vld [vmem:[%s13 + $0x34] sm:$0xf]
        %v1892 = vld [vmem:[%s13 + $0x38] sm:$0xf]
        %v1893 = vld [vmem:[%s13 + $0x3c] sm:$0xf]
        %v1910 = vunpack.c.l.b16 %v1878
        %v1911 = vunpack.c.l.b16 %v1879
        %v1912 = vunpack.c.l.b16 %v1880
        %v1913 = vunpack.c.l.b16 %v1881
        %v1914 = vunpack.c.l.b16 %v1882
        %v1915 = vunpack.c.l.b16 %v1883
        %v1916 = vunpack.c.l.b16 %v1884
        %v1917 = vunpack.c.l.b16 %v1885
        %v1918 = vunpack.c.l.b16 %v1886
        %v1919 = vunpack.c.l.b16 %v1887
        %v1920 = vunpack.c.l.b16 %v1888
        %v1921 = vunpack.c.l.b16 %v1889
        %v1922 = vunpack.c.l.b16 %v1890
        %v1923 = vunpack.c.l.b16 %v1891
        %v1924 = vunpack.c.l.b16 %v1892
        %v1925 = vunpack.c.l.b16 %v1893
        %v1926 = vpack.c.b16 %v1911, %v1910
        %v1927 = vpack.c.b16 %v1913, %v1912
        %v1928 = vpack.c.b16 %v1915, %v1914
        %v1929 = vpack.c.b16 %v1917, %v1916
        %v1930 = vpack.c.b16 %v1919, %v1918
        %v1931 = vpack.c.b16 %v1921, %v1920
        %v1932 = vpack.c.b16 %v1923, %v1922
        %v1933 = vpack.c.b16 %v1925, %v1924
        %1942 = vmatprep.subr.bf16.mxu0 0
        %1943 = vmatpush1.bf16.msra.mxu0 %v1933
        %1944 = vmatprep.subr.bf16.mxu0 0
        %1945 = vmatpush1.bf16.msra.mxu0 %v1932
        %1946 = vmatprep.subr.bf16.mxu0 0
        %1947 = vmatpush1.bf16.msra.mxu0 %v1931
        %1948 = vmatprep.subr.bf16.mxu0 0
        %1949 = vmatpush1.bf16.msra.mxu0 %v1930
        %1950 = vmatprep.subr.bf16.mxu0 0
        %1951 = vmatpush1.bf16.msra.mxu0 %v1929
        %1952 = vmatprep.subr.bf16.mxu0 0
        %1953 = vmatpush1.bf16.msra.mxu0 %v1928
        %1954 = vmatprep.subr.bf16.mxu0 0
        %1955 = vmatpush1.bf16.msra.mxu0 %v1927
        %1956 = vmatprep.subr.bf16.mxu0 0
        %1957 = vmatpush1.bf16.msra.mxu0 %v1926
        %1958 = vmatprep.subr.bf16.mxu0 0
        %1959 = vmatpush2.bf16.msra.mxu0 0
        %1960 = vmatprep.subr.bf16.mxu0 0
        %1961 = vmatpush2.bf16.msra.mxu0 0
        %1962 = vmatprep.subr.bf16.mxu0 0
        %1963 = vmatpush2.bf16.msra.mxu0 0
        %1964 = vmatprep.subr.bf16.mxu0 0
        %1965 = vmatpush2.bf16.msra.mxu0 0
        %1966 = vmatprep.subr.bf16.mxu0 0
        %1967 = vmatpush2.bf16.msra.mxu0 0
        %1968 = vmatprep.subr.bf16.mxu0 0
        %1969 = vmatpush2.bf16.msra.mxu0 0
        %1970 = vmatprep.subr.bf16.mxu0 0
        %1971 = vmatpush2.bf16.msra.mxu0 0
        %1972 = vmatprep.subr.bf16.mxu0 0
        %1973 = vmatpush2.bf16.msra.mxu0 0
        %1974 = vmatprep.mubr.bf16.mxu0 0
        %1975 = vmatmul.mubr.bf16.gmra.mxu0 %v1874
        %v1976 = vpop.f32.mrf.mxu0
        %v1977 = vadd.f32 0.0, %v1976
        %v1978 = vpop.f32.mrf.mxu0
        %v1979 = vpop.f32.mrf.mxu0
        %v1980 = vadd.f32 0.0, %v1979
        %v1981 = vpop.f32.mrf.mxu0
        %1982 = vmatprep.mubr.bf16.mxu0 0
        %1983 = vmatmul.mubr.bf16.gmra.mxu0 %v1875
        %v1984 = vpop.f32.mrf.mxu0
        %v1985 = vadd.f32 0.0, %v1984
        %v1986 = vpop.f32.mrf.mxu0
        %v1987 = vpop.f32.mrf.mxu0
        %v1988 = vadd.f32 0.0, %v1987
        %v1989 = vpop.f32.mrf.mxu0
        %1990 = vmatprep.mubr.bf16.mxu0 0
        %1991 = vmatmul.mubr.bf16.gmra.mxu0 %v1876
        %v1992 = vpop.f32.mrf.mxu0
        %v1993 = vadd.f32 0.0, %v1992
        %v1994 = vpop.f32.mrf.mxu0
        %v1995 = vpop.f32.mrf.mxu0
        %v1996 = vadd.f32 0.0, %v1995
        %v1997 = vpop.f32.mrf.mxu0
        %1998 = vmatprep.mubr.bf16.mxu0 0
        %1999 = vmatmul.mubr.bf16.gmra.mxu0 %v1877
        %v2000 = vpop.f32.mrf.mxu0
        %v2001 = vadd.f32 0.0, %v2000
        %v2002 = vpop.f32.mrf.mxu0
        %v2003 = vpop.f32.mrf.mxu0
        %v2004 = vadd.f32 0.0, %v2003
        %v2005 = vpop.f32.mrf.mxu0
        %2006 = vdwg.mxu0
        %v2007 = vadd.f32 %v942, %v1977
        %v2008 = vadd.f32 %v943, %v1980
        %v2009 = vadd.f32 %v944, %v1985
        %v2010 = vadd.f32 %v945, %v1988
        %v2011 = vadd.f32 %v946, %v1993
        %v2012 = vadd.f32 %v947, %v1996
        %v2013 = vadd.f32 %v948, %v2001
        %v2014 = vadd.f32 %v949, %v2004
        %v2015 = vld [vmem:[#allocation18] sm:$0x1]
        %v2017 = vlaneseq
        %v2018 = vshrl.u32 %v2017, 7
        %v2019 = vsub.s32 0, %v2018
        %v2020 = vrot.slane %v2015, %v2019
        %v2022 = vadd.f32 %v2007, %v2020
        %v2023 = vadd.f32 %v2008, %v2020
        %v2024 = vadd.f32 %v2009, %v2020
        %v2025 = vadd.f32 %v2010, %v2020
        %v2026 = vadd.f32 %v2011, %v2020
        %v2027 = vadd.f32 %v2012, %v2020
        %v2028 = vadd.f32 %v2013, %v2020
        %v2029 = vadd.f32 %v2014, %v2020
        %s2030 = scalar_lea.vmem [#allocation8], 1
        %v2031 = vld [vmem:[%s2030] sm:$0x1]
        %s2032 = scalar_lea.vmem [#allocation9], 1
        %v2033 = vld [vmem:[%s2032] sm:$0x1]
        %v2034 = vsel %vm952, %v2022, 0.0
        %2035 = vadd.xlane.f32.xlu0 %v2034
        %v2036 = vpop.xlane.xlu0 %2035
        %v2037 = vsel %vm952, %v2023, 0.0
        %2038 = vadd.xlane.f32.xlu0 %v2037
        %v2039 = vpop.xlane.xlu0 %2038
        %v2040 = vsel %vm952, %v2024, 0.0
        %2041 = vadd.xlane.f32.xlu0 %v2040
        %v2042 = vpop.xlane.xlu0 %2041
        %v2043 = vsel %vm952, %v2025, 0.0
        %2044 = vadd.xlane.f32.xlu0 %v2043
        %v2045 = vpop.xlane.xlu0 %2044
        %v2046 = vsel %vm952, %v2026, 0.0
        %2047 = vadd.xlane.f32.xlu0 %v2046
        %v2048 = vpop.xlane.xlu0 %2047
        %v2049 = vsel %vm952, %v2027, 0.0
        %2050 = vadd.xlane.f32.xlu0 %v2049
        %v2051 = vpop.xlane.xlu0 %2050
        %v2052 = vsel %vm952, %v2028, 0.0
        %2053 = vadd.xlane.f32.xlu0 %v2052
        %v2054 = vpop.xlane.xlu0 %2053
        %v2055 = vsel %vm952, %v2029, 0.0
        %2056 = vadd.xlane.f32.xlu0 %v2055
        %v2057 = vpop.xlane.xlu0 %2056
        %v2058 = vmul.f32 %v2036, %v977
        %v2059 = vmul.f32 %v2039, %v977
        %v2060 = vmul.f32 %v2042, %v977
        %v2061 = vmul.f32 %v2045, %v977
        %v2062 = vmul.f32 %v2048, %v977
        %v2063 = vmul.f32 %v2051, %v977
        %v2064 = vmul.f32 %v2054, %v977
        %v2065 = vmul.f32 %v2057, %v977
        %v2066 = vsub.f32 %v2022, %v2058
        %v2067 = vsub.f32 %v2023, %v2059
        %v2068 = vsub.f32 %v2024, %v2060
        %v2069 = vsub.f32 %v2025, %v2061
        %v2070 = vsub.f32 %v2026, %v2062
        %v2071 = vsub.f32 %v2027, %v2063
        %v2072 = vsub.f32 %v2028, %v2064
        %v2073 = vsub.f32 %v2029, %v2065
        %v2074 = vmul.f32 %v2066, %v2066
        %v2075 = vmul.f32 %v2067, %v2067
        %v2076 = vmul.f32 %v2068, %v2068
        %v2077 = vmul.f32 %v2069, %v2069
        %v2078 = vmul.f32 %v2070, %v2070
        %v2079 = vmul.f32 %v2071, %v2071
        %v2080 = vmul.f32 %v2072, %v2072
        %v2081 = vmul.f32 %v2073, %v2073
        %v2082 = vsel %vm952, %v2074, 0.0
        %2083 = vadd.xlane.f32.xlu0 %v2082
        %v2084 = vpop.xlane.xlu0 %2083
        %v2085 = vsel %vm952, %v2075, 0.0
        %2086 = vadd.xlane.f32.xlu0 %v2085
        %v2087 = vpop.xlane.xlu0 %2086
        %v2088 = vsel %vm952, %v2076, 0.0
        %2089 = vadd.xlane.f32.xlu0 %v2088
        %v2090 = vpop.xlane.xlu0 %2089
        %v2091 = vsel %vm952, %v2077, 0.0
        %2092 = vadd.xlane.f32.xlu0 %v2091
        %v2093 = vpop.xlane.xlu0 %2092
        %v2094 = vsel %vm952, %v2078, 0.0
        %2095 = vadd.xlane.f32.xlu0 %v2094
        %v2096 = vpop.xlane.xlu0 %2095
        %v2097 = vsel %vm952, %v2079, 0.0
        %2098 = vadd.xlane.f32.xlu0 %v2097
        %v2099 = vpop.xlane.xlu0 %2098
        %v2100 = vsel %vm952, %v2080, 0.0
        %2101 = vadd.xlane.f32.xlu0 %v2100
        %v2102 = vpop.xlane.xlu0 %2101
        %v2103 = vsel %vm952, %v2081, 0.0
        %2104 = vadd.xlane.f32.xlu0 %v2103
        %v2105 = vpop.xlane.xlu0 %2104
        %v2106 = vmul.f32 %v2084, %v977
        %v2107 = vmul.f32 %v2087, %v977
        %v2108 = vmul.f32 %v2090, %v977
        %v2109 = vmul.f32 %v2093, %v977
        %v2110 = vmul.f32 %v2096, %v977
        %v2111 = vmul.f32 %v2099, %v977
        %v2112 = vmul.f32 %v2102, %v977
        %v2113 = vmul.f32 %v2105, %v977
        %v2114 = vadd.f32 %v2106, 1e-05
        %v2115 = vadd.f32 %v2107, 1e-05
        %v2116 = vadd.f32 %v2108, 1e-05
        %v2117 = vadd.f32 %v2109, 1e-05
        %v2118 = vadd.f32 %v2110, 1e-05
        %v2119 = vadd.f32 %v2111, 1e-05
        %v2120 = vadd.f32 %v2112, 1e-05
        %v2121 = vadd.f32 %v2113, 1e-05
        %v2122 = vrsqrt.pop %v2114
        %v2123 = vrsqrt.pop %v2115
        %v2124 = vrsqrt.pop %v2116
        %v2125 = vrsqrt.pop %v2117
        %v2126 = vrsqrt.pop %v2118
        %v2127 = vrsqrt.pop %v2119
        %v2128 = vrsqrt.pop %v2120
        %v2129 = vrsqrt.pop %v2121
        %v2130 = vmul.f32 %v2066, %v2122
        %v2131 = vmul.f32 %v2067, %v2123
        %v2132 = vmul.f32 %v2068, %v2124
        %v2133 = vmul.f32 %v2069, %v2125
        %v2134 = vmul.f32 %v2070, %v2126
        %v2135 = vmul.f32 %v2071, %v2127
        %v2136 = vmul.f32 %v2072, %v2128
        %v2137 = vmul.f32 %v2073, %v2129
        %v2139 = vlaneseq
        %v2140 = vshrl.u32 %v2139, 7
        %v2141 = vsub.s32 0, %v2140
        %v2142 = vrot.slane %v2031, %v2141
        %v2144 = vmul.f32 %v2130, %v2142
        %v2145 = vmul.f32 %v2131, %v2142
        %v2146 = vmul.f32 %v2132, %v2142
        %v2147 = vmul.f32 %v2133, %v2142
        %v2148 = vmul.f32 %v2134, %v2142
        %v2149 = vmul.f32 %v2135, %v2142
        %v2150 = vmul.f32 %v2136, %v2142
        %v2151 = vmul.f32 %v2137, %v2142
        %v2153 = vlaneseq
        %v2154 = vshrl.u32 %v2153, 7
        %v2155 = vsub.s32 0, %v2154
        %v2156 = vrot.slane %v2033, %v2155
        %v2158 = vadd.f32 %v2144, %v2156
        %v2159 = vadd.f32 %v2145, %v2156
        %v2160 = vadd.f32 %v2146, %v2156
        %v2161 = vadd.f32 %v2147, %v2156
        %v2162 = vadd.f32 %v2148, %v2156
        %v2163 = vadd.f32 %v2149, %v2156
        %v2164 = vadd.f32 %v2150, %v2156
        %v2165 = vadd.f32 %v2151, %v2156
        %s2166 = scalar_lea.vmem %s5, 64
        %v2167 = vld [vmem:[%s2166] sm:$0xf]
        %v2168 = vld [vmem:[%s2166 + $0x4] sm:$0xf]
        %v2169 = vld [vmem:[%s2166 + $0x8] sm:$0xf]
        %v2170 = vld [vmem:[%s2166 + $0xc] sm:$0xf]
        %v2171 = vld [vmem:[%s2166 + $0x10] sm:$0xf]
        %v2172 = vld [vmem:[%s2166 + $0x14] sm:$0xf]
        %v2173 = vld [vmem:[%s2166 + $0x18] sm:$0xf]
        %v2174 = vld [vmem:[%s2166 + $0x1c] sm:$0xf]
        %v2175 = vld [vmem:[%s2166 + $0x20] sm:$0xf]
        %v2176 = vld [vmem:[%s2166 + $0x24] sm:$0xf]
        %v2177 = vld [vmem:[%s2166 + $0x28] sm:$0xf]
        %v2178 = vld [vmem:[%s2166 + $0x2c] sm:$0xf]
        %v2179 = vld [vmem:[%s2166 + $0x30] sm:$0xf]
        %v2180 = vld [vmem:[%s2166 + $0x34] sm:$0xf]
        %v2181 = vld [vmem:[%s2166 + $0x38] sm:$0xf]
        %v2182 = vld [vmem:[%s2166 + $0x3c] sm:$0xf]
        %v2183 = vpack.c.bf16 %v2159, %v2158
        %v2184 = vpack.c.bf16 %v2161, %v2160
        %v2185 = vpack.c.bf16 %v2163, %v2162
        %v2186 = vpack.c.bf16 %v2165, %v2164
        %s2187 = scalar_lea.vmem %s6, 128
        %v2188 = vld [vmem:[%s2187] sm:$0xff]
        %v2189 = vld [vmem:[%s2187 + $0x8] sm:$0xff]
        %v2190 = vld [vmem:[%s2187 + $0x10] sm:$0xff]
        %v2191 = vld [vmem:[%s2187 + $0x18] sm:$0xff]
        %v2192 = vld [vmem:[%s2187 + $0x20] sm:$0xff]
        %v2193 = vld [vmem:[%s2187 + $0x28] sm:$0xff]
        %v2194 = vld [vmem:[%s2187 + $0x30] sm:$0xff]
        %v2195 = vld [vmem:[%s2187 + $0x38] sm:$0xff]
        %v2196 = vld [vmem:[%s2187 + $0x40] sm:$0xff]
        %v2197 = vld [vmem:[%s2187 + $0x48] sm:$0xff]
        %v2198 = vld [vmem:[%s2187 + $0x50] sm:$0xff]
        %v2199 = vld [vmem:[%s2187 + $0x58] sm:$0xff]
        %v2200 = vld [vmem:[%s2187 + $0x60] sm:$0xff]
        %v2201 = vld [vmem:[%s2187 + $0x68] sm:$0xff]
        %v2202 = vld [vmem:[%s2187 + $0x70] sm:$0xff]
        %v2203 = vld [vmem:[%s2187 + $0x78] sm:$0xff]
        %v2220 = vunpack.c.l.b16 %v2167
        %v2221 = vunpack.c.l.b16 %v2168
        %v2222 = vunpack.c.l.b16 %v2169
        %v2223 = vunpack.c.l.b16 %v2170
        %v2224 = vunpack.c.l.b16 %v2171
        %v2225 = vunpack.c.l.b16 %v2172
        %v2226 = vunpack.c.l.b16 %v2173
        %v2227 = vunpack.c.l.b16 %v2174
        %v2228 = vunpack.c.l.b16 %v2175
        %v2229 = vunpack.c.l.b16 %v2176
        %v2230 = vunpack.c.l.b16 %v2177
        %v2231 = vunpack.c.l.b16 %v2178
        %v2232 = vunpack.c.l.b16 %v2179
        %v2233 = vunpack.c.l.b16 %v2180
        %v2234 = vunpack.c.l.b16 %v2181
        %v2235 = vunpack.c.l.b16 %v2182
        %v2236 = vpack.c.b16 %v2221, %v2220
        %v2237 = vpack.c.b16 %v2223, %v2222
        %v2238 = vpack.c.b16 %v2225, %v2224
        %v2239 = vpack.c.b16 %v2227, %v2226
        %v2240 = vpack.c.b16 %v2229, %v2228
        %v2241 = vpack.c.b16 %v2231, %v2230
        %v2242 = vpack.c.b16 %v2233, %v2232
        %v2243 = vpack.c.b16 %v2235, %v2234
        %v2245 = vsel %vm952, %v2236, 0
        %v2248 = vsel %vm952, %v2237, 0
        %v2251 = vsel %vm952, %v2238, 0
        %v2254 = vsel %vm952, %v2239, 0
        %v2257 = vsel %vm952, %v2240, 0
        %v2260 = vsel %vm952, %v2241, 0
        %v2263 = vsel %vm952, %v2242, 0
        %v2266 = vsel %vm952, %v2243, 0
        %2268 = vmatprep.subr.bf16.mxu0 0
        %2269 = vmatpush1.bf16.msra.mxu0 0
        %2270 = vmatprep.subr.bf16.mxu0 0
        %2271 = vmatpush1.bf16.msra.mxu0 0
        %2272 = vmatprep.subr.bf16.mxu0 0
        %2273 = vmatpush1.bf16.msra.mxu0 0
        %2274 = vmatprep.subr.bf16.mxu0 0
        %2275 = vmatpush1.bf16.msra.mxu0 0
        %2276 = vmatprep.subr.bf16.mxu0 0
        %2277 = vmatpush1.bf16.msra.mxu0 %v2186
        %2278 = vmatprep.subr.bf16.mxu0 0
        %2279 = vmatpush1.bf16.msra.mxu0 %v2185
        %2280 = vmatprep.subr.bf16.mxu0 0
        %2281 = vmatpush1.bf16.msra.mxu0 %v2184
        %2282 = vmatprep.subr.bf16.mxu0 0
        %2283 = vmatpush1.bf16.msra.mxu0 %v2183
        %2284 = vmatprep.subr.bf16.mxu0 0
        %2285 = vmatpush2.bf16.msra.mxu0 0
        %2286 = vmatprep.subr.bf16.mxu0 0
        %2287 = vmatpush2.bf16.msra.mxu0 0
        %2288 = vmatprep.subr.bf16.mxu0 0
        %2289 = vmatpush2.bf16.msra.mxu0 0
        %2290 = vmatprep.subr.bf16.mxu0 0
        %2291 = vmatpush2.bf16.msra.mxu0 0
        %2292 = vmatprep.subr.bf16.mxu0 0
        %2293 = vmatpush2.bf16.msra.mxu0 0
        %2294 = vmatprep.subr.bf16.mxu0 0
        %2295 = vmatpush2.bf16.msra.mxu0 0
        %2296 = vmatprep.subr.bf16.mxu0 0
        %2297 = vmatpush2.bf16.msra.mxu0 0
        %2298 = vmatprep.subr.bf16.mxu0 0
        %2299 = vmatpush2.bf16.msra.mxu0 0
        %2300 = vmatprep.mubr.bf16.mxu0 0
        %2301 = vmatmul.mubr.bf16.gmra.mxu0 %v2245
        %v2302 = vpop.f32.mrf.mxu0
        %v2303 = vadd.f32 %v2188, %v2302
        %v2304 = vpop.f32.mrf.mxu0
        %v2305 = vpop.f32.mrf.mxu0
        %v2306 = vadd.f32 %v2189, %v2305
        %v2307 = vpop.f32.mrf.mxu0
        %2308 = vmatprep.mubr.bf16.mxu0 0
        %2309 = vmatmul.mubr.bf16.gmra.mxu0 %v2248
        %v2310 = vpop.f32.mrf.mxu0
        %v2311 = vadd.f32 %v2190, %v2310
        %v2312 = vpop.f32.mrf.mxu0
        %v2313 = vpop.f32.mrf.mxu0
        %v2314 = vadd.f32 %v2191, %v2313
        %v2315 = vpop.f32.mrf.mxu0
        %2316 = vmatprep.mubr.bf16.mxu0 0
        %2317 = vmatmul.mubr.bf16.gmra.mxu0 %v2251
        %v2318 = vpop.f32.mrf.mxu0
        %v2319 = vadd.f32 %v2192, %v2318
        %v2320 = vpop.f32.mrf.mxu0
        %v2321 = vpop.f32.mrf.mxu0
        %v2322 = vadd.f32 %v2193, %v2321
        %v2323 = vpop.f32.mrf.mxu0
        %2324 = vmatprep.mubr.bf16.mxu0 0
        %2325 = vmatmul.mubr.bf16.gmra.mxu0 %v2254
        %v2326 = vpop.f32.mrf.mxu0
        %v2327 = vadd.f32 %v2194, %v2326
        %v2328 = vpop.f32.mrf.mxu0
        %v2329 = vpop.f32.mrf.mxu0
        %v2330 = vadd.f32 %v2195, %v2329
        %v2331 = vpop.f32.mrf.mxu0
        %2332 = vmatprep.mubr.bf16.mxu0 0
        %2333 = vmatmul.mubr.bf16.gmra.mxu0 %v2257
        %v2334 = vpop.f32.mrf.mxu0
        %v2335 = vadd.f32 %v2196, %v2334
        %v2336 = vpop.f32.mrf.mxu0
        %v2337 = vpop.f32.mrf.mxu0
        %v2338 = vadd.f32 %v2197, %v2337
        %v2339 = vpop.f32.mrf.mxu0
        %2340 = vmatprep.mubr.bf16.mxu0 0
        %2341 = vmatmul.mubr.bf16.gmra.mxu0 %v2260
        %v2342 = vpop.f32.mrf.mxu0
        %v2343 = vadd.f32 %v2198, %v2342
        %v2344 = vpop.f32.mrf.mxu0
        %v2345 = vpop.f32.mrf.mxu0
        %v2346 = vadd.f32 %v2199, %v2345
        %v2347 = vpop.f32.mrf.mxu0
        %2348 = vmatprep.mubr.bf16.mxu0 0
        %2349 = vmatmul.mubr.bf16.gmra.mxu0 %v2263
        %v2350 = vpop.f32.mrf.mxu0
        %v2351 = vadd.f32 %v2200, %v2350
        %v2352 = vpop.f32.mrf.mxu0
        %v2353 = vpop.f32.mrf.mxu0
        %v2354 = vadd.f32 %v2201, %v2353
        %v2355 = vpop.f32.mrf.mxu0
        %2356 = vmatprep.mubr.bf16.mxu0 0
        %2357 = vmatmul.mubr.bf16.gmra.mxu0 %v2266
        %v2358 = vpop.f32.mrf.mxu0
        %v2359 = vadd.f32 %v2202, %v2358
        %v2360 = vpop.f32.mrf.mxu0
        %v2361 = vpop.f32.mrf.mxu0
        %v2362 = vadd.f32 %v2203, %v2361
        %v2363 = vpop.f32.mrf.mxu0
        %2364 = vdwg.mxu0
        %v2365 = vmul.f32 %v2303, %v2303
        %v2366 = vmul.f32 %v2306, %v2306
        %v2367 = vmul.f32 %v2311, %v2311
        %v2368 = vmul.f32 %v2314, %v2314
        %v2369 = vmul.f32 %v2319, %v2319
        %v2370 = vmul.f32 %v2322, %v2322
        %v2371 = vmul.f32 %v2327, %v2327
        %v2372 = vmul.f32 %v2330, %v2330
        %v2373 = vmul.f32 %v2335, %v2335
        %v2374 = vmul.f32 %v2338, %v2338
        %v2375 = vmul.f32 %v2343, %v2343
        %v2376 = vmul.f32 %v2346, %v2346
        %v2377 = vmul.f32 %v2351, %v2351
        %v2378 = vmul.f32 %v2354, %v2354
        %v2379 = vmul.f32 %v2359, %v2359
        %v2380 = vmul.f32 %v2362, %v2362
        %v2381 = vmul.f32 %v2303, %v2365
        %v2382 = vmul.f32 %v2306, %v2366
        %v2383 = vmul.f32 %v2311, %v2367
        %v2384 = vmul.f32 %v2314, %v2368
        %v2385 = vmul.f32 %v2319, %v2369
        %v2386 = vmul.f32 %v2322, %v2370
        %v2387 = vmul.f32 %v2327, %v2371
        %v2388 = vmul.f32 %v2330, %v2372
        %v2389 = vmul.f32 %v2335, %v2373
        %v2390 = vmul.f32 %v2338, %v2374
        %v2391 = vmul.f32 %v2343, %v2375
        %v2392 = vmul.f32 %v2346, %v2376
        %v2393 = vmul.f32 %v2351, %v2377
        %v2394 = vmul.f32 %v2354, %v2378
        %v2395 = vmul.f32 %v2359, %v2379
        %v2396 = vmul.f32 %v2362, %v2380
        %v2397 = vmul.f32 %v2381, 0.044715
        %v2398 = vmul.f32 %v2382, 0.044715
        %v2399 = vmul.f32 %v2383, 0.044715
        %v2400 = vmul.f32 %v2384, 0.044715
        %v2401 = vmul.f32 %v2385, 0.044715
        %v2402 = vmul.f32 %v2386, 0.044715
        %v2403 = vmul.f32 %v2387, 0.044715
        %v2404 = vmul.f32 %v2388, 0.044715
        %v2405 = vmul.f32 %v2389, 0.044715
        %v2406 = vmul.f32 %v2390, 0.044715
        %v2407 = vmul.f32 %v2391, 0.044715
        %v2408 = vmul.f32 %v2392, 0.044715
        %v2409 = vmul.f32 %v2393, 0.044715
        %v2410 = vmul.f32 %v2394, 0.044715
        %v2411 = vmul.f32 %v2395, 0.044715
        %v2412 = vmul.f32 %v2396, 0.044715
        %v2413 = vadd.f32 %v2303, %v2397
        %v2414 = vadd.f32 %v2306, %v2398
        %v2415 = vadd.f32 %v2311, %v2399
        %v2416 = vadd.f32 %v2314, %v2400
        %v2417 = vadd.f32 %v2319, %v2401
        %v2418 = vadd.f32 %v2322, %v2402
        %v2419 = vadd.f32 %v2327, %v2403
        %v2420 = vadd.f32 %v2330, %v2404
        %v2421 = vadd.f32 %v2335, %v2405
        %v2422 = vadd.f32 %v2338, %v2406
        %v2423 = vadd.f32 %v2343, %v2407
        %v2424 = vadd.f32 %v2346, %v2408
        %v2425 = vadd.f32 %v2351, %v2409
        %v2426 = vadd.f32 %v2354, %v2410
        %v2427 = vadd.f32 %v2359, %v2411
        %v2428 = vadd.f32 %v2362, %v2412
        %v2429 = vmul.f32 %v2413, 0.7978846
        %v2430 = vmul.f32 %v2414, 0.7978846
        %v2431 = vmul.f32 %v2415, 0.7978846
        %v2432 = vmul.f32 %v2416, 0.7978846
        %v2433 = vmul.f32 %v2417, 0.7978846
        %v2434 = vmul.f32 %v2418, 0.7978846
        %v2435 = vmul.f32 %v2419, 0.7978846
        %v2436 = vmul.f32 %v2420, 0.7978846
        %v2437 = vmul.f32 %v2421, 0.7978846
        %v2438 = vmul.f32 %v2422, 0.7978846
        %v2439 = vmul.f32 %v2423, 0.7978846
        %v2440 = vmul.f32 %v2424, 0.7978846
        %v2441 = vmul.f32 %v2425, 0.7978846
        %v2442 = vmul.f32 %v2426, 0.7978846
        %v2443 = vmul.f32 %v2427, 0.7978846
        %v2444 = vmul.f32 %v2428, 0.7978846
        %v2445 = vtanh.pop %v2429
        %v2446 = vtanh.pop %v2430
        %v2447 = vtanh.pop %v2431
        %v2448 = vtanh.pop %v2432
        %v2449 = vtanh.pop %v2433
        %v2450 = vtanh.pop %v2434
        %v2451 = vtanh.pop %v2435
        %v2452 = vtanh.pop %v2436
        %v2453 = vtanh.pop %v2437
        %v2454 = vtanh.pop %v2438
        %v2455 = vtanh.pop %v2439
        %v2456 = vtanh.pop %v2440
        %v2457 = vtanh.pop %v2441
        %v2458 = vtanh.pop %v2442
        %v2459 = vtanh.pop %v2443
        %v2460 = vtanh.pop %v2444
        %v2461 = vadd.f32 %v2445, 1.0
        %v2462 = vadd.f32 %v2446, 1.0
        %v2463 = vadd.f32 %v2447, 1.0
        %v2464 = vadd.f32 %v2448, 1.0
        %v2465 = vadd.f32 %v2449, 1.0
        %v2466 = vadd.f32 %v2450, 1.0
        %v2467 = vadd.f32 %v2451, 1.0
        %v2468 = vadd.f32 %v2452, 1.0
        %v2469 = vadd.f32 %v2453, 1.0
        %v2470 = vadd.f32 %v2454, 1.0
        %v2471 = vadd.f32 %v2455, 1.0
        %v2472 = vadd.f32 %v2456, 1.0
        %v2473 = vadd.f32 %v2457, 1.0
        %v2474 = vadd.f32 %v2458, 1.0
        %v2475 = vadd.f32 %v2459, 1.0
        %v2476 = vadd.f32 %v2460, 1.0
        %v2477 = vmul.f32 %v2461, 0.5
        %v2478 = vmul.f32 %v2462, 0.5
        %v2479 = vmul.f32 %v2463, 0.5
        %v2480 = vmul.f32 %v2464, 0.5
        %v2481 = vmul.f32 %v2465, 0.5
        %v2482 = vmul.f32 %v2466, 0.5
        %v2483 = vmul.f32 %v2467, 0.5
        %v2484 = vmul.f32 %v2468, 0.5
        %v2485 = vmul.f32 %v2469, 0.5
        %v2486 = vmul.f32 %v2470, 0.5
        %v2487 = vmul.f32 %v2471, 0.5
        %v2488 = vmul.f32 %v2472, 0.5
        %v2489 = vmul.f32 %v2473, 0.5
        %v2490 = vmul.f32 %v2474, 0.5
        %v2491 = vmul.f32 %v2475, 0.5
        %v2492 = vmul.f32 %v2476, 0.5
        %v2493 = vmul.f32 %v2303, %v2477
        %v2494 = vmul.f32 %v2306, %v2478
        %v2495 = vmul.f32 %v2311, %v2479
        %v2496 = vmul.f32 %v2314, %v2480
        %v2497 = vmul.f32 %v2319, %v2481
        %v2498 = vmul.f32 %v2322, %v2482
        %v2499 = vmul.f32 %v2327, %v2483
        %v2500 = vmul.f32 %v2330, %v2484
        %v2501 = vmul.f32 %v2335, %v2485
        %v2502 = vmul.f32 %v2338, %v2486
        %v2503 = vmul.f32 %v2343, %v2487
        %v2504 = vmul.f32 %v2346, %v2488
        %v2505 = vmul.f32 %v2351, %v2489
        %v2506 = vmul.f32 %v2354, %v2490
        %v2507 = vmul.f32 %v2359, %v2491
        %v2508 = vmul.f32 %v2362, %v2492
        %s2509 = scalar_lea.vmem [#allocation11], 32
        %v2510 = vld [vmem:[%s2509] sm:$0xf]
        %v2511 = vld [vmem:[%s2509 + $0x4] sm:$0xf]
        %v2512 = vld [vmem:[%s2509 + $0x8] sm:$0xf]
        %v2513 = vld [vmem:[%s2509 + $0xc] sm:$0xf]
        %v2514 = vld [vmem:[%s2509 + $0x10] sm:$0xf]
        %v2515 = vld [vmem:[%s2509 + $0x14] sm:$0xf]
        %v2516 = vld [vmem:[%s2509 + $0x18] sm:$0xf]
        %v2517 = vld [vmem:[%s2509 + $0x1c] sm:$0xf]
        %v2518 = vpack.c.bf16 %v2494, %v2493
        %v2519 = vpack.c.bf16 %v2496, %v2495
        %v2520 = vpack.c.bf16 %v2498, %v2497
        %v2521 = vpack.c.bf16 %v2500, %v2499
        %v2522 = vpack.c.bf16 %v2502, %v2501
        %v2523 = vpack.c.bf16 %v2504, %v2503
        %v2524 = vpack.c.bf16 %v2506, %v2505
        %v2525 = vpack.c.bf16 %v2508, %v2507
        %s2526 = scalar_lea.vmem %s8, 64
        %v2527 = vld [vmem:[%s2526] sm:$0xff]
        %v2528 = vld [vmem:[%s2526 + $0x8] sm:$0xff]
        %v2529 = vld [vmem:[%s2526 + $0x10] sm:$0xff]
        %v2530 = vld [vmem:[%s2526 + $0x18] sm:$0xff]
        %v2531 = vld [vmem:[%s2526 + $0x20] sm:$0xff]
        %v2532 = vld [vmem:[%s2526 + $0x28] sm:$0xff]
        %v2533 = vld [vmem:[%s2526 + $0x30] sm:$0xff]
        %v2534 = vld [vmem:[%s2526 + $0x38] sm:$0xff]
        %v2543 = vunpack.c.l.b16 %v2510
        %v2544 = vunpack.c.l.b16 %v2511
        %v2545 = vunpack.c.l.b16 %v2512
        %v2546 = vunpack.c.l.b16 %v2513
        %v2547 = vunpack.c.l.b16 %v2514
        %v2548 = vunpack.c.l.b16 %v2515
        %v2549 = vunpack.c.l.b16 %v2516
        %v2550 = vunpack.c.l.b16 %v2517
        %v2551 = vpack.c.b16 %v2544, %v2543
        %v2552 = vpack.c.b16 %v2546, %v2545
        %v2553 = vpack.c.b16 %v2548, %v2547
        %v2554 = vpack.c.b16 %v2550, %v2549
        %2559 = vmatprep.subr.bf16.mxu0 0
        %2560 = vmatpush1.bf16.msra.mxu0 %v2525
        %2561 = vmatprep.subr.bf16.mxu0 0
        %2562 = vmatpush1.bf16.msra.mxu0 %v2524
        %2563 = vmatprep.subr.bf16.mxu0 0
        %2564 = vmatpush1.bf16.msra.mxu0 %v2523
        %2565 = vmatprep.subr.bf16.mxu0 0
        %2566 = vmatpush1.bf16.msra.mxu0 %v2522
        %2567 = vmatprep.subr.bf16.mxu0 0
        %2568 = vmatpush1.bf16.msra.mxu0 %v2521
        %2569 = vmatprep.subr.bf16.mxu0 0
        %2570 = vmatpush1.bf16.msra.mxu0 %v2520
        %2571 = vmatprep.subr.bf16.mxu0 0
        %2572 = vmatpush1.bf16.msra.mxu0 %v2519
        %2573 = vmatprep.subr.bf16.mxu0 0
        %2574 = vmatpush1.bf16.msra.mxu0 %v2518
        %2575 = vmatprep.subr.bf16.mxu0 0
        %2576 = vmatpush2.bf16.msra.mxu0 0
        %2577 = vmatprep.subr.bf16.mxu0 0
        %2578 = vmatpush2.bf16.msra.mxu0 0
        %2579 = vmatprep.subr.bf16.mxu0 0
        %2580 = vmatpush2.bf16.msra.mxu0 0
        %2581 = vmatprep.subr.bf16.mxu0 0
        %2582 = vmatpush2.bf16.msra.mxu0 0
        %2583 = vmatprep.subr.bf16.mxu0 0
        %2584 = vmatpush2.bf16.msra.mxu0 0
        %2585 = vmatprep.subr.bf16.mxu0 0
        %2586 = vmatpush2.bf16.msra.mxu0 0
        %2587 = vmatprep.subr.bf16.mxu0 0
        %2588 = vmatpush2.bf16.msra.mxu0 0
        %2589 = vmatprep.subr.bf16.mxu0 0
        %2590 = vmatpush2.bf16.msra.mxu0 0
        %2591 = vmatprep.mubr.bf16.mxu0 0
        %2592 = vmatmul.mubr.bf16.gmra.mxu0 %v2551
        %v2593 = vpop.f32.mrf.mxu0
        %v2594 = vadd.f32 %v2527, %v2593
        %v2595 = vpop.f32.mrf.mxu0
        %v2596 = vpop.f32.mrf.mxu0
        %v2597 = vadd.f32 %v2528, %v2596
        %v2598 = vpop.f32.mrf.mxu0
        %2599 = vmatprep.mubr.bf16.mxu0 0
        %2600 = vmatmul.mubr.bf16.gmra.mxu0 %v2552
        %v2601 = vpop.f32.mrf.mxu0
        %v2602 = vadd.f32 %v2529, %v2601
        %v2603 = vpop.f32.mrf.mxu0
        %v2604 = vpop.f32.mrf.mxu0
        %v2605 = vadd.f32 %v2530, %v2604
        %v2606 = vpop.f32.mrf.mxu0
        %2607 = vmatprep.mubr.bf16.mxu0 0
        %2608 = vmatmul.mubr.bf16.gmra.mxu0 %v2553
        %v2609 = vpop.f32.mrf.mxu0
        %v2610 = vadd.f32 %v2531, %v2609
        %v2611 = vpop.f32.mrf.mxu0
        %v2612 = vpop.f32.mrf.mxu0
        %v2613 = vadd.f32 %v2532, %v2612
        %v2614 = vpop.f32.mrf.mxu0
        %2615 = vmatprep.mubr.bf16.mxu0 0
        %2616 = vmatmul.mubr.bf16.gmra.mxu0 %v2554
        %v2617 = vpop.f32.mrf.mxu0
        %v2618 = vadd.f32 %v2533, %v2617
        %v2619 = vpop.f32.mrf.mxu0
        %v2620 = vpop.f32.mrf.mxu0
        %v2621 = vadd.f32 %v2534, %v2620
        %v2622 = vpop.f32.mrf.mxu0
        %2623 = vdwg.mxu0
        %v2624 = vadd.f32 %v2022, %v2594
        %v2625 = vadd.f32 %v2023, %v2597
        %v2626 = vadd.f32 %v2024, %v2602
        %v2627 = vadd.f32 %v2025, %v2605
        %v2628 = vadd.f32 %v2026, %v2610
        %v2629 = vadd.f32 %v2027, %v2613
        %v2630 = vadd.f32 %v2028, %v2618
        %v2631 = vadd.f32 %v2029, %v2621
        %s2632 = scalar_lea.vmem [#allocation12], 1
        %v2633 = vld [vmem:[%s2632] sm:$0x1]
        %s2634 = scalar_lea.vmem [#allocation14], 1
        %v2635 = vld [vmem:[%s2634] sm:$0x1]
        %v2636 = vsel %vm952, %v2624, 0.0
        %2637 = vadd.xlane.f32.xlu0 %v2636
        %v2638 = vpop.xlane.xlu0 %2637
        %v2639 = vsel %vm952, %v2625, 0.0
        %2640 = vadd.xlane.f32.xlu0 %v2639
        %v2641 = vpop.xlane.xlu0 %2640
        %v2642 = vsel %vm952, %v2626, 0.0
        %2643 = vadd.xlane.f32.xlu0 %v2642
        %v2644 = vpop.xlane.xlu0 %2643
        %v2645 = vsel %vm952, %v2627, 0.0
        %2646 = vadd.xlane.f32.xlu0 %v2645
        %v2647 = vpop.xlane.xlu0 %2646
        %v2648 = vsel %vm952, %v2628, 0.0
        %2649 = vadd.xlane.f32.xlu0 %v2648
        %v2650 = vpop.xlane.xlu0 %2649
        %v2651 = vsel %vm952, %v2629, 0.0
        %2652 = vadd.xlane.f32.xlu0 %v2651
        %v2653 = vpop.xlane.xlu0 %2652
        %v2654 = vsel %vm952, %v2630, 0.0
        %2655 = vadd.xlane.f32.xlu0 %v2654
        %v2656 = vpop.xlane.xlu0 %2655
        %v2657 = vsel %vm952, %v2631, 0.0
        %2658 = vadd.xlane.f32.xlu0 %v2657
        %v2659 = vpop.xlane.xlu0 %2658
        %v2660 = vmul.f32 %v2638, %v977
        %v2661 = vmul.f32 %v2641, %v977
        %v2662 = vmul.f32 %v2644, %v977
        %v2663 = vmul.f32 %v2647, %v977
        %v2664 = vmul.f32 %v2650, %v977
        %v2665 = vmul.f32 %v2653, %v977
        %v2666 = vmul.f32 %v2656, %v977
        %v2667 = vmul.f32 %v2659, %v977
        %v2668 = vsub.f32 %v2624, %v2660
        %v2669 = vsub.f32 %v2625, %v2661
        %v2670 = vsub.f32 %v2626, %v2662
        %v2671 = vsub.f32 %v2627, %v2663
        %v2672 = vsub.f32 %v2628, %v2664
        %v2673 = vsub.f32 %v2629, %v2665
        %v2674 = vsub.f32 %v2630, %v2666
        %v2675 = vsub.f32 %v2631, %v2667
        %v2676 = vmul.f32 %v2668, %v2668
        %v2677 = vmul.f32 %v2669, %v2669
        %v2678 = vmul.f32 %v2670, %v2670
        %v2679 = vmul.f32 %v2671, %v2671
        %v2680 = vmul.f32 %v2672, %v2672
        %v2681 = vmul.f32 %v2673, %v2673
        %v2682 = vmul.f32 %v2674, %v2674
        %v2683 = vmul.f32 %v2675, %v2675
        %v2684 = vsel %vm952, %v2676, 0.0
        %2685 = vadd.xlane.f32.xlu0 %v2684
        %v2686 = vpop.xlane.xlu0 %2685
        %v2687 = vsel %vm952, %v2677, 0.0
        %2688 = vadd.xlane.f32.xlu0 %v2687
        %v2689 = vpop.xlane.xlu0 %2688
        %v2690 = vsel %vm952, %v2678, 0.0
        %2691 = vadd.xlane.f32.xlu0 %v2690
        %v2692 = vpop.xlane.xlu0 %2691
        %v2693 = vsel %vm952, %v2679, 0.0
        %2694 = vadd.xlane.f32.xlu0 %v2693
        %v2695 = vpop.xlane.xlu0 %2694
        %v2696 = vsel %vm952, %v2680, 0.0
        %2697 = vadd.xlane.f32.xlu0 %v2696
        %v2698 = vpop.xlane.xlu0 %2697
        %v2699 = vsel %vm952, %v2681, 0.0
        %2700 = vadd.xlane.f32.xlu0 %v2699
        %v2701 = vpop.xlane.xlu0 %2700
        %v2702 = vsel %vm952, %v2682, 0.0
        %2703 = vadd.xlane.f32.xlu0 %v2702
        %v2704 = vpop.xlane.xlu0 %2703
        %v2705 = vsel %vm952, %v2683, 0.0
        %2706 = vadd.xlane.f32.xlu0 %v2705
        %v2707 = vpop.xlane.xlu0 %2706
        %v2708 = vmul.f32 %v2686, %v977
        %v2709 = vmul.f32 %v2689, %v977
        %v2710 = vmul.f32 %v2692, %v977
        %v2711 = vmul.f32 %v2695, %v977
        %v2712 = vmul.f32 %v2698, %v977
        %v2713 = vmul.f32 %v2701, %v977
        %v2714 = vmul.f32 %v2704, %v977
        %v2715 = vmul.f32 %v2707, %v977
        %v2716 = vadd.f32 %v2708, 1e-05
        %v2717 = vadd.f32 %v2709, 1e-05
        %v2718 = vadd.f32 %v2710, 1e-05
        %v2719 = vadd.f32 %v2711, 1e-05
        %v2720 = vadd.f32 %v2712, 1e-05
        %v2721 = vadd.f32 %v2713, 1e-05
        %v2722 = vadd.f32 %v2714, 1e-05
        %v2723 = vadd.f32 %v2715, 1e-05
        %v2724 = vrsqrt.pop %v2716
        %v2725 = vrsqrt.pop %v2717
        %v2726 = vrsqrt.pop %v2718
        %v2727 = vrsqrt.pop %v2719
        %v2728 = vrsqrt.pop %v2720
        %v2729 = vrsqrt.pop %v2721
        %v2730 = vrsqrt.pop %v2722
        %v2731 = vrsqrt.pop %v2723
        %v2732 = vmul.f32 %v2668, %v2724
        %v2733 = vmul.f32 %v2669, %v2725
        %v2734 = vmul.f32 %v2670, %v2726
        %v2735 = vmul.f32 %v2671, %v2727
        %v2736 = vmul.f32 %v2672, %v2728
        %v2737 = vmul.f32 %v2673, %v2729
        %v2738 = vmul.f32 %v2674, %v2730
        %v2739 = vmul.f32 %v2675, %v2731
        %v2741 = vlaneseq
        %v2742 = vshrl.u32 %v2741, 7
        %v2743 = vsub.s32 0, %v2742
        %v2744 = vrot.slane %v2633, %v2743
        %v2746 = vmul.f32 %v2732, %v2744
        %v2747 = vmul.f32 %v2733, %v2744
        %v2748 = vmul.f32 %v2734, %v2744
        %v2749 = vmul.f32 %v2735, %v2744
        %v2750 = vmul.f32 %v2736, %v2744
        %v2751 = vmul.f32 %v2737, %v2744
        %v2752 = vmul.f32 %v2738, %v2744
        %v2753 = vmul.f32 %v2739, %v2744
        %v2755 = vlaneseq
        %v2756 = vshrl.u32 %v2755, 7
        %v2757 = vsub.s32 0, %v2756
        %v2758 = vrot.slane %v2635, %v2757
        %v2760 = vadd.f32 %v2746, %v2758
        %v2761 = vadd.f32 %v2747, %v2758
        %v2762 = vadd.f32 %v2748, %v2758
        %v2763 = vadd.f32 %v2749, %v2758
        %v2764 = vadd.f32 %v2750, %v2758
        %v2765 = vadd.f32 %v2751, %v2758
        %v2766 = vadd.f32 %v2752, %v2758
        %v2767 = vadd.f32 %v2753, %v2758
        %v2768 = vpack.c.bf16 %v2761, %v2760
        %v2769 = vpack.c.bf16 %v2763, %v2762
        %v2770 = vpack.c.bf16 %v2765, %v2764
        %v2771 = vpack.c.bf16 %v2767, %v2766
        %s2772 = scalar_lea.vmem [#allocation15], 32
        %v2773 = vld [vmem:[%s2772] sm:$0xf]
        %v2774 = vld [vmem:[%s2772 + $0x4] sm:$0xf]
        %v2775 = vld [vmem:[%s2772 + $0x8] sm:$0xf]
        %v2776 = vld [vmem:[%s2772 + $0xc] sm:$0xf]
        %v2777 = vld [vmem:[%s2772 + $0x10] sm:$0xf]
        %v2778 = vld [vmem:[%s2772 + $0x14] sm:$0xf]
        %v2779 = vld [vmem:[%s2772 + $0x18] sm:$0xf]
        %v2780 = vld [vmem:[%s2772 + $0x1c] sm:$0xf]
        %s2781 = scalar_lea.vmem [#allocation17], 1
        %v2782 = vld [vmem:[%s2781] sm:$0x1]
        %v2784 = vlaneseq
        %v2785 = vshrl.u32 %v2784, 7
        %v2786 = vsub.s32 0, %v2785
        %v2787 = vrot.slane %v2782, %v2786
        %v2797 = vunpack.c.l.b16 %v2773
        %v2798 = vunpack.c.l.b16 %v2774
        %v2799 = vunpack.c.l.b16 %v2775
        %v2800 = vunpack.c.l.b16 %v2776
        %v2801 = vunpack.c.l.b16 %v2777
        %v2802 = vunpack.c.l.b16 %v2778
        %v2803 = vunpack.c.l.b16 %v2779
        %v2804 = vunpack.c.l.b16 %v2780
        %v2805 = vpack.c.b16 %v2798, %v2797
        %v2806 = vpack.c.b16 %v2800, %v2799
        %v2807 = vpack.c.b16 %v2802, %v2801
        %v2808 = vpack.c.b16 %v2804, %v2803
        %v2814 = vsel %vm952, %v2768, 0
        %v2817 = vsel %vm952, %v2769, 0
        %v2820 = vsel %vm952, %v2770, 0
        %v2823 = vsel %vm952, %v2771, 0
        %2825 = vmatprep.subr.bf16.mxu0 0
        %2826 = vmatpush1.bf16.msra.mxu0 0
        %2827 = vmatprep.subr.bf16.mxu0 0
        %2828 = vmatpush1.bf16.msra.mxu0 0
        %2829 = vmatprep.subr.bf16.mxu0 0
        %2830 = vmatpush1.bf16.msra.mxu0 0
        %2831 = vmatprep.subr.bf16.mxu0 0
        %2832 = vmatpush1.bf16.msra.mxu0 0
        %2833 = vmatprep.subr.bf16.mxu0 0
        %2834 = vmatpush1.bf16.msra.mxu0 %v2808
        %2835 = vmatprep.subr.bf16.mxu0 0
        %2836 = vmatpush1.bf16.msra.mxu0 %v2807
        %2837 = vmatprep.subr.bf16.mxu0 0
        %2838 = vmatpush1.bf16.msra.mxu0 %v2806
        %2839 = vmatprep.subr.bf16.mxu0 0
        %2840 = vmatpush1.bf16.msra.mxu0 %v2805
        %2841 = vmatprep.subr.bf16.mxu0 0
        %2842 = vmatpush2.bf16.msra.mxu0 0
        %2843 = vmatprep.subr.bf16.mxu0 0
        %2844 = vmatpush2.bf16.msra.mxu0 0
        %2845 = vmatprep.subr.bf16.mxu0 0
        %2846 = vmatpush2.bf16.msra.mxu0 0
        %2847 = vmatprep.subr.bf16.mxu0 0
        %2848 = vmatpush2.bf16.msra.mxu0 0
        %2849 = vmatprep.subr.bf16.mxu0 0
        %2850 = vmatpush2.bf16.msra.mxu0 0
        %2851 = vmatprep.subr.bf16.mxu0 0
        %2852 = vmatpush2.bf16.msra.mxu0 0
        %2853 = vmatprep.subr.bf16.mxu0 0
        %2854 = vmatpush2.bf16.msra.mxu0 0
        %2855 = vmatprep.subr.bf16.mxu0 0
        %2856 = vmatpush2.bf16.msra.mxu0 0
        %2857 = vmatprep.mubr.bf16.mxu0 0
        %2858 = vmatmul.mubr.bf16.gmra.mxu0 %v2814
        %v2859 = vpop.f32.mrf.mxu0
        %v2860 = vadd.f32 %v2787, %v2859
        %v2861 = vpop.f32.mrf.mxu0
        %v2862 = vpop.f32.mrf.mxu0
        %v2863 = vadd.f32 %v2787, %v2862
        %v2864 = vpop.f32.mrf.mxu0
        %2865 = vmatprep.mubr.bf16.mxu0 0
        %2866 = vmatmul.mubr.bf16.gmra.mxu0 %v2817
        %v2867 = vpop.f32.mrf.mxu0
        %v2868 = vadd.f32 %v2787, %v2867
        %v2869 = vpop.f32.mrf.mxu0
        %v2870 = vpop.f32.mrf.mxu0
        %v2871 = vadd.f32 %v2787, %v2870
        %v2872 = vpop.f32.mrf.mxu0
        %2873 = vmatprep.mubr.bf16.mxu0 0
        %2874 = vmatmul.mubr.bf16.gmra.mxu0 %v2820
        %v2875 = vpop.f32.mrf.mxu0
        %v2876 = vadd.f32 %v2787, %v2875
        %v2877 = vpop.f32.mrf.mxu0
        %v2878 = vpop.f32.mrf.mxu0
        %v2879 = vadd.f32 %v2787, %v2878
        %v2880 = vpop.f32.mrf.mxu0
        %2881 = vmatprep.mubr.bf16.mxu0 0
        %2882 = vmatmul.mubr.bf16.gmra.mxu0 %v2823
        %v2883 = vpop.f32.mrf.mxu0
        %v2884 = vadd.f32 %v2787, %v2883
        %v2885 = vpop.f32.mrf.mxu0
        %v2886 = vpop.f32.mrf.mxu0
        %v2887 = vadd.f32 %v2787, %v2886
        %v2888 = vpop.f32.mrf.mxu0
        %2889 = vdwg.mxu0
        %v2890 = vmul.f32 %v2860, %v2860
        %v2891 = vmul.f32 %v2863, %v2863
        %v2892 = vmul.f32 %v2868, %v2868
        %v2893 = vmul.f32 %v2871, %v2871
        %v2894 = vmul.f32 %v2876, %v2876
        %v2895 = vmul.f32 %v2879, %v2879
        %v2896 = vmul.f32 %v2884, %v2884
        %v2897 = vmul.f32 %v2887, %v2887
        %v2898 = vmul.f32 %v2860, %v2890
        %v2899 = vmul.f32 %v2863, %v2891
        %v2900 = vmul.f32 %v2868, %v2892
        %v2901 = vmul.f32 %v2871, %v2893
        %v2902 = vmul.f32 %v2876, %v2894
        %v2903 = vmul.f32 %v2879, %v2895
        %v2904 = vmul.f32 %v2884, %v2896
        %v2905 = vmul.f32 %v2887, %v2897
        %v2906 = vmul.f32 %v2898, 0.044715
        %v2907 = vmul.f32 %v2899, 0.044715
        %v2908 = vmul.f32 %v2900, 0.044715
        %v2909 = vmul.f32 %v2901, 0.044715
        %v2910 = vmul.f32 %v2902, 0.044715
        %v2911 = vmul.f32 %v2903, 0.044715
        %v2912 = vmul.f32 %v2904, 0.044715
        %v2913 = vmul.f32 %v2905, 0.044715
        %v2914 = vadd.f32 %v2860, %v2906
        %v2915 = vadd.f32 %v2863, %v2907
        %v2916 = vadd.f32 %v2868, %v2908
        %v2917 = vadd.f32 %v2871, %v2909
        %v2918 = vadd.f32 %v2876, %v2910
        %v2919 = vadd.f32 %v2879, %v2911
        %v2920 = vadd.f32 %v2884, %v2912
        %v2921 = vadd.f32 %v2887, %v2913
        %v2922 = vmul.f32 %v2914, 0.7978846
        %v2923 = vmul.f32 %v2915, 0.7978846
        %v2924 = vmul.f32 %v2916, 0.7978846
        %v2925 = vmul.f32 %v2917, 0.7978846
        %v2926 = vmul.f32 %v2918, 0.7978846
        %v2927 = vmul.f32 %v2919, 0.7978846
        %v2928 = vmul.f32 %v2920, 0.7978846
        %v2929 = vmul.f32 %v2921, 0.7978846
        %v2930 = vtanh.pop %v2922
        %v2931 = vtanh.pop %v2923
        %v2932 = vtanh.pop %v2924
        %v2933 = vtanh.pop %v2925
        %v2934 = vtanh.pop %v2926
        %v2935 = vtanh.pop %v2927
        %v2936 = vtanh.pop %v2928
        %v2937 = vtanh.pop %v2929
        %v2938 = vadd.f32 %v2930, 1.0
        %v2939 = vadd.f32 %v2931, 1.0
        %v2940 = vadd.f32 %v2932, 1.0
        %v2941 = vadd.f32 %v2933, 1.0
        %v2942 = vadd.f32 %v2934, 1.0
        %v2943 = vadd.f32 %v2935, 1.0
        %v2944 = vadd.f32 %v2936, 1.0
        %v2945 = vadd.f32 %v2937, 1.0
        %v2946 = vmul.f32 %v2938, 0.5
        %v2947 = vmul.f32 %v2939, 0.5
        %v2948 = vmul.f32 %v2940, 0.5
        %v2949 = vmul.f32 %v2941, 0.5
        %v2950 = vmul.f32 %v2942, 0.5
        %v2951 = vmul.f32 %v2943, 0.5
        %v2952 = vmul.f32 %v2944, 0.5
        %v2953 = vmul.f32 %v2945, 0.5
        %v2954 = vmul.f32 %v2860, %v2946
        %v2955 = vmul.f32 %v2863, %v2947
        %v2956 = vmul.f32 %v2868, %v2948
        %v2957 = vmul.f32 %v2871, %v2949
        %v2958 = vmul.f32 %v2876, %v2950
        %v2959 = vmul.f32 %v2879, %v2951
        %v2960 = vmul.f32 %v2884, %v2952
        %v2961 = vmul.f32 %v2887, %v2953
        %v2962 = vpack.c.bf16 %v2955, %v2954
        %v2963 = vpack.c.bf16 %v2957, %v2956
        %v2964 = vpack.c.bf16 %v2959, %v2958
        %v2965 = vpack.c.bf16 %v2961, %v2960
        %s2966 = scalar_lea.vmem %s13, 64
        %v2967 = vld [vmem:[%s2966] sm:$0xf]
        %v2968 = vld [vmem:[%s2966 + $0x4] sm:$0xf]
        %v2969 = vld [vmem:[%s2966 + $0x8] sm:$0xf]
        %v2970 = vld [vmem:[%s2966 + $0xc] sm:$0xf]
        %v2971 = vld [vmem:[%s2966 + $0x10] sm:$0xf]
        %v2972 = vld [vmem:[%s2966 + $0x14] sm:$0xf]
        %v2973 = vld [vmem:[%s2966 + $0x18] sm:$0xf]
        %v2974 = vld [vmem:[%s2966 + $0x1c] sm:$0xf]
        %v2975 = vld [vmem:[%s2966 + $0x20] sm:$0xf]
        %v2976 = vld [vmem:[%s2966 + $0x24] sm:$0xf]
        %v2977 = vld [vmem:[%s2966 + $0x28] sm:$0xf]
        %v2978 = vld [vmem:[%s2966 + $0x2c] sm:$0xf]
        %v2979 = vld [vmem:[%s2966 + $0x30] sm:$0xf]
        %v2980 = vld [vmem:[%s2966 + $0x34] sm:$0xf]
        %v2981 = vld [vmem:[%s2966 + $0x38] sm:$0xf]
        %v2982 = vld [vmem:[%s2966 + $0x3c] sm:$0xf]
        %v2999 = vunpack.c.l.b16 %v2967
        %v3000 = vunpack.c.l.b16 %v2968
        %v3001 = vunpack.c.l.b16 %v2969
        %v3002 = vunpack.c.l.b16 %v2970
        %v3003 = vunpack.c.l.b16 %v2971
        %v3004 = vunpack.c.l.b16 %v2972
        %v3005 = vunpack.c.l.b16 %v2973
        %v3006 = vunpack.c.l.b16 %v2974
        %v3007 = vunpack.c.l.b16 %v2975
        %v3008 = vunpack.c.l.b16 %v2976
        %v3009 = vunpack.c.l.b16 %v2977
        %v3010 = vunpack.c.l.b16 %v2978
        %v3011 = vunpack.c.l.b16 %v2979
        %v3012 = vunpack.c.l.b16 %v2980
        %v3013 = vunpack.c.l.b16 %v2981
        %v3014 = vunpack.c.l.b16 %v2982
        %v3015 = vpack.c.b16 %v3000, %v2999
        %v3016 = vpack.c.b16 %v3002, %v3001
        %v3017 = vpack.c.b16 %v3004, %v3003
        %v3018 = vpack.c.b16 %v3006, %v3005
        %v3019 = vpack.c.b16 %v3008, %v3007
        %v3020 = vpack.c.b16 %v3010, %v3009
        %v3021 = vpack.c.b16 %v3012, %v3011
        %v3022 = vpack.c.b16 %v3014, %v3013
        %3031 = vmatprep.subr.bf16.mxu0 0
        %3032 = vmatpush1.bf16.msra.mxu0 %v3022
        %3033 = vmatprep.subr.bf16.mxu0 0
        %3034 = vmatpush1.bf16.msra.mxu0 %v3021
        %3035 = vmatprep.subr.bf16.mxu0 0
        %3036 = vmatpush1.bf16.msra.mxu0 %v3020
        %3037 = vmatprep.subr.bf16.mxu0 0
        %3038 = vmatpush1.bf16.msra.mxu0 %v3019
        %3039 = vmatprep.subr.bf16.mxu0 0
        %3040 = vmatpush1.bf16.msra.mxu0 %v3018
        %3041 = vmatprep.subr.bf16.mxu0 0
        %3042 = vmatpush1.bf16.msra.mxu0 %v3017
        %3043 = vmatprep.subr.bf16.mxu0 0
        %3044 = vmatpush1.bf16.msra.mxu0 %v3016
        %3045 = vmatprep.subr.bf16.mxu0 0
        %3046 = vmatpush1.bf16.msra.mxu0 %v3015
        %3047 = vmatprep.subr.bf16.mxu0 0
        %3048 = vmatpush2.bf16.msra.mxu0 0
        %3049 = vmatprep.subr.bf16.mxu0 0
        %3050 = vmatpush2.bf16.msra.mxu0 0
        %3051 = vmatprep.subr.bf16.mxu0 0
        %3052 = vmatpush2.bf16.msra.mxu0 0
        %3053 = vmatprep.subr.bf16.mxu0 0
        %3054 = vmatpush2.bf16.msra.mxu0 0
        %3055 = vmatprep.subr.bf16.mxu0 0
        %3056 = vmatpush2.bf16.msra.mxu0 0
        %3057 = vmatprep.subr.bf16.mxu0 0
        %3058 = vmatpush2.bf16.msra.mxu0 0
        %3059 = vmatprep.subr.bf16.mxu0 0
        %3060 = vmatpush2.bf16.msra.mxu0 0
        %3061 = vmatprep.subr.bf16.mxu0 0
        %3062 = vmatpush2.bf16.msra.mxu0 0
        %3063 = vmatprep.mubr.bf16.mxu0 0
        %3064 = vmatmul.mubr.bf16.gmra.mxu0 %v2962
        %v3065 = vpop.f32.mrf.mxu0
        %v3066 = vadd.f32 0.0, %v3065
        %v3067 = vpop.f32.mrf.mxu0
        %v3068 = vpop.f32.mrf.mxu0
        %v3069 = vadd.f32 0.0, %v3068
        %v3070 = vpop.f32.mrf.mxu0
        %3071 = vmatprep.mubr.bf16.mxu0 0
        %3072 = vmatmul.mubr.bf16.gmra.mxu0 %v2963
        %v3073 = vpop.f32.mrf.mxu0
        %v3074 = vadd.f32 0.0, %v3073
        %v3075 = vpop.f32.mrf.mxu0
        %v3076 = vpop.f32.mrf.mxu0
        %v3077 = vadd.f32 0.0, %v3076
        %v3078 = vpop.f32.mrf.mxu0
        %3079 = vmatprep.mubr.bf16.mxu0 0
        %3080 = vmatmul.mubr.bf16.gmra.mxu0 %v2964
        %v3081 = vpop.f32.mrf.mxu0
        %v3082 = vadd.f32 0.0, %v3081
        %v3083 = vpop.f32.mrf.mxu0
        %v3084 = vpop.f32.mrf.mxu0
        %v3085 = vadd.f32 0.0, %v3084
        %v3086 = vpop.f32.mrf.mxu0
        %3087 = vmatprep.mubr.bf16.mxu0 0
        %3088 = vmatmul.mubr.bf16.gmra.mxu0 %v2965
        %v3089 = vpop.f32.mrf.mxu0
        %v3090 = vadd.f32 0.0, %v3089
        %v3091 = vpop.f32.mrf.mxu0
        %v3092 = vpop.f32.mrf.mxu0
        %v3093 = vadd.f32 0.0, %v3092
        %v3094 = vpop.f32.mrf.mxu0
        %3095 = vdwg.mxu0
        %v3096 = vadd.f32 %v2022, %v3066
        %v3097 = vadd.f32 %v2023, %v3069
        %v3098 = vadd.f32 %v2024, %v3074
        %v3099 = vadd.f32 %v2025, %v3077
        %v3100 = vadd.f32 %v2026, %v3082
        %v3101 = vadd.f32 %v2027, %v3085
        %v3102 = vadd.f32 %v2028, %v3090
        %v3103 = vadd.f32 %v2029, %v3093
        %s3104 = scalar_lea.vmem [#allocation18], 1
        %v3105 = vld [vmem:[%s3104] sm:$0x1]
        %v3107 = vlaneseq
        %v3108 = vshrl.u32 %v3107, 7
        %v3109 = vsub.s32 0, %v3108
        %v3110 = vrot.slane %v3105, %v3109
        %v3112 = vadd.f32 %v3096, %v3110
        %v3113 = vadd.f32 %v3097, %v3110
        %v3114 = vadd.f32 %v3098, %v3110
        %v3115 = vadd.f32 %v3099, %v3110
        %v3116 = vadd.f32 %v3100, %v3110
        %v3117 = vadd.f32 %v3101, %v3110
        %v3118 = vadd.f32 %v3102, %v3110
        %v3119 = vadd.f32 %v3103, %v3110
        %v3120 = vld [vmem:[#allocation20] sm:$0x1]
        %v3121 = vld [vmem:[#allocation21] sm:$0x1]
        %v3122 = vsel %vm952, %v3112, 0.0
        %3123 = vadd.xlane.f32.xlu0 %v3122
        %v3124 = vpop.xlane.xlu0 %3123
        %v3125 = vsel %vm952, %v3113, 0.0
        %3126 = vadd.xlane.f32.xlu0 %v3125
        %v3127 = vpop.xlane.xlu0 %3126
        %v3128 = vsel %vm952, %v3114, 0.0
        %3129 = vadd.xlane.f32.xlu0 %v3128
        %v3130 = vpop.xlane.xlu0 %3129
        %v3131 = vsel %vm952, %v3115, 0.0
        %3132 = vadd.xlane.f32.xlu0 %v3131
        %v3133 = vpop.xlane.xlu0 %3132
        %v3134 = vsel %vm952, %v3116, 0.0
        %3135 = vadd.xlane.f32.xlu0 %v3134
        %v3136 = vpop.xlane.xlu0 %3135
        %v3137 = vsel %vm952, %v3117, 0.0
        %3138 = vadd.xlane.f32.xlu0 %v3137
        %v3139 = vpop.xlane.xlu0 %3138
        %v3140 = vsel %vm952, %v3118, 0.0
        %3141 = vadd.xlane.f32.xlu0 %v3140
        %v3142 = vpop.xlane.xlu0 %3141
        %v3143 = vsel %vm952, %v3119, 0.0
        %3144 = vadd.xlane.f32.xlu0 %v3143
        %v3145 = vpop.xlane.xlu0 %3144
        %v3146 = vmul.f32 %v3124, %v977
        %v3147 = vmul.f32 %v3127, %v977
        %v3148 = vmul.f32 %v3130, %v977
        %v3149 = vmul.f32 %v3133, %v977
        %v3150 = vmul.f32 %v3136, %v977
        %v3151 = vmul.f32 %v3139, %v977
        %v3152 = vmul.f32 %v3142, %v977
        %v3153 = vmul.f32 %v3145, %v977
        %v3154 = vsub.f32 %v3112, %v3146
        %v3155 = vsub.f32 %v3113, %v3147
        %v3156 = vsub.f32 %v3114, %v3148
        %v3157 = vsub.f32 %v3115, %v3149
        %v3158 = vsub.f32 %v3116, %v3150
        %v3159 = vsub.f32 %v3117, %v3151
        %v3160 = vsub.f32 %v3118, %v3152
        %v3161 = vsub.f32 %v3119, %v3153
        %v3162 = vmul.f32 %v3154, %v3154
        %v3163 = vmul.f32 %v3155, %v3155
        %v3164 = vmul.f32 %v3156, %v3156
        %v3165 = vmul.f32 %v3157, %v3157
        %v3166 = vmul.f32 %v3158, %v3158
        %v3167 = vmul.f32 %v3159, %v3159
        %v3168 = vmul.f32 %v3160, %v3160
        %v3169 = vmul.f32 %v3161, %v3161
        %v3170 = vsel %vm952, %v3162, 0.0
        %3171 = vadd.xlane.f32.xlu0 %v3170
        %v3172 = vpop.xlane.xlu0 %3171
        %v3173 = vsel %vm952, %v3163, 0.0
        %3174 = vadd.xlane.f32.xlu0 %v3173
        %v3175 = vpop.xlane.xlu0 %3174
        %v3176 = vsel %vm952, %v3164, 0.0
        %3177 = vadd.xlane.f32.xlu0 %v3176
        %v3178 = vpop.xlane.xlu0 %3177
        %v3179 = vsel %vm952, %v3165, 0.0
        %3180 = vadd.xlane.f32.xlu0 %v3179
        %v3181 = vpop.xlane.xlu0 %3180
        %v3182 = vsel %vm952, %v3166, 0.0
        %3183 = vadd.xlane.f32.xlu0 %v3182
        %v3184 = vpop.xlane.xlu0 %3183
        %v3185 = vsel %vm952, %v3167, 0.0
        %3186 = vadd.xlane.f32.xlu0 %v3185
        %v3187 = vpop.xlane.xlu0 %3186
        %v3188 = vsel %vm952, %v3168, 0.0
        %3189 = vadd.xlane.f32.xlu0 %v3188
        %v3190 = vpop.xlane.xlu0 %3189
        %v3191 = vsel %vm952, %v3169, 0.0
        %3192 = vadd.xlane.f32.xlu0 %v3191
        %v3193 = vpop.xlane.xlu0 %3192
        %v3194 = vmul.f32 %v3172, %v977
        %v3195 = vmul.f32 %v3175, %v977
        %v3196 = vmul.f32 %v3178, %v977
        %v3197 = vmul.f32 %v3181, %v977
        %v3198 = vmul.f32 %v3184, %v977
        %v3199 = vmul.f32 %v3187, %v977
        %v3200 = vmul.f32 %v3190, %v977
        %v3201 = vmul.f32 %v3193, %v977
        %v3202 = vadd.f32 %v3194, 1e-05
        %v3203 = vadd.f32 %v3195, 1e-05
        %v3204 = vadd.f32 %v3196, 1e-05
        %v3205 = vadd.f32 %v3197, 1e-05
        %v3206 = vadd.f32 %v3198, 1e-05
        %v3207 = vadd.f32 %v3199, 1e-05
        %v3208 = vadd.f32 %v3200, 1e-05
        %v3209 = vadd.f32 %v3201, 1e-05
        %v3210 = vrsqrt.pop %v3202
        %v3211 = vrsqrt.pop %v3203
        %v3212 = vrsqrt.pop %v3204
        %v3213 = vrsqrt.pop %v3205
        %v3214 = vrsqrt.pop %v3206
        %v3215 = vrsqrt.pop %v3207
        %v3216 = vrsqrt.pop %v3208
        %v3217 = vrsqrt.pop %v3209
        %v3218 = vmul.f32 %v3154, %v3210
        %v3219 = vmul.f32 %v3155, %v3211
        %v3220 = vmul.f32 %v3156, %v3212
        %v3221 = vmul.f32 %v3157, %v3213
        %v3222 = vmul.f32 %v3158, %v3214
        %v3223 = vmul.f32 %v3159, %v3215
        %v3224 = vmul.f32 %v3160, %v3216
        %v3225 = vmul.f32 %v3161, %v3217
        %v3227 = vlaneseq
        %v3228 = vshrl.u32 %v3227, 7
        %v3229 = vsub.s32 0, %v3228
        %v3230 = vrot.slane %v3120, %v3229
        %v3232 = vmul.f32 %v3218, %v3230
        %v3233 = vmul.f32 %v3219, %v3230
        %v3234 = vmul.f32 %v3220, %v3230
        %v3235 = vmul.f32 %v3221, %v3230
        %v3236 = vmul.f32 %v3222, %v3230
        %v3237 = vmul.f32 %v3223, %v3230
        %v3238 = vmul.f32 %v3224, %v3230
        %v3239 = vmul.f32 %v3225, %v3230
        %v3241 = vlaneseq
        %v3242 = vshrl.u32 %v3241, 7
        %v3243 = vsub.s32 0, %v3242
        %v3244 = vrot.slane %v3121, %v3243
        %v3246 = vadd.f32 %v3232, %v3244
        %v3247 = vadd.f32 %v3233, %v3244
        %v3248 = vadd.f32 %v3234, %v3244
        %v3249 = vadd.f32 %v3235, %v3244
        %v3250 = vadd.f32 %v3236, %v3244
        %v3251 = vadd.f32 %v3237, %v3244
        %v3252 = vadd.f32 %v3238, %v3244
        %v3253 = vadd.f32 %v3239, %v3244
        %3254 = vst.msk [vmem:[%s820] sm:$0xff] %vm952, %v3246
        %3255 = vst.msk [vmem:[%s820 + $0x8] sm:$0xff] %vm952, %v3247
        %3256 = vst.msk [vmem:[%s820 + $0x10] sm:$0xff] %vm952, %v3248
        %3257 = vst.msk [vmem:[%s820 + $0x18] sm:$0xff] %vm952, %v3249
        %3258 = vst.msk [vmem:[%s820 + $0x20] sm:$0xff] %vm952, %v3250
        %3259 = vst.msk [vmem:[%s820 + $0x28] sm:$0xff] %vm952, %v3251
        %3260 = vst.msk [vmem:[%s820 + $0x30] sm:$0xff] %vm952, %v3252
        %3261 = vst.msk [vmem:[%s820 + $0x38] sm:$0xff] %vm952, %v3253
        %v3262 = vld [vmem:[#allocation23] sm:$0x1]
        %v3263 = vld [vmem:[#allocation2] sm:$0x1]
        %3265 = vset.pattern.permute.xlu0 0
        %3266 = vperm.xlu0 %3265, %v3263
        %v3267 = vpop.permute.xlu0 %3266
        %v3269 = vlaneseq
        %v3270 = vshrl.u32 %v3269, 7
        %v3271 = vsub.s32 0, %v3270
        %v3272 = vrot.slane %v3267, %v3271
        %v3274 = vsel %vm952, %v3262, 0
        %v3277 = vsel %vm952, %v3246, 0
        %v3280 = vsel %vm952, %v3247, 0
        %v3283 = vsel %vm952, %v3248, 0
        %v3286 = vsel %vm952, %v3249, 0
        %v3289 = vsel %vm952, %v3250, 0
        %v3292 = vsel %vm952, %v3251, 0
        %v3295 = vsel %vm952, %v3252, 0
        %v3298 = vsel %vm952, %v3253, 0
        %3300 = vmatprep.subr.mxu0 0.0
        %3301 = vmatpush1.xpose.msra.mxu0 0.0
        %3302 = vmatprep.subr.mxu0 0.0
        %3303 = vmatpush1.xpose.msra.mxu0 0.0
        %3304 = vmatprep.subr.mxu0 0.0
        %3305 = vmatpush1.xpose.msra.mxu0 0.0
        %3306 = vmatprep.subr.mxu0 0.0
        %3307 = vmatpush1.xpose.msra.mxu0 0.0
        %3308 = vmatprep.subr.mxu0 0.0
        %3309 = vmatpush1.xpose.msra.mxu0 0.0
        %3310 = vmatprep.subr.mxu0 0.0
        %3311 = vmatpush1.xpose.msra.mxu0 0.0
        %3312 = vmatprep.subr.mxu0 0.0
        %3313 = vmatpush1.xpose.msra.mxu0 0.0
        %3314 = vmatprep.subr.mxu0 0.0
        %3315 = vmatpush1.xpose.msra.mxu0 0.0
        %3316 = vmatprep.subr.mxu0 0.0
        %3317 = vmatpush1.xpose.msra.mxu0 %v3298
        %3318 = vmatprep.subr.mxu0 0.0
        %3319 = vmatpush1.xpose.msra.mxu0 %v3295
        %3320 = vmatprep.subr.mxu0 0.0
        %3321 = vmatpush1.xpose.msra.mxu0 %v3292
        %3322 = vmatprep.subr.mxu0 0.0
        %3323 = vmatpush1.xpose.msra.mxu0 %v3289
        %3324 = vmatprep.subr.mxu0 0.0
        %3325 = vmatpush1.xpose.msra.mxu0 %v3286
        %3326 = vmatprep.subr.mxu0 0.0
        %3327 = vmatpush1.xpose.msra.mxu0 %v3283
        %3328 = vmatprep.subr.mxu0 0.0
        %3329 = vmatpush1.xpose.msra.mxu0 %v3280
        %3330 = vmatprep.subr.mxu0 0.0
        %3331 = vmatpush1.xpose.msra.mxu0 %v3277
        %3332 = vmatprep.subr.mxu0 0.0
        %3333 = vmatpush2.xpose.msra.mxu0 0.0
        %3334 = vmatprep.subr.mxu0 0.0
        %3335 = vmatpush2.xpose.msra.mxu0 0.0
        %3336 = vmatprep.subr.mxu0 0.0
        %3337 = vmatpush2.xpose.msra.mxu0 0.0
        %3338 = vmatprep.subr.mxu0 0.0
        %3339 = vmatpush2.xpose.msra.mxu0 0.0
        %3340 = vmatprep.subr.mxu0 0.0
        %3341 = vmatpush2.xpose.msra.mxu0 0.0
        %3342 = vmatprep.subr.mxu0 0.0
        %3343 = vmatpush2.xpose.msra.mxu0 0.0
        %3344 = vmatprep.subr.mxu0 0.0
        %3345 = vmatpush2.xpose.msra.mxu0 0.0
        %3346 = vmatprep.subr.mxu0 0.0
        %3347 = vmatpush2.xpose.msra.mxu0 0.0
        %3348 = vmatprep.subr.mxu0 0.0
        %3349 = vmatpush2.xpose.msra.mxu0 0.0
        %3350 = vmatprep.subr.mxu0 0.0
        %3351 = vmatpush2.xpose.msra.mxu0 0.0
        %3352 = vmatprep.subr.mxu0 0.0
        %3353 = vmatpush2.xpose.msra.mxu0 0.0
        %3354 = vmatprep.subr.mxu0 0.0
        %3355 = vmatpush2.xpose.msra.mxu0 0.0
        %3356 = vmatprep.subr.mxu0 0.0
        %3357 = vmatpush2.xpose.msra.mxu0 0.0
        %3358 = vmatprep.subr.mxu0 0.0
        %3359 = vmatpush2.xpose.msra.mxu0 0.0
        %3360 = vmatprep.subr.mxu0 0.0
        %3361 = vmatpush2.xpose.msra.mxu0 0.0
        %3362 = vmatprep.subr.mxu0 0.0
        %3363 = vmatpush2.xpose.msra.mxu0 0.0
        %3364 = vmatprep.mubr.f32.mxu0 0.0
        %3365 = vmatmul.mubr.f32.gmra.mxu0 %v3274
        %v3366 = vpop.f32.mrf.mxu0
        %v3367 = vadd.f32 %v3272, %v3366
        %v3368 = vpop.f32.mrf.mxu0
        %3369 = vdwg.mxu0
        %vm3370 = vcmask 516096
        %3371 = vst.msk [vmem:[%s810] sm:$0x1] %vm3370, %v3367
        %p3372 = scmp.lt.s32.totalorder %s44, 1
        %s3373 = scalar_select %p3372, %s44, 1
        %s3374 = smul.addr %s3373, 8
        %s3375 = smul.addr %s3374, 8
        %s3376 = scalar_lea.vmem %s19, %s3375
        %s3377 = sand.u32 %s482, 1
        %s3378 = scalar_lea.sflag [#allocation5], %s3377
        %s3379 = sand.u32 %s482, 1
        %s3380 = scalar_lea.vmem [#allocation24], %s3379
        // Predicated region
        $region149: #{mlp_mixer_forward.2} parent=95 // pred_check
          %p3381 = pneg %p466
        $region150: #{mlp_mixer_forward.2} parent=95 // pred_check_branch
          %3383 = sbr.rel (%p3381) target = $region152
        $region151: #{mlp_mixer_forward.2} parent=95 // pred_region
          _
        $region152: #{mlp_mixer_forward.2} parent=95 // pred_fallthru
          _
        // Predicated region
        $region153: #{mlp_mixer_forward.2} parent=95 // pred_check
          %p3384 = pneg %p492
        $region154: #{mlp_mixer_forward.2} parent=95 // pred_check_branch
          %3386 = sbr.rel (%p3384) target = $region156
        $region155: #{mlp_mixer_forward.2} parent=95 // pred_region
          %s3388 = ssub.s32 16, 16
          %3389 = vsyncadd %s3378, %s3388
          %s3390 = smul.addr %s44, 16
          %s3391 = scalar_lea.hbm %s20, %s3390
          %s3393 = sshll.u32 %s3380, 4
          %s3394 = int_to_ptr.vmem [resolvable:$true] %s3393
          %3396 = dma.vmem_to_hbm [thread:$0]  %s3394, 16, %s3391, %s3378
        $region156: #{mlp_mixer_forward.2} parent=95 // pred_fallthru
          _
      $region96: #{mlp_mixer_forward.2} parent=5 // pred_fallthru
        _
      %p3397 = scmp.le.s32.totalorder 2, %s39
      // Predicated region
      $region157: #{mlp_mixer_forward.2} parent=5 // pred_check
        %p3398 = pneg %p3397
      $region158: #{mlp_mixer_forward.2} parent=5 // pred_check_branch
        %3400 = sbr.rel (%p3398) target = $region160
      $region159: #{mlp_mixer_forward.2} parent=5 // pred_region
        %s3401 = ssub.s32 %s39, 2
        // Predicated region
        $region161: #{mlp_mixer_forward.2} parent=159 // pred_check
          %p3402 = pneg %p472
        $region162: #{mlp_mixer_forward.2} parent=159 // pred_check_branch
          %3404 = sbr.rel (%p3402) target = $region164
        $region163: #{mlp_mixer_forward.2} parent=159 // pred_region
          %p3405 = scmp.lt.s32.totalorder %s45, 1
          %s3406 = scalar_select %p3405, %s45, 1
          %s3407 = smul.addr %s3406, 8
          %s3408 = smul.addr %s3407, 8
          %s3409 = scalar_lea.vmem %s19, %s3408
        $region164: #{mlp_mixer_forward.2} parent=159 // pred_fallthru
          _
        // Predicated region
        $region165: #{mlp_mixer_forward.2} parent=159 // pred_check
          %p3410 = pneg %p498
        $region166: #{mlp_mixer_forward.2} parent=159 // pred_check_branch
          %3412 = sbr.rel (%p3410) target = $region168
        $region167: #{mlp_mixer_forward.2} parent=159 // pred_region
          %s3413 = sand.u32 %s483, 1
          %s3414 = scalar_lea.sflag [#allocation5], %s3413
          %s3415 = sand.u32 %s483, 1
          %s3416 = scalar_lea.vmem [#allocation24], %s3415
          %3417 = dma.done %s3414, 16
        $region168: #{mlp_mixer_forward.2} parent=159 // pred_fallthru
          _
      $region160: #{mlp_mixer_forward.2} parent=5 // pred_fallthru
        _
    $region6: #{mlp_mixer_forward.2} parent=1 // loop_footer
      %s43 = sadd.s32 1, %s39
    $region7: #{mlp_mixer_forward.2} parent=1 // loop_footer_branch
      %38 = sbr.rel target = $region3
    $region8: #{mlp_mixer_forward.2} parent=1 // loop_exit
      _
    %3418 = vsyncpa [#allocation4], 1
    %s3419 = scalar_lea.sflag [#allocation4], 1
    %3420 = vsyncpa %s3419, 1
    %3421 = vsyncpa [#allocation7], 1
    %3422 = vsyncpa [#allocation10], 1
    %3423 = vsyncpa [#allocation13], 1
    %3424 = vsyncpa [#allocation16], 1
    %3425 = vsyncpa [#allocation19], 1
    %3426 = vsyncpa [#allocation22], 1
    %3427 = vsyncpa [#allocation5], 1
    %s3428 = scalar_lea.sflag [#allocation5], 1
    %3429 = vsyncpa %s3428, 1

// kernel: mlp_mixer_forward.3
$region0: #{mlp_mixer_forward.3}
  #allocation0 [shape = 'u32[]', space=smem, size = 0x4, offset = 0x4, fixed_abs, tag = 'smem constant byte address 0x4 - core index']
  #allocation1 [shape = 'u32[144,128]{1,0:T(1,128)}', space=vmem, size = 0x12000, scoped, tag = 'internal scratch']
  #allocation2 [shape = 'f32[1,1]{1,0:T(1,128)S(1)}', space=vmem, size = 0x200, scoped, tag = 'scoped memory for mlp_mixer_forward.3']
  %s0 = inlined_call_operand.vmem [shape: f32[2,4096], index: 0, kind: input, shape index: {}]
  %s1 = inlined_call_operand.vmem [shape: bf16[4096,128], index: 1, kind: input, shape index: {}]
  %s2 = inlined_call_operand.hbm [shape: f32[1,128], index: 2, kind: input, shape index: {}]
  %s3 = inlined_call_operand.vmem [shape: f32[128,1], index: 3, kind: input, shape index: {}]
  %s4 = inlined_call_operand.<no memory space> [shape: f32[1,1], index: 4, kind: input, shape index: {}]
  %s5 = inlined_call_operand.vmem [shape: f32[2,1], index: 5, kind: output, shape index: {}]
  %s6 = sld [smem:[#allocation0]]
  $region34: #{mlp_mixer_forward.3} parent=0
    _
  %s8 = ssub.s32 1, %s6
  %s9 = scalar_select 0, %s8, %s6
  %v10 = vstv %s4
  %11 = vst [vmem:[#allocation2] sm:$0x1] %v10
  $region1: #{mlp_mixer_forward.3} parent=0
    #allocation3 [shape = 'u8[512]{0}', space=vmem, size = 0x400, scoped, tag = 'input window, operand 2, single buffered']
    #allocation4 [shape = 's32[1]{0}', space=sflag, size = 0x4, scoped, tag = 'scoped memory for mlp_mixer_forward.3']
    %12 = vsyncpa [#allocation4], 0
    // Predicated region
    $region2: #{mlp_mixer_forward.3} parent=1 // pred_check
      _
    $region3: #{mlp_mixer_forward.3} parent=1 // pred_check_branch
      %14 = sbr.rel (0) target = $region5
    $region4: #{mlp_mixer_forward.3} parent=1 // pred_region
      _
    $region5: #{mlp_mixer_forward.3} parent=1 // pred_fallthru
      _
    // Predicated region
    $region6: #{mlp_mixer_forward.3} parent=1 // pred_check
      _
    $region7: #{mlp_mixer_forward.3} parent=1 // pred_check_branch
      %16 = sbr.rel (0) target = $region9
    $region8: #{mlp_mixer_forward.3} parent=1 // pred_region
      _
    $region9: #{mlp_mixer_forward.3} parent=1 // pred_fallthru
      _
    // Predicated region
    $region10: #{mlp_mixer_forward.3} parent=1 // pred_check
      _
    $region11: #{mlp_mixer_forward.3} parent=1 // pred_check_branch
      %18 = sbr.rel (0) target = $region13
    $region12: #{mlp_mixer_forward.3} parent=1 // pred_region
      %s20 = ssub.s32 16, 16
      %21 = vsyncadd [#allocation4], %s20
      %s23 = sshll.u32 [#allocation3], 4
      %s24 = int_to_ptr.vmem [resolvable:$true] %s23
      %26 = dma.hbm_to_vmem [thread:$0]  %s2, 16, %s24, [#allocation4]
    $region13: #{mlp_mixer_forward.3} parent=1 // pred_fallthru
      _
    // Predicated region
    $region14: #{mlp_mixer_forward.3} parent=1 // pred_check
      _
    $region15: #{mlp_mixer_forward.3} parent=1 // pred_check_branch
      %28 = sbr.rel (0) target = $region17
    $region16: #{mlp_mixer_forward.3} parent=1 // pred_region
      _
    $region17: #{mlp_mixer_forward.3} parent=1 // pred_fallthru
      _
    // Predicated region
    $region18: #{mlp_mixer_forward.3} parent=1 // pred_check
      _
    $region19: #{mlp_mixer_forward.3} parent=1 // pred_check_branch
      %30 = sbr.rel (0) target = $region21
    $region20: #{mlp_mixer_forward.3} parent=1 // pred_region
      _
    $region21: #{mlp_mixer_forward.3} parent=1 // pred_fallthru
      _
    // Predicated region
    $region22: #{mlp_mixer_forward.3} parent=1 // pred_check
      _
    $region23: #{mlp_mixer_forward.3} parent=1 // pred_check_branch
      %32 = sbr.rel (0) target = $region25
    $region24: #{mlp_mixer_forward.3} parent=1 // pred_region
      %33 = dma.done [#allocation4], 16
    $region25: #{mlp_mixer_forward.3} parent=1 // pred_fallthru
      _
    %v35 = vld [vmem:[%s0] sm:$0xff]
    %v36 = vld [vmem:[%s0 + $0x8] sm:$0xff]
    %v37 = vld [vmem:[%s0 + $0x10] sm:$0xff]
    %v38 = vld [vmem:[%s0 + $0x18] sm:$0xff]
    %v39 = vld [vmem:[%s0 + $0x20] sm:$0xff]
    %v40 = vld [vmem:[%s0 + $0x28] sm:$0xff]
    %v41 = vld [vmem:[%s0 + $0x30] sm:$0xff]
    %v42 = vld [vmem:[%s0 + $0x38] sm:$0xff]
    %v51 = vcombine.high %v35, %v35
    %v53 = vunpack.c.l.s4 1983009808
    %v54 = vunpack.c.0.s8 %v53
    %v55 = vlaneseq
    %v56 = vshrl.u32 %v55, 7
    %v57 = vsub.s32 %v54, %v56
    %v58 = vrot.slane %v35, %v57
    %v60 = vunpack.c.l.s4 1983009808
    %v61 = vunpack.c.0.s8 %v60
    %v62 = vlaneseq
    %v63 = vshrl.u32 %v62, 7
    %v64 = vsub.s32 %v61, %v63
    %v65 = vrot.slane %v51, %v64
    %v66 = vcombine.high %v58, %v58
    %v67 = vcombine.high %v65, %v65
    %v68 = vcombine.high %v36, %v36
    %v70 = vunpack.c.l.s4 1983009808
    %v71 = vunpack.c.0.s8 %v70
    %v72 = vlaneseq
    %v73 = vshrl.u32 %v72, 7
    %v74 = vsub.s32 %v71, %v73
    %v75 = vrot.slane %v36, %v74
    %v77 = vunpack.c.l.s4 1983009808
    %v78 = vunpack.c.0.s8 %v77
    %v79 = vlaneseq
    %v80 = vshrl.u32 %v79, 7
    %v81 = vsub.s32 %v78, %v80
    %v82 = vrot.slane %v68, %v81
    %v83 = vcombine.high %v75, %v75
    %v84 = vcombine.high %v82, %v82
    %v85 = vcombine.high %v37, %v37
    %v87 = vunpack.c.l.s4 1983009808
    %v88 = vunpack.c.0.s8 %v87
    %v89 = vlaneseq
    %v90 = vshrl.u32 %v89, 7
    %v91 = vsub.s32 %v88, %v90
    %v92 = vrot.slane %v37, %v91
    %v94 = vunpack.c.l.s4 1983009808
    %v95 = vunpack.c.0.s8 %v94
    %v96 = vlaneseq
    %v97 = vshrl.u32 %v96, 7
    %v98 = vsub.s32 %v95, %v97
    %v99 = vrot.slane %v85, %v98
    %v100 = vcombine.high %v92, %v92
    %v101 = vcombine.high %v99, %v99
    %v102 = vcombine.high %v38, %v38
    %v104 = vunpack.c.l.s4 1983009808
    %v105 = vunpack.c.0.s8 %v104
    %v106 = vlaneseq
    %v107 = vshrl.u32 %v106, 7
    %v108 = vsub.s32 %v105, %v107
    %v109 = vrot.slane %v38, %v108
    %v111 = vunpack.c.l.s4 1983009808
    %v112 = vunpack.c.0.s8 %v111
    %v113 = vlaneseq
    %v114 = vshrl.u32 %v113, 7
    %v115 = vsub.s32 %v112, %v114
    %v116 = vrot.slane %v102, %v115
    %v117 = vcombine.high %v109, %v109
    %v118 = vcombine.high %v116, %v116
    %v119 = vcombine.high %v39, %v39
    %v121 = vunpack.c.l.s4 1983009808
    %v122 = vunpack.c.0.s8 %v121
    %v123 = vlaneseq
    %v124 = vshrl.u32 %v123, 7
    %v125 = vsub.s32 %v122, %v124
    %v126 = vrot.slane %v39, %v125
    %v128 = vunpack.c.l.s4 1983009808
    %v129 = vunpack.c.0.s8 %v128
    %v130 = vlaneseq
    %v131 = vshrl.u32 %v130, 7
    %v132 = vsub.s32 %v129, %v131
    %v133 = vrot.slane %v119, %v132
    %v134 = vcombine.high %v126, %v126
    %v135 = vcombine.high %v133, %v133
    %v136 = vcombine.high %v40, %v40
    %v138 = vunpack.c.l.s4 1983009808
    %v139 = vunpack.c.0.s8 %v138
    %v140 = vlaneseq
    %v141 = vshrl.u32 %v140, 7
    %v142 = vsub.s32 %v139, %v141
    %v143 = vrot.slane %v40, %v142
    %v145 = vunpack.c.l.s4 1983009808
    %v146 = vunpack.c.0.s8 %v145
    %v147 = vlaneseq
    %v148 = vshrl.u32 %v147, 7
    %v149 = vsub.s32 %v146, %v148
    %v150 = vrot.slane %v136, %v149
    %v151 = vcombine.high %v143, %v143
    %v152 = vcombine.high %v150, %v150
    %v153 = vcombine.high %v41, %v41
    %v155 = vunpack.c.l.s4 1983009808
    %v156 = vunpack.c.0.s8 %v155
    %v157 = vlaneseq
    %v158 = vshrl.u32 %v157, 7
    %v159 = vsub.s32 %v156, %v158
    %v160 = vrot.slane %v41, %v159
    %v162 = vunpack.c.l.s4 1983009808
    %v163 = vunpack.c.0.s8 %v162
    %v164 = vlaneseq
    %v165 = vshrl.u32 %v164, 7
    %v166 = vsub.s32 %v163, %v165
    %v167 = vrot.slane %v153, %v166
    %v168 = vcombine.high %v160, %v160
    %v169 = vcombine.high %v167, %v167
    %v170 = vcombine.high %v42, %v42
    %v172 = vunpack.c.l.s4 1983009808
    %v173 = vunpack.c.0.s8 %v172
    %v174 = vlaneseq
    %v175 = vshrl.u32 %v174, 7
    %v176 = vsub.s32 %v173, %v175
    %v177 = vrot.slane %v42, %v176
    %v179 = vunpack.c.l.s4 1983009808
    %v180 = vunpack.c.0.s8 %v179
    %v181 = vlaneseq
    %v182 = vshrl.u32 %v181, 7
    %v183 = vsub.s32 %v180, %v182
    %v184 = vrot.slane %v170, %v183
    %v185 = vcombine.high %v177, %v177
    %v186 = vcombine.high %v184, %v184
    %v219 = vpack.c.bf16 %v58, %v58
    %v220 = vpack.c.bf16 %v66, %v66
    %v221 = vpack.c.bf16 %v65, %v65
    %v222 = vpack.c.bf16 %v67, %v67
    %v223 = vpack.c.bf16 %v75, %v75
    %v224 = vpack.c.bf16 %v83, %v83
    %v225 = vpack.c.bf16 %v82, %v82
    %v226 = vpack.c.bf16 %v84, %v84
    %v227 = vpack.c.bf16 %v92, %v92
    %v228 = vpack.c.bf16 %v100, %v100
    %v229 = vpack.c.bf16 %v99, %v99
    %v230 = vpack.c.bf16 %v101, %v101
    %v231 = vpack.c.bf16 %v109, %v109
    %v232 = vpack.c.bf16 %v117, %v117
    %v233 = vpack.c.bf16 %v116, %v116
    %v234 = vpack.c.bf16 %v118, %v118
    %v235 = vpack.c.bf16 %v126, %v126
    %v236 = vpack.c.bf16 %v134, %v134
    %v237 = vpack.c.bf16 %v133, %v133
    %v238 = vpack.c.bf16 %v135, %v135
    %v239 = vpack.c.bf16 %v143, %v143
    %v240 = vpack.c.bf16 %v151, %v151
    %v241 = vpack.c.bf16 %v150, %v150
    %v242 = vpack.c.bf16 %v152, %v152
    %v243 = vpack.c.bf16 %v160, %v160
    %v244 = vpack.c.bf16 %v168, %v168
    %v245 = vpack.c.bf16 %v167, %v167
    %v246 = vpack.c.bf16 %v169, %v169
    %v247 = vpack.c.bf16 %v177, %v177
    %v248 = vpack.c.bf16 %v185, %v185
    %v249 = vpack.c.bf16 %v184, %v184
    %v250 = vpack.c.bf16 %v186, %v186
    %v251 = vld [vmem:[%s1] sm:$0xf]
    %v252 = vld [vmem:[%s1 + $0x4] sm:$0xf]
    %v253 = vld [vmem:[%s1 + $0x8] sm:$0xf]
    %v254 = vld [vmem:[%s1 + $0xc] sm:$0xf]
    %v255 = vld [vmem:[%s1 + $0x10] sm:$0xf]
    %v256 = vld [vmem:[%s1 + $0x14] sm:$0xf]
    %v257 = vld [vmem:[%s1 + $0x18] sm:$0xf]
    %v258 = vld [vmem:[%s1 + $0x1c] sm:$0xf]
    %v259 = vld [vmem:[%s1 + $0x20] sm:$0xf]
    %v260 = vld [vmem:[%s1 + $0x24] sm:$0xf]
    %v261 = vld [vmem:[%s1 + $0x28] sm:$0xf]
    %v262 = vld [vmem:[%s1 + $0x2c] sm:$0xf]
    %v263 = vld [vmem:[%s1 + $0x30] sm:$0xf]
    %v264 = vld [vmem:[%s1 + $0x34] sm:$0xf]
    %v265 = vld [vmem:[%s1 + $0x38] sm:$0xf]
    %v266 = vld [vmem:[%s1 + $0x3c] sm:$0xf]
    %v267 = vld [vmem:[%s1 + $0x40] sm:$0xf]
    %v268 = vld [vmem:[%s1 + $0x44] sm:$0xf]
    %v269 = vld [vmem:[%s1 + $0x48] sm:$0xf]
    %v270 = vld [vmem:[%s1 + $0x4c] sm:$0xf]
    %v271 = vld [vmem:[%s1 + $0x50] sm:$0xf]
    %v272 = vld [vmem:[%s1 + $0x54] sm:$0xf]
    %v273 = vld [vmem:[%s1 + $0x58] sm:$0xf]
    %v274 = vld [vmem:[%s1 + $0x5c] sm:$0xf]
    %v275 = vld [vmem:[%s1 + $0x60] sm:$0xf]
    %v276 = vld [vmem:[%s1 + $0x64] sm:$0xf]
    %v277 = vld [vmem:[%s1 + $0x68] sm:$0xf]
    %v278 = vld [vmem:[%s1 + $0x6c] sm:$0xf]
    %v279 = vld [vmem:[%s1 + $0x70] sm:$0xf]
    %v280 = vld [vmem:[%s1 + $0x74] sm:$0xf]
    %v281 = vld [vmem:[%s1 + $0x78] sm:$0xf]
    %v282 = vld [vmem:[%s1 + $0x7c] sm:$0xf]
    %v283 = vld [vmem:[%s1 + $0x80] sm:$0xf]
    %v284 = vld [vmem:[%s1 + $0x84] sm:$0xf]
    %v285 = vld [vmem:[%s1 + $0x88] sm:$0xf]
    %v286 = vld [vmem:[%s1 + $0x8c] sm:$0xf]
    %v287 = vld [vmem:[%s1 + $0x90] sm:$0xf]
    %v288 = vld [vmem:[%s1 + $0x94] sm:$0xf]
    %v289 = vld [vmem:[%s1 + $0x98] sm:$0xf]
    %v290 = vld [vmem:[%s1 + $0x9c] sm:$0xf]
    %v291 = vld [vmem:[%s1 + $0xa0] sm:$0xf]
    %v292 = vld [vmem:[%s1 + $0xa4] sm:$0xf]
    %v293 = vld [vmem:[%s1 + $0xa8] sm:$0xf]
    %v294 = vld [vmem:[%s1 + $0xac] sm:$0xf]
    %v295 = vld [vmem:[%s1 + $0xb0] sm:$0xf]
    %v296 = vld [vmem:[%s1 + $0xb4] sm:$0xf]
    %v297 = vld [vmem:[%s1 + $0xb8] sm:$0xf]
    %v298 = vld [vmem:[%s1 + $0xbc] sm:$0xf]
    %v299 = vld [vmem:[%s1 + $0xc0] sm:$0xf]
    %v300 = vld [vmem:[%s1 + $0xc4] sm:$0xf]
    %v301 = vld [vmem:[%s1 + $0xc8] sm:$0xf]
    %v302 = vld [vmem:[%s1 + $0xcc] sm:$0xf]
    %v303 = vld [vmem:[%s1 + $0xd0] sm:$0xf]
    %v304 = vld [vmem:[%s1 + $0xd4] sm:$0xf]
    %v305 = vld [vmem:[%s1 + $0xd8] sm:$0xf]
    %v306 = vld [vmem:[%s1 + $0xdc] sm:$0xf]
    %v307 = vld [vmem:[%s1 + $0xe0] sm:$0xf]
    %v308 = vld [vmem:[%s1 + $0xe4] sm:$0xf]
    %v309 = vld [vmem:[%s1 + $0xe8] sm:$0xf]
    %v310 = vld [vmem:[%s1 + $0xec] sm:$0xf]
    %v311 = vld [vmem:[%s1 + $0xf0] sm:$0xf]
    %v312 = vld [vmem:[%s1 + $0xf4] sm:$0xf]
    %v313 = vld [vmem:[%s1 + $0xf8] sm:$0xf]
    %v314 = vld [vmem:[%s1 + $0xfc] sm:$0xf]
    %v315 = vld [vmem:[%s1 + $0x100] sm:$0xf]
    %v316 = vld [vmem:[%s1 + $0x104] sm:$0xf]
    %v317 = vld [vmem:[%s1 + $0x108] sm:$0xf]
    %v318 = vld [vmem:[%s1 + $0x10c] sm:$0xf]
    %v319 = vld [vmem:[%s1 + $0x110] sm:$0xf]
    %v320 = vld [vmem:[%s1 + $0x114] sm:$0xf]
    %v321 = vld [vmem:[%s1 + $0x118] sm:$0xf]
    %v322 = vld [vmem:[%s1 + $0x11c] sm:$0xf]
    %v323 = vld [vmem:[%s1 + $0x120] sm:$0xf]
    %v324 = vld [vmem:[%s1 + $0x124] sm:$0xf]
    %v325 = vld [vmem:[%s1 + $0x128] sm:$0xf]
    %v326 = vld [vmem:[%s1 + $0x12c] sm:$0xf]
    %v327 = vld [vmem:[%s1 + $0x130] sm:$0xf]
    %v328 = vld [vmem:[%s1 + $0x134] sm:$0xf]
    %v329 = vld [vmem:[%s1 + $0x138] sm:$0xf]
    %v330 = vld [vmem:[%s1 + $0x13c] sm:$0xf]
    %v331 = vld [vmem:[%s1 + $0x140] sm:$0xf]
    %v332 = vld [vmem:[%s1 + $0x144] sm:$0xf]
    %v333 = vld [vmem:[%s1 + $0x148] sm:$0xf]
    %v334 = vld [vmem:[%s1 + $0x14c] sm:$0xf]
    %v335 = vld [vmem:[%s1 + $0x150] sm:$0xf]
    %v336 = vld [vmem:[%s1 + $0x154] sm:$0xf]
    %v337 = vld [vmem:[%s1 + $0x158] sm:$0xf]
    %v338 = vld [vmem:[%s1 + $0x15c] sm:$0xf]
    %v339 = vld [vmem:[%s1 + $0x160] sm:$0xf]
    %v340 = vld [vmem:[%s1 + $0x164] sm:$0xf]
    %v341 = vld [vmem:[%s1 + $0x168] sm:$0xf]
    %v342 = vld [vmem:[%s1 + $0x16c] sm:$0xf]
    %v343 = vld [vmem:[%s1 + $0x170] sm:$0xf]
    %v344 = vld [vmem:[%s1 + $0x174] sm:$0xf]
    %v345 = vld [vmem:[%s1 + $0x178] sm:$0xf]
    %v346 = vld [vmem:[%s1 + $0x17c] sm:$0xf]
    %v347 = vld [vmem:[%s1 + $0x180] sm:$0xf]
    %v348 = vld [vmem:[%s1 + $0x184] sm:$0xf]
    %v349 = vld [vmem:[%s1 + $0x188] sm:$0xf]
    %v350 = vld [vmem:[%s1 + $0x18c] sm:$0xf]
    %v351 = vld [vmem:[%s1 + $0x190] sm:$0xf]
    %v352 = vld [vmem:[%s1 + $0x194] sm:$0xf]
    %v353 = vld [vmem:[%s1 + $0x198] sm:$0xf]
    %v354 = vld [vmem:[%s1 + $0x19c] sm:$0xf]
    %v355 = vld [vmem:[%s1 + $0x1a0] sm:$0xf]
    %v356 = vld [vmem:[%s1 + $0x1a4] sm:$0xf]
    %v357 = vld [vmem:[%s1 + $0x1a8] sm:$0xf]
    %v358 = vld [vmem:[%s1 + $0x1ac] sm:$0xf]
    %v359 = vld [vmem:[%s1 + $0x1b0] sm:$0xf]
    %v360 = vld [vmem:[%s1 + $0x1b4] sm:$0xf]
    %v361 = vld [vmem:[%s1 + $0x1b8] sm:$0xf]
    %v362 = vld [vmem:[%s1 + $0x1bc] sm:$0xf]
    %v363 = vld [vmem:[%s1 + $0x1c0] sm:$0xf]
    %v364 = vld [vmem:[%s1 + $0x1c4] sm:$0xf]
    %v365 = vld [vmem:[%s1 + $0x1c8] sm:$0xf]
    %v366 = vld [vmem:[%s1 + $0x1cc] sm:$0xf]
    %v367 = vld [vmem:[%s1 + $0x1d0] sm:$0xf]
    %v368 = vld [vmem:[%s1 + $0x1d4] sm:$0xf]
    %v369 = vld [vmem:[%s1 + $0x1d8] sm:$0xf]
    %v370 = vld [vmem:[%s1 + $0x1dc] sm:$0xf]
    %v371 = vld [vmem:[%s1 + $0x1e0] sm:$0xf]
    %v372 = vld [vmem:[%s1 + $0x1e4] sm:$0xf]
    %v373 = vld [vmem:[%s1 + $0x1e8] sm:$0xf]
    %v374 = vld [vmem:[%s1 + $0x1ec] sm:$0xf]
    %v375 = vld [vmem:[%s1 + $0x1f0] sm:$0xf]
    %v376 = vld [vmem:[%s1 + $0x1f4] sm:$0xf]
    %v377 = vld [vmem:[%s1 + $0x1f8] sm:$0xf]
    %v378 = vld [vmem:[%s1 + $0x1fc] sm:$0xf]
    %v379 = vld [vmem:[%s1 + $0x200] sm:$0xf]
    %v380 = vld [vmem:[%s1 + $0x204] sm:$0xf]
    %v381 = vld [vmem:[%s1 + $0x208] sm:$0xf]
    %v382 = vld [vmem:[%s1 + $0x20c] sm:$0xf]
    %v383 = vld [vmem:[%s1 + $0x210] sm:$0xf]
    %v384 = vld [vmem:[%s1 + $0x214] sm:$0xf]
    %v385 = vld [vmem:[%s1 + $0x218] sm:$0xf]
    %v386 = vld [vmem:[%s1 + $0x21c] sm:$0xf]
    %v387 = vld [vmem:[%s1 + $0x220] sm:$0xf]
    %v388 = vld [vmem:[%s1 + $0x224] sm:$0xf]
    %v389 = vld [vmem:[%s1 + $0x228] sm:$0xf]
    %v390 = vld [vmem:[%s1 + $0x22c] sm:$0xf]
    %v391 = vld [vmem:[%s1 + $0x230] sm:$0xf]
    %v392 = vld [vmem:[%s1 + $0x234] sm:$0xf]
    %v393 = vld [vmem:[%s1 + $0x238] sm:$0xf]
    %v394 = vld [vmem:[%s1 + $0x23c] sm:$0xf]
    %v395 = vld [vmem:[%s1 + $0x240] sm:$0xf]
    %v396 = vld [vmem:[%s1 + $0x244] sm:$0xf]
    %v397 = vld [vmem:[%s1 + $0x248] sm:$0xf]
    %v398 = vld [vmem:[%s1 + $0x24c] sm:$0xf]
    %v399 = vld [vmem:[%s1 + $0x250] sm:$0xf]
    %v400 = vld [vmem:[%s1 + $0x254] sm:$0xf]
    %v401 = vld [vmem:[%s1 + $0x258] sm:$0xf]
    %v402 = vld [vmem:[%s1 + $0x25c] sm:$0xf]
    %v403 = vld [vmem:[%s1 + $0x260] sm:$0xf]
    %v404 = vld [vmem:[%s1 + $0x264] sm:$0xf]
    %v405 = vld [vmem:[%s1 + $0x268] sm:$0xf]
    %v406 = vld [vmem:[%s1 + $0x26c] sm:$0xf]
    %v407 = vld [vmem:[%s1 + $0x270] sm:$0xf]
    %v408 = vld [vmem:[%s1 + $0x274] sm:$0xf]
    %v409 = vld [vmem:[%s1 + $0x278] sm:$0xf]
    %v410 = vld [vmem:[%s1 + $0x27c] sm:$0xf]
    %v411 = vld [vmem:[%s1 + $0x280] sm:$0xf]
    %v412 = vld [vmem:[%s1 + $0x284] sm:$0xf]
    %v413 = vld [vmem:[%s1 + $0x288] sm:$0xf]
    %v414 = vld [vmem:[%s1 + $0x28c] sm:$0xf]
    %v415 = vld [vmem:[%s1 + $0x290] sm:$0xf]
    %v416 = vld [vmem:[%s1 + $0x294] sm:$0xf]
    %v417 = vld [vmem:[%s1 + $0x298] sm:$0xf]
    %v418 = vld [vmem:[%s1 + $0x29c] sm:$0xf]
    %v419 = vld [vmem:[%s1 + $0x2a0] sm:$0xf]
    %v420 = vld [vmem:[%s1 + $0x2a4] sm:$0xf]
    %v421 = vld [vmem:[%s1 + $0x2a8] sm:$0xf]
    %v422 = vld [vmem:[%s1 + $0x2ac] sm:$0xf]
    %v423 = vld [vmem:[%s1 + $0x2b0] sm:$0xf]
    %v424 = vld [vmem:[%s1 + $0x2b4] sm:$0xf]
    %v425 = vld [vmem:[%s1 + $0x2b8] sm:$0xf]
    %v426 = vld [vmem:[%s1 + $0x2bc] sm:$0xf]
    %v427 = vld [vmem:[%s1 + $0x2c0] sm:$0xf]
    %v428 = vld [vmem:[%s1 + $0x2c4] sm:$0xf]
    %v429 = vld [vmem:[%s1 + $0x2c8] sm:$0xf]
    %v430 = vld [vmem:[%s1 + $0x2cc] sm:$0xf]
    %v431 = vld [vmem:[%s1 + $0x2d0] sm:$0xf]
    %v432 = vld [vmem:[%s1 + $0x2d4] sm:$0xf]
    %v433 = vld [vmem:[%s1 + $0x2d8] sm:$0xf]
    %v434 = vld [vmem:[%s1 + $0x2dc] sm:$0xf]
    %v435 = vld [vmem:[%s1 + $0x2e0] sm:$0xf]
    %v436 = vld [vmem:[%s1 + $0x2e4] sm:$0xf]
    %v437 = vld [vmem:[%s1 + $0x2e8] sm:$0xf]
    %v438 = vld [vmem:[%s1 + $0x2ec] sm:$0xf]
    %v439 = vld [vmem:[%s1 + $0x2f0] sm:$0xf]
    %v440 = vld [vmem:[%s1 + $0x2f4] sm:$0xf]
    %v441 = vld [vmem:[%s1 + $0x2f8] sm:$0xf]
    %v442 = vld [vmem:[%s1 + $0x2fc] sm:$0xf]
    %v443 = vld [vmem:[%s1 + $0x300] sm:$0xf]
    %v444 = vld [vmem:[%s1 + $0x304] sm:$0xf]
    %v445 = vld [vmem:[%s1 + $0x308] sm:$0xf]
    %v446 = vld [vmem:[%s1 + $0x30c] sm:$0xf]
    %v447 = vld [vmem:[%s1 + $0x310] sm:$0xf]
    %v448 = vld [vmem:[%s1 + $0x314] sm:$0xf]
    %v449 = vld [vmem:[%s1 + $0x318] sm:$0xf]
    %v450 = vld [vmem:[%s1 + $0x31c] sm:$0xf]
    %v451 = vld [vmem:[%s1 + $0x320] sm:$0xf]
    %v452 = vld [vmem:[%s1 + $0x324] sm:$0xf]
    %v453 = vld [vmem:[%s1 + $0x328] sm:$0xf]
    %v454 = vld [vmem:[%s1 + $0x32c] sm:$0xf]
    %v455 = vld [vmem:[%s1 + $0x330] sm:$0xf]
    %v456 = vld [vmem:[%s1 + $0x334] sm:$0xf]
    %v457 = vld [vmem:[%s1 + $0x338] sm:$0xf]
    %v458 = vld [vmem:[%s1 + $0x33c] sm:$0xf]
    %v459 = vld [vmem:[%s1 + $0x340] sm:$0xf]
    %v460 = vld [vmem:[%s1 + $0x344] sm:$0xf]
    %v461 = vld [vmem:[%s1 + $0x348] sm:$0xf]
    %v462 = vld [vmem:[%s1 + $0x34c] sm:$0xf]
    %v463 = vld [vmem:[%s1 + $0x350] sm:$0xf]
    %v464 = vld [vmem:[%s1 + $0x354] sm:$0xf]
    %v465 = vld [vmem:[%s1 + $0x358] sm:$0xf]
    %v466 = vld [vmem:[%s1 + $0x35c] sm:$0xf]
    %v467 = vld [vmem:[%s1 + $0x360] sm:$0xf]
    %v468 = vld [vmem:[%s1 + $0x364] sm:$0xf]
    %v469 = vld [vmem:[%s1 + $0x368] sm:$0xf]
    %v470 = vld [vmem:[%s1 + $0x36c] sm:$0xf]
    %v471 = vld [vmem:[%s1 + $0x370] sm:$0xf]
    %v472 = vld [vmem:[%s1 + $0x374] sm:$0xf]
    %v473 = vld [vmem:[%s1 + $0x378] sm:$0xf]
    %v474 = vld [vmem:[%s1 + $0x37c] sm:$0xf]
    %v475 = vld [vmem:[%s1 + $0x380] sm:$0xf]
    %v476 = vld [vmem:[%s1 + $0x384] sm:$0xf]
    %v477 = vld [vmem:[%s1 + $0x388] sm:$0xf]
    %v478 = vld [vmem:[%s1 + $0x38c] sm:$0xf]
    %v479 = vld [vmem:[%s1 + $0x390] sm:$0xf]
    %v480 = vld [vmem:[%s1 + $0x394] sm:$0xf]
    %v481 = vld [vmem:[%s1 + $0x398] sm:$0xf]
    %v482 = vld [vmem:[%s1 + $0x39c] sm:$0xf]
    %v483 = vld [vmem:[%s1 + $0x3a0] sm:$0xf]
    %v484 = vld [vmem:[%s1 + $0x3a4] sm:$0xf]
    %v485 = vld [vmem:[%s1 + $0x3a8] sm:$0xf]
    %v486 = vld [vmem:[%s1 + $0x3ac] sm:$0xf]
    %v487 = vld [vmem:[%s1 + $0x3b0] sm:$0xf]
    %v488 = vld [vmem:[%s1 + $0x3b4] sm:$0xf]
    %v489 = vld [vmem:[%s1 + $0x3b8] sm:$0xf]
    %v490 = vld [vmem:[%s1 + $0x3bc] sm:$0xf]
    %v491 = vld [vmem:[%s1 + $0x3c0] sm:$0xf]
    %v492 = vld [vmem:[%s1 + $0x3c4] sm:$0xf]
    %v493 = vld [vmem:[%s1 + $0x3c8] sm:$0xf]
    %v494 = vld [vmem:[%s1 + $0x3cc] sm:$0xf]
    %v495 = vld [vmem:[%s1 + $0x3d0] sm:$0xf]
    %v496 = vld [vmem:[%s1 + $0x3d4] sm:$0xf]
    %v497 = vld [vmem:[%s1 + $0x3d8] sm:$0xf]
    %v498 = vld [vmem:[%s1 + $0x3dc] sm:$0xf]
    %v499 = vld [vmem:[%s1 + $0x3e0] sm:$0xf]
    %v500 = vld [vmem:[%s1 + $0x3e4] sm:$0xf]
    %v501 = vld [vmem:[%s1 + $0x3e8] sm:$0xf]
    %v502 = vld [vmem:[%s1 + $0x3ec] sm:$0xf]
    %v503 = vld [vmem:[%s1 + $0x3f0] sm:$0xf]
    %v504 = vld [vmem:[%s1 + $0x3f4] sm:$0xf]
    %v505 = vld [vmem:[%s1 + $0x3f8] sm:$0xf]
    %v506 = vld [vmem:[%s1 + $0x3fc] sm:$0xf]
    %v507 = vld [vmem:[%s1 + $0x400] sm:$0xf]
    %v508 = vld [vmem:[%s1 + $0x404] sm:$0xf]
    %v509 = vld [vmem:[%s1 + $0x408] sm:$0xf]
    %v510 = vld [vmem:[%s1 + $0x40c] sm:$0xf]
    %v511 = vld [vmem:[%s1 + $0x410] sm:$0xf]
    %v512 = vld [vmem:[%s1 + $0x414] sm:$0xf]
    %v513 = vld [vmem:[%s1 + $0x418] sm:$0xf]
    %v514 = vld [vmem:[%s1 + $0x41c] sm:$0xf]
    %v515 = vld [vmem:[%s1 + $0x420] sm:$0xf]
    %v516 = vld [vmem:[%s1 + $0x424] sm:$0xf]
    %v517 = vld [vmem:[%s1 + $0x428] sm:$0xf]
    %v518 = vld [vmem:[%s1 + $0x42c] sm:$0xf]
    %v519 = vld [vmem:[%s1 + $0x430] sm:$0xf]
    %v520 = vld [vmem:[%s1 + $0x434] sm:$0xf]
    %v521 = vld [vmem:[%s1 + $0x438] sm:$0xf]
    %v522 = vld [vmem:[%s1 + $0x43c] sm:$0xf]
    %v523 = vld [vmem:[%s1 + $0x440] sm:$0xf]
    %v524 = vld [vmem:[%s1 + $0x444] sm:$0xf]
    %v525 = vld [vmem:[%s1 + $0x448] sm:$0xf]
    %v526 = vld [vmem:[%s1 + $0x44c] sm:$0xf]
    %v527 = vld [vmem:[%s1 + $0x450] sm:$0xf]
    %v528 = vld [vmem:[%s1 + $0x454] sm:$0xf]
    %v529 = vld [vmem:[%s1 + $0x458] sm:$0xf]
    %v530 = vld [vmem:[%s1 + $0x45c] sm:$0xf]
    %v531 = vld [vmem:[%s1 + $0x460] sm:$0xf]
    %v532 = vld [vmem:[%s1 + $0x464] sm:$0xf]
    %v533 = vld [vmem:[%s1 + $0x468] sm:$0xf]
    %v534 = vld [vmem:[%s1 + $0x46c] sm:$0xf]
    %v535 = vld [vmem:[%s1 + $0x470] sm:$0xf]
    %v536 = vld [vmem:[%s1 + $0x474] sm:$0xf]
    %v537 = vld [vmem:[%s1 + $0x478] sm:$0xf]
    %v538 = vld [vmem:[%s1 + $0x47c] sm:$0xf]
    %v539 = vld [vmem:[%s1 + $0x480] sm:$0xf]
    %v540 = vld [vmem:[%s1 + $0x484] sm:$0xf]
    %v541 = vld [vmem:[%s1 + $0x488] sm:$0xf]
    %v542 = vld [vmem:[%s1 + $0x48c] sm:$0xf]
    %v543 = vld [vmem:[%s1 + $0x490] sm:$0xf]
    %v544 = vld [vmem:[%s1 + $0x494] sm:$0xf]
    %v545 = vld [vmem:[%s1 + $0x498] sm:$0xf]
    %v546 = vld [vmem:[%s1 + $0x49c] sm:$0xf]
    %v547 = vld [vmem:[%s1 + $0x4a0] sm:$0xf]
    %v548 = vld [vmem:[%s1 + $0x4a4] sm:$0xf]
    %v549 = vld [vmem:[%s1 + $0x4a8] sm:$0xf]
    %v550 = vld [vmem:[%s1 + $0x4ac] sm:$0xf]
    %v551 = vld [vmem:[%s1 + $0x4b0] sm:$0xf]
    %v552 = vld [vmem:[%s1 + $0x4b4] sm:$0xf]
    %v553 = vld [vmem:[%s1 + $0x4b8] sm:$0xf]
    %v554 = vld [vmem:[%s1 + $0x4bc] sm:$0xf]
    %v555 = vld [vmem:[%s1 + $0x4c0] sm:$0xf]
    %v556 = vld [vmem:[%s1 + $0x4c4] sm:$0xf]
    %v557 = vld [vmem:[%s1 + $0x4c8] sm:$0xf]
    %v558 = vld [vmem:[%s1 + $0x4cc] sm:$0xf]
    %v559 = vld [vmem:[%s1 + $0x4d0] sm:$0xf]
    %v560 = vld [vmem:[%s1 + $0x4d4] sm:$0xf]
    %v561 = vld [vmem:[%s1 + $0x4d8] sm:$0xf]
    %v562 = vld [vmem:[%s1 + $0x4dc] sm:$0xf]
    %v563 = vld [vmem:[%s1 + $0x4e0] sm:$0xf]
    %v564 = vld [vmem:[%s1 + $0x4e4] sm:$0xf]
    %v565 = vld [vmem:[%s1 + $0x4e8] sm:$0xf]
    %v566 = vld [vmem:[%s1 + $0x4ec] sm:$0xf]
    %v567 = vld [vmem:[%s1 + $0x4f0] sm:$0xf]
    %v568 = vld [vmem:[%s1 + $0x4f4] sm:$0xf]
    %v569 = vld [vmem:[%s1 + $0x4f8] sm:$0xf]
    %v570 = vld [vmem:[%s1 + $0x4fc] sm:$0xf]
    %v571 = vld [vmem:[%s1 + $0x500] sm:$0xf]
    %v572 = vld [vmem:[%s1 + $0x504] sm:$0xf]
    %v573 = vld [vmem:[%s1 + $0x508] sm:$0xf]
    %v574 = vld [vmem:[%s1 + $0x50c] sm:$0xf]
    %v575 = vld [vmem:[%s1 + $0x510] sm:$0xf]
    %v576 = vld [vmem:[%s1 + $0x514] sm:$0xf]
    %v577 = vld [vmem:[%s1 + $0x518] sm:$0xf]
    %v578 = vld [vmem:[%s1 + $0x51c] sm:$0xf]
    %v579 = vld [vmem:[%s1 + $0x520] sm:$0xf]
    %v580 = vld [vmem:[%s1 + $0x524] sm:$0xf]
    %v581 = vld [vmem:[%s1 + $0x528] sm:$0xf]
    %v582 = vld [vmem:[%s1 + $0x52c] sm:$0xf]
    %v583 = vld [vmem:[%s1 + $0x530] sm:$0xf]
    %v584 = vld [vmem:[%s1 + $0x534] sm:$0xf]
    %v585 = vld [vmem:[%s1 + $0x538] sm:$0xf]
    %v586 = vld [vmem:[%s1 + $0x53c] sm:$0xf]
    %v587 = vld [vmem:[%s1 + $0x540] sm:$0xf]
    %v588 = vld [vmem:[%s1 + $0x544] sm:$0xf]
    %v589 = vld [vmem:[%s1 + $0x548] sm:$0xf]
    %v590 = vld [vmem:[%s1 + $0x54c] sm:$0xf]
    %v591 = vld [vmem:[%s1 + $0x550] sm:$0xf]
    %v592 = vld [vmem:[%s1 + $0x554] sm:$0xf]
    %v593 = vld [vmem:[%s1 + $0x558] sm:$0xf]
    %v594 = vld [vmem:[%s1 + $0x55c] sm:$0xf]
    %v595 = vld [vmem:[%s1 + $0x560] sm:$0xf]
    %v596 = vld [vmem:[%s1 + $0x564] sm:$0xf]
    %v597 = vld [vmem:[%s1 + $0x568] sm:$0xf]
    %v598 = vld [vmem:[%s1 + $0x56c] sm:$0xf]
    %v599 = vld [vmem:[%s1 + $0x570] sm:$0xf]
    %v600 = vld [vmem:[%s1 + $0x574] sm:$0xf]
    %v601 = vld [vmem:[%s1 + $0x578] sm:$0xf]
    %v602 = vld [vmem:[%s1 + $0x57c] sm:$0xf]
    %v603 = vld [vmem:[%s1 + $0x580] sm:$0xf]
    %v604 = vld [vmem:[%s1 + $0x584] sm:$0xf]
    %v605 = vld [vmem:[%s1 + $0x588] sm:$0xf]
    %v606 = vld [vmem:[%s1 + $0x58c] sm:$0xf]
    %v607 = vld [vmem:[%s1 + $0x590] sm:$0xf]
    %v608 = vld [vmem:[%s1 + $0x594] sm:$0xf]
    %v609 = vld [vmem:[%s1 + $0x598] sm:$0xf]
    %v610 = vld [vmem:[%s1 + $0x59c] sm:$0xf]
    %v611 = vld [vmem:[%s1 + $0x5a0] sm:$0xf]
    %v612 = vld [vmem:[%s1 + $0x5a4] sm:$0xf]
    %v613 = vld [vmem:[%s1 + $0x5a8] sm:$0xf]
    %v614 = vld [vmem:[%s1 + $0x5ac] sm:$0xf]
    %v615 = vld [vmem:[%s1 + $0x5b0] sm:$0xf]
    %v616 = vld [vmem:[%s1 + $0x5b4] sm:$0xf]
    %v617 = vld [vmem:[%s1 + $0x5b8] sm:$0xf]
    %v618 = vld [vmem:[%s1 + $0x5bc] sm:$0xf]
    %v619 = vld [vmem:[%s1 + $0x5c0] sm:$0xf]
    %v620 = vld [vmem:[%s1 + $0x5c4] sm:$0xf]
    %v621 = vld [vmem:[%s1 + $0x5c8] sm:$0xf]
    %v622 = vld [vmem:[%s1 + $0x5cc] sm:$0xf]
    %v623 = vld [vmem:[%s1 + $0x5d0] sm:$0xf]
    %v624 = vld [vmem:[%s1 + $0x5d4] sm:$0xf]
    %v625 = vld [vmem:[%s1 + $0x5d8] sm:$0xf]
    %v626 = vld [vmem:[%s1 + $0x5dc] sm:$0xf]
    %v627 = vld [vmem:[%s1 + $0x5e0] sm:$0xf]
    %v628 = vld [vmem:[%s1 + $0x5e4] sm:$0xf]
    %v629 = vld [vmem:[%s1 + $0x5e8] sm:$0xf]
    %v630 = vld [vmem:[%s1 + $0x5ec] sm:$0xf]
    %v631 = vld [vmem:[%s1 + $0x5f0] sm:$0xf]
    %v632 = vld [vmem:[%s1 + $0x5f4] sm:$0xf]
    %v633 = vld [vmem:[%s1 + $0x5f8] sm:$0xf]
    %v634 = vld [vmem:[%s1 + $0x5fc] sm:$0xf]
    %v635 = vld [vmem:[%s1 + $0x600] sm:$0xf]
    %v636 = vld [vmem:[%s1 + $0x604] sm:$0xf]
    %v637 = vld [vmem:[%s1 + $0x608] sm:$0xf]
    %v638 = vld [vmem:[%s1 + $0x60c] sm:$0xf]
    %v639 = vld [vmem:[%s1 + $0x610] sm:$0xf]
    %v640 = vld [vmem:[%s1 + $0x614] sm:$0xf]
    %v641 = vld [vmem:[%s1 + $0x618] sm:$0xf]
    %v642 = vld [vmem:[%s1 + $0x61c] sm:$0xf]
    %v643 = vld [vmem:[%s1 + $0x620] sm:$0xf]
    %v644 = vld [vmem:[%s1 + $0x624] sm:$0xf]
    %v645 = vld [vmem:[%s1 + $0x628] sm:$0xf]
    %v646 = vld [vmem:[%s1 + $0x62c] sm:$0xf]
    %v647 = vld [vmem:[%s1 + $0x630] sm:$0xf]
    %v648 = vld [vmem:[%s1 + $0x634] sm:$0xf]
    %v649 = vld [vmem:[%s1 + $0x638] sm:$0xf]
    %v650 = vld [vmem:[%s1 + $0x63c] sm:$0xf]
    %v651 = vld [vmem:[%s1 + $0x640] sm:$0xf]
    %v652 = vld [vmem:[%s1 + $0x644] sm:$0xf]
    %v653 = vld [vmem:[%s1 + $0x648] sm:$0xf]
    %v654 = vld [vmem:[%s1 + $0x64c] sm:$0xf]
    %v655 = vld [vmem:[%s1 + $0x650] sm:$0xf]
    %v656 = vld [vmem:[%s1 + $0x654] sm:$0xf]
    %v657 = vld [vmem:[%s1 + $0x658] sm:$0xf]
    %v658 = vld [vmem:[%s1 + $0x65c] sm:$0xf]
    %v659 = vld [vmem:[%s1 + $0x660] sm:$0xf]
    %v660 = vld [vmem:[%s1 + $0x664] sm:$0xf]
    %v661 = vld [vmem:[%s1 + $0x668] sm:$0xf]
    %v662 = vld [vmem:[%s1 + $0x66c] sm:$0xf]
    %v663 = vld [vmem:[%s1 + $0x670] sm:$0xf]
    %v664 = vld [vmem:[%s1 + $0x674] sm:$0xf]
    %v665 = vld [vmem:[%s1 + $0x678] sm:$0xf]
    %v666 = vld [vmem:[%s1 + $0x67c] sm:$0xf]
    %v667 = vld [vmem:[%s1 + $0x680] sm:$0xf]
    %v668 = vld [vmem:[%s1 + $0x684] sm:$0xf]
    %v669 = vld [vmem:[%s1 + $0x688] sm:$0xf]
    %v670 = vld [vmem:[%s1 + $0x68c] sm:$0xf]
    %v671 = vld [vmem:[%s1 + $0x690] sm:$0xf]
    %v672 = vld [vmem:[%s1 + $0x694] sm:$0xf]
    %v673 = vld [vmem:[%s1 + $0x698] sm:$0xf]
    %v674 = vld [vmem:[%s1 + $0x69c] sm:$0xf]
    %v675 = vld [vmem:[%s1 + $0x6a0] sm:$0xf]
    %v676 = vld [vmem:[%s1 + $0x6a4] sm:$0xf]
    %v677 = vld [vmem:[%s1 + $0x6a8] sm:$0xf]
    %v678 = vld [vmem:[%s1 + $0x6ac] sm:$0xf]
    %v679 = vld [vmem:[%s1 + $0x6b0] sm:$0xf]
    %v680 = vld [vmem:[%s1 + $0x6b4] sm:$0xf]
    %v681 = vld [vmem:[%s1 + $0x6b8] sm:$0xf]
    %v682 = vld [vmem:[%s1 + $0x6bc] sm:$0xf]
    %v683 = vld [vmem:[%s1 + $0x6c0] sm:$0xf]
    %v684 = vld [vmem:[%s1 + $0x6c4] sm:$0xf]
    %v685 = vld [vmem:[%s1 + $0x6c8] sm:$0xf]
    %v686 = vld [vmem:[%s1 + $0x6cc] sm:$0xf]
    %v687 = vld [vmem:[%s1 + $0x6d0] sm:$0xf]
    %v688 = vld [vmem:[%s1 + $0x6d4] sm:$0xf]
    %v689 = vld [vmem:[%s1 + $0x6d8] sm:$0xf]
    %v690 = vld [vmem:[%s1 + $0x6dc] sm:$0xf]
    %v691 = vld [vmem:[%s1 + $0x6e0] sm:$0xf]
    %v692 = vld [vmem:[%s1 + $0x6e4] sm:$0xf]
    %v693 = vld [vmem:[%s1 + $0x6e8] sm:$0xf]
    %v694 = vld [vmem:[%s1 + $0x6ec] sm:$0xf]
    %v695 = vld [vmem:[%s1 + $0x6f0] sm:$0xf]
    %v696 = vld [vmem:[%s1 + $0x6f4] sm:$0xf]
    %v697 = vld [vmem:[%s1 + $0x6f8] sm:$0xf]
    %v698 = vld [vmem:[%s1 + $0x6fc] sm:$0xf]
    %v699 = vld [vmem:[%s1 + $0x700] sm:$0xf]
    %v700 = vld [vmem:[%s1 + $0x704] sm:$0xf]
    %v701 = vld [vmem:[%s1 + $0x708] sm:$0xf]
    %v702 = vld [vmem:[%s1 + $0x70c] sm:$0xf]
    %v703 = vld [vmem:[%s1 + $0x710] sm:$0xf]
    %v704 = vld [vmem:[%s1 + $0x714] sm:$0xf]
    %v705 = vld [vmem:[%s1 + $0x718] sm:$0xf]
    %v706 = vld [vmem:[%s1 + $0x71c] sm:$0xf]
    %v707 = vld [vmem:[%s1 + $0x720] sm:$0xf]
    %v708 = vld [vmem:[%s1 + $0x724] sm:$0xf]
    %v709 = vld [vmem:[%s1 + $0x728] sm:$0xf]
    %v710 = vld [vmem:[%s1 + $0x72c] sm:$0xf]
    %v711 = vld [vmem:[%s1 + $0x730] sm:$0xf]
    %v712 = vld [vmem:[%s1 + $0x734] sm:$0xf]
    %v713 = vld [vmem:[%s1 + $0x738] sm:$0xf]
    %v714 = vld [vmem:[%s1 + $0x73c] sm:$0xf]
    %v715 = vld [vmem:[%s1 + $0x740] sm:$0xf]
    %v716 = vld [vmem:[%s1 + $0x744] sm:$0xf]
    %v717 = vld [vmem:[%s1 + $0x748] sm:$0xf]
    %v718 = vld [vmem:[%s1 + $0x74c] sm:$0xf]
    %v719 = vld [vmem:[%s1 + $0x750] sm:$0xf]
    %v720 = vld [vmem:[%s1 + $0x754] sm:$0xf]
    %v721 = vld [vmem:[%s1 + $0x758] sm:$0xf]
    %v722 = vld [vmem:[%s1 + $0x75c] sm:$0xf]
    %v723 = vld [vmem:[%s1 + $0x760] sm:$0xf]
    %v724 = vld [vmem:[%s1 + $0x764] sm:$0xf]
    %v725 = vld [vmem:[%s1 + $0x768] sm:$0xf]
    %v726 = vld [vmem:[%s1 + $0x76c] sm:$0xf]
    %v727 = vld [vmem:[%s1 + $0x770] sm:$0xf]
    %v728 = vld [vmem:[%s1 + $0x774] sm:$0xf]
    %v729 = vld [vmem:[%s1 + $0x778] sm:$0xf]
    %v730 = vld [vmem:[%s1 + $0x77c] sm:$0xf]
    %v731 = vld [vmem:[%s1 + $0x780] sm:$0xf]
    %v732 = vld [vmem:[%s1 + $0x784] sm:$0xf]
    %v733 = vld [vmem:[%s1 + $0x788] sm:$0xf]
    %v734 = vld [vmem:[%s1 + $0x78c] sm:$0xf]
    %v735 = vld [vmem:[%s1 + $0x790] sm:$0xf]
    %v736 = vld [vmem:[%s1 + $0x794] sm:$0xf]
    %v737 = vld [vmem:[%s1 + $0x798] sm:$0xf]
    %v738 = vld [vmem:[%s1 + $0x79c] sm:$0xf]
    %v739 = vld [vmem:[%s1 + $0x7a0] sm:$0xf]
    %v740 = vld [vmem:[%s1 + $0x7a4] sm:$0xf]
    %v741 = vld [vmem:[%s1 + $0x7a8] sm:$0xf]
    %v742 = vld [vmem:[%s1 + $0x7ac] sm:$0xf]
    %v743 = vld [vmem:[%s1 + $0x7b0] sm:$0xf]
    %v744 = vld [vmem:[%s1 + $0x7b4] sm:$0xf]
    %v745 = vld [vmem:[%s1 + $0x7b8] sm:$0xf]
    %v746 = vld [vmem:[%s1 + $0x7bc] sm:$0xf]
    %v747 = vld [vmem:[%s1 + $0x7c0] sm:$0xf]
    %v748 = vld [vmem:[%s1 + $0x7c4] sm:$0xf]
    %v749 = vld [vmem:[%s1 + $0x7c8] sm:$0xf]
    %v750 = vld [vmem:[%s1 + $0x7cc] sm:$0xf]
    %v751 = vld [vmem:[%s1 + $0x7d0] sm:$0xf]
    %v752 = vld [vmem:[%s1 + $0x7d4] sm:$0xf]
    %v753 = vld [vmem:[%s1 + $0x7d8] sm:$0xf]
    %v754 = vld [vmem:[%s1 + $0x7dc] sm:$0xf]
    %v755 = vld [vmem:[%s1 + $0x7e0] sm:$0xf]
    %v756 = vld [vmem:[%s1 + $0x7e4] sm:$0xf]
    %v757 = vld [vmem:[%s1 + $0x7e8] sm:$0xf]
    %v758 = vld [vmem:[%s1 + $0x7ec] sm:$0xf]
    %v759 = vld [vmem:[%s1 + $0x7f0] sm:$0xf]
    %v760 = vld [vmem:[%s1 + $0x7f4] sm:$0xf]
    %v761 = vld [vmem:[%s1 + $0x7f8] sm:$0xf]
    %v762 = vld [vmem:[%s1 + $0x7fc] sm:$0xf]
    %v763 = vld [vmem:[#allocation3] sm:$0x1]
    %v765 = vlaneseq
    %v766 = vshrl.u32 %v765, 7
    %v767 = vsub.s32 0, %v766
    %v768 = vrot.slane %v763, %v767
    %v1282 = vunpack.c.l.b16 %v251
    %v1283 = vunpack.c.l.b16 %v252
    %v1284 = vunpack.c.l.b16 %v253
    %v1285 = vunpack.c.l.b16 %v254
    %v1286 = vunpack.c.l.b16 %v255
    %v1287 = vunpack.c.l.b16 %v256
    %v1288 = vunpack.c.l.b16 %v257
    %v1289 = vunpack.c.l.b16 %v258
    %v1290 = vunpack.c.l.b16 %v259
    %v1291 = vunpack.c.l.b16 %v260
    %v1292 = vunpack.c.l.b16 %v261
    %v1293 = vunpack.c.l.b16 %v262
    %v1294 = vunpack.c.l.b16 %v263
    %v1295 = vunpack.c.l.b16 %v264
    %v1296 = vunpack.c.l.b16 %v265
    %v1297 = vunpack.c.l.b16 %v266
    %v1298 = vunpack.c.l.b16 %v267
    %v1299 = vunpack.c.l.b16 %v268
    %v1300 = vunpack.c.l.b16 %v269
    %v1301 = vunpack.c.l.b16 %v270
    %v1302 = vunpack.c.l.b16 %v271
    %v1303 = vunpack.c.l.b16 %v272
    %v1304 = vunpack.c.l.b16 %v273
    %v1305 = vunpack.c.l.b16 %v274
    %v1306 = vunpack.c.l.b16 %v275
    %v1307 = vunpack.c.l.b16 %v276
    %v1308 = vunpack.c.l.b16 %v277
    %v1309 = vunpack.c.l.b16 %v278
    %v1310 = vunpack.c.l.b16 %v279
    %v1311 = vunpack.c.l.b16 %v280
    %v1312 = vunpack.c.l.b16 %v281
    %v1313 = vunpack.c.l.b16 %v282
    %v1314 = vunpack.c.l.b16 %v283
    %v1315 = vunpack.c.l.b16 %v284
    %v1316 = vunpack.c.l.b16 %v285
    %v1317 = vunpack.c.l.b16 %v286
    %v1318 = vunpack.c.l.b16 %v287
    %v1319 = vunpack.c.l.b16 %v288
    %v1320 = vunpack.c.l.b16 %v289
    %v1321 = vunpack.c.l.b16 %v290
    %v1322 = vunpack.c.l.b16 %v291
    %v1323 = vunpack.c.l.b16 %v292
    %v1324 = vunpack.c.l.b16 %v293
    %v1325 = vunpack.c.l.b16 %v294
    %v1326 = vunpack.c.l.b16 %v295
    %v1327 = vunpack.c.l.b16 %v296
    %v1328 = vunpack.c.l.b16 %v297
    %v1329 = vunpack.c.l.b16 %v298
    %v1330 = vunpack.c.l.b16 %v299
    %v1331 = vunpack.c.l.b16 %v300
    %v1332 = vunpack.c.l.b16 %v301
    %v1333 = vunpack.c.l.b16 %v302
    %v1334 = vunpack.c.l.b16 %v303
    %v1335 = vunpack.c.l.b16 %v304
    %v1336 = vunpack.c.l.b16 %v305
    %v1337 = vunpack.c.l.b16 %v306
    %v1338 = vunpack.c.l.b16 %v307
    %v1339 = vunpack.c.l.b16 %v308
    %v1340 = vunpack.c.l.b16 %v309
    %v1341 = vunpack.c.l.b16 %v310
    %v1342 = vunpack.c.l.b16 %v311
    %v1343 = vunpack.c.l.b16 %v312
    %v1344 = vunpack.c.l.b16 %v313
    %v1345 = vunpack.c.l.b16 %v314
    %v1346 = vunpack.c.l.b16 %v315
    %v1347 = vunpack.c.l.b16 %v316
    %v1348 = vunpack.c.l.b16 %v317
    %v1349 = vunpack.c.l.b16 %v318
    %v1350 = vunpack.c.l.b16 %v319
    %v1351 = vunpack.c.l.b16 %v320
    %v1352 = vunpack.c.l.b16 %v321
    %v1353 = vunpack.c.l.b16 %v322
    %v1354 = vunpack.c.l.b16 %v323
    %v1355 = vunpack.c.l.b16 %v324
    %v1356 = vunpack.c.l.b16 %v325
    %v1357 = vunpack.c.l.b16 %v326
    %v1358 = vunpack.c.l.b16 %v327
    %v1359 = vunpack.c.l.b16 %v328
    %v1360 = vunpack.c.l.b16 %v329
    %v1361 = vunpack.c.l.b16 %v330
    %v1362 = vunpack.c.l.b16 %v331
    %v1363 = vunpack.c.l.b16 %v332
    %v1364 = vunpack.c.l.b16 %v333
    %v1365 = vunpack.c.l.b16 %v334
    %v1366 = vunpack.c.l.b16 %v335
    %v1367 = vunpack.c.l.b16 %v336
    %v1368 = vunpack.c.l.b16 %v337
    %v1369 = vunpack.c.l.b16 %v338
    %v1370 = vunpack.c.l.b16 %v339
    %v1371 = vunpack.c.l.b16 %v340
    %v1372 = vunpack.c.l.b16 %v341
    %v1373 = vunpack.c.l.b16 %v342
    %v1374 = vunpack.c.l.b16 %v343
    %v1375 = vunpack.c.l.b16 %v344
    %v1376 = vunpack.c.l.b16 %v345
    %v1377 = vunpack.c.l.b16 %v346
    %v1378 = vunpack.c.l.b16 %v347
    %v1379 = vunpack.c.l.b16 %v348
    %v1380 = vunpack.c.l.b16 %v349
    %v1381 = vunpack.c.l.b16 %v350
    %v1382 = vunpack.c.l.b16 %v351
    %v1383 = vunpack.c.l.b16 %v352
    %v1384 = vunpack.c.l.b16 %v353
    %v1385 = vunpack.c.l.b16 %v354
    %v1386 = vunpack.c.l.b16 %v355
    %v1387 = vunpack.c.l.b16 %v356
    %v1388 = vunpack.c.l.b16 %v357
    %v1389 = vunpack.c.l.b16 %v358
    %v1390 = vunpack.c.l.b16 %v359
    %v1391 = vunpack.c.l.b16 %v360
    %v1392 = vunpack.c.l.b16 %v361
    %v1393 = vunpack.c.l.b16 %v362
    %v1394 = vunpack.c.l.b16 %v363
    %v1395 = vunpack.c.l.b16 %v364
    %v1396 = vunpack.c.l.b16 %v365
    %v1397 = vunpack.c.l.b16 %v366
    %v1398 = vunpack.c.l.b16 %v367
    %v1399 = vunpack.c.l.b16 %v368
    %v1400 = vunpack.c.l.b16 %v369
    %v1401 = vunpack.c.l.b16 %v370
    %v1402 = vunpack.c.l.b16 %v371
    %v1403 = vunpack.c.l.b16 %v372
    %v1404 = vunpack.c.l.b16 %v373
    %v1405 = vunpack.c.l.b16 %v374
    %v1406 = vunpack.c.l.b16 %v375
    %v1407 = vunpack.c.l.b16 %v376
    %v1408 = vunpack.c.l.b16 %v377
    %v1409 = vunpack.c.l.b16 %v378
    %v1410 = vunpack.c.l.b16 %v379
    %v1411 = vunpack.c.l.b16 %v380
    %v1412 = vunpack.c.l.b16 %v381
    %v1413 = vunpack.c.l.b16 %v382
    %v1414 = vunpack.c.l.b16 %v383
    %v1415 = vunpack.c.l.b16 %v384
    %v1416 = vunpack.c.l.b16 %v385
    %v1417 = vunpack.c.l.b16 %v386
    %v1418 = vunpack.c.l.b16 %v387
    %v1419 = vunpack.c.l.b16 %v388
    %v1420 = vunpack.c.l.b16 %v389
    %v1421 = vunpack.c.l.b16 %v390
    %v1422 = vunpack.c.l.b16 %v391
    %v1423 = vunpack.c.l.b16 %v392
    %v1424 = vunpack.c.l.b16 %v393
    %v1425 = vunpack.c.l.b16 %v394
    %v1426 = vunpack.c.l.b16 %v395
    %v1427 = vunpack.c.l.b16 %v396
    %v1428 = vunpack.c.l.b16 %v397
    %v1429 = vunpack.c.l.b16 %v398
    %v1430 = vunpack.c.l.b16 %v399
    %v1431 = vunpack.c.l.b16 %v400
    %v1432 = vunpack.c.l.b16 %v401
    %v1433 = vunpack.c.l.b16 %v402
    %v1434 = vunpack.c.l.b16 %v403
    %v1435 = vunpack.c.l.b16 %v404
    %v1436 = vunpack.c.l.b16 %v405
    %v1437 = vunpack.c.l.b16 %v406
    %v1438 = vunpack.c.l.b16 %v407
    %v1439 = vunpack.c.l.b16 %v408
    %v1440 = vunpack.c.l.b16 %v409
    %v1441 = vunpack.c.l.b16 %v410
    %v1442 = vunpack.c.l.b16 %v411
    %v1443 = vunpack.c.l.b16 %v412
    %v1444 = vunpack.c.l.b16 %v413
    %v1445 = vunpack.c.l.b16 %v414
    %v1446 = vunpack.c.l.b16 %v415
    %v1447 = vunpack.c.l.b16 %v416
    %v1448 = vunpack.c.l.b16 %v417
    %v1449 = vunpack.c.l.b16 %v418
    %v1450 = vunpack.c.l.b16 %v419
    %v1451 = vunpack.c.l.b16 %v420
    %v1452 = vunpack.c.l.b16 %v421
    %v1453 = vunpack.c.l.b16 %v422
    %v1454 = vunpack.c.l.b16 %v423
    %v1455 = vunpack.c.l.b16 %v424
    %v1456 = vunpack.c.l.b16 %v425
    %v1457 = vunpack.c.l.b16 %v426
    %v1458 = vunpack.c.l.b16 %v427
    %v1459 = vunpack.c.l.b16 %v428
    %v1460 = vunpack.c.l.b16 %v429
    %v1461 = vunpack.c.l.b16 %v430
    %v1462 = vunpack.c.l.b16 %v431
    %v1463 = vunpack.c.l.b16 %v432
    %v1464 = vunpack.c.l.b16 %v433
    %v1465 = vunpack.c.l.b16 %v434
    %v1466 = vunpack.c.l.b16 %v435
    %v1467 = vunpack.c.l.b16 %v436
    %v1468 = vunpack.c.l.b16 %v437
    %v1469 = vunpack.c.l.b16 %v438
    %v1470 = vunpack.c.l.b16 %v439
    %v1471 = vunpack.c.l.b16 %v440
    %v1472 = vunpack.c.l.b16 %v441
    %v1473 = vunpack.c.l.b16 %v442
    %v1474 = vunpack.c.l.b16 %v443
    %v1475 = vunpack.c.l.b16 %v444
    %v1476 = vunpack.c.l.b16 %v445
    %v1477 = vunpack.c.l.b16 %v446
    %v1478 = vunpack.c.l.b16 %v447
    %v1479 = vunpack.c.l.b16 %v448
    %v1480 = vunpack.c.l.b16 %v449
    %v1481 = vunpack.c.l.b16 %v450
    %v1482 = vunpack.c.l.b16 %v451
    %v1483 = vunpack.c.l.b16 %v452
    %v1484 = vunpack.c.l.b16 %v453
    %v1485 = vunpack.c.l.b16 %v454
    %v1486 = vunpack.c.l.b16 %v455
    %v1487 = vunpack.c.l.b16 %v456
    %v1488 = vunpack.c.l.b16 %v457
    %v1489 = vunpack.c.l.b16 %v458
    %v1490 = vunpack.c.l.b16 %v459
    %v1491 = vunpack.c.l.b16 %v460
    %v1492 = vunpack.c.l.b16 %v461
    %v1493 = vunpack.c.l.b16 %v462
    %v1494 = vunpack.c.l.b16 %v463
    %v1495 = vunpack.c.l.b16 %v464
    %v1496 = vunpack.c.l.b16 %v465
    %v1497 = vunpack.c.l.b16 %v466
    %v1498 = vunpack.c.l.b16 %v467
    %v1499 = vunpack.c.l.b16 %v468
    %v1500 = vunpack.c.l.b16 %v469
    %v1501 = vunpack.c.l.b16 %v470
    %v1502 = vunpack.c.l.b16 %v471
    %v1503 = vunpack.c.l.b16 %v472
    %v1504 = vunpack.c.l.b16 %v473
    %v1505 = vunpack.c.l.b16 %v474
    %v1506 = vunpack.c.l.b16 %v475
    %v1507 = vunpack.c.l.b16 %v476
    %v1508 = vunpack.c.l.b16 %v477
    %v1509 = vunpack.c.l.b16 %v478
    %v1510 = vunpack.c.l.b16 %v479
    %v1511 = vunpack.c.l.b16 %v480
    %v1512 = vunpack.c.l.b16 %v481
    %v1513 = vunpack.c.l.b16 %v482
    %v1514 = vunpack.c.l.b16 %v483
    %v1515 = vunpack.c.l.b16 %v484
    %v1516 = vunpack.c.l.b16 %v485
    %v1517 = vunpack.c.l.b16 %v486
    %v1518 = vunpack.c.l.b16 %v487
    %v1519 = vunpack.c.l.b16 %v488
    %v1520 = vunpack.c.l.b16 %v489
    %v1521 = vunpack.c.l.b16 %v490
    %v1522 = vunpack.c.l.b16 %v491
    %v1523 = vunpack.c.l.b16 %v492
    %v1524 = vunpack.c.l.b16 %v493
    %v1525 = vunpack.c.l.b16 %v494
    %v1526 = vunpack.c.l.b16 %v495
    %v1527 = vunpack.c.l.b16 %v496
    %v1528 = vunpack.c.l.b16 %v497
    %v1529 = vunpack.c.l.b16 %v498
    %v1530 = vunpack.c.l.b16 %v499
    %v1531 = vunpack.c.l.b16 %v500
    %v1532 = vunpack.c.l.b16 %v501
    %v1533 = vunpack.c.l.b16 %v502
    %v1534 = vunpack.c.l.b16 %v503
    %v1535 = vunpack.c.l.b16 %v504
    %v1536 = vunpack.c.l.b16 %v505
    %v1537 = vunpack.c.l.b16 %v506
    %v1538 = vunpack.c.l.b16 %v507
    %v1539 = vunpack.c.l.b16 %v508
    %v1540 = vunpack.c.l.b16 %v509
    %v1541 = vunpack.c.l.b16 %v510
    %v1542 = vunpack.c.l.b16 %v511
    %v1543 = vunpack.c.l.b16 %v512
    %v1544 = vunpack.c.l.b16 %v513
    %v1545 = vunpack.c.l.b16 %v514
    %v1546 = vunpack.c.l.b16 %v515
    %v1547 = vunpack.c.l.b16 %v516
    %v1548 = vunpack.c.l.b16 %v517
    %v1549 = vunpack.c.l.b16 %v518
    %v1550 = vunpack.c.l.b16 %v519
    %v1551 = vunpack.c.l.b16 %v520
    %v1552 = vunpack.c.l.b16 %v521
    %v1553 = vunpack.c.l.b16 %v522
    %v1554 = vunpack.c.l.b16 %v523
    %v1555 = vunpack.c.l.b16 %v524
    %v1556 = vunpack.c.l.b16 %v525
    %v1557 = vunpack.c.l.b16 %v526
    %v1558 = vunpack.c.l.b16 %v527
    %v1559 = vunpack.c.l.b16 %v528
    %v1560 = vunpack.c.l.b16 %v529
    %v1561 = vunpack.c.l.b16 %v530
    %v1562 = vunpack.c.l.b16 %v531
    %v1563 = vunpack.c.l.b16 %v532
    %v1564 = vunpack.c.l.b16 %v533
    %v1565 = vunpack.c.l.b16 %v534
    %v1566 = vunpack.c.l.b16 %v535
    %v1567 = vunpack.c.l.b16 %v536
    %v1568 = vunpack.c.l.b16 %v537
    %v1569 = vunpack.c.l.b16 %v538
    %v1570 = vunpack.c.l.b16 %v539
    %v1571 = vunpack.c.l.b16 %v540
    %v1572 = vunpack.c.l.b16 %v541
    %v1573 = vunpack.c.l.b16 %v542
    %v1574 = vunpack.c.l.b16 %v543
    %v1575 = vunpack.c.l.b16 %v544
    %v1576 = vunpack.c.l.b16 %v545
    %v1577 = vunpack.c.l.b16 %v546
    %v1578 = vunpack.c.l.b16 %v547
    %v1579 = vunpack.c.l.b16 %v548
    %v1580 = vunpack.c.l.b16 %v549
    %v1581 = vunpack.c.l.b16 %v550
    %v1582 = vunpack.c.l.b16 %v551
    %v1583 = vunpack.c.l.b16 %v552
    %v1584 = vunpack.c.l.b16 %v553
    %v1585 = vunpack.c.l.b16 %v554
    %v1586 = vunpack.c.l.b16 %v555
    %v1587 = vunpack.c.l.b16 %v556
    %v1588 = vunpack.c.l.b16 %v557
    %v1589 = vunpack.c.l.b16 %v558
    %v1590 = vunpack.c.l.b16 %v559
    %v1591 = vunpack.c.l.b16 %v560
    %v1592 = vunpack.c.l.b16 %v561
    %v1593 = vunpack.c.l.b16 %v562
    %v1594 = vunpack.c.l.b16 %v563
    %v1595 = vunpack.c.l.b16 %v564
    %v1596 = vunpack.c.l.b16 %v565
    %v1597 = vunpack.c.l.b16 %v566
    %v1598 = vunpack.c.l.b16 %v567
    %v1599 = vunpack.c.l.b16 %v568
    %v1600 = vunpack.c.l.b16 %v569
    %v1601 = vunpack.c.l.b16 %v570
    %v1602 = vunpack.c.l.b16 %v571
    %v1603 = vunpack.c.l.b16 %v572
    %v1604 = vunpack.c.l.b16 %v573
    %v1605 = vunpack.c.l.b16 %v574
    %v1606 = vunpack.c.l.b16 %v575
    %v1607 = vunpack.c.l.b16 %v576
    %v1608 = vunpack.c.l.b16 %v577
    %v1609 = vunpack.c.l.b16 %v578
    %v1610 = vunpack.c.l.b16 %v579
    %v1611 = vunpack.c.l.b16 %v580
    %v1612 = vunpack.c.l.b16 %v581
    %v1613 = vunpack.c.l.b16 %v582
    %v1614 = vunpack.c.l.b16 %v583
    %v1615 = vunpack.c.l.b16 %v584
    %v1616 = vunpack.c.l.b16 %v585
    %v1617 = vunpack.c.l.b16 %v586
    %v1618 = vunpack.c.l.b16 %v587
    %v1619 = vunpack.c.l.b16 %v588
    %v1620 = vunpack.c.l.b16 %v589
    %v1621 = vunpack.c.l.b16 %v590
    %v1622 = vunpack.c.l.b16 %v591
    %v1623 = vunpack.c.l.b16 %v592
    %v1624 = vunpack.c.l.b16 %v593
    %v1625 = vunpack.c.l.b16 %v594
    %v1626 = vunpack.c.l.b16 %v595
    %v1627 = vunpack.c.l.b16 %v596
    %v1628 = vunpack.c.l.b16 %v597
    %v1629 = vunpack.c.l.b16 %v598
    %v1630 = vunpack.c.l.b16 %v599
    %v1631 = vunpack.c.l.b16 %v600
    %v1632 = vunpack.c.l.b16 %v601
    %v1633 = vunpack.c.l.b16 %v602
    %v1634 = vunpack.c.l.b16 %v603
    %v1635 = vunpack.c.l.b16 %v604
    %v1636 = vunpack.c.l.b16 %v605
    %v1637 = vunpack.c.l.b16 %v606
    %v1638 = vunpack.c.l.b16 %v607
    %v1639 = vunpack.c.l.b16 %v608
    %v1640 = vunpack.c.l.b16 %v609
    %v1641 = vunpack.c.l.b16 %v610
    %v1642 = vunpack.c.l.b16 %v611
    %v1643 = vunpack.c.l.b16 %v612
    %v1644 = vunpack.c.l.b16 %v613
    %v1645 = vunpack.c.l.b16 %v614
    %v1646 = vunpack.c.l.b16 %v615
    %v1647 = vunpack.c.l.b16 %v616
    %v1648 = vunpack.c.l.b16 %v617
    %v1649 = vunpack.c.l.b16 %v618
    %v1650 = vunpack.c.l.b16 %v619
    %v1651 = vunpack.c.l.b16 %v620
    %v1652 = vunpack.c.l.b16 %v621
    %v1653 = vunpack.c.l.b16 %v622
    %v1654 = vunpack.c.l.b16 %v623
    %v1655 = vunpack.c.l.b16 %v624
    %v1656 = vunpack.c.l.b16 %v625
    %v1657 = vunpack.c.l.b16 %v626
    %v1658 = vunpack.c.l.b16 %v627
    %v1659 = vunpack.c.l.b16 %v628
    %v1660 = vunpack.c.l.b16 %v629
    %v1661 = vunpack.c.l.b16 %v630
    %v1662 = vunpack.c.l.b16 %v631
    %v1663 = vunpack.c.l.b16 %v632
    %v1664 = vunpack.c.l.b16 %v633
    %v1665 = vunpack.c.l.b16 %v634
    %v1666 = vunpack.c.l.b16 %v635
    %v1667 = vunpack.c.l.b16 %v636
    %v1668 = vunpack.c.l.b16 %v637
    %v1669 = vunpack.c.l.b16 %v638
    %v1670 = vunpack.c.l.b16 %v639
    %v1671 = vunpack.c.l.b16 %v640
    %v1672 = vunpack.c.l.b16 %v641
    %v1673 = vunpack.c.l.b16 %v642
    %v1674 = vunpack.c.l.b16 %v643
    %v1675 = vunpack.c.l.b16 %v644
    %v1676 = vunpack.c.l.b16 %v645
    %v1677 = vunpack.c.l.b16 %v646
    %v1678 = vunpack.c.l.b16 %v647
    %v1679 = vunpack.c.l.b16 %v648
    %v1680 = vunpack.c.l.b16 %v649
    %v1681 = vunpack.c.l.b16 %v650
    %v1682 = vunpack.c.l.b16 %v651
    %v1683 = vunpack.c.l.b16 %v652
    %v1684 = vunpack.c.l.b16 %v653
    %v1685 = vunpack.c.l.b16 %v654
    %v1686 = vunpack.c.l.b16 %v655
    %v1687 = vunpack.c.l.b16 %v656
    %v1688 = vunpack.c.l.b16 %v657
    %v1689 = vunpack.c.l.b16 %v658
    %v1690 = vunpack.c.l.b16 %v659
    %v1691 = vunpack.c.l.b16 %v660
    %v1692 = vunpack.c.l.b16 %v661
    %v1693 = vunpack.c.l.b16 %v662
    %v1694 = vunpack.c.l.b16 %v663
    %v1695 = vunpack.c.l.b16 %v664
    %v1696 = vunpack.c.l.b16 %v665
    %v1697 = vunpack.c.l.b16 %v666
    %v1698 = vunpack.c.l.b16 %v667
    %v1699 = vunpack.c.l.b16 %v668
    %v1700 = vunpack.c.l.b16 %v669
    %v1701 = vunpack.c.l.b16 %v670
    %v1702 = vunpack.c.l.b16 %v671
    %v1703 = vunpack.c.l.b16 %v672
    %v1704 = vunpack.c.l.b16 %v673
    %v1705 = vunpack.c.l.b16 %v674
    %v1706 = vunpack.c.l.b16 %v675
    %v1707 = vunpack.c.l.b16 %v676
    %v1708 = vunpack.c.l.b16 %v677
    %v1709 = vunpack.c.l.b16 %v678
    %v1710 = vunpack.c.l.b16 %v679
    %v1711 = vunpack.c.l.b16 %v680
    %v1712 = vunpack.c.l.b16 %v681
    %v1713 = vunpack.c.l.b16 %v682
    %v1714 = vunpack.c.l.b16 %v683
    %v1715 = vunpack.c.l.b16 %v684
    %v1716 = vunpack.c.l.b16 %v685
    %v1717 = vunpack.c.l.b16 %v686
    %v1718 = vunpack.c.l.b16 %v687
    %v1719 = vunpack.c.l.b16 %v688
    %v1720 = vunpack.c.l.b16 %v689
    %v1721 = vunpack.c.l.b16 %v690
    %v1722 = vunpack.c.l.b16 %v691
    %v1723 = vunpack.c.l.b16 %v692
    %v1724 = vunpack.c.l.b16 %v693
    %v1725 = vunpack.c.l.b16 %v694
    %v1726 = vunpack.c.l.b16 %v695
    %v1727 = vunpack.c.l.b16 %v696
    %v1728 = vunpack.c.l.b16 %v697
    %v1729 = vunpack.c.l.b16 %v698
    %v1730 = vunpack.c.l.b16 %v699
    %v1731 = vunpack.c.l.b16 %v700
    %v1732 = vunpack.c.l.b16 %v701
    %v1733 = vunpack.c.l.b16 %v702
    %v1734 = vunpack.c.l.b16 %v703
    %v1735 = vunpack.c.l.b16 %v704
    %v1736 = vunpack.c.l.b16 %v705
    %v1737 = vunpack.c.l.b16 %v706
    %v1738 = vunpack.c.l.b16 %v707
    %v1739 = vunpack.c.l.b16 %v708
    %v1740 = vunpack.c.l.b16 %v709
    %v1741 = vunpack.c.l.b16 %v710
    %v1742 = vunpack.c.l.b16 %v711
    %v1743 = vunpack.c.l.b16 %v712
    %v1744 = vunpack.c.l.b16 %v713
    %v1745 = vunpack.c.l.b16 %v714
    %v1746 = vunpack.c.l.b16 %v715
    %v1747 = vunpack.c.l.b16 %v716
    %v1748 = vunpack.c.l.b16 %v717
    %v1749 = vunpack.c.l.b16 %v718
    %v1750 = vunpack.c.l.b16 %v719
    %v1751 = vunpack.c.l.b16 %v720
    %v1752 = vunpack.c.l.b16 %v721
    %v1753 = vunpack.c.l.b16 %v722
    %v1754 = vunpack.c.l.b16 %v723
    %v1755 = vunpack.c.l.b16 %v724
    %v1756 = vunpack.c.l.b16 %v725
    %v1757 = vunpack.c.l.b16 %v726
    %v1758 = vunpack.c.l.b16 %v727
    %v1759 = vunpack.c.l.b16 %v728
    %v1760 = vunpack.c.l.b16 %v729
    %v1761 = vunpack.c.l.b16 %v730
    %v1762 = vunpack.c.l.b16 %v731
    %v1763 = vunpack.c.l.b16 %v732
    %v1764 = vunpack.c.l.b16 %v733
    %v1765 = vunpack.c.l.b16 %v734
    %v1766 = vunpack.c.l.b16 %v735
    %v1767 = vunpack.c.l.b16 %v736
    %v1768 = vunpack.c.l.b16 %v737
    %v1769 = vunpack.c.l.b16 %v738
    %v1770 = vunpack.c.l.b16 %v739
    %v1771 = vunpack.c.l.b16 %v740
    %v1772 = vunpack.c.l.b16 %v741
    %v1773 = vunpack.c.l.b16 %v742
    %v1774 = vunpack.c.l.b16 %v743
    %v1775 = vunpack.c.l.b16 %v744
    %v1776 = vunpack.c.l.b16 %v745
    %v1777 = vunpack.c.l.b16 %v746
    %v1778 = vunpack.c.l.b16 %v747
    %v1779 = vunpack.c.l.b16 %v748
    %v1780 = vunpack.c.l.b16 %v749
    %v1781 = vunpack.c.l.b16 %v750
    %v1782 = vunpack.c.l.b16 %v751
    %v1783 = vunpack.c.l.b16 %v752
    %v1784 = vunpack.c.l.b16 %v753
    %v1785 = vunpack.c.l.b16 %v754
    %v1786 = vunpack.c.l.b16 %v755
    %v1787 = vunpack.c.l.b16 %v756
    %v1788 = vunpack.c.l.b16 %v757
    %v1789 = vunpack.c.l.b16 %v758
    %v1790 = vunpack.c.l.b16 %v759
    %v1791 = vunpack.c.l.b16 %v760
    %v1792 = vunpack.c.l.b16 %v761
    %v1793 = vunpack.c.l.b16 %v762
    %v1794 = vpack.c.b16 %v1283, %v1282
    %v1795 = vpack.c.b16 %v1285, %v1284
    %v1796 = vpack.c.b16 %v1287, %v1286
    %v1797 = vpack.c.b16 %v1289, %v1288
    %v1798 = vpack.c.b16 %v1291, %v1290
    %v1799 = vpack.c.b16 %v1293, %v1292
    %v1800 = vpack.c.b16 %v1295, %v1294
    %v1801 = vpack.c.b16 %v1297, %v1296
    %v1802 = vpack.c.b16 %v1299, %v1298
    %v1803 = vpack.c.b16 %v1301, %v1300
    %v1804 = vpack.c.b16 %v1303, %v1302
    %v1805 = vpack.c.b16 %v1305, %v1304
    %v1806 = vpack.c.b16 %v1307, %v1306
    %v1807 = vpack.c.b16 %v1309, %v1308
    %v1808 = vpack.c.b16 %v1311, %v1310
    %v1809 = vpack.c.b16 %v1313, %v1312
    %v1810 = vpack.c.b16 %v1315, %v1314
    %v1811 = vpack.c.b16 %v1317, %v1316
    %v1812 = vpack.c.b16 %v1319, %v1318
    %v1813 = vpack.c.b16 %v1321, %v1320
    %v1814 = vpack.c.b16 %v1323, %v1322
    %v1815 = vpack.c.b16 %v1325, %v1324
    %v1816 = vpack.c.b16 %v1327, %v1326
    %v1817 = vpack.c.b16 %v1329, %v1328
    %v1818 = vpack.c.b16 %v1331, %v1330
    %v1819 = vpack.c.b16 %v1333, %v1332
    %v1820 = vpack.c.b16 %v1335, %v1334
    %v1821 = vpack.c.b16 %v1337, %v1336
    %v1822 = vpack.c.b16 %v1339, %v1338
    %v1823 = vpack.c.b16 %v1341, %v1340
    %v1824 = vpack.c.b16 %v1343, %v1342
    %v1825 = vpack.c.b16 %v1345, %v1344
    %v1826 = vpack.c.b16 %v1347, %v1346
    %v1827 = vpack.c.b16 %v1349, %v1348
    %v1828 = vpack.c.b16 %v1351, %v1350
    %v1829 = vpack.c.b16 %v1353, %v1352
    %v1830 = vpack.c.b16 %v1355, %v1354
    %v1831 = vpack.c.b16 %v1357, %v1356
    %v1832 = vpack.c.b16 %v1359, %v1358
    %v1833 = vpack.c.b16 %v1361, %v1360
    %v1834 = vpack.c.b16 %v1363, %v1362
    %v1835 = vpack.c.b16 %v1365, %v1364
    %v1836 = vpack.c.b16 %v1367, %v1366
    %v1837 = vpack.c.b16 %v1369, %v1368
    %v1838 = vpack.c.b16 %v1371, %v1370
    %v1839 = vpack.c.b16 %v1373, %v1372
    %v1840 = vpack.c.b16 %v1375, %v1374
    %v1841 = vpack.c.b16 %v1377, %v1376
    %v1842 = vpack.c.b16 %v1379, %v1378
    %v1843 = vpack.c.b16 %v1381, %v1380
    %v1844 = vpack.c.b16 %v1383, %v1382
    %v1845 = vpack.c.b16 %v1385, %v1384
    %v1846 = vpack.c.b16 %v1387, %v1386
    %v1847 = vpack.c.b16 %v1389, %v1388
    %v1848 = vpack.c.b16 %v1391, %v1390
    %v1849 = vpack.c.b16 %v1393, %v1392
    %v1850 = vpack.c.b16 %v1395, %v1394
    %v1851 = vpack.c.b16 %v1397, %v1396
    %v1852 = vpack.c.b16 %v1399, %v1398
    %v1853 = vpack.c.b16 %v1401, %v1400
    %v1854 = vpack.c.b16 %v1403, %v1402
    %v1855 = vpack.c.b16 %v1405, %v1404
    %v1856 = vpack.c.b16 %v1407, %v1406
    %v1857 = vpack.c.b16 %v1409, %v1408
    %v1858 = vpack.c.b16 %v1411, %v1410
    %v1859 = vpack.c.b16 %v1413, %v1412
    %v1860 = vpack.c.b16 %v1415, %v1414
    %v1861 = vpack.c.b16 %v1417, %v1416
    %v1862 = vpack.c.b16 %v1419, %v1418
    %v1863 = vpack.c.b16 %v1421, %v1420
    %v1864 = vpack.c.b16 %v1423, %v1422
    %v1865 = vpack.c.b16 %v1425, %v1424
    %v1866 = vpack.c.b16 %v1427, %v1426
    %v1867 = vpack.c.b16 %v1429, %v1428
    %v1868 = vpack.c.b16 %v1431, %v1430
    %v1869 = vpack.c.b16 %v1433, %v1432
    %v1870 = vpack.c.b16 %v1435, %v1434
    %v1871 = vpack.c.b16 %v1437, %v1436
    %v1872 = vpack.c.b16 %v1439, %v1438
    %v1873 = vpack.c.b16 %v1441, %v1440
    %v1874 = vpack.c.b16 %v1443, %v1442
    %v1875 = vpack.c.b16 %v1445, %v1444
    %v1876 = vpack.c.b16 %v1447, %v1446
    %v1877 = vpack.c.b16 %v1449, %v1448
    %v1878 = vpack.c.b16 %v1451, %v1450
    %v1879 = vpack.c.b16 %v1453, %v1452
    %v1880 = vpack.c.b16 %v1455, %v1454
    %v1881 = vpack.c.b16 %v1457, %v1456
    %v1882 = vpack.c.b16 %v1459, %v1458
    %v1883 = vpack.c.b16 %v1461, %v1460
    %v1884 = vpack.c.b16 %v1463, %v1462
    %v1885 = vpack.c.b16 %v1465, %v1464
    %v1886 = vpack.c.b16 %v1467, %v1466
    %v1887 = vpack.c.b16 %v1469, %v1468
    %v1888 = vpack.c.b16 %v1471, %v1470
    %v1889 = vpack.c.b16 %v1473, %v1472
    %v1890 = vpack.c.b16 %v1475, %v1474
    %v1891 = vpack.c.b16 %v1477, %v1476
    %v1892 = vpack.c.b16 %v1479, %v1478
    %v1893 = vpack.c.b16 %v1481, %v1480
    %v1894 = vpack.c.b16 %v1483, %v1482
    %v1895 = vpack.c.b16 %v1485, %v1484
    %v1896 = vpack.c.b16 %v1487, %v1486
    %v1897 = vpack.c.b16 %v1489, %v1488
    %v1898 = vpack.c.b16 %v1491, %v1490
    %v1899 = vpack.c.b16 %v1493, %v1492
    %v1900 = vpack.c.b16 %v1495, %v1494
    %v1901 = vpack.c.b16 %v1497, %v1496
    %v1902 = vpack.c.b16 %v1499, %v1498
    %v1903 = vpack.c.b16 %v1501, %v1500
    %v1904 = vpack.c.b16 %v1503, %v1502
    %v1905 = vpack.c.b16 %v1505, %v1504
    %v1906 = vpack.c.b16 %v1507, %v1506
    %v1907 = vpack.c.b16 %v1509, %v1508
    %v1908 = vpack.c.b16 %v1511, %v1510
    %v1909 = vpack.c.b16 %v1513, %v1512
    %v1910 = vpack.c.b16 %v1515, %v1514
    %v1911 = vpack.c.b16 %v1517, %v1516
    %v1912 = vpack.c.b16 %v1519, %v1518
    %v1913 = vpack.c.b16 %v1521, %v1520
    %v1914 = vpack.c.b16 %v1523, %v1522
    %v1915 = vpack.c.b16 %v1525, %v1524
    %v1916 = vpack.c.b16 %v1527, %v1526
    %v1917 = vpack.c.b16 %v1529, %v1528
    %v1918 = vpack.c.b16 %v1531, %v1530
    %v1919 = vpack.c.b16 %v1533, %v1532
    %v1920 = vpack.c.b16 %v1535, %v1534
    %v1921 = vpack.c.b16 %v1537, %v1536
    %v1922 = vpack.c.b16 %v1539, %v1538
    %v1923 = vpack.c.b16 %v1541, %v1540
    %v1924 = vpack.c.b16 %v1543, %v1542
    %v1925 = vpack.c.b16 %v1545, %v1544
    %v1926 = vpack.c.b16 %v1547, %v1546
    %v1927 = vpack.c.b16 %v1549, %v1548
    %v1928 = vpack.c.b16 %v1551, %v1550
    %v1929 = vpack.c.b16 %v1553, %v1552
    %v1930 = vpack.c.b16 %v1555, %v1554
    %v1931 = vpack.c.b16 %v1557, %v1556
    %v1932 = vpack.c.b16 %v1559, %v1558
    %v1933 = vpack.c.b16 %v1561, %v1560
    %v1934 = vpack.c.b16 %v1563, %v1562
    %v1935 = vpack.c.b16 %v1565, %v1564
    %v1936 = vpack.c.b16 %v1567, %v1566
    %v1937 = vpack.c.b16 %v1569, %v1568
    %v1938 = vpack.c.b16 %v1571, %v1570
    %v1939 = vpack.c.b16 %v1573, %v1572
    %v1940 = vpack.c.b16 %v1575, %v1574
    %v1941 = vpack.c.b16 %v1577, %v1576
    %v1942 = vpack.c.b16 %v1579, %v1578
    %v1943 = vpack.c.b16 %v1581, %v1580
    %v1944 = vpack.c.b16 %v1583, %v1582
    %v1945 = vpack.c.b16 %v1585, %v1584
    %v1946 = vpack.c.b16 %v1587, %v1586
    %v1947 = vpack.c.b16 %v1589, %v1588
    %v1948 = vpack.c.b16 %v1591, %v1590
    %v1949 = vpack.c.b16 %v1593, %v1592
    %v1950 = vpack.c.b16 %v1595, %v1594
    %v1951 = vpack.c.b16 %v1597, %v1596
    %v1952 = vpack.c.b16 %v1599, %v1598
    %v1953 = vpack.c.b16 %v1601, %v1600
    %v1954 = vpack.c.b16 %v1603, %v1602
    %v1955 = vpack.c.b16 %v1605, %v1604
    %v1956 = vpack.c.b16 %v1607, %v1606
    %v1957 = vpack.c.b16 %v1609, %v1608
    %v1958 = vpack.c.b16 %v1611, %v1610
    %v1959 = vpack.c.b16 %v1613, %v1612
    %v1960 = vpack.c.b16 %v1615, %v1614
    %v1961 = vpack.c.b16 %v1617, %v1616
    %v1962 = vpack.c.b16 %v1619, %v1618
    %v1963 = vpack.c.b16 %v1621, %v1620
    %v1964 = vpack.c.b16 %v1623, %v1622
    %v1965 = vpack.c.b16 %v1625, %v1624
    %v1966 = vpack.c.b16 %v1627, %v1626
    %v1967 = vpack.c.b16 %v1629, %v1628
    %v1968 = vpack.c.b16 %v1631, %v1630
    %v1969 = vpack.c.b16 %v1633, %v1632
    %v1970 = vpack.c.b16 %v1635, %v1634
    %v1971 = vpack.c.b16 %v1637, %v1636
    %v1972 = vpack.c.b16 %v1639, %v1638
    %v1973 = vpack.c.b16 %v1641, %v1640
    %v1974 = vpack.c.b16 %v1643, %v1642
    %v1975 = vpack.c.b16 %v1645, %v1644
    %v1976 = vpack.c.b16 %v1647, %v1646
    %v1977 = vpack.c.b16 %v1649, %v1648
    %v1978 = vpack.c.b16 %v1651, %v1650
    %v1979 = vpack.c.b16 %v1653, %v1652
    %v1980 = vpack.c.b16 %v1655, %v1654
    %v1981 = vpack.c.b16 %v1657, %v1656
    %v1982 = vpack.c.b16 %v1659, %v1658
    %v1983 = vpack.c.b16 %v1661, %v1660
    %v1984 = vpack.c.b16 %v1663, %v1662
    %v1985 = vpack.c.b16 %v1665, %v1664
    %v1986 = vpack.c.b16 %v1667, %v1666
    %v1987 = vpack.c.b16 %v1669, %v1668
    %v1988 = vpack.c.b16 %v1671, %v1670
    %v1989 = vpack.c.b16 %v1673, %v1672
    %v1990 = vpack.c.b16 %v1675, %v1674
    %v1991 = vpack.c.b16 %v1677, %v1676
    %v1992 = vpack.c.b16 %v1679, %v1678
    %v1993 = vpack.c.b16 %v1681, %v1680
    %v1994 = vpack.c.b16 %v1683, %v1682
    %v1995 = vpack.c.b16 %v1685, %v1684
    %v1996 = vpack.c.b16 %v1687, %v1686
    %v1997 = vpack.c.b16 %v1689, %v1688
    %v1998 = vpack.c.b16 %v1691, %v1690
    %v1999 = vpack.c.b16 %v1693, %v1692
    %v2000 = vpack.c.b16 %v1695, %v1694
    %v2001 = vpack.c.b16 %v1697, %v1696
    %v2002 = vpack.c.b16 %v1699, %v1698
    %v2003 = vpack.c.b16 %v1701, %v1700
    %v2004 = vpack.c.b16 %v1703, %v1702
    %v2005 = vpack.c.b16 %v1705, %v1704
    %v2006 = vpack.c.b16 %v1707, %v1706
    %v2007 = vpack.c.b16 %v1709, %v1708
    %v2008 = vpack.c.b16 %v1711, %v1710
    %v2009 = vpack.c.b16 %v1713, %v1712
    %v2010 = vpack.c.b16 %v1715, %v1714
    %v2011 = vpack.c.b16 %v1717, %v1716
    %v2012 = vpack.c.b16 %v1719, %v1718
    %v2013 = vpack.c.b16 %v1721, %v1720
    %v2014 = vpack.c.b16 %v1723, %v1722
    %v2015 = vpack.c.b16 %v1725, %v1724
    %v2016 = vpack.c.b16 %v1727, %v1726
    %v2017 = vpack.c.b16 %v1729, %v1728
    %v2018 = vpack.c.b16 %v1731, %v1730
    %v2019 = vpack.c.b16 %v1733, %v1732
    %v2020 = vpack.c.b16 %v1735, %v1734
    %v2021 = vpack.c.b16 %v1737, %v1736
    %v2022 = vpack.c.b16 %v1739, %v1738
    %v2023 = vpack.c.b16 %v1741, %v1740
    %v2024 = vpack.c.b16 %v1743, %v1742
    %v2025 = vpack.c.b16 %v1745, %v1744
    %v2026 = vpack.c.b16 %v1747, %v1746
    %v2027 = vpack.c.b16 %v1749, %v1748
    %v2028 = vpack.c.b16 %v1751, %v1750
    %v2029 = vpack.c.b16 %v1753, %v1752
    %v2030 = vpack.c.b16 %v1755, %v1754
    %v2031 = vpack.c.b16 %v1757, %v1756
    %v2032 = vpack.c.b16 %v1759, %v1758
    %v2033 = vpack.c.b16 %v1761, %v1760
    %v2034 = vpack.c.b16 %v1763, %v1762
    %v2035 = vpack.c.b16 %v1765, %v1764
    %v2036 = vpack.c.b16 %v1767, %v1766
    %v2037 = vpack.c.b16 %v1769, %v1768
    %v2038 = vpack.c.b16 %v1771, %v1770
    %v2039 = vpack.c.b16 %v1773, %v1772
    %v2040 = vpack.c.b16 %v1775, %v1774
    %v2041 = vpack.c.b16 %v1777, %v1776
    %v2042 = vpack.c.b16 %v1779, %v1778
    %v2043 = vpack.c.b16 %v1781, %v1780
    %v2044 = vpack.c.b16 %v1783, %v1782
    %v2045 = vpack.c.b16 %v1785, %v1784
    %v2046 = vpack.c.b16 %v1787, %v1786
    %v2047 = vpack.c.b16 %v1789, %v1788
    %v2048 = vpack.c.b16 %v1791, %v1790
    %v2049 = vpack.c.b16 %v1793, %v1792
    %2306 = vmatprep.subr.bf16.mxu0 0
    %2307 = vmatpush1.bf16.msra.mxu0 %v1801
    %2308 = vmatprep.subr.bf16.mxu0 0
    %2309 = vmatpush1.bf16.msra.mxu0 %v1800
    %2310 = vmatprep.subr.bf16.mxu0 0
    %2311 = vmatpush1.bf16.msra.mxu0 %v1799
    %2312 = vmatprep.subr.bf16.mxu0 0
    %2313 = vmatpush1.bf16.msra.mxu0 %v1798
    %2314 = vmatprep.subr.bf16.mxu0 0
    %2315 = vmatpush1.bf16.msra.mxu0 %v1797
    %2316 = vmatprep.subr.bf16.mxu0 0
    %2317 = vmatpush1.bf16.msra.mxu0 %v1796
    %2318 = vmatprep.subr.bf16.mxu0 0
    %2319 = vmatpush1.bf16.msra.mxu0 %v1795
    %2320 = vmatprep.subr.bf16.mxu0 0
    %2321 = vmatpush1.bf16.msra.mxu0 %v1794
    %2322 = vmatprep.subr.bf16.mxu0 0
    %2323 = vmatpush2.bf16.msra.mxu0 %v1809
    %2324 = vmatprep.subr.bf16.mxu0 0
    %2325 = vmatpush2.bf16.msra.mxu0 %v1808
    %2326 = vmatprep.subr.bf16.mxu0 0
    %2327 = vmatpush2.bf16.msra.mxu0 %v1807
    %2328 = vmatprep.subr.bf16.mxu0 0
    %2329 = vmatpush2.bf16.msra.mxu0 %v1806
    %2330 = vmatprep.subr.bf16.mxu0 0
    %2331 = vmatpush2.bf16.msra.mxu0 %v1805
    %2332 = vmatprep.subr.bf16.mxu0 0
    %2333 = vmatpush2.bf16.msra.mxu0 %v1804
    %2334 = vmatprep.subr.bf16.mxu0 0
    %2335 = vmatpush2.bf16.msra.mxu0 %v1803
    %2336 = vmatprep.subr.bf16.mxu0 0
    %2337 = vmatpush2.bf16.msra.mxu0 %v1802
    %2338 = vmatprep.mubr.bf16.mxu0 %v220
    %2339 = vmatmul.mubr.bf16.gmra.mxu0 %v219
    %v2340 = vpop.f32.mrf.mxu0
    %v2341 = vadd.f32 %v768, %v2340
    %v2342 = vpop.f32.mrf.mxu0
    %v2343 = vpop.f32.mrf.mxu0
    %v2344 = vpop.f32.mrf.mxu0
    %2345 = vdwg.mxu0
    %2346 = vmatprep.subr.bf16.mxu0 0
    %2347 = vmatpush1.bf16.msra.mxu0 %v1817
    %2348 = vmatprep.subr.bf16.mxu0 0
    %2349 = vmatpush1.bf16.msra.mxu0 %v1816
    %2350 = vmatprep.subr.bf16.mxu0 0
    %2351 = vmatpush1.bf16.msra.mxu0 %v1815
    %2352 = vmatprep.subr.bf16.mxu0 0
    %2353 = vmatpush1.bf16.msra.mxu0 %v1814
    %2354 = vmatprep.subr.bf16.mxu0 0
    %2355 = vmatpush1.bf16.msra.mxu0 %v1813
    %2356 = vmatprep.subr.bf16.mxu0 0
    %2357 = vmatpush1.bf16.msra.mxu0 %v1812
    %2358 = vmatprep.subr.bf16.mxu0 0
    %2359 = vmatpush1.bf16.msra.mxu0 %v1811
    %2360 = vmatprep.subr.bf16.mxu0 0
    %2361 = vmatpush1.bf16.msra.mxu0 %v1810
    %2362 = vmatprep.subr.bf16.mxu0 0
    %2363 = vmatpush2.bf16.msra.mxu0 %v1825
    %2364 = vmatprep.subr.bf16.mxu0 0
    %2365 = vmatpush2.bf16.msra.mxu0 %v1824
    %2366 = vmatprep.subr.bf16.mxu0 0
    %2367 = vmatpush2.bf16.msra.mxu0 %v1823
    %2368 = vmatprep.subr.bf16.mxu0 0
    %2369 = vmatpush2.bf16.msra.mxu0 %v1822
    %2370 = vmatprep.subr.bf16.mxu0 0
    %2371 = vmatpush2.bf16.msra.mxu0 %v1821
    %2372 = vmatprep.subr.bf16.mxu0 0
    %2373 = vmatpush2.bf16.msra.mxu0 %v1820
    %2374 = vmatprep.subr.bf16.mxu0 0
    %2375 = vmatpush2.bf16.msra.mxu0 %v1819
    %2376 = vmatprep.subr.bf16.mxu0 0
    %2377 = vmatpush2.bf16.msra.mxu0 %v1818
    %2378 = vmatprep.mubr.bf16.mxu0 %v222
    %2379 = vmatmul.mubr.bf16.gmra.mxu0 %v221
    %v2380 = vpop.f32.mrf.mxu0
    %v2381 = vadd.f32 %v2341, %v2380
    %v2382 = vpop.f32.mrf.mxu0
    %v2383 = vpop.f32.mrf.mxu0
    %v2384 = vpop.f32.mrf.mxu0
    %2385 = vdwg.mxu0
    %2386 = vmatprep.subr.bf16.mxu0 0
    %2387 = vmatpush1.bf16.msra.mxu0 %v1833
    %2388 = vmatprep.subr.bf16.mxu0 0
    %2389 = vmatpush1.bf16.msra.mxu0 %v1832
    %2390 = vmatprep.subr.bf16.mxu0 0
    %2391 = vmatpush1.bf16.msra.mxu0 %v1831
    %2392 = vmatprep.subr.bf16.mxu0 0
    %2393 = vmatpush1.bf16.msra.mxu0 %v1830
    %2394 = vmatprep.subr.bf16.mxu0 0
    %2395 = vmatpush1.bf16.msra.mxu0 %v1829
    %2396 = vmatprep.subr.bf16.mxu0 0
    %2397 = vmatpush1.bf16.msra.mxu0 %v1828
    %2398 = vmatprep.subr.bf16.mxu0 0
    %2399 = vmatpush1.bf16.msra.mxu0 %v1827
    %2400 = vmatprep.subr.bf16.mxu0 0
    %2401 = vmatpush1.bf16.msra.mxu0 %v1826
    %2402 = vmatprep.subr.bf16.mxu0 0
    %2403 = vmatpush2.bf16.msra.mxu0 %v1841
    %2404 = vmatprep.subr.bf16.mxu0 0
    %2405 = vmatpush2.bf16.msra.mxu0 %v1840
    %2406 = vmatprep.subr.bf16.mxu0 0
    %2407 = vmatpush2.bf16.msra.mxu0 %v1839
    %2408 = vmatprep.subr.bf16.mxu0 0
    %2409 = vmatpush2.bf16.msra.mxu0 %v1838
    %2410 = vmatprep.subr.bf16.mxu0 0
    %2411 = vmatpush2.bf16.msra.mxu0 %v1837
    %2412 = vmatprep.subr.bf16.mxu0 0
    %2413 = vmatpush2.bf16.msra.mxu0 %v1836
    %2414 = vmatprep.subr.bf16.mxu0 0
    %2415 = vmatpush2.bf16.msra.mxu0 %v1835
    %2416 = vmatprep.subr.bf16.mxu0 0
    %2417 = vmatpush2.bf16.msra.mxu0 %v1834
    %2418 = vmatprep.mubr.bf16.mxu0 %v224
    %2419 = vmatmul.mubr.bf16.gmra.mxu0 %v223
    %v2420 = vpop.f32.mrf.mxu0
    %v2421 = vadd.f32 %v2381, %v2420
    %v2422 = vpop.f32.mrf.mxu0
    %v2423 = vpop.f32.mrf.mxu0
    %v2424 = vpop.f32.mrf.mxu0
    %2425 = vdwg.mxu0
    %2426 = vmatprep.subr.bf16.mxu0 0
    %2427 = vmatpush1.bf16.msra.mxu0 %v1849
    %2428 = vmatprep.subr.bf16.mxu0 0
    %2429 = vmatpush1.bf16.msra.mxu0 %v1848
    %2430 = vmatprep.subr.bf16.mxu0 0
    %2431 = vmatpush1.bf16.msra.mxu0 %v1847
    %2432 = vmatprep.subr.bf16.mxu0 0
    %2433 = vmatpush1.bf16.msra.mxu0 %v1846
    %2434 = vmatprep.subr.bf16.mxu0 0
    %2435 = vmatpush1.bf16.msra.mxu0 %v1845
    %2436 = vmatprep.subr.bf16.mxu0 0
    %2437 = vmatpush1.bf16.msra.mxu0 %v1844
    %2438 = vmatprep.subr.bf16.mxu0 0
    %2439 = vmatpush1.bf16.msra.mxu0 %v1843
    %2440 = vmatprep.subr.bf16.mxu0 0
    %2441 = vmatpush1.bf16.msra.mxu0 %v1842
    %2442 = vmatprep.subr.bf16.mxu0 0
    %2443 = vmatpush2.bf16.msra.mxu0 %v1857
    %2444 = vmatprep.subr.bf16.mxu0 0
    %2445 = vmatpush2.bf16.msra.mxu0 %v1856
    %2446 = vmatprep.subr.bf16.mxu0 0
    %2447 = vmatpush2.bf16.msra.mxu0 %v1855
    %2448 = vmatprep.subr.bf16.mxu0 0
    %2449 = vmatpush2.bf16.msra.mxu0 %v1854
    %2450 = vmatprep.subr.bf16.mxu0 0
    %2451 = vmatpush2.bf16.msra.mxu0 %v1853
    %2452 = vmatprep.subr.bf16.mxu0 0
    %2453 = vmatpush2.bf16.msra.mxu0 %v1852
    %2454 = vmatprep.subr.bf16.mxu0 0
    %2455 = vmatpush2.bf16.msra.mxu0 %v1851
    %2456 = vmatprep.subr.bf16.mxu0 0
    %2457 = vmatpush2.bf16.msra.mxu0 %v1850
    %2458 = vmatprep.mubr.bf16.mxu0 %v226
    %2459 = vmatmul.mubr.bf16.gmra.mxu0 %v225
    %v2460 = vpop.f32.mrf.mxu0
    %v2461 = vadd.f32 %v2421, %v2460
    %v2462 = vpop.f32.mrf.mxu0
    %v2463 = vpop.f32.mrf.mxu0
    %v2464 = vpop.f32.mrf.mxu0
    %2465 = vdwg.mxu0
    %2466 = vmatprep.subr.bf16.mxu0 0
    %2467 = vmatpush1.bf16.msra.mxu0 %v1865
    %2468 = vmatprep.subr.bf16.mxu0 0
    %2469 = vmatpush1.bf16.msra.mxu0 %v1864
    %2470 = vmatprep.subr.bf16.mxu0 0
    %2471 = vmatpush1.bf16.msra.mxu0 %v1863
    %2472 = vmatprep.subr.bf16.mxu0 0
    %2473 = vmatpush1.bf16.msra.mxu0 %v1862
    %2474 = vmatprep.subr.bf16.mxu0 0
    %2475 = vmatpush1.bf16.msra.mxu0 %v1861
    %2476 = vmatprep.subr.bf16.mxu0 0
    %2477 = vmatpush1.bf16.msra.mxu0 %v1860
    %2478 = vmatprep.subr.bf16.mxu0 0
    %2479 = vmatpush1.bf16.msra.mxu0 %v1859
    %2480 = vmatprep.subr.bf16.mxu0 0
    %2481 = vmatpush1.bf16.msra.mxu0 %v1858
    %2482 = vmatprep.subr.bf16.mxu0 0
    %2483 = vmatpush2.bf16.msra.mxu0 %v1873
    %2484 = vmatprep.subr.bf16.mxu0 0
    %2485 = vmatpush2.bf16.msra.mxu0 %v1872
    %2486 = vmatprep.subr.bf16.mxu0 0
    %2487 = vmatpush2.bf16.msra.mxu0 %v1871
    %2488 = vmatprep.subr.bf16.mxu0 0
    %2489 = vmatpush2.bf16.msra.mxu0 %v1870
    %2490 = vmatprep.subr.bf16.mxu0 0
    %2491 = vmatpush2.bf16.msra.mxu0 %v1869
    %2492 = vmatprep.subr.bf16.mxu0 0
    %2493 = vmatpush2.bf16.msra.mxu0 %v1868
    %2494 = vmatprep.subr.bf16.mxu0 0
    %2495 = vmatpush2.bf16.msra.mxu0 %v1867
    %2496 = vmatprep.subr.bf16.mxu0 0
    %2497 = vmatpush2.bf16.msra.mxu0 %v1866
    %2498 = vmatprep.mubr.bf16.mxu0 %v228
    %2499 = vmatmul.mubr.bf16.gmra.mxu0 %v227
    %v2500 = vpop.f32.mrf.mxu0
    %v2501 = vadd.f32 %v2461, %v2500
    %v2502 = vpop.f32.mrf.mxu0
    %v2503 = vpop.f32.mrf.mxu0
    %v2504 = vpop.f32.mrf.mxu0
    %2505 = vdwg.mxu0
    %2506 = vmatprep.subr.bf16.mxu0 0
    %2507 = vmatpush1.bf16.msra.mxu0 %v1881
    %2508 = vmatprep.subr.bf16.mxu0 0
    %2509 = vmatpush1.bf16.msra.mxu0 %v1880
    %2510 = vmatprep.subr.bf16.mxu0 0
    %2511 = vmatpush1.bf16.msra.mxu0 %v1879
    %2512 = vmatprep.subr.bf16.mxu0 0
    %2513 = vmatpush1.bf16.msra.mxu0 %v1878
    %2514 = vmatprep.subr.bf16.mxu0 0
    %2515 = vmatpush1.bf16.msra.mxu0 %v1877
    %2516 = vmatprep.subr.bf16.mxu0 0
    %2517 = vmatpush1.bf16.msra.mxu0 %v1876
    %2518 = vmatprep.subr.bf16.mxu0 0
    %2519 = vmatpush1.bf16.msra.mxu0 %v1875
    %2520 = vmatprep.subr.bf16.mxu0 0
    %2521 = vmatpush1.bf16.msra.mxu0 %v1874
    %2522 = vmatprep.subr.bf16.mxu0 0
    %2523 = vmatpush2.bf16.msra.mxu0 %v1889
    %2524 = vmatprep.subr.bf16.mxu0 0
    %2525 = vmatpush2.bf16.msra.mxu0 %v1888
    %2526 = vmatprep.subr.bf16.mxu0 0
    %2527 = vmatpush2.bf16.msra.mxu0 %v1887
    %2528 = vmatprep.subr.bf16.mxu0 0
    %2529 = vmatpush2.bf16.msra.mxu0 %v1886
    %2530 = vmatprep.subr.bf16.mxu0 0
    %2531 = vmatpush2.bf16.msra.mxu0 %v1885
    %2532 = vmatprep.subr.bf16.mxu0 0
    %2533 = vmatpush2.bf16.msra.mxu0 %v1884
    %2534 = vmatprep.subr.bf16.mxu0 0
    %2535 = vmatpush2.bf16.msra.mxu0 %v1883
    %2536 = vmatprep.subr.bf16.mxu0 0
    %2537 = vmatpush2.bf16.msra.mxu0 %v1882
    %2538 = vmatprep.mubr.bf16.mxu0 %v230
    %2539 = vmatmul.mubr.bf16.gmra.mxu0 %v229
    %v2540 = vpop.f32.mrf.mxu0
    %v2541 = vadd.f32 %v2501, %v2540
    %v2542 = vpop.f32.mrf.mxu0
    %v2543 = vpop.f32.mrf.mxu0
    %v2544 = vpop.f32.mrf.mxu0
    %2545 = vdwg.mxu0
    %2546 = vmatprep.subr.bf16.mxu0 0
    %2547 = vmatpush1.bf16.msra.mxu0 %v1897
    %2548 = vmatprep.subr.bf16.mxu0 0
    %2549 = vmatpush1.bf16.msra.mxu0 %v1896
    %2550 = vmatprep.subr.bf16.mxu0 0
    %2551 = vmatpush1.bf16.msra.mxu0 %v1895
    %2552 = vmatprep.subr.bf16.mxu0 0
    %2553 = vmatpush1.bf16.msra.mxu0 %v1894
    %2554 = vmatprep.subr.bf16.mxu0 0
    %2555 = vmatpush1.bf16.msra.mxu0 %v1893
    %2556 = vmatprep.subr.bf16.mxu0 0
    %2557 = vmatpush1.bf16.msra.mxu0 %v1892
    %2558 = vmatprep.subr.bf16.mxu0 0
    %2559 = vmatpush1.bf16.msra.mxu0 %v1891
    %2560 = vmatprep.subr.bf16.mxu0 0
    %2561 = vmatpush1.bf16.msra.mxu0 %v1890
    %2562 = vmatprep.subr.bf16.mxu0 0
    %2563 = vmatpush2.bf16.msra.mxu0 %v1905
    %2564 = vmatprep.subr.bf16.mxu0 0
    %2565 = vmatpush2.bf16.msra.mxu0 %v1904
    %2566 = vmatprep.subr.bf16.mxu0 0
    %2567 = vmatpush2.bf16.msra.mxu0 %v1903
    %2568 = vmatprep.subr.bf16.mxu0 0
    %2569 = vmatpush2.bf16.msra.mxu0 %v1902
    %2570 = vmatprep.subr.bf16.mxu0 0
    %2571 = vmatpush2.bf16.msra.mxu0 %v1901
    %2572 = vmatprep.subr.bf16.mxu0 0
    %2573 = vmatpush2.bf16.msra.mxu0 %v1900
    %2574 = vmatprep.subr.bf16.mxu0 0
    %2575 = vmatpush2.bf16.msra.mxu0 %v1899
    %2576 = vmatprep.subr.bf16.mxu0 0
    %2577 = vmatpush2.bf16.msra.mxu0 %v1898
    %2578 = vmatprep.mubr.bf16.mxu0 %v232
    %2579 = vmatmul.mubr.bf16.gmra.mxu0 %v231
    %v2580 = vpop.f32.mrf.mxu0
    %v2581 = vadd.f32 %v2541, %v2580
    %v2582 = vpop.f32.mrf.mxu0
    %v2583 = vpop.f32.mrf.mxu0
    %v2584 = vpop.f32.mrf.mxu0
    %2585 = vdwg.mxu0
    %2586 = vmatprep.subr.bf16.mxu0 0
    %2587 = vmatpush1.bf16.msra.mxu0 %v1913
    %2588 = vmatprep.subr.bf16.mxu0 0
    %2589 = vmatpush1.bf16.msra.mxu0 %v1912
    %2590 = vmatprep.subr.bf16.mxu0 0
    %2591 = vmatpush1.bf16.msra.mxu0 %v1911
    %2592 = vmatprep.subr.bf16.mxu0 0
    %2593 = vmatpush1.bf16.msra.mxu0 %v1910
    %2594 = vmatprep.subr.bf16.mxu0 0
    %2595 = vmatpush1.bf16.msra.mxu0 %v1909
    %2596 = vmatprep.subr.bf16.mxu0 0
    %2597 = vmatpush1.bf16.msra.mxu0 %v1908
    %2598 = vmatprep.subr.bf16.mxu0 0
    %2599 = vmatpush1.bf16.msra.mxu0 %v1907
    %2600 = vmatprep.subr.bf16.mxu0 0
    %2601 = vmatpush1.bf16.msra.mxu0 %v1906
    %2602 = vmatprep.subr.bf16.mxu0 0
    %2603 = vmatpush2.bf16.msra.mxu0 %v1921
    %2604 = vmatprep.subr.bf16.mxu0 0
    %2605 = vmatpush2.bf16.msra.mxu0 %v1920
    %2606 = vmatprep.subr.bf16.mxu0 0
    %2607 = vmatpush2.bf16.msra.mxu0 %v1919
    %2608 = vmatprep.subr.bf16.mxu0 0
    %2609 = vmatpush2.bf16.msra.mxu0 %v1918
    %2610 = vmatprep.subr.bf16.mxu0 0
    %2611 = vmatpush2.bf16.msra.mxu0 %v1917
    %2612 = vmatprep.subr.bf16.mxu0 0
    %2613 = vmatpush2.bf16.msra.mxu0 %v1916
    %2614 = vmatprep.subr.bf16.mxu0 0
    %2615 = vmatpush2.bf16.msra.mxu0 %v1915
    %2616 = vmatprep.subr.bf16.mxu0 0
    %2617 = vmatpush2.bf16.msra.mxu0 %v1914
    %2618 = vmatprep.mubr.bf16.mxu0 %v234
    %2619 = vmatmul.mubr.bf16.gmra.mxu0 %v233
    %v2620 = vpop.f32.mrf.mxu0
    %v2621 = vadd.f32 %v2581, %v2620
    %v2622 = vpop.f32.mrf.mxu0
    %v2623 = vpop.f32.mrf.mxu0
    %v2624 = vpop.f32.mrf.mxu0
    %2625 = vdwg.mxu0
    %2626 = vmatprep.subr.bf16.mxu0 0
    %2627 = vmatpush1.bf16.msra.mxu0 %v1929
    %2628 = vmatprep.subr.bf16.mxu0 0
    %2629 = vmatpush1.bf16.msra.mxu0 %v1928
    %2630 = vmatprep.subr.bf16.mxu0 0
    %2631 = vmatpush1.bf16.msra.mxu0 %v1927
    %2632 = vmatprep.subr.bf16.mxu0 0
    %2633 = vmatpush1.bf16.msra.mxu0 %v1926
    %2634 = vmatprep.subr.bf16.mxu0 0
    %2635 = vmatpush1.bf16.msra.mxu0 %v1925
    %2636 = vmatprep.subr.bf16.mxu0 0
    %2637 = vmatpush1.bf16.msra.mxu0 %v1924
    %2638 = vmatprep.subr.bf16.mxu0 0
    %2639 = vmatpush1.bf16.msra.mxu0 %v1923
    %2640 = vmatprep.subr.bf16.mxu0 0
    %2641 = vmatpush1.bf16.msra.mxu0 %v1922
    %2642 = vmatprep.subr.bf16.mxu0 0
    %2643 = vmatpush2.bf16.msra.mxu0 %v1937
    %2644 = vmatprep.subr.bf16.mxu0 0
    %2645 = vmatpush2.bf16.msra.mxu0 %v1936
    %2646 = vmatprep.subr.bf16.mxu0 0
    %2647 = vmatpush2.bf16.msra.mxu0 %v1935
    %2648 = vmatprep.subr.bf16.mxu0 0
    %2649 = vmatpush2.bf16.msra.mxu0 %v1934
    %2650 = vmatprep.subr.bf16.mxu0 0
    %2651 = vmatpush2.bf16.msra.mxu0 %v1933
    %2652 = vmatprep.subr.bf16.mxu0 0
    %2653 = vmatpush2.bf16.msra.mxu0 %v1932
    %2654 = vmatprep.subr.bf16.mxu0 0
    %2655 = vmatpush2.bf16.msra.mxu0 %v1931
    %2656 = vmatprep.subr.bf16.mxu0 0
    %2657 = vmatpush2.bf16.msra.mxu0 %v1930
    %2658 = vmatprep.mubr.bf16.mxu0 %v236
    %2659 = vmatmul.mubr.bf16.gmra.mxu0 %v235
    %v2660 = vpop.f32.mrf.mxu0
    %v2661 = vadd.f32 %v2621, %v2660
    %v2662 = vpop.f32.mrf.mxu0
    %v2663 = vpop.f32.mrf.mxu0
    %v2664 = vpop.f32.mrf.mxu0
    %2665 = vdwg.mxu0
    %2666 = vmatprep.subr.bf16.mxu0 0
    %2667 = vmatpush1.bf16.msra.mxu0 %v1945
    %2668 = vmatprep.subr.bf16.mxu0 0
    %2669 = vmatpush1.bf16.msra.mxu0 %v1944
    %2670 = vmatprep.subr.bf16.mxu0 0
    %2671 = vmatpush1.bf16.msra.mxu0 %v1943
    %2672 = vmatprep.subr.bf16.mxu0 0
    %2673 = vmatpush1.bf16.msra.mxu0 %v1942
    %2674 = vmatprep.subr.bf16.mxu0 0
    %2675 = vmatpush1.bf16.msra.mxu0 %v1941
    %2676 = vmatprep.subr.bf16.mxu0 0
    %2677 = vmatpush1.bf16.msra.mxu0 %v1940
    %2678 = vmatprep.subr.bf16.mxu0 0
    %2679 = vmatpush1.bf16.msra.mxu0 %v1939
    %2680 = vmatprep.subr.bf16.mxu0 0
    %2681 = vmatpush1.bf16.msra.mxu0 %v1938
    %2682 = vmatprep.subr.bf16.mxu0 0
    %2683 = vmatpush2.bf16.msra.mxu0 %v1953
    %2684 = vmatprep.subr.bf16.mxu0 0
    %2685 = vmatpush2.bf16.msra.mxu0 %v1952
    %2686 = vmatprep.subr.bf16.mxu0 0
    %2687 = vmatpush2.bf16.msra.mxu0 %v1951
    %2688 = vmatprep.subr.bf16.mxu0 0
    %2689 = vmatpush2.bf16.msra.mxu0 %v1950
    %2690 = vmatprep.subr.bf16.mxu0 0
    %2691 = vmatpush2.bf16.msra.mxu0 %v1949
    %2692 = vmatprep.subr.bf16.mxu0 0
    %2693 = vmatpush2.bf16.msra.mxu0 %v1948
    %2694 = vmatprep.subr.bf16.mxu0 0
    %2695 = vmatpush2.bf16.msra.mxu0 %v1947
    %2696 = vmatprep.subr.bf16.mxu0 0
    %2697 = vmatpush2.bf16.msra.mxu0 %v1946
    %2698 = vmatprep.mubr.bf16.mxu0 %v238
    %2699 = vmatmul.mubr.bf16.gmra.mxu0 %v237
    %v2700 = vpop.f32.mrf.mxu0
    %v2701 = vadd.f32 %v2661, %v2700
    %v2702 = vpop.f32.mrf.mxu0
    %v2703 = vpop.f32.mrf.mxu0
    %v2704 = vpop.f32.mrf.mxu0
    %2705 = vdwg.mxu0
    %2706 = vmatprep.subr.bf16.mxu0 0
    %2707 = vmatpush1.bf16.msra.mxu0 %v1961
    %2708 = vmatprep.subr.bf16.mxu0 0
    %2709 = vmatpush1.bf16.msra.mxu0 %v1960
    %2710 = vmatprep.subr.bf16.mxu0 0
    %2711 = vmatpush1.bf16.msra.mxu0 %v1959
    %2712 = vmatprep.subr.bf16.mxu0 0
    %2713 = vmatpush1.bf16.msra.mxu0 %v1958
    %2714 = vmatprep.subr.bf16.mxu0 0
    %2715 = vmatpush1.bf16.msra.mxu0 %v1957
    %2716 = vmatprep.subr.bf16.mxu0 0
    %2717 = vmatpush1.bf16.msra.mxu0 %v1956
    %2718 = vmatprep.subr.bf16.mxu0 0
    %2719 = vmatpush1.bf16.msra.mxu0 %v1955
    %2720 = vmatprep.subr.bf16.mxu0 0
    %2721 = vmatpush1.bf16.msra.mxu0 %v1954
    %2722 = vmatprep.subr.bf16.mxu0 0
    %2723 = vmatpush2.bf16.msra.mxu0 %v1969
    %2724 = vmatprep.subr.bf16.mxu0 0
    %2725 = vmatpush2.bf16.msra.mxu0 %v1968
    %2726 = vmatprep.subr.bf16.mxu0 0
    %2727 = vmatpush2.bf16.msra.mxu0 %v1967
    %2728 = vmatprep.subr.bf16.mxu0 0
    %2729 = vmatpush2.bf16.msra.mxu0 %v1966
    %2730 = vmatprep.subr.bf16.mxu0 0
    %2731 = vmatpush2.bf16.msra.mxu0 %v1965
    %2732 = vmatprep.subr.bf16.mxu0 0
    %2733 = vmatpush2.bf16.msra.mxu0 %v1964
    %2734 = vmatprep.subr.bf16.mxu0 0
    %2735 = vmatpush2.bf16.msra.mxu0 %v1963
    %2736 = vmatprep.subr.bf16.mxu0 0
    %2737 = vmatpush2.bf16.msra.mxu0 %v1962
    %2738 = vmatprep.mubr.bf16.mxu0 %v240
    %2739 = vmatmul.mubr.bf16.gmra.mxu0 %v239
    %v2740 = vpop.f32.mrf.mxu0
    %v2741 = vadd.f32 %v2701, %v2740
    %v2742 = vpop.f32.mrf.mxu0
    %v2743 = vpop.f32.mrf.mxu0
    %v2744 = vpop.f32.mrf.mxu0
    %2745 = vdwg.mxu0
    %2746 = vmatprep.subr.bf16.mxu0 0
    %2747 = vmatpush1.bf16.msra.mxu0 %v1977
    %2748 = vmatprep.subr.bf16.mxu0 0
    %2749 = vmatpush1.bf16.msra.mxu0 %v1976
    %2750 = vmatprep.subr.bf16.mxu0 0
    %2751 = vmatpush1.bf16.msra.mxu0 %v1975
    %2752 = vmatprep.subr.bf16.mxu0 0
    %2753 = vmatpush1.bf16.msra.mxu0 %v1974
    %2754 = vmatprep.subr.bf16.mxu0 0
    %2755 = vmatpush1.bf16.msra.mxu0 %v1973
    %2756 = vmatprep.subr.bf16.mxu0 0
    %2757 = vmatpush1.bf16.msra.mxu0 %v1972
    %2758 = vmatprep.subr.bf16.mxu0 0
    %2759 = vmatpush1.bf16.msra.mxu0 %v1971
    %2760 = vmatprep.subr.bf16.mxu0 0
    %2761 = vmatpush1.bf16.msra.mxu0 %v1970
    %2762 = vmatprep.subr.bf16.mxu0 0
    %2763 = vmatpush2.bf16.msra.mxu0 %v1985
    %2764 = vmatprep.subr.bf16.mxu0 0
    %2765 = vmatpush2.bf16.msra.mxu0 %v1984
    %2766 = vmatprep.subr.bf16.mxu0 0
    %2767 = vmatpush2.bf16.msra.mxu0 %v1983
    %2768 = vmatprep.subr.bf16.mxu0 0
    %2769 = vmatpush2.bf16.msra.mxu0 %v1982
    %2770 = vmatprep.subr.bf16.mxu0 0
    %2771 = vmatpush2.bf16.msra.mxu0 %v1981
    %2772 = vmatprep.subr.bf16.mxu0 0
    %2773 = vmatpush2.bf16.msra.mxu0 %v1980
    %2774 = vmatprep.subr.bf16.mxu0 0
    %2775 = vmatpush2.bf16.msra.mxu0 %v1979
    %2776 = vmatprep.subr.bf16.mxu0 0
    %2777 = vmatpush2.bf16.msra.mxu0 %v1978
    %2778 = vmatprep.mubr.bf16.mxu0 %v242
    %2779 = vmatmul.mubr.bf16.gmra.mxu0 %v241
    %v2780 = vpop.f32.mrf.mxu0
    %v2781 = vadd.f32 %v2741, %v2780
    %v2782 = vpop.f32.mrf.mxu0
    %v2783 = vpop.f32.mrf.mxu0
    %v2784 = vpop.f32.mrf.mxu0
    %2785 = vdwg.mxu0
    %2786 = vmatprep.subr.bf16.mxu0 0
    %2787 = vmatpush1.bf16.msra.mxu0 %v1993
    %2788 = vmatprep.subr.bf16.mxu0 0
    %2789 = vmatpush1.bf16.msra.mxu0 %v1992
    %2790 = vmatprep.subr.bf16.mxu0 0
    %2791 = vmatpush1.bf16.msra.mxu0 %v1991
    %2792 = vmatprep.subr.bf16.mxu0 0
    %2793 = vmatpush1.bf16.msra.mxu0 %v1990
    %2794 = vmatprep.subr.bf16.mxu0 0
    %2795 = vmatpush1.bf16.msra.mxu0 %v1989
    %2796 = vmatprep.subr.bf16.mxu0 0
    %2797 = vmatpush1.bf16.msra.mxu0 %v1988
    %2798 = vmatprep.subr.bf16.mxu0 0
    %2799 = vmatpush1.bf16.msra.mxu0 %v1987
    %2800 = vmatprep.subr.bf16.mxu0 0
    %2801 = vmatpush1.bf16.msra.mxu0 %v1986
    %2802 = vmatprep.subr.bf16.mxu0 0
    %2803 = vmatpush2.bf16.msra.mxu0 %v2001
    %2804 = vmatprep.subr.bf16.mxu0 0
    %2805 = vmatpush2.bf16.msra.mxu0 %v2000
    %2806 = vmatprep.subr.bf16.mxu0 0
    %2807 = vmatpush2.bf16.msra.mxu0 %v1999
    %2808 = vmatprep.subr.bf16.mxu0 0
    %2809 = vmatpush2.bf16.msra.mxu0 %v1998
    %2810 = vmatprep.subr.bf16.mxu0 0
    %2811 = vmatpush2.bf16.msra.mxu0 %v1997
    %2812 = vmatprep.subr.bf16.mxu0 0
    %2813 = vmatpush2.bf16.msra.mxu0 %v1996
    %2814 = vmatprep.subr.bf16.mxu0 0
    %2815 = vmatpush2.bf16.msra.mxu0 %v1995
    %2816 = vmatprep.subr.bf16.mxu0 0
    %2817 = vmatpush2.bf16.msra.mxu0 %v1994
    %2818 = vmatprep.mubr.bf16.mxu0 %v244
    %2819 = vmatmul.mubr.bf16.gmra.mxu0 %v243
    %v2820 = vpop.f32.mrf.mxu0
    %v2821 = vadd.f32 %v2781, %v2820
    %v2822 = vpop.f32.mrf.mxu0
    %v2823 = vpop.f32.mrf.mxu0
    %v2824 = vpop.f32.mrf.mxu0
    %2825 = vdwg.mxu0
    %2826 = vmatprep.subr.bf16.mxu0 0
    %2827 = vmatpush1.bf16.msra.mxu0 %v2009
    %2828 = vmatprep.subr.bf16.mxu0 0
    %2829 = vmatpush1.bf16.msra.mxu0 %v2008
    %2830 = vmatprep.subr.bf16.mxu0 0
    %2831 = vmatpush1.bf16.msra.mxu0 %v2007
    %2832 = vmatprep.subr.bf16.mxu0 0
    %2833 = vmatpush1.bf16.msra.mxu0 %v2006
    %2834 = vmatprep.subr.bf16.mxu0 0
    %2835 = vmatpush1.bf16.msra.mxu0 %v2005
    %2836 = vmatprep.subr.bf16.mxu0 0
    %2837 = vmatpush1.bf16.msra.mxu0 %v2004
    %2838 = vmatprep.subr.bf16.mxu0 0
    %2839 = vmatpush1.bf16.msra.mxu0 %v2003
    %2840 = vmatprep.subr.bf16.mxu0 0
    %2841 = vmatpush1.bf16.msra.mxu0 %v2002
    %2842 = vmatprep.subr.bf16.mxu0 0
    %2843 = vmatpush2.bf16.msra.mxu0 %v2017
    %2844 = vmatprep.subr.bf16.mxu0 0
    %2845 = vmatpush2.bf16.msra.mxu0 %v2016
    %2846 = vmatprep.subr.bf16.mxu0 0
    %2847 = vmatpush2.bf16.msra.mxu0 %v2015
    %2848 = vmatprep.subr.bf16.mxu0 0
    %2849 = vmatpush2.bf16.msra.mxu0 %v2014
    %2850 = vmatprep.subr.bf16.mxu0 0
    %2851 = vmatpush2.bf16.msra.mxu0 %v2013
    %2852 = vmatprep.subr.bf16.mxu0 0
    %2853 = vmatpush2.bf16.msra.mxu0 %v2012
    %2854 = vmatprep.subr.bf16.mxu0 0
    %2855 = vmatpush2.bf16.msra.mxu0 %v2011
    %2856 = vmatprep.subr.bf16.mxu0 0
    %2857 = vmatpush2.bf16.msra.mxu0 %v2010
    %2858 = vmatprep.mubr.bf16.mxu0 %v246
    %2859 = vmatmul.mubr.bf16.gmra.mxu0 %v245
    %v2860 = vpop.f32.mrf.mxu0
    %v2861 = vadd.f32 %v2821, %v2860
    %v2862 = vpop.f32.mrf.mxu0
    %v2863 = vpop.f32.mrf.mxu0
    %v2864 = vpop.f32.mrf.mxu0
    %2865 = vdwg.mxu0
    %2866 = vmatprep.subr.bf16.mxu0 0
    %2867 = vmatpush1.bf16.msra.mxu0 %v2025
    %2868 = vmatprep.subr.bf16.mxu0 0
    %2869 = vmatpush1.bf16.msra.mxu0 %v2024
    %2870 = vmatprep.subr.bf16.mxu0 0
    %2871 = vmatpush1.bf16.msra.mxu0 %v2023
    %2872 = vmatprep.subr.bf16.mxu0 0
    %2873 = vmatpush1.bf16.msra.mxu0 %v2022
    %2874 = vmatprep.subr.bf16.mxu0 0
    %2875 = vmatpush1.bf16.msra.mxu0 %v2021
    %2876 = vmatprep.subr.bf16.mxu0 0
    %2877 = vmatpush1.bf16.msra.mxu0 %v2020
    %2878 = vmatprep.subr.bf16.mxu0 0
    %2879 = vmatpush1.bf16.msra.mxu0 %v2019
    %2880 = vmatprep.subr.bf16.mxu0 0
    %2881 = vmatpush1.bf16.msra.mxu0 %v2018
    %2882 = vmatprep.subr.bf16.mxu0 0
    %2883 = vmatpush2.bf16.msra.mxu0 %v2033
    %2884 = vmatprep.subr.bf16.mxu0 0
    %2885 = vmatpush2.bf16.msra.mxu0 %v2032
    %2886 = vmatprep.subr.bf16.mxu0 0
    %2887 = vmatpush2.bf16.msra.mxu0 %v2031
    %2888 = vmatprep.subr.bf16.mxu0 0
    %2889 = vmatpush2.bf16.msra.mxu0 %v2030
    %2890 = vmatprep.subr.bf16.mxu0 0
    %2891 = vmatpush2.bf16.msra.mxu0 %v2029
    %2892 = vmatprep.subr.bf16.mxu0 0
    %2893 = vmatpush2.bf16.msra.mxu0 %v2028
    %2894 = vmatprep.subr.bf16.mxu0 0
    %2895 = vmatpush2.bf16.msra.mxu0 %v2027
    %2896 = vmatprep.subr.bf16.mxu0 0
    %2897 = vmatpush2.bf16.msra.mxu0 %v2026
    %2898 = vmatprep.mubr.bf16.mxu0 %v248
    %2899 = vmatmul.mubr.bf16.gmra.mxu0 %v247
    %v2900 = vpop.f32.mrf.mxu0
    %v2901 = vadd.f32 %v2861, %v2900
    %v2902 = vpop.f32.mrf.mxu0
    %v2903 = vpop.f32.mrf.mxu0
    %v2904 = vpop.f32.mrf.mxu0
    %2905 = vdwg.mxu0
    %2906 = vmatprep.subr.bf16.mxu0 0
    %2907 = vmatpush1.bf16.msra.mxu0 %v2041
    %2908 = vmatprep.subr.bf16.mxu0 0
    %2909 = vmatpush1.bf16.msra.mxu0 %v2040
    %2910 = vmatprep.subr.bf16.mxu0 0
    %2911 = vmatpush1.bf16.msra.mxu0 %v2039
    %2912 = vmatprep.subr.bf16.mxu0 0
    %2913 = vmatpush1.bf16.msra.mxu0 %v2038
    %2914 = vmatprep.subr.bf16.mxu0 0
    %2915 = vmatpush1.bf16.msra.mxu0 %v2037
    %2916 = vmatprep.subr.bf16.mxu0 0
    %2917 = vmatpush1.bf16.msra.mxu0 %v2036
    %2918 = vmatprep.subr.bf16.mxu0 0
    %2919 = vmatpush1.bf16.msra.mxu0 %v2035
    %2920 = vmatprep.subr.bf16.mxu0 0
    %2921 = vmatpush1.bf16.msra.mxu0 %v2034
    %2922 = vmatprep.subr.bf16.mxu0 0
    %2923 = vmatpush2.bf16.msra.mxu0 %v2049
    %2924 = vmatprep.subr.bf16.mxu0 0
    %2925 = vmatpush2.bf16.msra.mxu0 %v2048
    %2926 = vmatprep.subr.bf16.mxu0 0
    %2927 = vmatpush2.bf16.msra.mxu0 %v2047
    %2928 = vmatprep.subr.bf16.mxu0 0
    %2929 = vmatpush2.bf16.msra.mxu0 %v2046
    %2930 = vmatprep.subr.bf16.mxu0 0
    %2931 = vmatpush2.bf16.msra.mxu0 %v2045
    %2932 = vmatprep.subr.bf16.mxu0 0
    %2933 = vmatpush2.bf16.msra.mxu0 %v2044
    %2934 = vmatprep.subr.bf16.mxu0 0
    %2935 = vmatpush2.bf16.msra.mxu0 %v2043
    %2936 = vmatprep.subr.bf16.mxu0 0
    %2937 = vmatpush2.bf16.msra.mxu0 %v2042
    %2938 = vmatprep.mubr.bf16.mxu0 %v250
    %2939 = vmatmul.mubr.bf16.gmra.mxu0 %v249
    %v2940 = vpop.f32.mrf.mxu0
    %v2941 = vadd.f32 %v2901, %v2940
    %v2942 = vpop.f32.mrf.mxu0
    %v2943 = vpop.f32.mrf.mxu0
    %v2944 = vpop.f32.mrf.mxu0
    %2945 = vdwg.mxu0
    %v2946 = vmax.f32 %v2941, 0.0
    %v2947 = vld [vmem:[%s3] sm:$0xff]
    %v2948 = vld [vmem:[%s3 + $0x8] sm:$0xff]
    %v2949 = vld [vmem:[%s3 + $0x10] sm:$0xff]
    %v2950 = vld [vmem:[%s3 + $0x18] sm:$0xff]
    %v2951 = vld [vmem:[%s3 + $0x20] sm:$0xff]
    %v2952 = vld [vmem:[%s3 + $0x28] sm:$0xff]
    %v2953 = vld [vmem:[%s3 + $0x30] sm:$0xff]
    %v2954 = vld [vmem:[%s3 + $0x38] sm:$0xff]
    %v2955 = vld [vmem:[%s3 + $0x40] sm:$0xff]
    %v2956 = vld [vmem:[%s3 + $0x48] sm:$0xff]
    %v2957 = vld [vmem:[%s3 + $0x50] sm:$0xff]
    %v2958 = vld [vmem:[%s3 + $0x58] sm:$0xff]
    %v2959 = vld [vmem:[%s3 + $0x60] sm:$0xff]
    %v2960 = vld [vmem:[%s3 + $0x68] sm:$0xff]
    %v2961 = vld [vmem:[%s3 + $0x70] sm:$0xff]
    %v2962 = vld [vmem:[%s3 + $0x78] sm:$0xff]
    %v2963 = vld [vmem:[#allocation2] sm:$0x1]
    %v2965 = vlaneseq
    %v2966 = vshrl.u32 %v2965, 7
    %v2967 = vsub.s32 0, %v2966
    %v2968 = vrot.slane %v2963, %v2967
    %2970 = vmatprep.subr.mxu0 0.0
    %2971 = vmatpush1.msra.mxu0 %v2962
    %2972 = vmatprep.subr.mxu0 0.0
    %2973 = vmatpush1.msra.mxu0 %v2961
    %2974 = vmatprep.subr.mxu0 0.0
    %2975 = vmatpush1.msra.mxu0 %v2960
    %2976 = vmatprep.subr.mxu0 0.0
    %2977 = vmatpush1.msra.mxu0 %v2959
    %2978 = vmatprep.subr.mxu0 0.0
    %2979 = vmatpush1.msra.mxu0 %v2958
    %2980 = vmatprep.subr.mxu0 0.0
    %2981 = vmatpush1.msra.mxu0 %v2957
    %2982 = vmatprep.subr.mxu0 0.0
    %2983 = vmatpush1.msra.mxu0 %v2956
    %2984 = vmatprep.subr.mxu0 0.0
    %2985 = vmatpush1.msra.mxu0 %v2955
    %2986 = vmatprep.subr.mxu0 0.0
    %2987 = vmatpush1.msra.mxu0 %v2954
    %2988 = vmatprep.subr.mxu0 0.0
    %2989 = vmatpush1.msra.mxu0 %v2953
    %2990 = vmatprep.subr.mxu0 0.0
    %2991 = vmatpush1.msra.mxu0 %v2952
    %2992 = vmatprep.subr.mxu0 0.0
    %2993 = vmatpush1.msra.mxu0 %v2951
    %2994 = vmatprep.subr.mxu0 0.0
    %2995 = vmatpush1.msra.mxu0 %v2950
    %2996 = vmatprep.subr.mxu0 0.0
    %2997 = vmatpush1.msra.mxu0 %v2949
    %2998 = vmatprep.subr.mxu0 0.0
    %2999 = vmatpush1.msra.mxu0 %v2948
    %3000 = vmatprep.subr.mxu0 0.0
    %3001 = vmatpush1.msra.mxu0 %v2947
    %3002 = vmatprep.subr.mxu0 0.0
    %3003 = vmatpush2.msra.mxu0 0.0
    %3004 = vmatprep.subr.mxu0 0.0
    %3005 = vmatpush2.msra.mxu0 0.0
    %3006 = vmatprep.subr.mxu0 0.0
    %3007 = vmatpush2.msra.mxu0 0.0
    %3008 = vmatprep.subr.mxu0 0.0
    %3009 = vmatpush2.msra.mxu0 0.0
    %3010 = vmatprep.subr.mxu0 0.0
    %3011 = vmatpush2.msra.mxu0 0.0
    %3012 = vmatprep.subr.mxu0 0.0
    %3013 = vmatpush2.msra.mxu0 0.0
    %3014 = vmatprep.subr.mxu0 0.0
    %3015 = vmatpush2.msra.mxu0 0.0
    %3016 = vmatprep.subr.mxu0 0.0
    %3017 = vmatpush2.msra.mxu0 0.0
    %3018 = vmatprep.subr.mxu0 0.0
    %3019 = vmatpush2.msra.mxu0 0.0
    %3020 = vmatprep.subr.mxu0 0.0
    %3021 = vmatpush2.msra.mxu0 0.0
    %3022 = vmatprep.subr.mxu0 0.0
    %3023 = vmatpush2.msra.mxu0 0.0
    %3024 = vmatprep.subr.mxu0 0.0
    %3025 = vmatpush2.msra.mxu0 0.0
    %3026 = vmatprep.subr.mxu0 0.0
    %3027 = vmatpush2.msra.mxu0 0.0
    %3028 = vmatprep.subr.mxu0 0.0
    %3029 = vmatpush2.msra.mxu0 0.0
    %3030 = vmatprep.subr.mxu0 0.0
    %3031 = vmatpush2.msra.mxu0 0.0
    %3032 = vmatprep.subr.mxu0 0.0
    %3033 = vmatpush2.msra.mxu0 0.0
    %3034 = vmatprep.mubr.f32.mxu0 0.0
    %3035 = vmatmul.mubr.f32.gmra.mxu0 %v2946
    %v3036 = vpop.f32.mrf.mxu0
    %v3037 = vadd.f32 %v2968, %v3036
    %v3038 = vpop.f32.mrf.mxu0
    %3039 = vdwg.mxu0
    %vm3040 = vcmask 1024
    %3041 = vst.msk [vmem:[%s5] sm:$0x3] %vm3040, %v3037
    // Predicated region
    $region26: #{mlp_mixer_forward.3} parent=1 // pred_check
      _
    $region27: #{mlp_mixer_forward.3} parent=1 // pred_check_branch
      %3043 = sbr.rel (0) target = $region29
    $region28: #{mlp_mixer_forward.3} parent=1 // pred_region
      _
    $region29: #{mlp_mixer_forward.3} parent=1 // pred_fallthru
      _
    // Predicated region
    $region30: #{mlp_mixer_forward.3} parent=1 // pred_check
      _
    $region31: #{mlp_mixer_forward.3} parent=1 // pred_check_branch
      %3045 = sbr.rel (0) target = $region33
    $region32: #{mlp_mixer_forward.3} parent=1 // pred_region
      _
    $region33: #{mlp_mixer_forward.3} parent=1 // pred_fallthru
      _
    %3046 = vsyncpa [#allocation4], 1

</llo_original>
